<compile_context>
chip_gen: v6e
topology: v6e:2x2x1
jax: 0.10.0
libtpu: 0.0.40
codegen_flags: <defaults>
</compile_context>

<pallas_src>
import functools

import jax
import jax.numpy as jnp
import numpy as np
from jax import lax
from jax.experimental import pallas as pl
from jax.experimental.pallas import tpu as pltpu


# ------------------------------ in-kernel math --------------------------------

def _gelu(x):
    # tanh-form GELU: the tanh runs on the EUP (its own VLIW slot); max abs
    # deviation from the exact erf GELU is ~3e-4.
    c = 0.7978845608028654  # sqrt(2/pi)
    return 0.5 * x * (1.0 + jnp.tanh(c * (x + 0.044715 * (x * x * x))))


def _double_conv_kernel(
    x_ref,                      # (BD, L_in)   f32  rows = (sample, depth)
    m1_ref,                     # (3, L_in,  L_mid)  bf16 block-Toeplitz taps
    m2_ref,                     # (3, L_mid, L_out)  bf16
    sf_ref, sb_ref,             # (BD, BD) f32 sample-blocked depth shifters
    r_ref, rt_ref,              # (B, BD) / (BD, B) f32 per-sample reduce/bcast
    s1_ref, s1t_ref,            # (L_mid, Cmid) / (Cmid, L_mid) f32 one-hots
    s2_ref, s2t_ref,            # (L_out, Cout) / (Cout, L_out)
    g1_ref, b1_ref,             # (1, L_mid) f32 GN1 affine (channel-tiled)
    g2_ref, b2_ref,             # (1, L_out) f32 GN2 affine
    o_ref,                      # (BD, L_out) f32
    *, residual, inv_count, eps,
):
    f32 = jnp.float32
    bf16 = jnp.bfloat16

    x = x_ref[...]                                        # (BD, L_in) f32
    sf, sb = sf_ref[...], sb_ref[...]
    rmat, rtmat = r_ref[...], rt_ref[...]

    def conv(a_f32, m_ref):
        # 3 depth-tap MXU matmuls over the full (BD, K) slab, bf16 in / f32 acc.
        a = a_f32.astype(bf16)
        t0 = jnp.dot(a, m_ref[0], preferred_element_type=f32)
        t1 = jnp.dot(a, m_ref[1], preferred_element_type=f32)
        t2 = jnp.dot(a, m_ref[2], preferred_element_type=f32)
        # Depth shift on the accumulator side: output plane d takes tap-0 from
        # plane d-1 and tap-2 from plane d+1 (zero at sample boundaries).
        return (jnp.dot(sf, t0, preferred_element_type=f32) + t1
                + jnp.dot(sb, t2, preferred_element_type=f32))

    def gnorm(h, sel, selt, gamma, beta):
        # GroupNorm with num_groups == channels, per-sample stats over D*H*W.
        # One-pass sum / sum-of-squares in f32 (activations are O(1) here, so
        # E[x^2]-E[x]^2 cancellation is well below eps).
        rs = jnp.dot(rmat, h, preferred_element_type=f32)        # (B, L)
        rs2 = jnp.dot(rmat, h * h, preferred_element_type=f32)   # (B, L)
        cs = jnp.dot(rs, sel, preferred_element_type=f32)        # (B, C)
        cs2 = jnp.dot(rs2, sel, preferred_element_type=f32)      # (B, C)
        mean = cs * inv_count
        var = cs2 * inv_count - mean * mean
        inv = lax.rsqrt(var + eps)
        # broadcast (B, C) -> (BD, L) with two tiny one-hot matmuls (MXU).
        mean_bd = jnp.dot(rtmat, jnp.dot(mean, selt, preferred_element_type=f32),
                          preferred_element_type=f32)
        inv_bd = jnp.dot(rtmat, jnp.dot(inv, selt, preferred_element_type=f32),
                         preferred_element_type=f32)
        return (h - mean_bd) * inv_bd * gamma + beta

    # conv1 -> GN(Cmid) -> GELU
    h = _gelu(gnorm(conv(x, m1_ref), s1_ref[...], s1t_ref[...],
                    g1_ref[...], b1_ref[...]))
    # conv2 -> GN(Cout)
    y = gnorm(conv(h, m2_ref), s2_ref[...], s2t_ref[...],
              g2_ref[...], b2_ref[...])
    if residual:
        y = _gelu(x + y)          # in_ch == out_ch -> identical lane layout
    o_ref[...] = y.astype(o_ref.dtype)


# ------------------------ host-side constant preparation ----------------------

def _banded_conv_matrices(w, H, W):
    """w: (3, 3, 3, Cin, Cout) -> bf16 (3, H*W*Cin, H*W*Cout) block-Toeplitz
    matrices, one per depth tap, over the UNPADDED flattened (h, w, c) plane.
    Out-of-range (h, w) taps are simply omitted (implicit zero padding)."""
    _, _, _, cin, cout = w.shape
    wn = np.asarray(w, np.float32)
    m = np.zeros((3, H * W * cin, H * W * cout), np.float32)
    for kd in range(3):
        for kh in range(3):
            for kw in range(3):
                blk = wn[kd, kh, kw]                 # (Cin, Cout)
                for ho in range(H):
                    hi = ho + kh - 1
                    if not 0 <= hi < H:
                        continue
                    for wo in range(W):
                        wi = wo + kw - 1
                        if not 0 <= wi < W:
                            continue
                        jin = (hi * W + wi) * cin
                        jout = (ho * W + wo) * cout
                        m[kd, jin:jin + cin, jout:jout + cout] += blk
    return jnp.asarray(m, jnp.bfloat16)


def _channel_onehots(L, C):
    sel = np.zeros((L, C), np.float32)
    sel[np.arange(L), np.arange(L) % C] = 1.0
    return jnp.asarray(sel), jnp.asarray(np.ascontiguousarray(sel.T))


def _tiled_affine(gamma, beta, reps):
    g = np.tile(np.asarray(gamma, np.float32), reps)[None, :]
    b = np.tile(np.asarray(beta, np.float32), reps)[None, :]
    return jnp.asarray(g), jnp.asarray(b)


def _vmem_limit_bytes():
    # ~3/4 of physical VMEM per TensorCore: 48 MiB on v7x, 96 MiB on v5e/v6e.
    try:
        cap = int(pltpu.get_tpu_info().vmem_capacity_bytes)
    except Exception:
        cap = 64 * 1024 * 1024
    return min((cap * 3) // 4, 112 * 1024 * 1024)


def _pick_batch_block(N, D):
    """Samples stacked per grid step.  The matmul M dim is B_blk*D: aim for
    >=256 rows (MXU rows on v6e/v7x; 128 covers v5e) while keeping >=2 grid
    steps when the batch allows it; keep the sublane dim a multiple of 8."""
    divs = [b for b in range(1, N + 1) if N % b == 0 and (b * D) % 8 == 0]
    if not divs:
        return N                     # block == full array is always legal
    for rows, min_steps in ((256, 2), (128, 2), (128, 1)):
        for b in divs:
            if b * D >= rows and N // b >= min_steps:
                return b
    return divs[-1]                  # tiny batch: stack everything


# ----------------------------------- builder ----------------------------------

def make_double_conv(w1, g1, b1, w2, g2, b2, *, D, H, W, residual=False):
    """Does the host-side weight plumbing ONCE per parameter set and returns a
    jitted callable: x[N, Cin, D, H, W] f32 -> [N, Cout, D, H, W] f32."""
    Cin, Cmid = int(w1.shape[3]), int(w1.shape[4])
    Cout = int(w2.shape[4])
    if residual and Cin != Cout:
        raise ValueError("residual DoubleConv requires in_ch == out_ch")
    L_in, L_mid, L_out = H * W * Cin, H * W * Cmid, H * W * Cout

    m1 = _banded_conv_matrices(w1, H, W)        # (3, L_in,  L_mid) bf16
    m2 = _banded_conv_matrices(w2, H, W)        # (3, L_mid, L_out) bf16
    s1, s1t = _channel_onehots(L_mid, Cmid)
    s2, s2t = _channel_onehots(L_out, Cout)
    g1t, b1t = _tiled_affine(g1, b1, H * W)
    g2t, b2t = _tiled_affine(g2, b2, H * W)

    kern = functools.partial(_double_conv_kernel, residual=residual,
                             inv_count=1.0 / float(D * H * W), eps=1e-5)
    vmem_limit = _vmem_limit_bytes()

    def _const(a):
        nd = a.ndim
        return pl.BlockSpec(a.shape, lambda i, _nd=nd: (0,) * _nd,
                            pipeline_mode=pl.Buffered(1))   # single-buffer consts

    @jax.jit
    def apply(x):
        N = x.shape[0]
        assert x.shape == (N, Cin, D, H, W)
        B_blk = _pick_batch_block(N, D)
        BD = B_blk * D
        n_blocks = N // B_blk

        # per-step depth-shift / per-sample reduce-broadcast constants (tiny)
        sf_np = np.zeros((BD, BD), np.float32)
        sb_np = np.zeros((BD, BD), np.float32)
        for r in range(BD):
            if r % D != 0:
                sf_np[r, r - 1] = 1.0        # out plane d <- tap plane d-1
            if r % D != D - 1:
                sb_np[r, r + 1] = 1.0        # out plane d <- tap plane d+1
        r_np = np.zeros((B_blk, BD), np.float32)
        for b in range(B_blk):
            r_np[b, b * D:(b + 1) * D] = 1.0
        sf, sb = jnp.asarray(sf_np), jnp.asarray(sb_np)
        rmat = jnp.asarray(r_np)
        rtmat = jnp.asarray(np.ascontiguousarray(r_np.T))

        # channels-last, plane flattened onto the lane axis (channel fastest)
        xt = jnp.transpose(x, (0, 2, 3, 4, 1)).reshape(N * D, L_in)

        out = pl.pallas_call(
            kern,
            out_shape=jax.ShapeDtypeStruct((N * D, L_out), jnp.float32),
            grid_spec=pltpu.PrefetchScalarGridSpec(
                num_scalar_prefetch=0,
                grid=(n_blocks,),
                in_specs=[
                    pl.BlockSpec((BD, L_in), lambda i: (i, 0)),
                    _const(m1), _const(m2),
                    _const(sf), _const(sb), _const(rmat), _const(rtmat),
                    _const(s1), _const(s1t), _const(s2), _const(s2t),
                    _const(g1t), _const(b1t), _const(g2t), _const(b2t),
                ],
                out_specs=pl.BlockSpec((BD, L_out), lambda i: (i, 0)),
            ),
            compiler_params=pltpu.CompilerParams(
                dimension_semantics=("parallel",),
                vmem_limit_bytes=vmem_limit),
        )(xt, m1, m2, sf, sb, rmat, rtmat, s1, s1t, s2, s2t, g1t, b1t, g2t, b2t)

        out = out.reshape(N, D, H, W, Cout)
        return jnp.transpose(out, (0, 4, 1, 2, 3))           # NCDHW

    return apply


# ----------------------------- pure-JAX reference ------------------------------

def double_conv_ref(x, w1, g1, b1, w2, g2, b2, *, residual=False):
    def conv(h, w):
        w_oidhw = jnp.transpose(w, (4, 3, 0, 1, 2))
        return lax.conv_general_dilated(
            h, w_oidhw, window_strides=(1, 1, 1), padding="SAME",
            dimension_numbers=("NCDHW", "OIDHW", "NCDHW"),
            precision=lax.Precision.HIGHEST)

    def gn(h, g, b):
        mean = h.mean(axis=(2, 3, 4), keepdims=True)
        var = ((h - mean) ** 2).mean(axis=(2, 3, 4), keepdims=True)
        hn = (h - mean) * lax.rsqrt(var + 1e-5)
        return hn * g[None, :, None, None, None] + b[None, :, None, None, None]

    gelu = lambda t: jax.nn.gelu(t, approximate=False)
    h = gelu(gn(conv(x, w1), g1, b1))
    y = gn(conv(h, w2), g2, b2)
    return gelu(x + y) if residual else y


# ------------------------------------ main -------------------------------------

if __name__ == "__main__":
    key = jax.random.PRNGKey(0)
    ks = jax.random.split(key, 12)

    # Kernel uses bf16 MXU inputs + tanh-form GELU; reference is f32 / erf GELU.
    ATOL = RTOL = 3e-2

    # non-residual DoubleConv(in_ch=4, out_ch=8)
    N, Cin, Cmid, Cout = 2, 4, 8, 8
    D = H = W = 8
    x = jax.random.normal(ks[0], (N, Cin, D, H, W), jnp.float32)
    w1 = 0.2 * jax.random.normal(ks[1], (3, 3, 3, Cin, Cmid), jnp.float32)
    g1 = 1.0 + 0.1 * jax.random.normal(ks[2], (Cmid,), jnp.float32)
    b1 = 0.1 * jax.random.normal(ks[3], (Cmid,), jnp.float32)
    w2 = 0.2 * jax.random.normal(ks[4], (3, 3, 3, Cmid, Cout), jnp.float32)
    g2 = 1.0 + 0.1 * jax.random.normal(ks[5], (Cout,), jnp.float32)
    b2 = 0.1 * jax.random.normal(ks[6], (Cout,), jnp.float32)

    f = make_double_conv(w1, g1, b1, w2, g2, b2, D=D, H=H, W=W, residual=False)
    out = jax.block_until_ready(f(x))
    ref = double_conv_ref(x, w1, g1, b1, w2, g2, b2, residual=False)
    assert out.shape == (N, Cout, D, H, W)
    assert jnp.allclose(out, ref, atol=ATOL, rtol=RTOL), \
        float(jnp.max(jnp.abs(out - ref)))

    # residual DoubleConv(in_ch=4, out_ch=4, residual=True)
    Cr = 4
    xr = jax.random.normal(ks[7], (N, Cr, D, H, W), jnp.float32)
    w1r = 0.2 * jax.random.normal(ks[8], (3, 3, 3, Cr, Cr), jnp.float32)
    g1r = 1.0 + 0.1 * jax.random.normal(ks[9], (Cr,), jnp.float32)
    b1r = 0.1 * jax.random.normal(ks[10], (Cr,), jnp.float32)
    w2r = 0.2 * jax.random.normal(ks[11], (3, 3, 3, Cr, Cr), jnp.float32)
    g2r = jnp.ones((Cr,), jnp.float32)
    b2r = jnp.zeros((Cr,), jnp.float32)

    fr = make_double_conv(w1r, g1r, b1r, w2r, g2r, b2r,
                          D=D, H=H, W=W, residual=True)
    out_r = jax.block_until_ready(fr(xr))
    ref_r = double_conv_ref(xr, w1r, g1r, b1r, w2r, g2r, b2r, residual=True)
    assert out_r.shape == (N, Cr, D, H, W)
    assert jnp.allclose(out_r, ref_r, atol=ATOL, rtol=RTOL), \
        float(jnp.max(jnp.abs(out_r - ref_r)))

    print("KERNEL_OK")
</pallas_src>

<mosaic_0001>
module attributes {stable_mosaic.version = 11 : i64} {
  func.func @_double_conv_kernel(%arg0: i32, %arg1: memref<16x256xf32, #tpu.memory_space<vmem>>, %arg2: memref<3x256x512xbf16, #tpu.memory_space<vmem>>, %arg3: memref<3x512x512xbf16, #tpu.memory_space<vmem>>, %arg4: memref<16x16xf32, #tpu.memory_space<vmem>>, %arg5: memref<16x16xf32, #tpu.memory_space<vmem>>, %arg6: memref<2x16xf32, #tpu.memory_space<vmem>>, %arg7: memref<16x2xf32, #tpu.memory_space<vmem>>, %arg8: memref<512x8xf32, #tpu.memory_space<vmem>>, %arg9: memref<8x512xf32, #tpu.memory_space<vmem>>, %arg10: memref<512x8xf32, #tpu.memory_space<vmem>>, %arg11: memref<8x512xf32, #tpu.memory_space<vmem>>, %arg12: memref<1x512xf32, #tpu.memory_space<vmem>>, %arg13: memref<1x512xf32, #tpu.memory_space<vmem>>, %arg14: memref<1x512xf32, #tpu.memory_space<vmem>>, %arg15: memref<1x512xf32, #tpu.memory_space<vmem>>, %arg16: memref<16x512xf32, #tpu.memory_space<vmem>>) attributes {dimension_semantics = [#tpu.dimension_semantics<parallel>], iteration_bounds = array<i64: 1>, scalar_prefetch = 0 : i64, scratch_operands = 0 : i64, tpu.core_type = #tpu.core_type<tc>, window_params = [{transform_indices = @transform_0, window_bounds = array<i64: 16, 256>}, {pipeline_mode = #tpu.pipeline_mode<synchronous>, transform_indices = @transform_1, window_bounds = array<i64: 3, 256, 512>}, {pipeline_mode = #tpu.pipeline_mode<synchronous>, transform_indices = @transform_2, window_bounds = array<i64: 3, 512, 512>}, {pipeline_mode = #tpu.pipeline_mode<synchronous>, transform_indices = @transform_3, window_bounds = array<i64: 16, 16>}, {pipeline_mode = #tpu.pipeline_mode<synchronous>, transform_indices = @transform_4, window_bounds = array<i64: 16, 16>}, {pipeline_mode = #tpu.pipeline_mode<synchronous>, transform_indices = @transform_5, window_bounds = array<i64: 2, 16>}, {pipeline_mode = #tpu.pipeline_mode<synchronous>, transform_indices = @transform_6, window_bounds = array<i64: 16, 2>}, {pipeline_mode = #tpu.pipeline_mode<synchronous>, transform_indices = @transform_7, window_bounds = array<i64: 512, 8>}, {pipeline_mode = #tpu.pipeline_mode<synchronous>, transform_indices = @transform_8, window_bounds = array<i64: 8, 512>}, {pipeline_mode = #tpu.pipeline_mode<synchronous>, transform_indices = @transform_9, window_bounds = array<i64: 512, 8>}, {pipeline_mode = #tpu.pipeline_mode<synchronous>, transform_indices = @transform_10, window_bounds = array<i64: 8, 512>}, {pipeline_mode = #tpu.pipeline_mode<synchronous>, transform_indices = @transform_11, window_bounds = array<i64: 1, 512>}, {pipeline_mode = #tpu.pipeline_mode<synchronous>, transform_indices = @transform_12, window_bounds = array<i64: 1, 512>}, {pipeline_mode = #tpu.pipeline_mode<synchronous>, transform_indices = @transform_13, window_bounds = array<i64: 1, 512>}, {pipeline_mode = #tpu.pipeline_mode<synchronous>, transform_indices = @transform_14, window_bounds = array<i64: 1, 512>}, {transform_indices = @transform_15, window_bounds = array<i64: 16, 512>}]} {
    %c0 = arith.constant 0 : index
    %c0_0 = arith.constant 0 : index
    %0 = vector.load %arg1[%c0, %c0_0] : memref<16x256xf32, #tpu.memory_space<vmem>>, vector<16x256xf32>
    %c0_1 = arith.constant 0 : index
    %c0_2 = arith.constant 0 : index
    %1 = vector.load %arg4[%c0_1, %c0_2] : memref<16x16xf32, #tpu.memory_space<vmem>>, vector<16x16xf32>
    %c0_3 = arith.constant 0 : index
    %c0_4 = arith.constant 0 : index
    %2 = vector.load %arg5[%c0_3, %c0_4] : memref<16x16xf32, #tpu.memory_space<vmem>>, vector<16x16xf32>
    %c0_5 = arith.constant 0 : index
    %c0_6 = arith.constant 0 : index
    %3 = vector.load %arg6[%c0_5, %c0_6] : memref<2x16xf32, #tpu.memory_space<vmem>>, vector<2x16xf32>
    %c0_7 = arith.constant 0 : index
    %c0_8 = arith.constant 0 : index
    %4 = vector.load %arg7[%c0_7, %c0_8] : memref<16x2xf32, #tpu.memory_space<vmem>>, vector<16x2xf32>
    %5 = arith.truncf %0 : vector<16x256xf32> to vector<16x256xbf16>
    %c0_9 = arith.constant 0 : index
    %c0_10 = arith.constant 0 : index
    %c0_11 = arith.constant 0 : index
    %6 = vector.load %arg2[%c0_9, %c0_10, %c0_11] : memref<3x256x512xbf16, #tpu.memory_space<vmem>>, vector<1x256x512xbf16>
    %7 = vector.shape_cast %6 : vector<1x256x512xbf16> to vector<256x512xbf16>
    %cst = arith.constant dense<0.000000e+00> : vector<16x512xf32>
    %8 = tpu.matmul %5, %7, %cst {dimension_numbers = #tpu.dot_dimension_numbers<[1], [0], [0], [1], [0, 0, 1, 1], [], []>} : vector<16x256xbf16>, vector<256x512xbf16>, vector<16x512xf32> -> vector<16x512xf32>
    %c1 = arith.constant 1 : index
    %c0_12 = arith.constant 0 : index
    %c0_13 = arith.constant 0 : index
    %9 = vector.load %arg2[%c1, %c0_12, %c0_13] : memref<3x256x512xbf16, #tpu.memory_space<vmem>>, vector<1x256x512xbf16>
    %10 = vector.shape_cast %9 : vector<1x256x512xbf16> to vector<256x512xbf16>
    %cst_14 = arith.constant dense<0.000000e+00> : vector<16x512xf32>
    %11 = tpu.matmul %5, %10, %cst_14 {dimension_numbers = #tpu.dot_dimension_numbers<[1], [0], [0], [1], [0, 0, 1, 1], [], []>} : vector<16x256xbf16>, vector<256x512xbf16>, vector<16x512xf32> -> vector<16x512xf32>
    %c2 = arith.constant 2 : index
    %c0_15 = arith.constant 0 : index
    %c0_16 = arith.constant 0 : index
    %12 = vector.load %arg2[%c2, %c0_15, %c0_16] : memref<3x256x512xbf16, #tpu.memory_space<vmem>>, vector<1x256x512xbf16>
    %13 = vector.shape_cast %12 : vector<1x256x512xbf16> to vector<256x512xbf16>
    %cst_17 = arith.constant dense<0.000000e+00> : vector<16x512xf32>
    %14 = tpu.matmul %5, %13, %cst_17 {dimension_numbers = #tpu.dot_dimension_numbers<[1], [0], [0], [1], [0, 0, 1, 1], [], []>} : vector<16x256xbf16>, vector<256x512xbf16>, vector<16x512xf32> -> vector<16x512xf32>
    %cst_18 = arith.constant dense<0.000000e+00> : vector<16x512xf32>
    %15 = tpu.matmul %1, %8, %cst_18 {dimension_numbers = #tpu.dot_dimension_numbers<[1], [0], [0], [1], [0, 0, 1, 1], [], []>} : vector<16x16xf32>, vector<16x512xf32>, vector<16x512xf32> -> vector<16x512xf32>
    %16 = arith.addf %15, %11 : vector<16x512xf32>
    %cst_19 = arith.constant dense<0.000000e+00> : vector<16x512xf32>
    %17 = tpu.matmul %2, %14, %cst_19 {dimension_numbers = #tpu.dot_dimension_numbers<[1], [0], [0], [1], [0, 0, 1, 1], [], []>} : vector<16x16xf32>, vector<16x512xf32>, vector<16x512xf32> -> vector<16x512xf32>
    %18 = arith.addf %16, %17 : vector<16x512xf32>
    %c0_20 = arith.constant 0 : index
    %c0_21 = arith.constant 0 : index
    %19 = vector.load %arg8[%c0_20, %c0_21] : memref<512x8xf32, #tpu.memory_space<vmem>>, vector<512x8xf32>
    %c0_22 = arith.constant 0 : index
    %c0_23 = arith.constant 0 : index
    %20 = vector.load %arg9[%c0_22, %c0_23] : memref<8x512xf32, #tpu.memory_space<vmem>>, vector<8x512xf32>
    %c0_24 = arith.constant 0 : index
    %c0_25 = arith.constant 0 : index
    %21 = vector.load %arg12[%c0_24, %c0_25] : memref<1x512xf32, #tpu.memory_space<vmem>>, vector<1x512xf32>
    %c0_26 = arith.constant 0 : index
    %c0_27 = arith.constant 0 : index
    %22 = vector.load %arg13[%c0_26, %c0_27] : memref<1x512xf32, #tpu.memory_space<vmem>>, vector<1x512xf32>
    %cst_28 = arith.constant dense<0.000000e+00> : vector<2x512xf32>
    %23 = tpu.matmul %3, %18, %cst_28 {dimension_numbers = #tpu.dot_dimension_numbers<[1], [0], [0], [1], [0, 0, 1, 1], [], []>} : vector<2x16xf32>, vector<16x512xf32>, vector<2x512xf32> -> vector<2x512xf32>
    %24 = arith.mulf %18, %18 : vector<16x512xf32>
    %cst_29 = arith.constant dense<0.000000e+00> : vector<2x512xf32>
    %25 = tpu.matmul %3, %24, %cst_29 {dimension_numbers = #tpu.dot_dimension_numbers<[1], [0], [0], [1], [0, 0, 1, 1], [], []>} : vector<2x16xf32>, vector<16x512xf32>, vector<2x512xf32> -> vector<2x512xf32>
    %cst_30 = arith.constant dense<0.000000e+00> : vector<2x8xf32>
    %26 = tpu.matmul %23, %19, %cst_30 {dimension_numbers = #tpu.dot_dimension_numbers<[1], [0], [0], [1], [0, 0, 1, 1], [], []>} : vector<2x512xf32>, vector<512x8xf32>, vector<2x8xf32> -> vector<2x8xf32>
    %cst_31 = arith.constant dense<0.000000e+00> : vector<2x8xf32>
    %27 = tpu.matmul %25, %19, %cst_31 {dimension_numbers = #tpu.dot_dimension_numbers<[1], [0], [0], [1], [0, 0, 1, 1], [], []>} : vector<2x512xf32>, vector<512x8xf32>, vector<2x8xf32> -> vector<2x8xf32>
    %cst_32 = arith.constant 0.001953125 : f32
    %28 = vector.broadcast %cst_32 : f32 to vector<2x8xf32>
    %29 = arith.mulf %26, %28 : vector<2x8xf32>
    %cst_33 = arith.constant 0.001953125 : f32
    %30 = vector.broadcast %cst_33 : f32 to vector<2x8xf32>
    %31 = arith.mulf %27, %30 : vector<2x8xf32>
    %32 = arith.mulf %29, %29 : vector<2x8xf32>
    %33 = arith.subf %31, %32 : vector<2x8xf32>
    %cst_34 = arith.constant 9.99999974E-6 : f32
    %34 = vector.broadcast %cst_34 : f32 to vector<2x8xf32>
    %35 = arith.addf %33, %34 : vector<2x8xf32>
    %36 = math.rsqrt %35 : vector<2x8xf32>
    %cst_35 = arith.constant dense<0.000000e+00> : vector<2x512xf32>
    %37 = tpu.matmul %29, %20, %cst_35 {dimension_numbers = #tpu.dot_dimension_numbers<[1], [0], [0], [1], [0, 0, 1, 1], [], []>} : vector<2x8xf32>, vector<8x512xf32>, vector<2x512xf32> -> vector<2x512xf32>
    %cst_36 = arith.constant dense<0.000000e+00> : vector<16x512xf32>
    %38 = tpu.matmul %4, %37, %cst_36 {dimension_numbers = #tpu.dot_dimension_numbers<[1], [0], [0], [1], [0, 0, 1, 1], [], []>} : vector<16x2xf32>, vector<2x512xf32>, vector<16x512xf32> -> vector<16x512xf32>
    %cst_37 = arith.constant dense<0.000000e+00> : vector<2x512xf32>
    %39 = tpu.matmul %36, %20, %cst_37 {dimension_numbers = #tpu.dot_dimension_numbers<[1], [0], [0], [1], [0, 0, 1, 1], [], []>} : vector<2x8xf32>, vector<8x512xf32>, vector<2x512xf32> -> vector<2x512xf32>
    %cst_38 = arith.constant dense<0.000000e+00> : vector<16x512xf32>
    %40 = tpu.matmul %4, %39, %cst_38 {dimension_numbers = #tpu.dot_dimension_numbers<[1], [0], [0], [1], [0, 0, 1, 1], [], []>} : vector<16x2xf32>, vector<2x512xf32>, vector<16x512xf32> -> vector<16x512xf32>
    %41 = arith.subf %18, %38 : vector<16x512xf32>
    %42 = arith.mulf %41, %40 : vector<16x512xf32>
    %43 = vector.broadcast %21 : vector<1x512xf32> to vector<16x512xf32>
    %44 = arith.mulf %42, %43 : vector<16x512xf32>
    %45 = vector.broadcast %22 : vector<1x512xf32> to vector<16x512xf32>
    %46 = arith.addf %44, %45 : vector<16x512xf32>
    %cst_39 = arith.constant 5.000000e-01 : f32
    %47 = vector.broadcast %cst_39 : f32 to vector<16x512xf32>
    %48 = arith.mulf %47, %46 : vector<16x512xf32>
    %49 = arith.mulf %46, %46 : vector<16x512xf32>
    %50 = arith.mulf %49, %46 : vector<16x512xf32>
    %cst_40 = arith.constant 4.471500e-02 : f32
    %51 = vector.broadcast %cst_40 : f32 to vector<16x512xf32>
    %52 = arith.mulf %51, %50 : vector<16x512xf32>
    %53 = arith.addf %46, %52 : vector<16x512xf32>
    %cst_41 = arith.constant 0.797884583 : f32
    %54 = vector.broadcast %cst_41 : f32 to vector<16x512xf32>
    %55 = arith.mulf %54, %53 : vector<16x512xf32>
    %56 = math.tanh %55 : vector<16x512xf32>
    %cst_42 = arith.constant 1.000000e+00 : f32
    %57 = vector.broadcast %cst_42 : f32 to vector<16x512xf32>
    %58 = arith.addf %57, %56 : vector<16x512xf32>
    %59 = arith.mulf %48, %58 : vector<16x512xf32>
    %60 = arith.truncf %59 : vector<16x512xf32> to vector<16x512xbf16>
    %c0_43 = arith.constant 0 : index
    %c0_44 = arith.constant 0 : index
    %c0_45 = arith.constant 0 : index
    %61 = vector.load %arg3[%c0_43, %c0_44, %c0_45] : memref<3x512x512xbf16, #tpu.memory_space<vmem>>, vector<1x512x512xbf16>
    %62 = vector.shape_cast %61 : vector<1x512x512xbf16> to vector<512x512xbf16>
    %cst_46 = arith.constant dense<0.000000e+00> : vector<16x512xf32>
    %63 = tpu.matmul %60, %62, %cst_46 {dimension_numbers = #tpu.dot_dimension_numbers<[1], [0], [0], [1], [0, 0, 1, 1], [], []>} : vector<16x512xbf16>, vector<512x512xbf16>, vector<16x512xf32> -> vector<16x512xf32>
    %c1_47 = arith.constant 1 : index
    %c0_48 = arith.constant 0 : index
    %c0_49 = arith.constant 0 : index
    %64 = vector.load %arg3[%c1_47, %c0_48, %c0_49] : memref<3x512x512xbf16, #tpu.memory_space<vmem>>, vector<1x512x512xbf16>
    %65 = vector.shape_cast %64 : vector<1x512x512xbf16> to vector<512x512xbf16>
    %cst_50 = arith.constant dense<0.000000e+00> : vector<16x512xf32>
    %66 = tpu.matmul %60, %65, %cst_50 {dimension_numbers = #tpu.dot_dimension_numbers<[1], [0], [0], [1], [0, 0, 1, 1], [], []>} : vector<16x512xbf16>, vector<512x512xbf16>, vector<16x512xf32> -> vector<16x512xf32>
    %c2_51 = arith.constant 2 : index
    %c0_52 = arith.constant 0 : index
    %c0_53 = arith.constant 0 : index
    %67 = vector.load %arg3[%c2_51, %c0_52, %c0_53] : memref<3x512x512xbf16, #tpu.memory_space<vmem>>, vector<1x512x512xbf16>
    %68 = vector.shape_cast %67 : vector<1x512x512xbf16> to vector<512x512xbf16>
    %cst_54 = arith.constant dense<0.000000e+00> : vector<16x512xf32>
    %69 = tpu.matmul %60, %68, %cst_54 {dimension_numbers = #tpu.dot_dimension_numbers<[1], [0], [0], [1], [0, 0, 1, 1], [], []>} : vector<16x512xbf16>, vector<512x512xbf16>, vector<16x512xf32> -> vector<16x512xf32>
    %cst_55 = arith.constant dense<0.000000e+00> : vector<16x512xf32>
    %70 = tpu.matmul %1, %63, %cst_55 {dimension_numbers = #tpu.dot_dimension_numbers<[1], [0], [0], [1], [0, 0, 1, 1], [], []>} : vector<16x16xf32>, vector<16x512xf32>, vector<16x512xf32> -> vector<16x512xf32>
    %71 = arith.addf %70, %66 : vector<16x512xf32>
    %cst_56 = arith.constant dense<0.000000e+00> : vector<16x512xf32>
    %72 = tpu.matmul %2, %69, %cst_56 {dimension_numbers = #tpu.dot_dimension_numbers<[1], [0], [0], [1], [0, 0, 1, 1], [], []>} : vector<16x16xf32>, vector<16x512xf32>, vector<16x512xf32> -> vector<16x512xf32>
    %73 = arith.addf %71, %72 : vector<16x512xf32>
    %c0_57 = arith.constant 0 : index
    %c0_58 = arith.constant 0 : index
    %74 = vector.load %arg10[%c0_57, %c0_58] : memref<512x8xf32, #tpu.memory_space<vmem>>, vector<512x8xf32>
    %c0_59 = arith.constant 0 : index
    %c0_60 = arith.constant 0 : index
    %75 = vector.load %arg11[%c0_59, %c0_60] : memref<8x512xf32, #tpu.memory_space<vmem>>, vector<8x512xf32>
    %c0_61 = arith.constant 0 : index
    %c0_62 = arith.constant 0 : index
    %76 = vector.load %arg14[%c0_61, %c0_62] : memref<1x512xf32, #tpu.memory_space<vmem>>, vector<1x512xf32>
    %c0_63 = arith.constant 0 : index
    %c0_64 = arith.constant 0 : index
    %77 = vector.load %arg15[%c0_63, %c0_64] : memref<1x512xf32, #tpu.memory_space<vmem>>, vector<1x512xf32>
    %cst_65 = arith.constant dense<0.000000e+00> : vector<2x512xf32>
    %78 = tpu.matmul %3, %73, %cst_65 {dimension_numbers = #tpu.dot_dimension_numbers<[1], [0], [0], [1], [0, 0, 1, 1], [], []>} : vector<2x16xf32>, vector<16x512xf32>, vector<2x512xf32> -> vector<2x512xf32>
    %79 = arith.mulf %73, %73 : vector<16x512xf32>
    %cst_66 = arith.constant dense<0.000000e+00> : vector<2x512xf32>
    %80 = tpu.matmul %3, %79, %cst_66 {dimension_numbers = #tpu.dot_dimension_numbers<[1], [0], [0], [1], [0, 0, 1, 1], [], []>} : vector<2x16xf32>, vector<16x512xf32>, vector<2x512xf32> -> vector<2x512xf32>
    %cst_67 = arith.constant dense<0.000000e+00> : vector<2x8xf32>
    %81 = tpu.matmul %78, %74, %cst_67 {dimension_numbers = #tpu.dot_dimension_numbers<[1], [0], [0], [1], [0, 0, 1, 1], [], []>} : vector<2x512xf32>, vector<512x8xf32>, vector<2x8xf32> -> vector<2x8xf32>
    %cst_68 = arith.constant dense<0.000000e+00> : vector<2x8xf32>
    %82 = tpu.matmul %80, %74, %cst_68 {dimension_numbers = #tpu.dot_dimension_numbers<[1], [0], [0], [1], [0, 0, 1, 1], [], []>} : vector<2x512xf32>, vector<512x8xf32>, vector<2x8xf32> -> vector<2x8xf32>
    %cst_69 = arith.constant 0.001953125 : f32
    %83 = vector.broadcast %cst_69 : f32 to vector<2x8xf32>
    %84 = arith.mulf %81, %83 : vector<2x8xf32>
    %cst_70 = arith.constant 0.001953125 : f32
    %85 = vector.broadcast %cst_70 : f32 to vector<2x8xf32>
    %86 = arith.mulf %82, %85 : vector<2x8xf32>
    %87 = arith.mulf %84, %84 : vector<2x8xf32>
    %88 = arith.subf %86, %87 : vector<2x8xf32>
    %cst_71 = arith.constant 9.99999974E-6 : f32
    %89 = vector.broadcast %cst_71 : f32 to vector<2x8xf32>
    %90 = arith.addf %88, %89 : vector<2x8xf32>
    %91 = math.rsqrt %90 : vector<2x8xf32>
    %cst_72 = arith.constant dense<0.000000e+00> : vector<2x512xf32>
    %92 = tpu.matmul %84, %75, %cst_72 {dimension_numbers = #tpu.dot_dimension_numbers<[1], [0], [0], [1], [0, 0, 1, 1], [], []>} : vector<2x8xf32>, vector<8x512xf32>, vector<2x512xf32> -> vector<2x512xf32>
    %cst_73 = arith.constant dense<0.000000e+00> : vector<16x512xf32>
    %93 = tpu.matmul %4, %92, %cst_73 {dimension_numbers = #tpu.dot_dimension_numbers<[1], [0], [0], [1], [0, 0, 1, 1], [], []>} : vector<16x2xf32>, vector<2x512xf32>, vector<16x512xf32> -> vector<16x512xf32>
    %cst_74 = arith.constant dense<0.000000e+00> : vector<2x512xf32>
    %94 = tpu.matmul %91, %75, %cst_74 {dimension_numbers = #tpu.dot_dimension_numbers<[1], [0], [0], [1], [0, 0, 1, 1], [], []>} : vector<2x8xf32>, vector<8x512xf32>, vector<2x512xf32> -> vector<2x512xf32>
    %cst_75 = arith.constant dense<0.000000e+00> : vector<16x512xf32>
    %95 = tpu.matmul %4, %94, %cst_75 {dimension_numbers = #tpu.dot_dimension_numbers<[1], [0], [0], [1], [0, 0, 1, 1], [], []>} : vector<16x2xf32>, vector<2x512xf32>, vector<16x512xf32> -> vector<16x512xf32>
    %96 = arith.subf %73, %93 : vector<16x512xf32>
    %97 = arith.mulf %96, %95 : vector<16x512xf32>
    %98 = vector.broadcast %76 : vector<1x512xf32> to vector<16x512xf32>
    %99 = arith.mulf %97, %98 : vector<16x512xf32>
    %100 = vector.broadcast %77 : vector<1x512xf32> to vector<16x512xf32>
    %101 = arith.addf %99, %100 : vector<16x512xf32>
    %c0_76 = arith.constant 0 : index
    %c0_77 = arith.constant 0 : index
    %102 = vector.load %arg16[%c0_76, %c0_77] : memref<16x512xf32, #tpu.memory_space<vmem>>, vector<16x512xf32>
    tpu.vector_store %arg16[%c0_76, %c0_77], %101 {strides = array<i32>} : memref<16x512xf32, #tpu.memory_space<vmem>>, vector<16x512xf32>,
    return
  }
  func.func @transform_0(%arg0: i32) -> (i32, i32) {
    %c0_i32 = arith.constant 0 : i32
    %c0_i32_0 = arith.constant 0 : i32
    return %arg0, %c0_i32 : i32, i32
  }
  func.func @transform_1(%arg0: i32) -> (i32, i32, i32) {
    %c0_i32 = arith.constant 0 : i32
    %c0_i32_0 = arith.constant 0 : i32
    %c0_i32_1 = arith.constant 0 : i32
    %c0_i32_2 = arith.constant 0 : i32
    return %c0_i32, %c0_i32_0, %c0_i32_1 : i32, i32, i32
  }
  func.func @transform_2(%arg0: i32) -> (i32, i32, i32) {
    %c0_i32 = arith.constant 0 : i32
    %c0_i32_0 = arith.constant 0 : i32
    %c0_i32_1 = arith.constant 0 : i32
    %c0_i32_2 = arith.constant 0 : i32
    return %c0_i32, %c0_i32_0, %c0_i32_1 : i32, i32, i32
  }
  func.func @transform_3(%arg0: i32) -> (i32, i32) {
    %c0_i32 = arith.constant 0 : i32
    %c0_i32_0 = arith.constant 0 : i32
    %c0_i32_1 = arith.constant 0 : i32
    return %c0_i32, %c0_i32_0 : i32, i32
  }
  func.func @transform_4(%arg0: i32) -> (i32, i32) {
    %c0_i32 = arith.constant 0 : i32
    %c0_i32_0 = arith.constant 0 : i32
    %c0_i32_1 = arith.constant 0 : i32
    return %c0_i32, %c0_i32_0 : i32, i32
  }
  func.func @transform_5(%arg0: i32) -> (i32, i32) {
    %c0_i32 = arith.constant 0 : i32
    %c0_i32_0 = arith.constant 0 : i32
    %c0_i32_1 = arith.constant 0 : i32
    return %c0_i32, %c0_i32_0 : i32, i32
  }
  func.func @transform_6(%arg0: i32) -> (i32, i32) {
    %c0_i32 = arith.constant 0 : i32
    %c0_i32_0 = arith.constant 0 : i32
    %c0_i32_1 = arith.constant 0 : i32
    return %c0_i32, %c0_i32_0 : i32, i32
  }
  func.func @transform_7(%arg0: i32) -> (i32, i32) {
    %c0_i32 = arith.constant 0 : i32
    %c0_i32_0 = arith.constant 0 : i32
    %c0_i32_1 = arith.constant 0 : i32
    return %c0_i32, %c0_i32_0 : i32, i32
  }
  func.func @transform_8(%arg0: i32) -> (i32, i32) {
    %c0_i32 = arith.constant 0 : i32
    %c0_i32_0 = arith.constant 0 : i32
    %c0_i32_1 = arith.constant 0 : i32
    return %c0_i32, %c0_i32_0 : i32, i32
  }
  func.func @transform_9(%arg0: i32) -> (i32, i32) {
    %c0_i32 = arith.constant 0 : i32
    %c0_i32_0 = arith.constant 0 : i32
    %c0_i32_1 = arith.constant 0 : i32
    return %c0_i32, %c0_i32_0 : i32, i32
  }
  func.func @transform_10(%arg0: i32) -> (i32, i32) {
    %c0_i32 = arith.constant 0 : i32
    %c0_i32_0 = arith.constant 0 : i32
    %c0_i32_1 = arith.constant 0 : i32
    return %c0_i32, %c0_i32_0 : i32, i32
  }
  func.func @transform_11(%arg0: i32) -> (i32, i32) {
    %c0_i32 = arith.constant 0 : i32
    %c0_i32_0 = arith.constant 0 : i32
    %c0_i32_1 = arith.constant 0 : i32
    return %c0_i32, %c0_i32_0 : i32, i32
  }
  func.func @transform_12(%arg0: i32) -> (i32, i32) {
    %c0_i32 = arith.constant 0 : i32
    %c0_i32_0 = arith.constant 0 : i32
    %c0_i32_1 = arith.constant 0 : i32
    return %c0_i32, %c0_i32_0 : i32, i32
  }
  func.func @transform_13(%arg0: i32) -> (i32, i32) {
    %c0_i32 = arith.constant 0 : i32
    %c0_i32_0 = arith.constant 0 : i32
    %c0_i32_1 = arith.constant 0 : i32
    return %c0_i32, %c0_i32_0 : i32, i32
  }
  func.func @transform_14(%arg0: i32) -> (i32, i32) {
    %c0_i32 = arith.constant 0 : i32
    %c0_i32_0 = arith.constant 0 : i32
    %c0_i32_1 = arith.constant 0 : i32
    return %c0_i32, %c0_i32_0 : i32, i32
  }
  func.func @transform_15(%arg0: i32) -> (i32, i32) {
    %c0_i32 = arith.constant 0 : i32
    %c0_i32_0 = arith.constant 0 : i32
    return %arg0, %c0_i32 : i32, i32
  }
}

</mosaic_0001>

<llo_original>
// kernel: apply.1
$region0: #{apply.1}
  #allocation0 [shape = 'u32[]', space=smem, size = 0x4, offset = 0x4, fixed_abs, tag = 'smem constant byte address 0x4 - core index']
  #allocation1 [shape = 'u32[144,128]{1,0:T(1,128)}', space=vmem, size = 0x12000, scoped, tag = 'internal scratch']
  %s0 = inlined_call_operand.vmem [shape: f32[16,256], index: 0, kind: input, shape index: {}]
  %s1 = inlined_call_operand.vmem [shape: bf16[3,256,512], index: 1, kind: input, shape index: {}]
  %s2 = inlined_call_operand.hbm [shape: bf16[3,512,512], index: 2, kind: input, shape index: {}]
  %s3 = inlined_call_operand.hbm [shape: f32[16,16], index: 3, kind: input, shape index: {}]
  %s4 = inlined_call_operand.hbm [shape: f32[16,16], index: 4, kind: input, shape index: {}]
  %s5 = inlined_call_operand.hbm [shape: f32[2,16], index: 5, kind: input, shape index: {}]
  %s6 = inlined_call_operand.hbm [shape: f32[16,2], index: 6, kind: input, shape index: {}]
  %s7 = inlined_call_operand.hbm [shape: f32[512,8], index: 7, kind: input, shape index: {}, may-alias: {7,9}]
  %s8 = inlined_call_operand.hbm [shape: f32[8,512], index: 8, kind: input, shape index: {}, may-alias: {8,10}]
  %s9 = inlined_call_operand.hbm [shape: f32[512,8], index: 9, kind: input, shape index: {}, may-alias: {7,9}]
  %s10 = inlined_call_operand.hbm [shape: f32[8,512], index: 10, kind: input, shape index: {}, may-alias: {8,10}]
  %s11 = inlined_call_operand.hbm [shape: f32[1,512], index: 11, kind: input, shape index: {}]
  %s12 = inlined_call_operand.hbm [shape: f32[1,512], index: 12, kind: input, shape index: {}]
  %s13 = inlined_call_operand.hbm [shape: f32[1,512], index: 13, kind: input, shape index: {}]
  %s14 = inlined_call_operand.hbm [shape: f32[1,512], index: 14, kind: input, shape index: {}]
  %s15 = inlined_call_operand.vmem [shape: f32[16,512], index: 15, kind: output, shape index: {}]
  %s16 = sld [smem:[#allocation0]]
  $region122: #{apply.1} parent=0
    _
  %s18 = ssub.s32 1, %s16
  %s19 = scalar_select 0, %s18, %s16
  $region1: #{apply.1} parent=0
    #allocation2 [shape = 'u8[1572864]{0}', space=vmem, size = 0x180000, scoped, tag = 'input window, operand 2, single buffered']
    #allocation3 [shape = 's32[1]{0}', space=sflag, size = 0x4, scoped, tag = 'scoped memory for apply.1']
    #allocation4 [shape = 'u8[8192]{0}', space=vmem, size = 0x2000, scoped, tag = 'input window, operand 3, single buffered']
    #allocation5 [shape = 's32[1]{0}', space=sflag, size = 0x4, scoped, tag = 'scoped memory for apply.1']
    #allocation6 [shape = 'u8[8192]{0}', space=vmem, size = 0x2000, scoped, tag = 'input window, operand 4, single buffered']
    #allocation7 [shape = 'u8[1024]{0}', space=vmem, size = 0x400, scoped, tag = 'input window, operand 5, single buffered']
    #allocation8 [shape = 's32[1]{0}', space=sflag, size = 0x4, scoped, tag = 'scoped memory for apply.1']
    #allocation9 [shape = 'u8[8192]{0}', space=vmem, size = 0x2000, scoped, tag = 'input window, operand 6, single buffered']
    #allocation10 [shape = 'u8[262144]{0}', space=vmem, size = 0x40000, scoped, tag = 'input window, operand 7, single buffered']
    #allocation11 [shape = 's32[1]{0}', space=sflag, size = 0x4, scoped, tag = 'scoped memory for apply.1']
    #allocation12 [shape = 'u8[16384]{0}', space=vmem, size = 0x4000, scoped, tag = 'input window, operand 8, single buffered']
    #allocation13 [shape = 'u8[262144]{0}', space=vmem, size = 0x40000, scoped, tag = 'input window, operand 9, single buffered']
    #allocation14 [shape = 's32[1]{0}', space=sflag, size = 0x4, scoped, tag = 'scoped memory for apply.1']
    #allocation15 [shape = 'u8[16384]{0}', space=vmem, size = 0x4000, scoped, tag = 'input window, operand 10, single buffered']
    #allocation16 [shape = 'u8[2048]{0}', space=vmem, size = 0x800, scoped, tag = 'input window, operand 11, single buffered']
    #allocation17 [shape = 's32[1]{0}', space=sflag, size = 0x4, scoped, tag = 'scoped memory for apply.1']
    #allocation18 [shape = 'u8[2048]{0}', space=vmem, size = 0x800, scoped, tag = 'input window, operand 12, single buffered']
    #allocation19 [shape = 'u8[2048]{0}', space=vmem, size = 0x800, scoped, tag = 'input window, operand 13, single buffered']
    #allocation20 [shape = 's32[1]{0}', space=sflag, size = 0x4, scoped, tag = 'scoped memory for apply.1']
    #allocation21 [shape = 'u8[2048]{0}', space=vmem, size = 0x800, scoped, tag = 'input window, operand 14, single buffered']
    %20 = vsyncpa [#allocation3], 0
    %21 = vsyncpa [#allocation5], 0
    %22 = vsyncpa [#allocation8], 0
    %23 = vsyncpa [#allocation11], 0
    %24 = vsyncpa [#allocation14], 0
    %25 = vsyncpa [#allocation17], 0
    %26 = vsyncpa [#allocation20], 0
    // Predicated region
    $region2: #{apply.1} parent=1 // pred_check
      _
    $region3: #{apply.1} parent=1 // pred_check_branch
      %28 = sbr.rel (0) target = $region5
    $region4: #{apply.1} parent=1 // pred_region
      _
    $region5: #{apply.1} parent=1 // pred_fallthru
      _
    // Predicated region
    $region6: #{apply.1} parent=1 // pred_check
      _
    $region7: #{apply.1} parent=1 // pred_check_branch
      %30 = sbr.rel (0) target = $region9
    $region8: #{apply.1} parent=1 // pred_region
      _
    $region9: #{apply.1} parent=1 // pred_fallthru
      _
    // Predicated region
    $region10: #{apply.1} parent=1 // pred_check
      _
    $region11: #{apply.1} parent=1 // pred_check_branch
      %32 = sbr.rel (0) target = $region13
    $region12: #{apply.1} parent=1 // pred_region
      %s34 = ssub.s32 49152, 49152
      %35 = vsyncadd [#allocation3], %s34
      %s36 = sshll.u32 [#allocation2], 4
      %s37 = int_to_ptr.vmem [resolvable:$true] %s36
      %42 = dma.hbm_to_vmem [thread:$0]  %s2, 49152, %s37, [#allocation3], 256, 256, 16
    $region13: #{apply.1} parent=1 // pred_fallthru
      _
    // Predicated region
    $region14: #{apply.1} parent=1 // pred_check
      _
    $region15: #{apply.1} parent=1 // pred_check_branch
      %44 = sbr.rel (0) target = $region17
    $region16: #{apply.1} parent=1 // pred_region
      %s46 = ssub.s32 256, 256
      %47 = vsyncadd [#allocation5], %s46
      %s48 = sshll.u32 [#allocation4], 4
      %s49 = int_to_ptr.vmem [resolvable:$true] %s48
      %54 = dma.hbm_to_vmem [thread:$0]  %s3, 256, %s49, [#allocation5], 128, 128, 8
    $region17: #{apply.1} parent=1 // pred_fallthru
      _
    // Predicated region
    $region18: #{apply.1} parent=1 // pred_check
      _
    $region19: #{apply.1} parent=1 // pred_check_branch
      %56 = sbr.rel (0) target = $region21
    $region20: #{apply.1} parent=1 // pred_region
      %s58 = ssub.s32 256, 256
      %59 = vsyncadd [#allocation5], %s58
      %s60 = sshll.u32 [#allocation6], 4
      %s61 = int_to_ptr.vmem [resolvable:$true] %s60
      %66 = dma.hbm_to_vmem [thread:$0]  %s4, 256, %s61, [#allocation5], 128, 128, 8
    $region21: #{apply.1} parent=1 // pred_fallthru
      _
    // Predicated region
    $region22: #{apply.1} parent=1 // pred_check
      _
    $region23: #{apply.1} parent=1 // pred_check_branch
      %68 = sbr.rel (0) target = $region25
    $region24: #{apply.1} parent=1 // pred_region
      %s70 = ssub.s32 32, 32
      %71 = vsyncadd [#allocation8], %s70
      %s73 = sshll.u32 [#allocation7], 4
      %s74 = int_to_ptr.vmem [resolvable:$true] %s73
      %76 = dma.hbm_to_vmem [thread:$0]  %s5, 32, %s74, [#allocation8]
    $region25: #{apply.1} parent=1 // pred_fallthru
      _
    // Predicated region
    $region26: #{apply.1} parent=1 // pred_check
      _
    $region27: #{apply.1} parent=1 // pred_check_branch
      %78 = sbr.rel (0) target = $region29
    $region28: #{apply.1} parent=1 // pred_region
      %s80 = ssub.s32 256, 256
      %81 = vsyncadd [#allocation8], %s80
      %s82 = sshll.u32 [#allocation9], 4
      %s83 = int_to_ptr.vmem [resolvable:$true] %s82
      %88 = dma.hbm_to_vmem [thread:$0]  %s6, 256, %s83, [#allocation8], 128, 128, 8
    $region29: #{apply.1} parent=1 // pred_fallthru
      _
    // Predicated region
    $region30: #{apply.1} parent=1 // pred_check
      _
    $region31: #{apply.1} parent=1 // pred_check_branch
      %90 = sbr.rel (0) target = $region33
    $region32: #{apply.1} parent=1 // pred_region
      %s92 = ssub.s32 8192, 8192
      %93 = vsyncadd [#allocation11], %s92
      %s94 = sshll.u32 [#allocation10], 4
      %s95 = int_to_ptr.vmem [resolvable:$true] %s94
      %100 = dma.hbm_to_vmem [thread:$0]  %s7, 8192, %s95, [#allocation11], 128, 128, 8
    $region33: #{apply.1} parent=1 // pred_fallthru
      _
    // Predicated region
    $region34: #{apply.1} parent=1 // pred_check
      _
    $region35: #{apply.1} parent=1 // pred_check_branch
      %102 = sbr.rel (0) target = $region37
    $region36: #{apply.1} parent=1 // pred_region
      %s104 = ssub.s32 512, 512
      %105 = vsyncadd [#allocation11], %s104
      %s107 = sshll.u32 [#allocation12], 4
      %s108 = int_to_ptr.vmem [resolvable:$true] %s107
      %110 = dma.hbm_to_vmem [thread:$0]  %s8, 512, %s108, [#allocation11]
    $region37: #{apply.1} parent=1 // pred_fallthru
      _
    // Predicated region
    $region38: #{apply.1} parent=1 // pred_check
      _
    $region39: #{apply.1} parent=1 // pred_check_branch
      %112 = sbr.rel (0) target = $region41
    $region40: #{apply.1} parent=1 // pred_region
      %s114 = ssub.s32 8192, 8192
      %115 = vsyncadd [#allocation14], %s114
      %s116 = sshll.u32 [#allocation13], 4
      %s117 = int_to_ptr.vmem [resolvable:$true] %s116
      %122 = dma.hbm_to_vmem [thread:$0]  %s9, 8192, %s117, [#allocation14], 128, 128, 8
    $region41: #{apply.1} parent=1 // pred_fallthru
      _
    // Predicated region
    $region42: #{apply.1} parent=1 // pred_check
      _
    $region43: #{apply.1} parent=1 // pred_check_branch
      %124 = sbr.rel (0) target = $region45
    $region44: #{apply.1} parent=1 // pred_region
      %s126 = ssub.s32 512, 512
      %127 = vsyncadd [#allocation14], %s126
      %s129 = sshll.u32 [#allocation15], 4
      %s130 = int_to_ptr.vmem [resolvable:$true] %s129
      %132 = dma.hbm_to_vmem [thread:$0]  %s10, 512, %s130, [#allocation14]
    $region45: #{apply.1} parent=1 // pred_fallthru
      _
    // Predicated region
    $region46: #{apply.1} parent=1 // pred_check
      _
    $region47: #{apply.1} parent=1 // pred_check_branch
      %134 = sbr.rel (0) target = $region49
    $region48: #{apply.1} parent=1 // pred_region
      %s136 = ssub.s32 64, 64
      %137 = vsyncadd [#allocation17], %s136
      %s139 = sshll.u32 [#allocation16], 4
      %s140 = int_to_ptr.vmem [resolvable:$true] %s139
      %142 = dma.hbm_to_vmem [thread:$0]  %s11, 64, %s140, [#allocation17]
    $region49: #{apply.1} parent=1 // pred_fallthru
      _
    // Predicated region
    $region50: #{apply.1} parent=1 // pred_check
      _
    $region51: #{apply.1} parent=1 // pred_check_branch
      %144 = sbr.rel (0) target = $region53
    $region52: #{apply.1} parent=1 // pred_region
      %s146 = ssub.s32 64, 64
      %147 = vsyncadd [#allocation17], %s146
      %s149 = sshll.u32 [#allocation18], 4
      %s150 = int_to_ptr.vmem [resolvable:$true] %s149
      %152 = dma.hbm_to_vmem [thread:$0]  %s12, 64, %s150, [#allocation17]
    $region53: #{apply.1} parent=1 // pred_fallthru
      _
    // Predicated region
    $region54: #{apply.1} parent=1 // pred_check
      _
    $region55: #{apply.1} parent=1 // pred_check_branch
      %154 = sbr.rel (0) target = $region57
    $region56: #{apply.1} parent=1 // pred_region
      %s156 = ssub.s32 64, 64
      %157 = vsyncadd [#allocation20], %s156
      %s159 = sshll.u32 [#allocation19], 4
      %s160 = int_to_ptr.vmem [resolvable:$true] %s159
      %162 = dma.hbm_to_vmem [thread:$0]  %s13, 64, %s160, [#allocation20]
    $region57: #{apply.1} parent=1 // pred_fallthru
      _
    // Predicated region
    $region58: #{apply.1} parent=1 // pred_check
      _
    $region59: #{apply.1} parent=1 // pred_check_branch
      %164 = sbr.rel (0) target = $region61
    $region60: #{apply.1} parent=1 // pred_region
      %s166 = ssub.s32 64, 64
      %167 = vsyncadd [#allocation20], %s166
      %s169 = sshll.u32 [#allocation21], 4
      %s170 = int_to_ptr.vmem [resolvable:$true] %s169
      %172 = dma.hbm_to_vmem [thread:$0]  %s14, 64, %s170, [#allocation20]
    $region61: #{apply.1} parent=1 // pred_fallthru
      _
    // Predicated region
    $region62: #{apply.1} parent=1 // pred_check
      _
    $region63: #{apply.1} parent=1 // pred_check_branch
      %174 = sbr.rel (0) target = $region65
    $region64: #{apply.1} parent=1 // pred_region
      %175 = dma.done [#allocation3], 49152
    $region65: #{apply.1} parent=1 // pred_fallthru
      _
    // Predicated region
    $region66: #{apply.1} parent=1 // pred_check
      _
    $region67: #{apply.1} parent=1 // pred_check_branch
      %177 = sbr.rel (0) target = $region69
    $region68: #{apply.1} parent=1 // pred_region
      %178 = dma.done [#allocation5], 256
    $region69: #{apply.1} parent=1 // pred_fallthru
      _
    // Predicated region
    $region70: #{apply.1} parent=1 // pred_check
      _
    $region71: #{apply.1} parent=1 // pred_check_branch
      %180 = sbr.rel (0) target = $region73
    $region72: #{apply.1} parent=1 // pred_region
      %181 = dma.done [#allocation5], 256
    $region73: #{apply.1} parent=1 // pred_fallthru
      _
    // Predicated region
    $region74: #{apply.1} parent=1 // pred_check
      _
    $region75: #{apply.1} parent=1 // pred_check_branch
      %183 = sbr.rel (0) target = $region77
    $region76: #{apply.1} parent=1 // pred_region
      %184 = dma.done [#allocation8], 32
    $region77: #{apply.1} parent=1 // pred_fallthru
      _
    // Predicated region
    $region78: #{apply.1} parent=1 // pred_check
      _
    $region79: #{apply.1} parent=1 // pred_check_branch
      %186 = sbr.rel (0) target = $region81
    $region80: #{apply.1} parent=1 // pred_region
      %187 = dma.done [#allocation8], 256
    $region81: #{apply.1} parent=1 // pred_fallthru
      _
    // Predicated region
    $region82: #{apply.1} parent=1 // pred_check
      _
    $region83: #{apply.1} parent=1 // pred_check_branch
      %189 = sbr.rel (0) target = $region85
    $region84: #{apply.1} parent=1 // pred_region
      %190 = dma.done [#allocation11], 8192
    $region85: #{apply.1} parent=1 // pred_fallthru
      _
    // Predicated region
    $region86: #{apply.1} parent=1 // pred_check
      _
    $region87: #{apply.1} parent=1 // pred_check_branch
      %192 = sbr.rel (0) target = $region89
    $region88: #{apply.1} parent=1 // pred_region
      %193 = dma.done [#allocation11], 512
    $region89: #{apply.1} parent=1 // pred_fallthru
      _
    // Predicated region
    $region90: #{apply.1} parent=1 // pred_check
      _
    $region91: #{apply.1} parent=1 // pred_check_branch
      %195 = sbr.rel (0) target = $region93
    $region92: #{apply.1} parent=1 // pred_region
      %196 = dma.done [#allocation14], 8192
    $region93: #{apply.1} parent=1 // pred_fallthru
      _
    // Predicated region
    $region94: #{apply.1} parent=1 // pred_check
      _
    $region95: #{apply.1} parent=1 // pred_check_branch
      %198 = sbr.rel (0) target = $region97
    $region96: #{apply.1} parent=1 // pred_region
      %199 = dma.done [#allocation14], 512
    $region97: #{apply.1} parent=1 // pred_fallthru
      _
    // Predicated region
    $region98: #{apply.1} parent=1 // pred_check
      _
    $region99: #{apply.1} parent=1 // pred_check_branch
      %201 = sbr.rel (0) target = $region101
    $region100: #{apply.1} parent=1 // pred_region
      %202 = dma.done [#allocation17], 64
    $region101: #{apply.1} parent=1 // pred_fallthru
      _
    // Predicated region
    $region102: #{apply.1} parent=1 // pred_check
      _
    $region103: #{apply.1} parent=1 // pred_check_branch
      %204 = sbr.rel (0) target = $region105
    $region104: #{apply.1} parent=1 // pred_region
      %205 = dma.done [#allocation17], 64
    $region105: #{apply.1} parent=1 // pred_fallthru
      _
    // Predicated region
    $region106: #{apply.1} parent=1 // pred_check
      _
    $region107: #{apply.1} parent=1 // pred_check_branch
      %207 = sbr.rel (0) target = $region109
    $region108: #{apply.1} parent=1 // pred_region
      %208 = dma.done [#allocation20], 64
    $region109: #{apply.1} parent=1 // pred_fallthru
      _
    // Predicated region
    $region110: #{apply.1} parent=1 // pred_check
      _
    $region111: #{apply.1} parent=1 // pred_check_branch
      %210 = sbr.rel (0) target = $region113
    $region112: #{apply.1} parent=1 // pred_region
      %211 = dma.done [#allocation20], 64
    $region113: #{apply.1} parent=1 // pred_fallthru
      _
    %v212 = vld [vmem:[%s0] sm:$0xff]
    %v213 = vld [vmem:[%s0 + $0x8] sm:$0xff]
    %v214 = vld [vmem:[%s0 + $0x10] sm:$0xff]
    %v215 = vld [vmem:[%s0 + $0x18] sm:$0xff]
    %v216 = vld [vmem:[#allocation4] sm:$0xff]
    %v217 = vld [vmem:[#allocation4 + $0x8] sm:$0xff]
    %v218 = vld [vmem:[#allocation6] sm:$0xff]
    %v219 = vld [vmem:[#allocation6 + $0x8] sm:$0xff]
    %v220 = vld [vmem:[#allocation7] sm:$0x3]
    %v221 = vld [vmem:[#allocation9] sm:$0xff]
    %v222 = vld [vmem:[#allocation9 + $0x8] sm:$0xff]
    %v223 = vpack.c.bf16 %v214, %v212
    %v224 = vpack.c.bf16 %v215, %v213
    %v225 = vld [vmem:[%s1] sm:$0xff]
    %v226 = vld [vmem:[%s1 + $0x8] sm:$0xff]
    %v227 = vld [vmem:[%s1 + $0x10] sm:$0xff]
    %v228 = vld [vmem:[%s1 + $0x18] sm:$0xff]
    %v229 = vld [vmem:[%s1 + $0x20] sm:$0xff]
    %v230 = vld [vmem:[%s1 + $0x28] sm:$0xff]
    %v231 = vld [vmem:[%s1 + $0x30] sm:$0xff]
    %v232 = vld [vmem:[%s1 + $0x38] sm:$0xff]
    %v233 = vld [vmem:[%s1 + $0x40] sm:$0xff]
    %v234 = vld [vmem:[%s1 + $0x48] sm:$0xff]
    %v235 = vld [vmem:[%s1 + $0x50] sm:$0xff]
    %v236 = vld [vmem:[%s1 + $0x58] sm:$0xff]
    %v237 = vld [vmem:[%s1 + $0x60] sm:$0xff]
    %v238 = vld [vmem:[%s1 + $0x68] sm:$0xff]
    %v239 = vld [vmem:[%s1 + $0x70] sm:$0xff]
    %v240 = vld [vmem:[%s1 + $0x78] sm:$0xff]
    %v241 = vld [vmem:[%s1 + $0x80] sm:$0xff]
    %v242 = vld [vmem:[%s1 + $0x88] sm:$0xff]
    %v243 = vld [vmem:[%s1 + $0x90] sm:$0xff]
    %v244 = vld [vmem:[%s1 + $0x98] sm:$0xff]
    %v245 = vld [vmem:[%s1 + $0xa0] sm:$0xff]
    %v246 = vld [vmem:[%s1 + $0xa8] sm:$0xff]
    %v247 = vld [vmem:[%s1 + $0xb0] sm:$0xff]
    %v248 = vld [vmem:[%s1 + $0xb8] sm:$0xff]
    %v249 = vld [vmem:[%s1 + $0xc0] sm:$0xff]
    %v250 = vld [vmem:[%s1 + $0xc8] sm:$0xff]
    %v251 = vld [vmem:[%s1 + $0xd0] sm:$0xff]
    %v252 = vld [vmem:[%s1 + $0xd8] sm:$0xff]
    %v253 = vld [vmem:[%s1 + $0xe0] sm:$0xff]
    %v254 = vld [vmem:[%s1 + $0xe8] sm:$0xff]
    %v255 = vld [vmem:[%s1 + $0xf0] sm:$0xff]
    %v256 = vld [vmem:[%s1 + $0xf8] sm:$0xff]
    %v257 = vld [vmem:[%s1 + $0x100] sm:$0xff]
    %v258 = vld [vmem:[%s1 + $0x108] sm:$0xff]
    %v259 = vld [vmem:[%s1 + $0x110] sm:$0xff]
    %v260 = vld [vmem:[%s1 + $0x118] sm:$0xff]
    %v261 = vld [vmem:[%s1 + $0x120] sm:$0xff]
    %v262 = vld [vmem:[%s1 + $0x128] sm:$0xff]
    %v263 = vld [vmem:[%s1 + $0x130] sm:$0xff]
    %v264 = vld [vmem:[%s1 + $0x138] sm:$0xff]
    %v265 = vld [vmem:[%s1 + $0x140] sm:$0xff]
    %v266 = vld [vmem:[%s1 + $0x148] sm:$0xff]
    %v267 = vld [vmem:[%s1 + $0x150] sm:$0xff]
    %v268 = vld [vmem:[%s1 + $0x158] sm:$0xff]
    %v269 = vld [vmem:[%s1 + $0x160] sm:$0xff]
    %v270 = vld [vmem:[%s1 + $0x168] sm:$0xff]
    %v271 = vld [vmem:[%s1 + $0x170] sm:$0xff]
    %v272 = vld [vmem:[%s1 + $0x178] sm:$0xff]
    %v273 = vld [vmem:[%s1 + $0x180] sm:$0xff]
    %v274 = vld [vmem:[%s1 + $0x188] sm:$0xff]
    %v275 = vld [vmem:[%s1 + $0x190] sm:$0xff]
    %v276 = vld [vmem:[%s1 + $0x198] sm:$0xff]
    %v277 = vld [vmem:[%s1 + $0x1a0] sm:$0xff]
    %v278 = vld [vmem:[%s1 + $0x1a8] sm:$0xff]
    %v279 = vld [vmem:[%s1 + $0x1b0] sm:$0xff]
    %v280 = vld [vmem:[%s1 + $0x1b8] sm:$0xff]
    %v281 = vld [vmem:[%s1 + $0x1c0] sm:$0xff]
    %v282 = vld [vmem:[%s1 + $0x1c8] sm:$0xff]
    %v283 = vld [vmem:[%s1 + $0x1d0] sm:$0xff]
    %v284 = vld [vmem:[%s1 + $0x1d8] sm:$0xff]
    %v285 = vld [vmem:[%s1 + $0x1e0] sm:$0xff]
    %v286 = vld [vmem:[%s1 + $0x1e8] sm:$0xff]
    %v287 = vld [vmem:[%s1 + $0x1f0] sm:$0xff]
    %v288 = vld [vmem:[%s1 + $0x1f8] sm:$0xff]
    %v353 = vunpack.c.l.b16 %v225
    %v354 = vunpack.c.h.b16 %v225
    %v355 = vunpack.c.l.b16 %v226
    %v356 = vunpack.c.h.b16 %v226
    %v357 = vunpack.c.l.b16 %v227
    %v358 = vunpack.c.h.b16 %v227
    %v359 = vunpack.c.l.b16 %v228
    %v360 = vunpack.c.h.b16 %v228
    %v361 = vunpack.c.l.b16 %v229
    %v362 = vunpack.c.h.b16 %v229
    %v363 = vunpack.c.l.b16 %v230
    %v364 = vunpack.c.h.b16 %v230
    %v365 = vunpack.c.l.b16 %v231
    %v366 = vunpack.c.h.b16 %v231
    %v367 = vunpack.c.l.b16 %v232
    %v368 = vunpack.c.h.b16 %v232
    %v369 = vunpack.c.l.b16 %v233
    %v370 = vunpack.c.h.b16 %v233
    %v371 = vunpack.c.l.b16 %v234
    %v372 = vunpack.c.h.b16 %v234
    %v373 = vunpack.c.l.b16 %v235
    %v374 = vunpack.c.h.b16 %v235
    %v375 = vunpack.c.l.b16 %v236
    %v376 = vunpack.c.h.b16 %v236
    %v377 = vunpack.c.l.b16 %v237
    %v378 = vunpack.c.h.b16 %v237
    %v379 = vunpack.c.l.b16 %v238
    %v380 = vunpack.c.h.b16 %v238
    %v381 = vunpack.c.l.b16 %v239
    %v382 = vunpack.c.h.b16 %v239
    %v383 = vunpack.c.l.b16 %v240
    %v384 = vunpack.c.h.b16 %v240
    %v385 = vunpack.c.l.b16 %v241
    %v386 = vunpack.c.h.b16 %v241
    %v387 = vunpack.c.l.b16 %v242
    %v388 = vunpack.c.h.b16 %v242
    %v389 = vunpack.c.l.b16 %v243
    %v390 = vunpack.c.h.b16 %v243
    %v391 = vunpack.c.l.b16 %v244
    %v392 = vunpack.c.h.b16 %v244
    %v393 = vunpack.c.l.b16 %v245
    %v394 = vunpack.c.h.b16 %v245
    %v395 = vunpack.c.l.b16 %v246
    %v396 = vunpack.c.h.b16 %v246
    %v397 = vunpack.c.l.b16 %v247
    %v398 = vunpack.c.h.b16 %v247
    %v399 = vunpack.c.l.b16 %v248
    %v400 = vunpack.c.h.b16 %v248
    %v401 = vunpack.c.l.b16 %v249
    %v402 = vunpack.c.h.b16 %v249
    %v403 = vunpack.c.l.b16 %v250
    %v404 = vunpack.c.h.b16 %v250
    %v405 = vunpack.c.l.b16 %v251
    %v406 = vunpack.c.h.b16 %v251
    %v407 = vunpack.c.l.b16 %v252
    %v408 = vunpack.c.h.b16 %v252
    %v409 = vunpack.c.l.b16 %v253
    %v410 = vunpack.c.h.b16 %v253
    %v411 = vunpack.c.l.b16 %v254
    %v412 = vunpack.c.h.b16 %v254
    %v413 = vunpack.c.l.b16 %v255
    %v414 = vunpack.c.h.b16 %v255
    %v415 = vunpack.c.l.b16 %v256
    %v416 = vunpack.c.h.b16 %v256
    %v417 = vunpack.c.l.b16 %v257
    %v418 = vunpack.c.h.b16 %v257
    %v419 = vunpack.c.l.b16 %v258
    %v420 = vunpack.c.h.b16 %v258
    %v421 = vunpack.c.l.b16 %v259
    %v422 = vunpack.c.h.b16 %v259
    %v423 = vunpack.c.l.b16 %v260
    %v424 = vunpack.c.h.b16 %v260
    %v425 = vunpack.c.l.b16 %v261
    %v426 = vunpack.c.h.b16 %v261
    %v427 = vunpack.c.l.b16 %v262
    %v428 = vunpack.c.h.b16 %v262
    %v429 = vunpack.c.l.b16 %v263
    %v430 = vunpack.c.h.b16 %v263
    %v431 = vunpack.c.l.b16 %v264
    %v432 = vunpack.c.h.b16 %v264
    %v433 = vunpack.c.l.b16 %v265
    %v434 = vunpack.c.h.b16 %v265
    %v435 = vunpack.c.l.b16 %v266
    %v436 = vunpack.c.h.b16 %v266
    %v437 = vunpack.c.l.b16 %v267
    %v438 = vunpack.c.h.b16 %v267
    %v439 = vunpack.c.l.b16 %v268
    %v440 = vunpack.c.h.b16 %v268
    %v441 = vunpack.c.l.b16 %v269
    %v442 = vunpack.c.h.b16 %v269
    %v443 = vunpack.c.l.b16 %v270
    %v444 = vunpack.c.h.b16 %v270
    %v445 = vunpack.c.l.b16 %v271
    %v446 = vunpack.c.h.b16 %v271
    %v447 = vunpack.c.l.b16 %v272
    %v448 = vunpack.c.h.b16 %v272
    %v449 = vunpack.c.l.b16 %v273
    %v450 = vunpack.c.h.b16 %v273
    %v451 = vunpack.c.l.b16 %v274
    %v452 = vunpack.c.h.b16 %v274
    %v453 = vunpack.c.l.b16 %v275
    %v454 = vunpack.c.h.b16 %v275
    %v455 = vunpack.c.l.b16 %v276
    %v456 = vunpack.c.h.b16 %v276
    %v457 = vunpack.c.l.b16 %v277
    %v458 = vunpack.c.h.b16 %v277
    %v459 = vunpack.c.l.b16 %v278
    %v460 = vunpack.c.h.b16 %v278
    %v461 = vunpack.c.l.b16 %v279
    %v462 = vunpack.c.h.b16 %v279
    %v463 = vunpack.c.l.b16 %v280
    %v464 = vunpack.c.h.b16 %v280
    %v465 = vunpack.c.l.b16 %v281
    %v466 = vunpack.c.h.b16 %v281
    %v467 = vunpack.c.l.b16 %v282
    %v468 = vunpack.c.h.b16 %v282
    %v469 = vunpack.c.l.b16 %v283
    %v470 = vunpack.c.h.b16 %v283
    %v471 = vunpack.c.l.b16 %v284
    %v472 = vunpack.c.h.b16 %v284
    %v473 = vunpack.c.l.b16 %v285
    %v474 = vunpack.c.h.b16 %v285
    %v475 = vunpack.c.l.b16 %v286
    %v476 = vunpack.c.h.b16 %v286
    %v477 = vunpack.c.l.b16 %v287
    %v478 = vunpack.c.h.b16 %v287
    %v479 = vunpack.c.l.b16 %v288
    %v480 = vunpack.c.h.b16 %v288
    %v481 = vpack.c.b16 %v357, %v353
    %v482 = vpack.c.b16 %v358, %v354
    %v483 = vpack.c.b16 %v359, %v355
    %v484 = vpack.c.b16 %v360, %v356
    %v485 = vpack.c.b16 %v365, %v361
    %v486 = vpack.c.b16 %v366, %v362
    %v487 = vpack.c.b16 %v367, %v363
    %v488 = vpack.c.b16 %v368, %v364
    %v489 = vpack.c.b16 %v373, %v369
    %v490 = vpack.c.b16 %v374, %v370
    %v491 = vpack.c.b16 %v375, %v371
    %v492 = vpack.c.b16 %v376, %v372
    %v493 = vpack.c.b16 %v381, %v377
    %v494 = vpack.c.b16 %v382, %v378
    %v495 = vpack.c.b16 %v383, %v379
    %v496 = vpack.c.b16 %v384, %v380
    %v497 = vpack.c.b16 %v389, %v385
    %v498 = vpack.c.b16 %v390, %v386
    %v499 = vpack.c.b16 %v391, %v387
    %v500 = vpack.c.b16 %v392, %v388
    %v501 = vpack.c.b16 %v397, %v393
    %v502 = vpack.c.b16 %v398, %v394
    %v503 = vpack.c.b16 %v399, %v395
    %v504 = vpack.c.b16 %v400, %v396
    %v505 = vpack.c.b16 %v405, %v401
    %v506 = vpack.c.b16 %v406, %v402
    %v507 = vpack.c.b16 %v407, %v403
    %v508 = vpack.c.b16 %v408, %v404
    %v509 = vpack.c.b16 %v413, %v409
    %v510 = vpack.c.b16 %v414, %v410
    %v511 = vpack.c.b16 %v415, %v411
    %v512 = vpack.c.b16 %v416, %v412
    %v513 = vpack.c.b16 %v421, %v417
    %v514 = vpack.c.b16 %v422, %v418
    %v515 = vpack.c.b16 %v423, %v419
    %v516 = vpack.c.b16 %v424, %v420
    %v517 = vpack.c.b16 %v429, %v425
    %v518 = vpack.c.b16 %v430, %v426
    %v519 = vpack.c.b16 %v431, %v427
    %v520 = vpack.c.b16 %v432, %v428
    %v521 = vpack.c.b16 %v437, %v433
    %v522 = vpack.c.b16 %v438, %v434
    %v523 = vpack.c.b16 %v439, %v435
    %v524 = vpack.c.b16 %v440, %v436
    %v525 = vpack.c.b16 %v445, %v441
    %v526 = vpack.c.b16 %v446, %v442
    %v527 = vpack.c.b16 %v447, %v443
    %v528 = vpack.c.b16 %v448, %v444
    %v529 = vpack.c.b16 %v453, %v449
    %v530 = vpack.c.b16 %v454, %v450
    %v531 = vpack.c.b16 %v455, %v451
    %v532 = vpack.c.b16 %v456, %v452
    %v533 = vpack.c.b16 %v461, %v457
    %v534 = vpack.c.b16 %v462, %v458
    %v535 = vpack.c.b16 %v463, %v459
    %v536 = vpack.c.b16 %v464, %v460
    %v537 = vpack.c.b16 %v469, %v465
    %v538 = vpack.c.b16 %v470, %v466
    %v539 = vpack.c.b16 %v471, %v467
    %v540 = vpack.c.b16 %v472, %v468
    %v541 = vpack.c.b16 %v477, %v473
    %v542 = vpack.c.b16 %v478, %v474
    %v543 = vpack.c.b16 %v479, %v475
    %v544 = vpack.c.b16 %v480, %v476
    %609 = vmatprep.subr.bf16.mxu0 %v510
    %610 = vmatpush1.bf16.msra.mxu0 %v509
    %611 = vmatprep.subr.bf16.mxu0 %v506
    %612 = vmatpush1.bf16.msra.mxu0 %v505
    %613 = vmatprep.subr.bf16.mxu0 %v502
    %614 = vmatpush1.bf16.msra.mxu0 %v501
    %615 = vmatprep.subr.bf16.mxu0 %v498
    %616 = vmatpush1.bf16.msra.mxu0 %v497
    %617 = vmatprep.subr.bf16.mxu0 %v494
    %618 = vmatpush1.bf16.msra.mxu0 %v493
    %619 = vmatprep.subr.bf16.mxu0 %v490
    %620 = vmatpush1.bf16.msra.mxu0 %v489
    %621 = vmatprep.subr.bf16.mxu0 %v486
    %622 = vmatpush1.bf16.msra.mxu0 %v485
    %623 = vmatprep.subr.bf16.mxu0 %v482
    %624 = vmatpush1.bf16.msra.mxu0 %v481
    %625 = vmatprep.subr.bf16.mxu0 %v542
    %626 = vmatpush2.bf16.msra.mxu0 %v541
    %627 = vmatprep.subr.bf16.mxu0 %v538
    %628 = vmatpush2.bf16.msra.mxu0 %v537
    %629 = vmatprep.subr.bf16.mxu0 %v534
    %630 = vmatpush2.bf16.msra.mxu0 %v533
    %631 = vmatprep.subr.bf16.mxu0 %v530
    %632 = vmatpush2.bf16.msra.mxu0 %v529
    %633 = vmatprep.subr.bf16.mxu0 %v526
    %634 = vmatpush2.bf16.msra.mxu0 %v525
    %635 = vmatprep.subr.bf16.mxu0 %v522
    %636 = vmatpush2.bf16.msra.mxu0 %v521
    %637 = vmatprep.subr.bf16.mxu0 %v518
    %638 = vmatpush2.bf16.msra.mxu0 %v517
    %639 = vmatprep.subr.bf16.mxu0 %v514
    %640 = vmatpush2.bf16.msra.mxu0 %v513
    %641 = vmatprep.mubr.bf16.mxu0 %v224
    %642 = vmatmul.mubr.bf16.gmra.mxu0 %v223
    %v643 = vpop.f32.mrf.mxu0
    %v644 = vadd.f32 0.0, %v643
    %v645 = vpop.f32.mrf.mxu0
    %v646 = vadd.f32 0.0, %v645
    %v647 = vpop.f32.mrf.mxu0
    %v648 = vadd.f32 0.0, %v647
    %v649 = vpop.f32.mrf.mxu0
    %v650 = vadd.f32 0.0, %v649
    %651 = vdwg.mxu0
    %652 = vmatprep.subr.bf16.mxu0 %v512
    %653 = vmatpush1.bf16.msra.mxu0 %v511
    %654 = vmatprep.subr.bf16.mxu0 %v508
    %655 = vmatpush1.bf16.msra.mxu0 %v507
    %656 = vmatprep.subr.bf16.mxu0 %v504
    %657 = vmatpush1.bf16.msra.mxu0 %v503
    %658 = vmatprep.subr.bf16.mxu0 %v500
    %659 = vmatpush1.bf16.msra.mxu0 %v499
    %660 = vmatprep.subr.bf16.mxu0 %v496
    %661 = vmatpush1.bf16.msra.mxu0 %v495
    %662 = vmatprep.subr.bf16.mxu0 %v492
    %663 = vmatpush1.bf16.msra.mxu0 %v491
    %664 = vmatprep.subr.bf16.mxu0 %v488
    %665 = vmatpush1.bf16.msra.mxu0 %v487
    %666 = vmatprep.subr.bf16.mxu0 %v484
    %667 = vmatpush1.bf16.msra.mxu0 %v483
    %668 = vmatprep.subr.bf16.mxu0 %v544
    %669 = vmatpush2.bf16.msra.mxu0 %v543
    %670 = vmatprep.subr.bf16.mxu0 %v540
    %671 = vmatpush2.bf16.msra.mxu0 %v539
    %672 = vmatprep.subr.bf16.mxu0 %v536
    %673 = vmatpush2.bf16.msra.mxu0 %v535
    %674 = vmatprep.subr.bf16.mxu0 %v532
    %675 = vmatpush2.bf16.msra.mxu0 %v531
    %676 = vmatprep.subr.bf16.mxu0 %v528
    %677 = vmatpush2.bf16.msra.mxu0 %v527
    %678 = vmatprep.subr.bf16.mxu0 %v524
    %679 = vmatpush2.bf16.msra.mxu0 %v523
    %680 = vmatprep.subr.bf16.mxu0 %v520
    %681 = vmatpush2.bf16.msra.mxu0 %v519
    %682 = vmatprep.subr.bf16.mxu0 %v516
    %683 = vmatpush2.bf16.msra.mxu0 %v515
    %684 = vmatprep.mubr.bf16.mxu0 %v224
    %685 = vmatmul.mubr.bf16.gmra.mxu0 %v223
    %v686 = vpop.f32.mrf.mxu0
    %v687 = vadd.f32 0.0, %v686
    %v688 = vpop.f32.mrf.mxu0
    %v689 = vadd.f32 0.0, %v688
    %v690 = vpop.f32.mrf.mxu0
    %v691 = vadd.f32 0.0, %v690
    %v692 = vpop.f32.mrf.mxu0
    %v693 = vadd.f32 0.0, %v692
    %694 = vdwg.mxu0
    %s695 = scalar_lea.vmem %s1, 512
    %v696 = vld [vmem:[%s695] sm:$0xff]
    %v697 = vld [vmem:[%s695 + $0x8] sm:$0xff]
    %v698 = vld [vmem:[%s695 + $0x10] sm:$0xff]
    %v699 = vld [vmem:[%s695 + $0x18] sm:$0xff]
    %v700 = vld [vmem:[%s695 + $0x20] sm:$0xff]
    %v701 = vld [vmem:[%s695 + $0x28] sm:$0xff]
    %v702 = vld [vmem:[%s695 + $0x30] sm:$0xff]
    %v703 = vld [vmem:[%s695 + $0x38] sm:$0xff]
    %v704 = vld [vmem:[%s695 + $0x40] sm:$0xff]
    %v705 = vld [vmem:[%s695 + $0x48] sm:$0xff]
    %v706 = vld [vmem:[%s695 + $0x50] sm:$0xff]
    %v707 = vld [vmem:[%s695 + $0x58] sm:$0xff]
    %v708 = vld [vmem:[%s695 + $0x60] sm:$0xff]
    %v709 = vld [vmem:[%s695 + $0x68] sm:$0xff]
    %v710 = vld [vmem:[%s695 + $0x70] sm:$0xff]
    %v711 = vld [vmem:[%s695 + $0x78] sm:$0xff]
    %v712 = vld [vmem:[%s695 + $0x80] sm:$0xff]
    %v713 = vld [vmem:[%s695 + $0x88] sm:$0xff]
    %v714 = vld [vmem:[%s695 + $0x90] sm:$0xff]
    %v715 = vld [vmem:[%s695 + $0x98] sm:$0xff]
    %v716 = vld [vmem:[%s695 + $0xa0] sm:$0xff]
    %v717 = vld [vmem:[%s695 + $0xa8] sm:$0xff]
    %v718 = vld [vmem:[%s695 + $0xb0] sm:$0xff]
    %v719 = vld [vmem:[%s695 + $0xb8] sm:$0xff]
    %v720 = vld [vmem:[%s695 + $0xc0] sm:$0xff]
    %v721 = vld [vmem:[%s695 + $0xc8] sm:$0xff]
    %v722 = vld [vmem:[%s695 + $0xd0] sm:$0xff]
    %v723 = vld [vmem:[%s695 + $0xd8] sm:$0xff]
    %v724 = vld [vmem:[%s695 + $0xe0] sm:$0xff]
    %v725 = vld [vmem:[%s695 + $0xe8] sm:$0xff]
    %v726 = vld [vmem:[%s695 + $0xf0] sm:$0xff]
    %v727 = vld [vmem:[%s695 + $0xf8] sm:$0xff]
    %v728 = vld [vmem:[%s695 + $0x100] sm:$0xff]
    %v729 = vld [vmem:[%s695 + $0x108] sm:$0xff]
    %v730 = vld [vmem:[%s695 + $0x110] sm:$0xff]
    %v731 = vld [vmem:[%s695 + $0x118] sm:$0xff]
    %v732 = vld [vmem:[%s695 + $0x120] sm:$0xff]
    %v733 = vld [vmem:[%s695 + $0x128] sm:$0xff]
    %v734 = vld [vmem:[%s695 + $0x130] sm:$0xff]
    %v735 = vld [vmem:[%s695 + $0x138] sm:$0xff]
    %v736 = vld [vmem:[%s695 + $0x140] sm:$0xff]
    %v737 = vld [vmem:[%s695 + $0x148] sm:$0xff]
    %v738 = vld [vmem:[%s695 + $0x150] sm:$0xff]
    %v739 = vld [vmem:[%s695 + $0x158] sm:$0xff]
    %v740 = vld [vmem:[%s695 + $0x160] sm:$0xff]
    %v741 = vld [vmem:[%s695 + $0x168] sm:$0xff]
    %v742 = vld [vmem:[%s695 + $0x170] sm:$0xff]
    %v743 = vld [vmem:[%s695 + $0x178] sm:$0xff]
    %v744 = vld [vmem:[%s695 + $0x180] sm:$0xff]
    %v745 = vld [vmem:[%s695 + $0x188] sm:$0xff]
    %v746 = vld [vmem:[%s695 + $0x190] sm:$0xff]
    %v747 = vld [vmem:[%s695 + $0x198] sm:$0xff]
    %v748 = vld [vmem:[%s695 + $0x1a0] sm:$0xff]
    %v749 = vld [vmem:[%s695 + $0x1a8] sm:$0xff]
    %v750 = vld [vmem:[%s695 + $0x1b0] sm:$0xff]
    %v751 = vld [vmem:[%s695 + $0x1b8] sm:$0xff]
    %v752 = vld [vmem:[%s695 + $0x1c0] sm:$0xff]
    %v753 = vld [vmem:[%s695 + $0x1c8] sm:$0xff]
    %v754 = vld [vmem:[%s695 + $0x1d0] sm:$0xff]
    %v755 = vld [vmem:[%s695 + $0x1d8] sm:$0xff]
    %v756 = vld [vmem:[%s695 + $0x1e0] sm:$0xff]
    %v757 = vld [vmem:[%s695 + $0x1e8] sm:$0xff]
    %v758 = vld [vmem:[%s695 + $0x1f0] sm:$0xff]
    %v759 = vld [vmem:[%s695 + $0x1f8] sm:$0xff]
    %v824 = vunpack.c.l.b16 %v696
    %v825 = vunpack.c.h.b16 %v696
    %v826 = vunpack.c.l.b16 %v697
    %v827 = vunpack.c.h.b16 %v697
    %v828 = vunpack.c.l.b16 %v698
    %v829 = vunpack.c.h.b16 %v698
    %v830 = vunpack.c.l.b16 %v699
    %v831 = vunpack.c.h.b16 %v699
    %v832 = vunpack.c.l.b16 %v700
    %v833 = vunpack.c.h.b16 %v700
    %v834 = vunpack.c.l.b16 %v701
    %v835 = vunpack.c.h.b16 %v701
    %v836 = vunpack.c.l.b16 %v702
    %v837 = vunpack.c.h.b16 %v702
    %v838 = vunpack.c.l.b16 %v703
    %v839 = vunpack.c.h.b16 %v703
    %v840 = vunpack.c.l.b16 %v704
    %v841 = vunpack.c.h.b16 %v704
    %v842 = vunpack.c.l.b16 %v705
    %v843 = vunpack.c.h.b16 %v705
    %v844 = vunpack.c.l.b16 %v706
    %v845 = vunpack.c.h.b16 %v706
    %v846 = vunpack.c.l.b16 %v707
    %v847 = vunpack.c.h.b16 %v707
    %v848 = vunpack.c.l.b16 %v708
    %v849 = vunpack.c.h.b16 %v708
    %v850 = vunpack.c.l.b16 %v709
    %v851 = vunpack.c.h.b16 %v709
    %v852 = vunpack.c.l.b16 %v710
    %v853 = vunpack.c.h.b16 %v710
    %v854 = vunpack.c.l.b16 %v711
    %v855 = vunpack.c.h.b16 %v711
    %v856 = vunpack.c.l.b16 %v712
    %v857 = vunpack.c.h.b16 %v712
    %v858 = vunpack.c.l.b16 %v713
    %v859 = vunpack.c.h.b16 %v713
    %v860 = vunpack.c.l.b16 %v714
    %v861 = vunpack.c.h.b16 %v714
    %v862 = vunpack.c.l.b16 %v715
    %v863 = vunpack.c.h.b16 %v715
    %v864 = vunpack.c.l.b16 %v716
    %v865 = vunpack.c.h.b16 %v716
    %v866 = vunpack.c.l.b16 %v717
    %v867 = vunpack.c.h.b16 %v717
    %v868 = vunpack.c.l.b16 %v718
    %v869 = vunpack.c.h.b16 %v718
    %v870 = vunpack.c.l.b16 %v719
    %v871 = vunpack.c.h.b16 %v719
    %v872 = vunpack.c.l.b16 %v720
    %v873 = vunpack.c.h.b16 %v720
    %v874 = vunpack.c.l.b16 %v721
    %v875 = vunpack.c.h.b16 %v721
    %v876 = vunpack.c.l.b16 %v722
    %v877 = vunpack.c.h.b16 %v722
    %v878 = vunpack.c.l.b16 %v723
    %v879 = vunpack.c.h.b16 %v723
    %v880 = vunpack.c.l.b16 %v724
    %v881 = vunpack.c.h.b16 %v724
    %v882 = vunpack.c.l.b16 %v725
    %v883 = vunpack.c.h.b16 %v725
    %v884 = vunpack.c.l.b16 %v726
    %v885 = vunpack.c.h.b16 %v726
    %v886 = vunpack.c.l.b16 %v727
    %v887 = vunpack.c.h.b16 %v727
    %v888 = vunpack.c.l.b16 %v728
    %v889 = vunpack.c.h.b16 %v728
    %v890 = vunpack.c.l.b16 %v729
    %v891 = vunpack.c.h.b16 %v729
    %v892 = vunpack.c.l.b16 %v730
    %v893 = vunpack.c.h.b16 %v730
    %v894 = vunpack.c.l.b16 %v731
    %v895 = vunpack.c.h.b16 %v731
    %v896 = vunpack.c.l.b16 %v732
    %v897 = vunpack.c.h.b16 %v732
    %v898 = vunpack.c.l.b16 %v733
    %v899 = vunpack.c.h.b16 %v733
    %v900 = vunpack.c.l.b16 %v734
    %v901 = vunpack.c.h.b16 %v734
    %v902 = vunpack.c.l.b16 %v735
    %v903 = vunpack.c.h.b16 %v735
    %v904 = vunpack.c.l.b16 %v736
    %v905 = vunpack.c.h.b16 %v736
    %v906 = vunpack.c.l.b16 %v737
    %v907 = vunpack.c.h.b16 %v737
    %v908 = vunpack.c.l.b16 %v738
    %v909 = vunpack.c.h.b16 %v738
    %v910 = vunpack.c.l.b16 %v739
    %v911 = vunpack.c.h.b16 %v739
    %v912 = vunpack.c.l.b16 %v740
    %v913 = vunpack.c.h.b16 %v740
    %v914 = vunpack.c.l.b16 %v741
    %v915 = vunpack.c.h.b16 %v741
    %v916 = vunpack.c.l.b16 %v742
    %v917 = vunpack.c.h.b16 %v742
    %v918 = vunpack.c.l.b16 %v743
    %v919 = vunpack.c.h.b16 %v743
    %v920 = vunpack.c.l.b16 %v744
    %v921 = vunpack.c.h.b16 %v744
    %v922 = vunpack.c.l.b16 %v745
    %v923 = vunpack.c.h.b16 %v745
    %v924 = vunpack.c.l.b16 %v746
    %v925 = vunpack.c.h.b16 %v746
    %v926 = vunpack.c.l.b16 %v747
    %v927 = vunpack.c.h.b16 %v747
    %v928 = vunpack.c.l.b16 %v748
    %v929 = vunpack.c.h.b16 %v748
    %v930 = vunpack.c.l.b16 %v749
    %v931 = vunpack.c.h.b16 %v749
    %v932 = vunpack.c.l.b16 %v750
    %v933 = vunpack.c.h.b16 %v750
    %v934 = vunpack.c.l.b16 %v751
    %v935 = vunpack.c.h.b16 %v751
    %v936 = vunpack.c.l.b16 %v752
    %v937 = vunpack.c.h.b16 %v752
    %v938 = vunpack.c.l.b16 %v753
    %v939 = vunpack.c.h.b16 %v753
    %v940 = vunpack.c.l.b16 %v754
    %v941 = vunpack.c.h.b16 %v754
    %v942 = vunpack.c.l.b16 %v755
    %v943 = vunpack.c.h.b16 %v755
    %v944 = vunpack.c.l.b16 %v756
    %v945 = vunpack.c.h.b16 %v756
    %v946 = vunpack.c.l.b16 %v757
    %v947 = vunpack.c.h.b16 %v757
    %v948 = vunpack.c.l.b16 %v758
    %v949 = vunpack.c.h.b16 %v758
    %v950 = vunpack.c.l.b16 %v759
    %v951 = vunpack.c.h.b16 %v759
    %v952 = vpack.c.b16 %v828, %v824
    %v953 = vpack.c.b16 %v829, %v825
    %v954 = vpack.c.b16 %v830, %v826
    %v955 = vpack.c.b16 %v831, %v827
    %v956 = vpack.c.b16 %v836, %v832
    %v957 = vpack.c.b16 %v837, %v833
    %v958 = vpack.c.b16 %v838, %v834
    %v959 = vpack.c.b16 %v839, %v835
    %v960 = vpack.c.b16 %v844, %v840
    %v961 = vpack.c.b16 %v845, %v841
    %v962 = vpack.c.b16 %v846, %v842
    %v963 = vpack.c.b16 %v847, %v843
    %v964 = vpack.c.b16 %v852, %v848
    %v965 = vpack.c.b16 %v853, %v849
    %v966 = vpack.c.b16 %v854, %v850
    %v967 = vpack.c.b16 %v855, %v851
    %v968 = vpack.c.b16 %v860, %v856
    %v969 = vpack.c.b16 %v861, %v857
    %v970 = vpack.c.b16 %v862, %v858
    %v971 = vpack.c.b16 %v863, %v859
    %v972 = vpack.c.b16 %v868, %v864
    %v973 = vpack.c.b16 %v869, %v865
    %v974 = vpack.c.b16 %v870, %v866
    %v975 = vpack.c.b16 %v871, %v867
    %v976 = vpack.c.b16 %v876, %v872
    %v977 = vpack.c.b16 %v877, %v873
    %v978 = vpack.c.b16 %v878, %v874
    %v979 = vpack.c.b16 %v879, %v875
    %v980 = vpack.c.b16 %v884, %v880
    %v981 = vpack.c.b16 %v885, %v881
    %v982 = vpack.c.b16 %v886, %v882
    %v983 = vpack.c.b16 %v887, %v883
    %v984 = vpack.c.b16 %v892, %v888
    %v985 = vpack.c.b16 %v893, %v889
    %v986 = vpack.c.b16 %v894, %v890
    %v987 = vpack.c.b16 %v895, %v891
    %v988 = vpack.c.b16 %v900, %v896
    %v989 = vpack.c.b16 %v901, %v897
    %v990 = vpack.c.b16 %v902, %v898
    %v991 = vpack.c.b16 %v903, %v899
    %v992 = vpack.c.b16 %v908, %v904
    %v993 = vpack.c.b16 %v909, %v905
    %v994 = vpack.c.b16 %v910, %v906
    %v995 = vpack.c.b16 %v911, %v907
    %v996 = vpack.c.b16 %v916, %v912
    %v997 = vpack.c.b16 %v917, %v913
    %v998 = vpack.c.b16 %v918, %v914
    %v999 = vpack.c.b16 %v919, %v915
    %v1000 = vpack.c.b16 %v924, %v920
    %v1001 = vpack.c.b16 %v925, %v921
    %v1002 = vpack.c.b16 %v926, %v922
    %v1003 = vpack.c.b16 %v927, %v923
    %v1004 = vpack.c.b16 %v932, %v928
    %v1005 = vpack.c.b16 %v933, %v929
    %v1006 = vpack.c.b16 %v934, %v930
    %v1007 = vpack.c.b16 %v935, %v931
    %v1008 = vpack.c.b16 %v940, %v936
    %v1009 = vpack.c.b16 %v941, %v937
    %v1010 = vpack.c.b16 %v942, %v938
    %v1011 = vpack.c.b16 %v943, %v939
    %v1012 = vpack.c.b16 %v948, %v944
    %v1013 = vpack.c.b16 %v949, %v945
    %v1014 = vpack.c.b16 %v950, %v946
    %v1015 = vpack.c.b16 %v951, %v947
    %1080 = vmatprep.subr.bf16.mxu0 %v981
    %1081 = vmatpush1.bf16.msra.mxu0 %v980
    %1082 = vmatprep.subr.bf16.mxu0 %v977
    %1083 = vmatpush1.bf16.msra.mxu0 %v976
    %1084 = vmatprep.subr.bf16.mxu0 %v973
    %1085 = vmatpush1.bf16.msra.mxu0 %v972
    %1086 = vmatprep.subr.bf16.mxu0 %v969
    %1087 = vmatpush1.bf16.msra.mxu0 %v968
    %1088 = vmatprep.subr.bf16.mxu0 %v965
    %1089 = vmatpush1.bf16.msra.mxu0 %v964
    %1090 = vmatprep.subr.bf16.mxu0 %v961
    %1091 = vmatpush1.bf16.msra.mxu0 %v960
    %1092 = vmatprep.subr.bf16.mxu0 %v957
    %1093 = vmatpush1.bf16.msra.mxu0 %v956
    %1094 = vmatprep.subr.bf16.mxu0 %v953
    %1095 = vmatpush1.bf16.msra.mxu0 %v952
    %1096 = vmatprep.subr.bf16.mxu0 %v1013
    %1097 = vmatpush2.bf16.msra.mxu0 %v1012
    %1098 = vmatprep.subr.bf16.mxu0 %v1009
    %1099 = vmatpush2.bf16.msra.mxu0 %v1008
    %1100 = vmatprep.subr.bf16.mxu0 %v1005
    %1101 = vmatpush2.bf16.msra.mxu0 %v1004
    %1102 = vmatprep.subr.bf16.mxu0 %v1001
    %1103 = vmatpush2.bf16.msra.mxu0 %v1000
    %1104 = vmatprep.subr.bf16.mxu0 %v997
    %1105 = vmatpush2.bf16.msra.mxu0 %v996
    %1106 = vmatprep.subr.bf16.mxu0 %v993
    %1107 = vmatpush2.bf16.msra.mxu0 %v992
    %1108 = vmatprep.subr.bf16.mxu0 %v989
    %1109 = vmatpush2.bf16.msra.mxu0 %v988
    %1110 = vmatprep.subr.bf16.mxu0 %v985
    %1111 = vmatpush2.bf16.msra.mxu0 %v984
    %1112 = vmatprep.mubr.bf16.mxu0 %v224
    %1113 = vmatmul.mubr.bf16.gmra.mxu0 %v223
    %v1114 = vpop.f32.mrf.mxu0
    %v1115 = vadd.f32 0.0, %v1114
    %v1116 = vpop.f32.mrf.mxu0
    %v1117 = vadd.f32 0.0, %v1116
    %v1118 = vpop.f32.mrf.mxu0
    %v1119 = vadd.f32 0.0, %v1118
    %v1120 = vpop.f32.mrf.mxu0
    %v1121 = vadd.f32 0.0, %v1120
    %1122 = vdwg.mxu0
    %1123 = vmatprep.subr.bf16.mxu0 %v983
    %1124 = vmatpush1.bf16.msra.mxu0 %v982
    %1125 = vmatprep.subr.bf16.mxu0 %v979
    %1126 = vmatpush1.bf16.msra.mxu0 %v978
    %1127 = vmatprep.subr.bf16.mxu0 %v975
    %1128 = vmatpush1.bf16.msra.mxu0 %v974
    %1129 = vmatprep.subr.bf16.mxu0 %v971
    %1130 = vmatpush1.bf16.msra.mxu0 %v970
    %1131 = vmatprep.subr.bf16.mxu0 %v967
    %1132 = vmatpush1.bf16.msra.mxu0 %v966
    %1133 = vmatprep.subr.bf16.mxu0 %v963
    %1134 = vmatpush1.bf16.msra.mxu0 %v962
    %1135 = vmatprep.subr.bf16.mxu0 %v959
    %1136 = vmatpush1.bf16.msra.mxu0 %v958
    %1137 = vmatprep.subr.bf16.mxu0 %v955
    %1138 = vmatpush1.bf16.msra.mxu0 %v954
    %1139 = vmatprep.subr.bf16.mxu0 %v1015
    %1140 = vmatpush2.bf16.msra.mxu0 %v1014
    %1141 = vmatprep.subr.bf16.mxu0 %v1011
    %1142 = vmatpush2.bf16.msra.mxu0 %v1010
    %1143 = vmatprep.subr.bf16.mxu0 %v1007
    %1144 = vmatpush2.bf16.msra.mxu0 %v1006
    %1145 = vmatprep.subr.bf16.mxu0 %v1003
    %1146 = vmatpush2.bf16.msra.mxu0 %v1002
    %1147 = vmatprep.subr.bf16.mxu0 %v999
    %1148 = vmatpush2.bf16.msra.mxu0 %v998
    %1149 = vmatprep.subr.bf16.mxu0 %v995
    %1150 = vmatpush2.bf16.msra.mxu0 %v994
    %1151 = vmatprep.subr.bf16.mxu0 %v991
    %1152 = vmatpush2.bf16.msra.mxu0 %v990
    %1153 = vmatprep.subr.bf16.mxu0 %v987
    %1154 = vmatpush2.bf16.msra.mxu0 %v986
    %1155 = vmatprep.mubr.bf16.mxu0 %v224
    %1156 = vmatmul.mubr.bf16.gmra.mxu0 %v223
    %v1157 = vpop.f32.mrf.mxu0
    %v1158 = vadd.f32 0.0, %v1157
    %v1159 = vpop.f32.mrf.mxu0
    %v1160 = vadd.f32 0.0, %v1159
    %v1161 = vpop.f32.mrf.mxu0
    %v1162 = vadd.f32 0.0, %v1161
    %v1163 = vpop.f32.mrf.mxu0
    %v1164 = vadd.f32 0.0, %v1163
    %1165 = vdwg.mxu0
    %s1166 = scalar_lea.vmem %s1, 1024
    %v1167 = vld [vmem:[%s1166] sm:$0xff]
    %v1168 = vld [vmem:[%s1166 + $0x8] sm:$0xff]
    %v1169 = vld [vmem:[%s1166 + $0x10] sm:$0xff]
    %v1170 = vld [vmem:[%s1166 + $0x18] sm:$0xff]
    %v1171 = vld [vmem:[%s1166 + $0x20] sm:$0xff]
    %v1172 = vld [vmem:[%s1166 + $0x28] sm:$0xff]
    %v1173 = vld [vmem:[%s1166 + $0x30] sm:$0xff]
    %v1174 = vld [vmem:[%s1166 + $0x38] sm:$0xff]
    %v1175 = vld [vmem:[%s1166 + $0x40] sm:$0xff]
    %v1176 = vld [vmem:[%s1166 + $0x48] sm:$0xff]
    %v1177 = vld [vmem:[%s1166 + $0x50] sm:$0xff]
    %v1178 = vld [vmem:[%s1166 + $0x58] sm:$0xff]
    %v1179 = vld [vmem:[%s1166 + $0x60] sm:$0xff]
    %v1180 = vld [vmem:[%s1166 + $0x68] sm:$0xff]
    %v1181 = vld [vmem:[%s1166 + $0x70] sm:$0xff]
    %v1182 = vld [vmem:[%s1166 + $0x78] sm:$0xff]
    %v1183 = vld [vmem:[%s1166 + $0x80] sm:$0xff]
    %v1184 = vld [vmem:[%s1166 + $0x88] sm:$0xff]
    %v1185 = vld [vmem:[%s1166 + $0x90] sm:$0xff]
    %v1186 = vld [vmem:[%s1166 + $0x98] sm:$0xff]
    %v1187 = vld [vmem:[%s1166 + $0xa0] sm:$0xff]
    %v1188 = vld [vmem:[%s1166 + $0xa8] sm:$0xff]
    %v1189 = vld [vmem:[%s1166 + $0xb0] sm:$0xff]
    %v1190 = vld [vmem:[%s1166 + $0xb8] sm:$0xff]
    %v1191 = vld [vmem:[%s1166 + $0xc0] sm:$0xff]
    %v1192 = vld [vmem:[%s1166 + $0xc8] sm:$0xff]
    %v1193 = vld [vmem:[%s1166 + $0xd0] sm:$0xff]
    %v1194 = vld [vmem:[%s1166 + $0xd8] sm:$0xff]
    %v1195 = vld [vmem:[%s1166 + $0xe0] sm:$0xff]
    %v1196 = vld [vmem:[%s1166 + $0xe8] sm:$0xff]
    %v1197 = vld [vmem:[%s1166 + $0xf0] sm:$0xff]
    %v1198 = vld [vmem:[%s1166 + $0xf8] sm:$0xff]
    %v1199 = vld [vmem:[%s1166 + $0x100] sm:$0xff]
    %v1200 = vld [vmem:[%s1166 + $0x108] sm:$0xff]
    %v1201 = vld [vmem:[%s1166 + $0x110] sm:$0xff]
    %v1202 = vld [vmem:[%s1166 + $0x118] sm:$0xff]
    %v1203 = vld [vmem:[%s1166 + $0x120] sm:$0xff]
    %v1204 = vld [vmem:[%s1166 + $0x128] sm:$0xff]
    %v1205 = vld [vmem:[%s1166 + $0x130] sm:$0xff]
    %v1206 = vld [vmem:[%s1166 + $0x138] sm:$0xff]
    %v1207 = vld [vmem:[%s1166 + $0x140] sm:$0xff]
    %v1208 = vld [vmem:[%s1166 + $0x148] sm:$0xff]
    %v1209 = vld [vmem:[%s1166 + $0x150] sm:$0xff]
    %v1210 = vld [vmem:[%s1166 + $0x158] sm:$0xff]
    %v1211 = vld [vmem:[%s1166 + $0x160] sm:$0xff]
    %v1212 = vld [vmem:[%s1166 + $0x168] sm:$0xff]
    %v1213 = vld [vmem:[%s1166 + $0x170] sm:$0xff]
    %v1214 = vld [vmem:[%s1166 + $0x178] sm:$0xff]
    %v1215 = vld [vmem:[%s1166 + $0x180] sm:$0xff]
    %v1216 = vld [vmem:[%s1166 + $0x188] sm:$0xff]
    %v1217 = vld [vmem:[%s1166 + $0x190] sm:$0xff]
    %v1218 = vld [vmem:[%s1166 + $0x198] sm:$0xff]
    %v1219 = vld [vmem:[%s1166 + $0x1a0] sm:$0xff]
    %v1220 = vld [vmem:[%s1166 + $0x1a8] sm:$0xff]
    %v1221 = vld [vmem:[%s1166 + $0x1b0] sm:$0xff]
    %v1222 = vld [vmem:[%s1166 + $0x1b8] sm:$0xff]
    %v1223 = vld [vmem:[%s1166 + $0x1c0] sm:$0xff]
    %v1224 = vld [vmem:[%s1166 + $0x1c8] sm:$0xff]
    %v1225 = vld [vmem:[%s1166 + $0x1d0] sm:$0xff]
    %v1226 = vld [vmem:[%s1166 + $0x1d8] sm:$0xff]
    %v1227 = vld [vmem:[%s1166 + $0x1e0] sm:$0xff]
    %v1228 = vld [vmem:[%s1166 + $0x1e8] sm:$0xff]
    %v1229 = vld [vmem:[%s1166 + $0x1f0] sm:$0xff]
    %v1230 = vld [vmem:[%s1166 + $0x1f8] sm:$0xff]
    %v1295 = vunpack.c.l.b16 %v1167
    %v1296 = vunpack.c.h.b16 %v1167
    %v1297 = vunpack.c.l.b16 %v1168
    %v1298 = vunpack.c.h.b16 %v1168
    %v1299 = vunpack.c.l.b16 %v1169
    %v1300 = vunpack.c.h.b16 %v1169
    %v1301 = vunpack.c.l.b16 %v1170
    %v1302 = vunpack.c.h.b16 %v1170
    %v1303 = vunpack.c.l.b16 %v1171
    %v1304 = vunpack.c.h.b16 %v1171
    %v1305 = vunpack.c.l.b16 %v1172
    %v1306 = vunpack.c.h.b16 %v1172
    %v1307 = vunpack.c.l.b16 %v1173
    %v1308 = vunpack.c.h.b16 %v1173
    %v1309 = vunpack.c.l.b16 %v1174
    %v1310 = vunpack.c.h.b16 %v1174
    %v1311 = vunpack.c.l.b16 %v1175
    %v1312 = vunpack.c.h.b16 %v1175
    %v1313 = vunpack.c.l.b16 %v1176
    %v1314 = vunpack.c.h.b16 %v1176
    %v1315 = vunpack.c.l.b16 %v1177
    %v1316 = vunpack.c.h.b16 %v1177
    %v1317 = vunpack.c.l.b16 %v1178
    %v1318 = vunpack.c.h.b16 %v1178
    %v1319 = vunpack.c.l.b16 %v1179
    %v1320 = vunpack.c.h.b16 %v1179
    %v1321 = vunpack.c.l.b16 %v1180
    %v1322 = vunpack.c.h.b16 %v1180
    %v1323 = vunpack.c.l.b16 %v1181
    %v1324 = vunpack.c.h.b16 %v1181
    %v1325 = vunpack.c.l.b16 %v1182
    %v1326 = vunpack.c.h.b16 %v1182
    %v1327 = vunpack.c.l.b16 %v1183
    %v1328 = vunpack.c.h.b16 %v1183
    %v1329 = vunpack.c.l.b16 %v1184
    %v1330 = vunpack.c.h.b16 %v1184
    %v1331 = vunpack.c.l.b16 %v1185
    %v1332 = vunpack.c.h.b16 %v1185
    %v1333 = vunpack.c.l.b16 %v1186
    %v1334 = vunpack.c.h.b16 %v1186
    %v1335 = vunpack.c.l.b16 %v1187
    %v1336 = vunpack.c.h.b16 %v1187
    %v1337 = vunpack.c.l.b16 %v1188
    %v1338 = vunpack.c.h.b16 %v1188
    %v1339 = vunpack.c.l.b16 %v1189
    %v1340 = vunpack.c.h.b16 %v1189
    %v1341 = vunpack.c.l.b16 %v1190
    %v1342 = vunpack.c.h.b16 %v1190
    %v1343 = vunpack.c.l.b16 %v1191
    %v1344 = vunpack.c.h.b16 %v1191
    %v1345 = vunpack.c.l.b16 %v1192
    %v1346 = vunpack.c.h.b16 %v1192
    %v1347 = vunpack.c.l.b16 %v1193
    %v1348 = vunpack.c.h.b16 %v1193
    %v1349 = vunpack.c.l.b16 %v1194
    %v1350 = vunpack.c.h.b16 %v1194
    %v1351 = vunpack.c.l.b16 %v1195
    %v1352 = vunpack.c.h.b16 %v1195
    %v1353 = vunpack.c.l.b16 %v1196
    %v1354 = vunpack.c.h.b16 %v1196
    %v1355 = vunpack.c.l.b16 %v1197
    %v1356 = vunpack.c.h.b16 %v1197
    %v1357 = vunpack.c.l.b16 %v1198
    %v1358 = vunpack.c.h.b16 %v1198
    %v1359 = vunpack.c.l.b16 %v1199
    %v1360 = vunpack.c.h.b16 %v1199
    %v1361 = vunpack.c.l.b16 %v1200
    %v1362 = vunpack.c.h.b16 %v1200
    %v1363 = vunpack.c.l.b16 %v1201
    %v1364 = vunpack.c.h.b16 %v1201
    %v1365 = vunpack.c.l.b16 %v1202
    %v1366 = vunpack.c.h.b16 %v1202
    %v1367 = vunpack.c.l.b16 %v1203
    %v1368 = vunpack.c.h.b16 %v1203
    %v1369 = vunpack.c.l.b16 %v1204
    %v1370 = vunpack.c.h.b16 %v1204
    %v1371 = vunpack.c.l.b16 %v1205
    %v1372 = vunpack.c.h.b16 %v1205
    %v1373 = vunpack.c.l.b16 %v1206
    %v1374 = vunpack.c.h.b16 %v1206
    %v1375 = vunpack.c.l.b16 %v1207
    %v1376 = vunpack.c.h.b16 %v1207
    %v1377 = vunpack.c.l.b16 %v1208
    %v1378 = vunpack.c.h.b16 %v1208
    %v1379 = vunpack.c.l.b16 %v1209
    %v1380 = vunpack.c.h.b16 %v1209
    %v1381 = vunpack.c.l.b16 %v1210
    %v1382 = vunpack.c.h.b16 %v1210
    %v1383 = vunpack.c.l.b16 %v1211
    %v1384 = vunpack.c.h.b16 %v1211
    %v1385 = vunpack.c.l.b16 %v1212
    %v1386 = vunpack.c.h.b16 %v1212
    %v1387 = vunpack.c.l.b16 %v1213
    %v1388 = vunpack.c.h.b16 %v1213
    %v1389 = vunpack.c.l.b16 %v1214
    %v1390 = vunpack.c.h.b16 %v1214
    %v1391 = vunpack.c.l.b16 %v1215
    %v1392 = vunpack.c.h.b16 %v1215
    %v1393 = vunpack.c.l.b16 %v1216
    %v1394 = vunpack.c.h.b16 %v1216
    %v1395 = vunpack.c.l.b16 %v1217
    %v1396 = vunpack.c.h.b16 %v1217
    %v1397 = vunpack.c.l.b16 %v1218
    %v1398 = vunpack.c.h.b16 %v1218
    %v1399 = vunpack.c.l.b16 %v1219
    %v1400 = vunpack.c.h.b16 %v1219
    %v1401 = vunpack.c.l.b16 %v1220
    %v1402 = vunpack.c.h.b16 %v1220
    %v1403 = vunpack.c.l.b16 %v1221
    %v1404 = vunpack.c.h.b16 %v1221
    %v1405 = vunpack.c.l.b16 %v1222
    %v1406 = vunpack.c.h.b16 %v1222
    %v1407 = vunpack.c.l.b16 %v1223
    %v1408 = vunpack.c.h.b16 %v1223
    %v1409 = vunpack.c.l.b16 %v1224
    %v1410 = vunpack.c.h.b16 %v1224
    %v1411 = vunpack.c.l.b16 %v1225
    %v1412 = vunpack.c.h.b16 %v1225
    %v1413 = vunpack.c.l.b16 %v1226
    %v1414 = vunpack.c.h.b16 %v1226
    %v1415 = vunpack.c.l.b16 %v1227
    %v1416 = vunpack.c.h.b16 %v1227
    %v1417 = vunpack.c.l.b16 %v1228
    %v1418 = vunpack.c.h.b16 %v1228
    %v1419 = vunpack.c.l.b16 %v1229
    %v1420 = vunpack.c.h.b16 %v1229
    %v1421 = vunpack.c.l.b16 %v1230
    %v1422 = vunpack.c.h.b16 %v1230
    %v1423 = vpack.c.b16 %v1299, %v1295
    %v1424 = vpack.c.b16 %v1300, %v1296
    %v1425 = vpack.c.b16 %v1301, %v1297
    %v1426 = vpack.c.b16 %v1302, %v1298
    %v1427 = vpack.c.b16 %v1307, %v1303
    %v1428 = vpack.c.b16 %v1308, %v1304
    %v1429 = vpack.c.b16 %v1309, %v1305
    %v1430 = vpack.c.b16 %v1310, %v1306
    %v1431 = vpack.c.b16 %v1315, %v1311
    %v1432 = vpack.c.b16 %v1316, %v1312
    %v1433 = vpack.c.b16 %v1317, %v1313
    %v1434 = vpack.c.b16 %v1318, %v1314
    %v1435 = vpack.c.b16 %v1323, %v1319
    %v1436 = vpack.c.b16 %v1324, %v1320
    %v1437 = vpack.c.b16 %v1325, %v1321
    %v1438 = vpack.c.b16 %v1326, %v1322
    %v1439 = vpack.c.b16 %v1331, %v1327
    %v1440 = vpack.c.b16 %v1332, %v1328
    %v1441 = vpack.c.b16 %v1333, %v1329
    %v1442 = vpack.c.b16 %v1334, %v1330
    %v1443 = vpack.c.b16 %v1339, %v1335
    %v1444 = vpack.c.b16 %v1340, %v1336
    %v1445 = vpack.c.b16 %v1341, %v1337
    %v1446 = vpack.c.b16 %v1342, %v1338
    %v1447 = vpack.c.b16 %v1347, %v1343
    %v1448 = vpack.c.b16 %v1348, %v1344
    %v1449 = vpack.c.b16 %v1349, %v1345
    %v1450 = vpack.c.b16 %v1350, %v1346
    %v1451 = vpack.c.b16 %v1355, %v1351
    %v1452 = vpack.c.b16 %v1356, %v1352
    %v1453 = vpack.c.b16 %v1357, %v1353
    %v1454 = vpack.c.b16 %v1358, %v1354
    %v1455 = vpack.c.b16 %v1363, %v1359
    %v1456 = vpack.c.b16 %v1364, %v1360
    %v1457 = vpack.c.b16 %v1365, %v1361
    %v1458 = vpack.c.b16 %v1366, %v1362
    %v1459 = vpack.c.b16 %v1371, %v1367
    %v1460 = vpack.c.b16 %v1372, %v1368
    %v1461 = vpack.c.b16 %v1373, %v1369
    %v1462 = vpack.c.b16 %v1374, %v1370
    %v1463 = vpack.c.b16 %v1379, %v1375
    %v1464 = vpack.c.b16 %v1380, %v1376
    %v1465 = vpack.c.b16 %v1381, %v1377
    %v1466 = vpack.c.b16 %v1382, %v1378
    %v1467 = vpack.c.b16 %v1387, %v1383
    %v1468 = vpack.c.b16 %v1388, %v1384
    %v1469 = vpack.c.b16 %v1389, %v1385
    %v1470 = vpack.c.b16 %v1390, %v1386
    %v1471 = vpack.c.b16 %v1395, %v1391
    %v1472 = vpack.c.b16 %v1396, %v1392
    %v1473 = vpack.c.b16 %v1397, %v1393
    %v1474 = vpack.c.b16 %v1398, %v1394
    %v1475 = vpack.c.b16 %v1403, %v1399
    %v1476 = vpack.c.b16 %v1404, %v1400
    %v1477 = vpack.c.b16 %v1405, %v1401
    %v1478 = vpack.c.b16 %v1406, %v1402
    %v1479 = vpack.c.b16 %v1411, %v1407
    %v1480 = vpack.c.b16 %v1412, %v1408
    %v1481 = vpack.c.b16 %v1413, %v1409
    %v1482 = vpack.c.b16 %v1414, %v1410
    %v1483 = vpack.c.b16 %v1419, %v1415
    %v1484 = vpack.c.b16 %v1420, %v1416
    %v1485 = vpack.c.b16 %v1421, %v1417
    %v1486 = vpack.c.b16 %v1422, %v1418
    %1551 = vmatprep.subr.bf16.mxu0 %v1452
    %1552 = vmatpush1.bf16.msra.mxu0 %v1451
    %1553 = vmatprep.subr.bf16.mxu0 %v1448
    %1554 = vmatpush1.bf16.msra.mxu0 %v1447
    %1555 = vmatprep.subr.bf16.mxu0 %v1444
    %1556 = vmatpush1.bf16.msra.mxu0 %v1443
    %1557 = vmatprep.subr.bf16.mxu0 %v1440
    %1558 = vmatpush1.bf16.msra.mxu0 %v1439
    %1559 = vmatprep.subr.bf16.mxu0 %v1436
    %1560 = vmatpush1.bf16.msra.mxu0 %v1435
    %1561 = vmatprep.subr.bf16.mxu0 %v1432
    %1562 = vmatpush1.bf16.msra.mxu0 %v1431
    %1563 = vmatprep.subr.bf16.mxu0 %v1428
    %1564 = vmatpush1.bf16.msra.mxu0 %v1427
    %1565 = vmatprep.subr.bf16.mxu0 %v1424
    %1566 = vmatpush1.bf16.msra.mxu0 %v1423
    %1567 = vmatprep.subr.bf16.mxu0 %v1484
    %1568 = vmatpush2.bf16.msra.mxu0 %v1483
    %1569 = vmatprep.subr.bf16.mxu0 %v1480
    %1570 = vmatpush2.bf16.msra.mxu0 %v1479
    %1571 = vmatprep.subr.bf16.mxu0 %v1476
    %1572 = vmatpush2.bf16.msra.mxu0 %v1475
    %1573 = vmatprep.subr.bf16.mxu0 %v1472
    %1574 = vmatpush2.bf16.msra.mxu0 %v1471
    %1575 = vmatprep.subr.bf16.mxu0 %v1468
    %1576 = vmatpush2.bf16.msra.mxu0 %v1467
    %1577 = vmatprep.subr.bf16.mxu0 %v1464
    %1578 = vmatpush2.bf16.msra.mxu0 %v1463
    %1579 = vmatprep.subr.bf16.mxu0 %v1460
    %1580 = vmatpush2.bf16.msra.mxu0 %v1459
    %1581 = vmatprep.subr.bf16.mxu0 %v1456
    %1582 = vmatpush2.bf16.msra.mxu0 %v1455
    %1583 = vmatprep.mubr.bf16.mxu0 %v224
    %1584 = vmatmul.mubr.bf16.gmra.mxu0 %v223
    %v1585 = vpop.f32.mrf.mxu0
    %v1586 = vadd.f32 0.0, %v1585
    %v1587 = vpop.f32.mrf.mxu0
    %v1588 = vadd.f32 0.0, %v1587
    %v1589 = vpop.f32.mrf.mxu0
    %v1590 = vadd.f32 0.0, %v1589
    %v1591 = vpop.f32.mrf.mxu0
    %v1592 = vadd.f32 0.0, %v1591
    %1593 = vdwg.mxu0
    %1594 = vmatprep.subr.bf16.mxu0 %v1454
    %1595 = vmatpush1.bf16.msra.mxu0 %v1453
    %1596 = vmatprep.subr.bf16.mxu0 %v1450
    %1597 = vmatpush1.bf16.msra.mxu0 %v1449
    %1598 = vmatprep.subr.bf16.mxu0 %v1446
    %1599 = vmatpush1.bf16.msra.mxu0 %v1445
    %1600 = vmatprep.subr.bf16.mxu0 %v1442
    %1601 = vmatpush1.bf16.msra.mxu0 %v1441
    %1602 = vmatprep.subr.bf16.mxu0 %v1438
    %1603 = vmatpush1.bf16.msra.mxu0 %v1437
    %1604 = vmatprep.subr.bf16.mxu0 %v1434
    %1605 = vmatpush1.bf16.msra.mxu0 %v1433
    %1606 = vmatprep.subr.bf16.mxu0 %v1430
    %1607 = vmatpush1.bf16.msra.mxu0 %v1429
    %1608 = vmatprep.subr.bf16.mxu0 %v1426
    %1609 = vmatpush1.bf16.msra.mxu0 %v1425
    %1610 = vmatprep.subr.bf16.mxu0 %v1486
    %1611 = vmatpush2.bf16.msra.mxu0 %v1485
    %1612 = vmatprep.subr.bf16.mxu0 %v1482
    %1613 = vmatpush2.bf16.msra.mxu0 %v1481
    %1614 = vmatprep.subr.bf16.mxu0 %v1478
    %1615 = vmatpush2.bf16.msra.mxu0 %v1477
    %1616 = vmatprep.subr.bf16.mxu0 %v1474
    %1617 = vmatpush2.bf16.msra.mxu0 %v1473
    %1618 = vmatprep.subr.bf16.mxu0 %v1470
    %1619 = vmatpush2.bf16.msra.mxu0 %v1469
    %1620 = vmatprep.subr.bf16.mxu0 %v1466
    %1621 = vmatpush2.bf16.msra.mxu0 %v1465
    %1622 = vmatprep.subr.bf16.mxu0 %v1462
    %1623 = vmatpush2.bf16.msra.mxu0 %v1461
    %1624 = vmatprep.subr.bf16.mxu0 %v1458
    %1625 = vmatpush2.bf16.msra.mxu0 %v1457
    %1626 = vmatprep.mubr.bf16.mxu0 %v224
    %1627 = vmatmul.mubr.bf16.gmra.mxu0 %v223
    %v1628 = vpop.f32.mrf.mxu0
    %v1629 = vadd.f32 0.0, %v1628
    %v1630 = vpop.f32.mrf.mxu0
    %v1631 = vadd.f32 0.0, %v1630
    %v1632 = vpop.f32.mrf.mxu0
    %v1633 = vadd.f32 0.0, %v1632
    %v1634 = vpop.f32.mrf.mxu0
    %v1635 = vadd.f32 0.0, %v1634
    %1636 = vdwg.mxu0
    %vm1637 = vcmask 130048
    %v1639 = vsel %vm1637, %v216, 0
    %v1642 = vsel %vm1637, %v217, 0
    %1644 = vmatprep.subr.mxu0 0.0
    %1645 = vmatpush1.msra.mxu0 0.0
    %1646 = vmatprep.subr.mxu0 0.0
    %1647 = vmatpush1.msra.mxu0 0.0
    %1648 = vmatprep.subr.mxu0 0.0
    %1649 = vmatpush1.msra.mxu0 0.0
    %1650 = vmatprep.subr.mxu0 0.0
    %1651 = vmatpush1.msra.mxu0 0.0
    %1652 = vmatprep.subr.mxu0 0.0
    %1653 = vmatpush1.msra.mxu0 0.0
    %1654 = vmatprep.subr.mxu0 0.0
    %1655 = vmatpush1.msra.mxu0 0.0
    %1656 = vmatprep.subr.mxu0 0.0
    %1657 = vmatpush1.msra.mxu0 0.0
    %1658 = vmatprep.subr.mxu0 0.0
    %1659 = vmatpush1.msra.mxu0 0.0
    %1660 = vmatprep.subr.mxu0 0.0
    %1661 = vmatpush1.msra.mxu0 0.0
    %1662 = vmatprep.subr.mxu0 0.0
    %1663 = vmatpush1.msra.mxu0 0.0
    %1664 = vmatprep.subr.mxu0 0.0
    %1665 = vmatpush1.msra.mxu0 0.0
    %1666 = vmatprep.subr.mxu0 0.0
    %1667 = vmatpush1.msra.mxu0 0.0
    %1668 = vmatprep.subr.mxu0 0.0
    %1669 = vmatpush1.msra.mxu0 0.0
    %1670 = vmatprep.subr.mxu0 0.0
    %1671 = vmatpush1.msra.mxu0 0.0
    %1672 = vmatprep.subr.mxu0 %v650
    %1673 = vmatpush1.msra.mxu0 %v648
    %1674 = vmatprep.subr.mxu0 %v646
    %1675 = vmatpush1.msra.mxu0 %v644
    %1676 = vmatprep.subr.mxu0 0.0
    %1677 = vmatpush2.msra.mxu0 0.0
    %1678 = vmatprep.subr.mxu0 0.0
    %1679 = vmatpush2.msra.mxu0 0.0
    %1680 = vmatprep.subr.mxu0 0.0
    %1681 = vmatpush2.msra.mxu0 0.0
    %1682 = vmatprep.subr.mxu0 0.0
    %1683 = vmatpush2.msra.mxu0 0.0
    %1684 = vmatprep.subr.mxu0 0.0
    %1685 = vmatpush2.msra.mxu0 0.0
    %1686 = vmatprep.subr.mxu0 0.0
    %1687 = vmatpush2.msra.mxu0 0.0
    %1688 = vmatprep.subr.mxu0 0.0
    %1689 = vmatpush2.msra.mxu0 0.0
    %1690 = vmatprep.subr.mxu0 0.0
    %1691 = vmatpush2.msra.mxu0 0.0
    %1692 = vmatprep.subr.mxu0 0.0
    %1693 = vmatpush2.msra.mxu0 0.0
    %1694 = vmatprep.subr.mxu0 0.0
    %1695 = vmatpush2.msra.mxu0 0.0
    %1696 = vmatprep.subr.mxu0 0.0
    %1697 = vmatpush2.msra.mxu0 0.0
    %1698 = vmatprep.subr.mxu0 0.0
    %1699 = vmatpush2.msra.mxu0 0.0
    %1700 = vmatprep.subr.mxu0 0.0
    %1701 = vmatpush2.msra.mxu0 0.0
    %1702 = vmatprep.subr.mxu0 0.0
    %1703 = vmatpush2.msra.mxu0 0.0
    %1704 = vmatprep.subr.mxu0 0.0
    %1705 = vmatpush2.msra.mxu0 0.0
    %1706 = vmatprep.subr.mxu0 0.0
    %1707 = vmatpush2.msra.mxu0 0.0
    %1708 = vmatprep.mubr.f32.mxu0 0.0
    %1709 = vmatmul.mubr.f32.gmra.mxu0 %v1639
    %v1710 = vpop.f32.mrf.mxu0
    %v1711 = vadd.f32 %v1115, %v1710
    %v1712 = vpop.f32.mrf.mxu0
    %v1713 = vadd.f32 %v1117, %v1712
    %1714 = vmatprep.mubr.f32.mxu0 0.0
    %1715 = vmatmul.mubr.f32.gmra.mxu0 %v1642
    %v1716 = vpop.f32.mrf.mxu0
    %v1717 = vadd.f32 %v1119, %v1716
    %v1718 = vpop.f32.mrf.mxu0
    %v1719 = vadd.f32 %v1121, %v1718
    %1720 = vdwg.mxu0
    %1721 = vmatprep.subr.mxu0 0.0
    %1722 = vmatpush1.msra.mxu0 0.0
    %1723 = vmatprep.subr.mxu0 0.0
    %1724 = vmatpush1.msra.mxu0 0.0
    %1725 = vmatprep.subr.mxu0 0.0
    %1726 = vmatpush1.msra.mxu0 0.0
    %1727 = vmatprep.subr.mxu0 0.0
    %1728 = vmatpush1.msra.mxu0 0.0
    %1729 = vmatprep.subr.mxu0 0.0
    %1730 = vmatpush1.msra.mxu0 0.0
    %1731 = vmatprep.subr.mxu0 0.0
    %1732 = vmatpush1.msra.mxu0 0.0
    %1733 = vmatprep.subr.mxu0 0.0
    %1734 = vmatpush1.msra.mxu0 0.0
    %1735 = vmatprep.subr.mxu0 0.0
    %1736 = vmatpush1.msra.mxu0 0.0
    %1737 = vmatprep.subr.mxu0 0.0
    %1738 = vmatpush1.msra.mxu0 0.0
    %1739 = vmatprep.subr.mxu0 0.0
    %1740 = vmatpush1.msra.mxu0 0.0
    %1741 = vmatprep.subr.mxu0 0.0
    %1742 = vmatpush1.msra.mxu0 0.0
    %1743 = vmatprep.subr.mxu0 0.0
    %1744 = vmatpush1.msra.mxu0 0.0
    %1745 = vmatprep.subr.mxu0 0.0
    %1746 = vmatpush1.msra.mxu0 0.0
    %1747 = vmatprep.subr.mxu0 0.0
    %1748 = vmatpush1.msra.mxu0 0.0
    %1749 = vmatprep.subr.mxu0 %v693
    %1750 = vmatpush1.msra.mxu0 %v691
    %1751 = vmatprep.subr.mxu0 %v689
    %1752 = vmatpush1.msra.mxu0 %v687
    %1753 = vmatprep.subr.mxu0 0.0
    %1754 = vmatpush2.msra.mxu0 0.0
    %1755 = vmatprep.subr.mxu0 0.0
    %1756 = vmatpush2.msra.mxu0 0.0
    %1757 = vmatprep.subr.mxu0 0.0
    %1758 = vmatpush2.msra.mxu0 0.0
    %1759 = vmatprep.subr.mxu0 0.0
    %1760 = vmatpush2.msra.mxu0 0.0
    %1761 = vmatprep.subr.mxu0 0.0
    %1762 = vmatpush2.msra.mxu0 0.0
    %1763 = vmatprep.subr.mxu0 0.0
    %1764 = vmatpush2.msra.mxu0 0.0
    %1765 = vmatprep.subr.mxu0 0.0
    %1766 = vmatpush2.msra.mxu0 0.0
    %1767 = vmatprep.subr.mxu0 0.0
    %1768 = vmatpush2.msra.mxu0 0.0
    %1769 = vmatprep.subr.mxu0 0.0
    %1770 = vmatpush2.msra.mxu0 0.0
    %1771 = vmatprep.subr.mxu0 0.0
    %1772 = vmatpush2.msra.mxu0 0.0
    %1773 = vmatprep.subr.mxu0 0.0
    %1774 = vmatpush2.msra.mxu0 0.0
    %1775 = vmatprep.subr.mxu0 0.0
    %1776 = vmatpush2.msra.mxu0 0.0
    %1777 = vmatprep.subr.mxu0 0.0
    %1778 = vmatpush2.msra.mxu0 0.0
    %1779 = vmatprep.subr.mxu0 0.0
    %1780 = vmatpush2.msra.mxu0 0.0
    %1781 = vmatprep.subr.mxu0 0.0
    %1782 = vmatpush2.msra.mxu0 0.0
    %1783 = vmatprep.subr.mxu0 0.0
    %1784 = vmatpush2.msra.mxu0 0.0
    %1785 = vmatprep.mubr.f32.mxu0 0.0
    %1786 = vmatmul.mubr.f32.gmra.mxu0 %v1639
    %v1787 = vpop.f32.mrf.mxu0
    %v1788 = vadd.f32 %v1158, %v1787
    %v1789 = vpop.f32.mrf.mxu0
    %v1790 = vadd.f32 %v1160, %v1789
    %1791 = vmatprep.mubr.f32.mxu0 0.0
    %1792 = vmatmul.mubr.f32.gmra.mxu0 %v1642
    %v1793 = vpop.f32.mrf.mxu0
    %v1794 = vadd.f32 %v1162, %v1793
    %v1795 = vpop.f32.mrf.mxu0
    %v1796 = vadd.f32 %v1164, %v1795
    %1797 = vdwg.mxu0
    %v1799 = vsel %vm1637, %v218, 0
    %v1802 = vsel %vm1637, %v219, 0
    %1804 = vmatprep.subr.mxu0 0.0
    %1805 = vmatpush1.msra.mxu0 0.0
    %1806 = vmatprep.subr.mxu0 0.0
    %1807 = vmatpush1.msra.mxu0 0.0
    %1808 = vmatprep.subr.mxu0 0.0
    %1809 = vmatpush1.msra.mxu0 0.0
    %1810 = vmatprep.subr.mxu0 0.0
    %1811 = vmatpush1.msra.mxu0 0.0
    %1812 = vmatprep.subr.mxu0 0.0
    %1813 = vmatpush1.msra.mxu0 0.0
    %1814 = vmatprep.subr.mxu0 0.0
    %1815 = vmatpush1.msra.mxu0 0.0
    %1816 = vmatprep.subr.mxu0 0.0
    %1817 = vmatpush1.msra.mxu0 0.0
    %1818 = vmatprep.subr.mxu0 0.0
    %1819 = vmatpush1.msra.mxu0 0.0
    %1820 = vmatprep.subr.mxu0 0.0
    %1821 = vmatpush1.msra.mxu0 0.0
    %1822 = vmatprep.subr.mxu0 0.0
    %1823 = vmatpush1.msra.mxu0 0.0
    %1824 = vmatprep.subr.mxu0 0.0
    %1825 = vmatpush1.msra.mxu0 0.0
    %1826 = vmatprep.subr.mxu0 0.0
    %1827 = vmatpush1.msra.mxu0 0.0
    %1828 = vmatprep.subr.mxu0 0.0
    %1829 = vmatpush1.msra.mxu0 0.0
    %1830 = vmatprep.subr.mxu0 0.0
    %1831 = vmatpush1.msra.mxu0 0.0
    %1832 = vmatprep.subr.mxu0 %v1592
    %1833 = vmatpush1.msra.mxu0 %v1590
    %1834 = vmatprep.subr.mxu0 %v1588
    %1835 = vmatpush1.msra.mxu0 %v1586
    %1836 = vmatprep.subr.mxu0 0.0
    %1837 = vmatpush2.msra.mxu0 0.0
    %1838 = vmatprep.subr.mxu0 0.0
    %1839 = vmatpush2.msra.mxu0 0.0
    %1840 = vmatprep.subr.mxu0 0.0
    %1841 = vmatpush2.msra.mxu0 0.0
    %1842 = vmatprep.subr.mxu0 0.0
    %1843 = vmatpush2.msra.mxu0 0.0
    %1844 = vmatprep.subr.mxu0 0.0
    %1845 = vmatpush2.msra.mxu0 0.0
    %1846 = vmatprep.subr.mxu0 0.0
    %1847 = vmatpush2.msra.mxu0 0.0
    %1848 = vmatprep.subr.mxu0 0.0
    %1849 = vmatpush2.msra.mxu0 0.0
    %1850 = vmatprep.subr.mxu0 0.0
    %1851 = vmatpush2.msra.mxu0 0.0
    %1852 = vmatprep.subr.mxu0 0.0
    %1853 = vmatpush2.msra.mxu0 0.0
    %1854 = vmatprep.subr.mxu0 0.0
    %1855 = vmatpush2.msra.mxu0 0.0
    %1856 = vmatprep.subr.mxu0 0.0
    %1857 = vmatpush2.msra.mxu0 0.0
    %1858 = vmatprep.subr.mxu0 0.0
    %1859 = vmatpush2.msra.mxu0 0.0
    %1860 = vmatprep.subr.mxu0 0.0
    %1861 = vmatpush2.msra.mxu0 0.0
    %1862 = vmatprep.subr.mxu0 0.0
    %1863 = vmatpush2.msra.mxu0 0.0
    %1864 = vmatprep.subr.mxu0 0.0
    %1865 = vmatpush2.msra.mxu0 0.0
    %1866 = vmatprep.subr.mxu0 0.0
    %1867 = vmatpush2.msra.mxu0 0.0
    %1868 = vmatprep.mubr.f32.mxu0 0.0
    %1869 = vmatmul.mubr.f32.gmra.mxu0 %v1799
    %v1870 = vpop.f32.mrf.mxu0
    %v1871 = vadd.f32 0.0, %v1870
    %v1872 = vpop.f32.mrf.mxu0
    %v1873 = vadd.f32 0.0, %v1872
    %1874 = vmatprep.mubr.f32.mxu0 0.0
    %1875 = vmatmul.mubr.f32.gmra.mxu0 %v1802
    %v1876 = vpop.f32.mrf.mxu0
    %v1877 = vadd.f32 0.0, %v1876
    %v1878 = vpop.f32.mrf.mxu0
    %v1879 = vadd.f32 0.0, %v1878
    %1880 = vdwg.mxu0
    %1881 = vmatprep.subr.mxu0 0.0
    %1882 = vmatpush1.msra.mxu0 0.0
    %1883 = vmatprep.subr.mxu0 0.0
    %1884 = vmatpush1.msra.mxu0 0.0
    %1885 = vmatprep.subr.mxu0 0.0
    %1886 = vmatpush1.msra.mxu0 0.0
    %1887 = vmatprep.subr.mxu0 0.0
    %1888 = vmatpush1.msra.mxu0 0.0
    %1889 = vmatprep.subr.mxu0 0.0
    %1890 = vmatpush1.msra.mxu0 0.0
    %1891 = vmatprep.subr.mxu0 0.0
    %1892 = vmatpush1.msra.mxu0 0.0
    %1893 = vmatprep.subr.mxu0 0.0
    %1894 = vmatpush1.msra.mxu0 0.0
    %1895 = vmatprep.subr.mxu0 0.0
    %1896 = vmatpush1.msra.mxu0 0.0
    %1897 = vmatprep.subr.mxu0 0.0
    %1898 = vmatpush1.msra.mxu0 0.0
    %1899 = vmatprep.subr.mxu0 0.0
    %1900 = vmatpush1.msra.mxu0 0.0
    %1901 = vmatprep.subr.mxu0 0.0
    %1902 = vmatpush1.msra.mxu0 0.0
    %1903 = vmatprep.subr.mxu0 0.0
    %1904 = vmatpush1.msra.mxu0 0.0
    %1905 = vmatprep.subr.mxu0 0.0
    %1906 = vmatpush1.msra.mxu0 0.0
    %1907 = vmatprep.subr.mxu0 0.0
    %1908 = vmatpush1.msra.mxu0 0.0
    %1909 = vmatprep.subr.mxu0 %v1635
    %1910 = vmatpush1.msra.mxu0 %v1633
    %1911 = vmatprep.subr.mxu0 %v1631
    %1912 = vmatpush1.msra.mxu0 %v1629
    %1913 = vmatprep.subr.mxu0 0.0
    %1914 = vmatpush2.msra.mxu0 0.0
    %1915 = vmatprep.subr.mxu0 0.0
    %1916 = vmatpush2.msra.mxu0 0.0
    %1917 = vmatprep.subr.mxu0 0.0
    %1918 = vmatpush2.msra.mxu0 0.0
    %1919 = vmatprep.subr.mxu0 0.0
    %1920 = vmatpush2.msra.mxu0 0.0
    %1921 = vmatprep.subr.mxu0 0.0
    %1922 = vmatpush2.msra.mxu0 0.0
    %1923 = vmatprep.subr.mxu0 0.0
    %1924 = vmatpush2.msra.mxu0 0.0
    %1925 = vmatprep.subr.mxu0 0.0
    %1926 = vmatpush2.msra.mxu0 0.0
    %1927 = vmatprep.subr.mxu0 0.0
    %1928 = vmatpush2.msra.mxu0 0.0
    %1929 = vmatprep.subr.mxu0 0.0
    %1930 = vmatpush2.msra.mxu0 0.0
    %1931 = vmatprep.subr.mxu0 0.0
    %1932 = vmatpush2.msra.mxu0 0.0
    %1933 = vmatprep.subr.mxu0 0.0
    %1934 = vmatpush2.msra.mxu0 0.0
    %1935 = vmatprep.subr.mxu0 0.0
    %1936 = vmatpush2.msra.mxu0 0.0
    %1937 = vmatprep.subr.mxu0 0.0
    %1938 = vmatpush2.msra.mxu0 0.0
    %1939 = vmatprep.subr.mxu0 0.0
    %1940 = vmatpush2.msra.mxu0 0.0
    %1941 = vmatprep.subr.mxu0 0.0
    %1942 = vmatpush2.msra.mxu0 0.0
    %1943 = vmatprep.subr.mxu0 0.0
    %1944 = vmatpush2.msra.mxu0 0.0
    %1945 = vmatprep.mubr.f32.mxu0 0.0
    %1946 = vmatmul.mubr.f32.gmra.mxu0 %v1799
    %v1947 = vpop.f32.mrf.mxu0
    %v1948 = vadd.f32 0.0, %v1947
    %v1949 = vpop.f32.mrf.mxu0
    %v1950 = vadd.f32 0.0, %v1949
    %1951 = vmatprep.mubr.f32.mxu0 0.0
    %1952 = vmatmul.mubr.f32.gmra.mxu0 %v1802
    %v1953 = vpop.f32.mrf.mxu0
    %v1954 = vadd.f32 0.0, %v1953
    %v1955 = vpop.f32.mrf.mxu0
    %v1956 = vadd.f32 0.0, %v1955
    %1957 = vdwg.mxu0
    %v1958 = vadd.f32 %v1711, %v1871
    %v1959 = vadd.f32 %v1713, %v1873
    %v1960 = vadd.f32 %v1788, %v1948
    %v1961 = vadd.f32 %v1790, %v1950
    %v1962 = vadd.f32 %v1717, %v1877
    %v1963 = vadd.f32 %v1719, %v1879
    %v1964 = vadd.f32 %v1794, %v1954
    %v1965 = vadd.f32 %v1796, %v1956
    %v1966 = vld [vmem:[#allocation10] sm:$0xff]
    %v1967 = vld [vmem:[#allocation10 + $0x8] sm:$0xff]
    %v1968 = vld [vmem:[#allocation10 + $0x10] sm:$0xff]
    %v1969 = vld [vmem:[#allocation10 + $0x18] sm:$0xff]
    %v1970 = vld [vmem:[#allocation10 + $0x20] sm:$0xff]
    %v1971 = vld [vmem:[#allocation10 + $0x28] sm:$0xff]
    %v1972 = vld [vmem:[#allocation10 + $0x30] sm:$0xff]
    %v1973 = vld [vmem:[#allocation10 + $0x38] sm:$0xff]
    %v1974 = vld [vmem:[#allocation10 + $0x40] sm:$0xff]
    %v1975 = vld [vmem:[#allocation10 + $0x48] sm:$0xff]
    %v1976 = vld [vmem:[#allocation10 + $0x50] sm:$0xff]
    %v1977 = vld [vmem:[#allocation10 + $0x58] sm:$0xff]
    %v1978 = vld [vmem:[#allocation10 + $0x60] sm:$0xff]
    %v1979 = vld [vmem:[#allocation10 + $0x68] sm:$0xff]
    %v1980 = vld [vmem:[#allocation10 + $0x70] sm:$0xff]
    %v1981 = vld [vmem:[#allocation10 + $0x78] sm:$0xff]
    %v1982 = vld [vmem:[#allocation10 + $0x80] sm:$0xff]
    %v1983 = vld [vmem:[#allocation10 + $0x88] sm:$0xff]
    %v1984 = vld [vmem:[#allocation10 + $0x90] sm:$0xff]
    %v1985 = vld [vmem:[#allocation10 + $0x98] sm:$0xff]
    %v1986 = vld [vmem:[#allocation10 + $0xa0] sm:$0xff]
    %v1987 = vld [vmem:[#allocation10 + $0xa8] sm:$0xff]
    %v1988 = vld [vmem:[#allocation10 + $0xb0] sm:$0xff]
    %v1989 = vld [vmem:[#allocation10 + $0xb8] sm:$0xff]
    %v1990 = vld [vmem:[#allocation10 + $0xc0] sm:$0xff]
    %v1991 = vld [vmem:[#allocation10 + $0xc8] sm:$0xff]
    %v1992 = vld [vmem:[#allocation10 + $0xd0] sm:$0xff]
    %v1993 = vld [vmem:[#allocation10 + $0xd8] sm:$0xff]
    %v1994 = vld [vmem:[#allocation10 + $0xe0] sm:$0xff]
    %v1995 = vld [vmem:[#allocation10 + $0xe8] sm:$0xff]
    %v1996 = vld [vmem:[#allocation10 + $0xf0] sm:$0xff]
    %v1997 = vld [vmem:[#allocation10 + $0xf8] sm:$0xff]
    %v1998 = vld [vmem:[#allocation10 + $0x100] sm:$0xff]
    %v1999 = vld [vmem:[#allocation10 + $0x108] sm:$0xff]
    %v2000 = vld [vmem:[#allocation10 + $0x110] sm:$0xff]
    %v2001 = vld [vmem:[#allocation10 + $0x118] sm:$0xff]
    %v2002 = vld [vmem:[#allocation10 + $0x120] sm:$0xff]
    %v2003 = vld [vmem:[#allocation10 + $0x128] sm:$0xff]
    %v2004 = vld [vmem:[#allocation10 + $0x130] sm:$0xff]
    %v2005 = vld [vmem:[#allocation10 + $0x138] sm:$0xff]
    %v2006 = vld [vmem:[#allocation10 + $0x140] sm:$0xff]
    %v2007 = vld [vmem:[#allocation10 + $0x148] sm:$0xff]
    %v2008 = vld [vmem:[#allocation10 + $0x150] sm:$0xff]
    %v2009 = vld [vmem:[#allocation10 + $0x158] sm:$0xff]
    %v2010 = vld [vmem:[#allocation10 + $0x160] sm:$0xff]
    %v2011 = vld [vmem:[#allocation10 + $0x168] sm:$0xff]
    %v2012 = vld [vmem:[#allocation10 + $0x170] sm:$0xff]
    %v2013 = vld [vmem:[#allocation10 + $0x178] sm:$0xff]
    %v2014 = vld [vmem:[#allocation10 + $0x180] sm:$0xff]
    %v2015 = vld [vmem:[#allocation10 + $0x188] sm:$0xff]
    %v2016 = vld [vmem:[#allocation10 + $0x190] sm:$0xff]
    %v2017 = vld [vmem:[#allocation10 + $0x198] sm:$0xff]
    %v2018 = vld [vmem:[#allocation10 + $0x1a0] sm:$0xff]
    %v2019 = vld [vmem:[#allocation10 + $0x1a8] sm:$0xff]
    %v2020 = vld [vmem:[#allocation10 + $0x1b0] sm:$0xff]
    %v2021 = vld [vmem:[#allocation10 + $0x1b8] sm:$0xff]
    %v2022 = vld [vmem:[#allocation10 + $0x1c0] sm:$0xff]
    %v2023 = vld [vmem:[#allocation10 + $0x1c8] sm:$0xff]
    %v2024 = vld [vmem:[#allocation10 + $0x1d0] sm:$0xff]
    %v2025 = vld [vmem:[#allocation10 + $0x1d8] sm:$0xff]
    %v2026 = vld [vmem:[#allocation10 + $0x1e0] sm:$0xff]
    %v2027 = vld [vmem:[#allocation10 + $0x1e8] sm:$0xff]
    %v2028 = vld [vmem:[#allocation10 + $0x1f0] sm:$0xff]
    %v2029 = vld [vmem:[#allocation10 + $0x1f8] sm:$0xff]
    %v2030 = vld [vmem:[#allocation12] sm:$0xff]
    %v2031 = vld [vmem:[#allocation12 + $0x8] sm:$0xff]
    %v2032 = vld [vmem:[#allocation12 + $0x10] sm:$0xff]
    %v2033 = vld [vmem:[#allocation12 + $0x18] sm:$0xff]
    %v2034 = vld [vmem:[#allocation16] sm:$0xf]
    %v2035 = vld [vmem:[#allocation18] sm:$0xf]
    %v2037 = vsel %vm1637, %v220, 0
    %2039 = vmatprep.subr.mxu0 0.0
    %2040 = vmatpush1.msra.mxu0 0.0
    %2041 = vmatprep.subr.mxu0 0.0
    %2042 = vmatpush1.msra.mxu0 0.0
    %2043 = vmatprep.subr.mxu0 0.0
    %2044 = vmatpush1.msra.mxu0 0.0
    %2045 = vmatprep.subr.mxu0 0.0
    %2046 = vmatpush1.msra.mxu0 0.0
    %2047 = vmatprep.subr.mxu0 0.0
    %2048 = vmatpush1.msra.mxu0 0.0
    %2049 = vmatprep.subr.mxu0 0.0
    %2050 = vmatpush1.msra.mxu0 0.0
    %2051 = vmatprep.subr.mxu0 0.0
    %2052 = vmatpush1.msra.mxu0 0.0
    %2053 = vmatprep.subr.mxu0 0.0
    %2054 = vmatpush1.msra.mxu0 0.0
    %2055 = vmatprep.subr.mxu0 0.0
    %2056 = vmatpush1.msra.mxu0 0.0
    %2057 = vmatprep.subr.mxu0 0.0
    %2058 = vmatpush1.msra.mxu0 0.0
    %2059 = vmatprep.subr.mxu0 0.0
    %2060 = vmatpush1.msra.mxu0 0.0
    %2061 = vmatprep.subr.mxu0 0.0
    %2062 = vmatpush1.msra.mxu0 0.0
    %2063 = vmatprep.subr.mxu0 0.0
    %2064 = vmatpush1.msra.mxu0 0.0
    %2065 = vmatprep.subr.mxu0 0.0
    %2066 = vmatpush1.msra.mxu0 0.0
    %2067 = vmatprep.subr.mxu0 %v1963
    %2068 = vmatpush1.msra.mxu0 %v1962
    %2069 = vmatprep.subr.mxu0 %v1959
    %2070 = vmatpush1.msra.mxu0 %v1958
    %2071 = vmatprep.subr.mxu0 0.0
    %2072 = vmatpush2.msra.mxu0 0.0
    %2073 = vmatprep.subr.mxu0 0.0
    %2074 = vmatpush2.msra.mxu0 0.0
    %2075 = vmatprep.subr.mxu0 0.0
    %2076 = vmatpush2.msra.mxu0 0.0
    %2077 = vmatprep.subr.mxu0 0.0
    %2078 = vmatpush2.msra.mxu0 0.0
    %2079 = vmatprep.subr.mxu0 0.0
    %2080 = vmatpush2.msra.mxu0 0.0
    %2081 = vmatprep.subr.mxu0 0.0
    %2082 = vmatpush2.msra.mxu0 0.0
    %2083 = vmatprep.subr.mxu0 0.0
    %2084 = vmatpush2.msra.mxu0 0.0
    %2085 = vmatprep.subr.mxu0 0.0
    %2086 = vmatpush2.msra.mxu0 0.0
    %2087 = vmatprep.subr.mxu0 0.0
    %2088 = vmatpush2.msra.mxu0 0.0
    %2089 = vmatprep.subr.mxu0 0.0
    %2090 = vmatpush2.msra.mxu0 0.0
    %2091 = vmatprep.subr.mxu0 0.0
    %2092 = vmatpush2.msra.mxu0 0.0
    %2093 = vmatprep.subr.mxu0 0.0
    %2094 = vmatpush2.msra.mxu0 0.0
    %2095 = vmatprep.subr.mxu0 0.0
    %2096 = vmatpush2.msra.mxu0 0.0
    %2097 = vmatprep.subr.mxu0 0.0
    %2098 = vmatpush2.msra.mxu0 0.0
    %2099 = vmatprep.subr.mxu0 0.0
    %2100 = vmatpush2.msra.mxu0 0.0
    %2101 = vmatprep.subr.mxu0 0.0
    %2102 = vmatpush2.msra.mxu0 0.0
    %2103 = vmatprep.mubr.f32.mxu0 0.0
    %2104 = vmatmul.mubr.f32.gmra.mxu0 %v2037
    %v2105 = vpop.f32.mrf.mxu0
    %v2106 = vadd.f32 0.0, %v2105
    %v2107 = vpop.f32.mrf.mxu0
    %v2108 = vadd.f32 0.0, %v2107
    %2109 = vdwg.mxu0
    %2110 = vmatprep.subr.mxu0 0.0
    %2111 = vmatpush1.msra.mxu0 0.0
    %2112 = vmatprep.subr.mxu0 0.0
    %2113 = vmatpush1.msra.mxu0 0.0
    %2114 = vmatprep.subr.mxu0 0.0
    %2115 = vmatpush1.msra.mxu0 0.0
    %2116 = vmatprep.subr.mxu0 0.0
    %2117 = vmatpush1.msra.mxu0 0.0
    %2118 = vmatprep.subr.mxu0 0.0
    %2119 = vmatpush1.msra.mxu0 0.0
    %2120 = vmatprep.subr.mxu0 0.0
    %2121 = vmatpush1.msra.mxu0 0.0
    %2122 = vmatprep.subr.mxu0 0.0
    %2123 = vmatpush1.msra.mxu0 0.0
    %2124 = vmatprep.subr.mxu0 0.0
    %2125 = vmatpush1.msra.mxu0 0.0
    %2126 = vmatprep.subr.mxu0 0.0
    %2127 = vmatpush1.msra.mxu0 0.0
    %2128 = vmatprep.subr.mxu0 0.0
    %2129 = vmatpush1.msra.mxu0 0.0
    %2130 = vmatprep.subr.mxu0 0.0
    %2131 = vmatpush1.msra.mxu0 0.0
    %2132 = vmatprep.subr.mxu0 0.0
    %2133 = vmatpush1.msra.mxu0 0.0
    %2134 = vmatprep.subr.mxu0 0.0
    %2135 = vmatpush1.msra.mxu0 0.0
    %2136 = vmatprep.subr.mxu0 0.0
    %2137 = vmatpush1.msra.mxu0 0.0
    %2138 = vmatprep.subr.mxu0 %v1965
    %2139 = vmatpush1.msra.mxu0 %v1964
    %2140 = vmatprep.subr.mxu0 %v1961
    %2141 = vmatpush1.msra.mxu0 %v1960
    %2142 = vmatprep.subr.mxu0 0.0
    %2143 = vmatpush2.msra.mxu0 0.0
    %2144 = vmatprep.subr.mxu0 0.0
    %2145 = vmatpush2.msra.mxu0 0.0
    %2146 = vmatprep.subr.mxu0 0.0
    %2147 = vmatpush2.msra.mxu0 0.0
    %2148 = vmatprep.subr.mxu0 0.0
    %2149 = vmatpush2.msra.mxu0 0.0
    %2150 = vmatprep.subr.mxu0 0.0
    %2151 = vmatpush2.msra.mxu0 0.0
    %2152 = vmatprep.subr.mxu0 0.0
    %2153 = vmatpush2.msra.mxu0 0.0
    %2154 = vmatprep.subr.mxu0 0.0
    %2155 = vmatpush2.msra.mxu0 0.0
    %2156 = vmatprep.subr.mxu0 0.0
    %2157 = vmatpush2.msra.mxu0 0.0
    %2158 = vmatprep.subr.mxu0 0.0
    %2159 = vmatpush2.msra.mxu0 0.0
    %2160 = vmatprep.subr.mxu0 0.0
    %2161 = vmatpush2.msra.mxu0 0.0
    %2162 = vmatprep.subr.mxu0 0.0
    %2163 = vmatpush2.msra.mxu0 0.0
    %2164 = vmatprep.subr.mxu0 0.0
    %2165 = vmatpush2.msra.mxu0 0.0
    %2166 = vmatprep.subr.mxu0 0.0
    %2167 = vmatpush2.msra.mxu0 0.0
    %2168 = vmatprep.subr.mxu0 0.0
    %2169 = vmatpush2.msra.mxu0 0.0
    %2170 = vmatprep.subr.mxu0 0.0
    %2171 = vmatpush2.msra.mxu0 0.0
    %2172 = vmatprep.subr.mxu0 0.0
    %2173 = vmatpush2.msra.mxu0 0.0
    %2174 = vmatprep.mubr.f32.mxu0 0.0
    %2175 = vmatmul.mubr.f32.gmra.mxu0 %v2037
    %v2176 = vpop.f32.mrf.mxu0
    %v2177 = vadd.f32 0.0, %v2176
    %v2178 = vpop.f32.mrf.mxu0
    %v2179 = vadd.f32 0.0, %v2178
    %2180 = vdwg.mxu0
    %v2181 = vmul.f32 %v1958, %v1958
    %v2182 = vmul.f32 %v1959, %v1959
    %v2183 = vmul.f32 %v1960, %v1960
    %v2184 = vmul.f32 %v1961, %v1961
    %v2185 = vmul.f32 %v1962, %v1962
    %v2186 = vmul.f32 %v1963, %v1963
    %v2187 = vmul.f32 %v1964, %v1964
    %v2188 = vmul.f32 %v1965, %v1965
    %2189 = vmatprep.subr.mxu0 0.0
    %2190 = vmatpush1.msra.mxu0 0.0
    %2191 = vmatprep.subr.mxu0 0.0
    %2192 = vmatpush1.msra.mxu0 0.0
    %2193 = vmatprep.subr.mxu0 0.0
    %2194 = vmatpush1.msra.mxu0 0.0
    %2195 = vmatprep.subr.mxu0 0.0
    %2196 = vmatpush1.msra.mxu0 0.0
    %2197 = vmatprep.subr.mxu0 0.0
    %2198 = vmatpush1.msra.mxu0 0.0
    %2199 = vmatprep.subr.mxu0 0.0
    %2200 = vmatpush1.msra.mxu0 0.0
    %2201 = vmatprep.subr.mxu0 0.0
    %2202 = vmatpush1.msra.mxu0 0.0
    %2203 = vmatprep.subr.mxu0 0.0
    %2204 = vmatpush1.msra.mxu0 0.0
    %2205 = vmatprep.subr.mxu0 0.0
    %2206 = vmatpush1.msra.mxu0 0.0
    %2207 = vmatprep.subr.mxu0 0.0
    %2208 = vmatpush1.msra.mxu0 0.0
    %2209 = vmatprep.subr.mxu0 0.0
    %2210 = vmatpush1.msra.mxu0 0.0
    %2211 = vmatprep.subr.mxu0 0.0
    %2212 = vmatpush1.msra.mxu0 0.0
    %2213 = vmatprep.subr.mxu0 0.0
    %2214 = vmatpush1.msra.mxu0 0.0
    %2215 = vmatprep.subr.mxu0 0.0
    %2216 = vmatpush1.msra.mxu0 0.0
    %2217 = vmatprep.subr.mxu0 %v2186
    %2218 = vmatpush1.msra.mxu0 %v2185
    %2219 = vmatprep.subr.mxu0 %v2182
    %2220 = vmatpush1.msra.mxu0 %v2181
    %2221 = vmatprep.subr.mxu0 0.0
    %2222 = vmatpush2.msra.mxu0 0.0
    %2223 = vmatprep.subr.mxu0 0.0
    %2224 = vmatpush2.msra.mxu0 0.0
    %2225 = vmatprep.subr.mxu0 0.0
    %2226 = vmatpush2.msra.mxu0 0.0
    %2227 = vmatprep.subr.mxu0 0.0
    %2228 = vmatpush2.msra.mxu0 0.0
    %2229 = vmatprep.subr.mxu0 0.0
    %2230 = vmatpush2.msra.mxu0 0.0
    %2231 = vmatprep.subr.mxu0 0.0
    %2232 = vmatpush2.msra.mxu0 0.0
    %2233 = vmatprep.subr.mxu0 0.0
    %2234 = vmatpush2.msra.mxu0 0.0
    %2235 = vmatprep.subr.mxu0 0.0
    %2236 = vmatpush2.msra.mxu0 0.0
    %2237 = vmatprep.subr.mxu0 0.0
    %2238 = vmatpush2.msra.mxu0 0.0
    %2239 = vmatprep.subr.mxu0 0.0
    %2240 = vmatpush2.msra.mxu0 0.0
    %2241 = vmatprep.subr.mxu0 0.0
    %2242 = vmatpush2.msra.mxu0 0.0
    %2243 = vmatprep.subr.mxu0 0.0
    %2244 = vmatpush2.msra.mxu0 0.0
    %2245 = vmatprep.subr.mxu0 0.0
    %2246 = vmatpush2.msra.mxu0 0.0
    %2247 = vmatprep.subr.mxu0 0.0
    %2248 = vmatpush2.msra.mxu0 0.0
    %2249 = vmatprep.subr.mxu0 0.0
    %2250 = vmatpush2.msra.mxu0 0.0
    %2251 = vmatprep.subr.mxu0 0.0
    %2252 = vmatpush2.msra.mxu0 0.0
    %2253 = vmatprep.mubr.f32.mxu0 0.0
    %2254 = vmatmul.mubr.f32.gmra.mxu0 %v2037
    %v2255 = vpop.f32.mrf.mxu0
    %v2256 = vadd.f32 0.0, %v2255
    %v2257 = vpop.f32.mrf.mxu0
    %v2258 = vadd.f32 0.0, %v2257
    %2259 = vdwg.mxu0
    %2260 = vmatprep.subr.mxu0 0.0
    %2261 = vmatpush1.msra.mxu0 0.0
    %2262 = vmatprep.subr.mxu0 0.0
    %2263 = vmatpush1.msra.mxu0 0.0
    %2264 = vmatprep.subr.mxu0 0.0
    %2265 = vmatpush1.msra.mxu0 0.0
    %2266 = vmatprep.subr.mxu0 0.0
    %2267 = vmatpush1.msra.mxu0 0.0
    %2268 = vmatprep.subr.mxu0 0.0
    %2269 = vmatpush1.msra.mxu0 0.0
    %2270 = vmatprep.subr.mxu0 0.0
    %2271 = vmatpush1.msra.mxu0 0.0
    %2272 = vmatprep.subr.mxu0 0.0
    %2273 = vmatpush1.msra.mxu0 0.0
    %2274 = vmatprep.subr.mxu0 0.0
    %2275 = vmatpush1.msra.mxu0 0.0
    %2276 = vmatprep.subr.mxu0 0.0
    %2277 = vmatpush1.msra.mxu0 0.0
    %2278 = vmatprep.subr.mxu0 0.0
    %2279 = vmatpush1.msra.mxu0 0.0
    %2280 = vmatprep.subr.mxu0 0.0
    %2281 = vmatpush1.msra.mxu0 0.0
    %2282 = vmatprep.subr.mxu0 0.0
    %2283 = vmatpush1.msra.mxu0 0.0
    %2284 = vmatprep.subr.mxu0 0.0
    %2285 = vmatpush1.msra.mxu0 0.0
    %2286 = vmatprep.subr.mxu0 0.0
    %2287 = vmatpush1.msra.mxu0 0.0
    %2288 = vmatprep.subr.mxu0 %v2188
    %2289 = vmatpush1.msra.mxu0 %v2187
    %2290 = vmatprep.subr.mxu0 %v2184
    %2291 = vmatpush1.msra.mxu0 %v2183
    %2292 = vmatprep.subr.mxu0 0.0
    %2293 = vmatpush2.msra.mxu0 0.0
    %2294 = vmatprep.subr.mxu0 0.0
    %2295 = vmatpush2.msra.mxu0 0.0
    %2296 = vmatprep.subr.mxu0 0.0
    %2297 = vmatpush2.msra.mxu0 0.0
    %2298 = vmatprep.subr.mxu0 0.0
    %2299 = vmatpush2.msra.mxu0 0.0
    %2300 = vmatprep.subr.mxu0 0.0
    %2301 = vmatpush2.msra.mxu0 0.0
    %2302 = vmatprep.subr.mxu0 0.0
    %2303 = vmatpush2.msra.mxu0 0.0
    %2304 = vmatprep.subr.mxu0 0.0
    %2305 = vmatpush2.msra.mxu0 0.0
    %2306 = vmatprep.subr.mxu0 0.0
    %2307 = vmatpush2.msra.mxu0 0.0
    %2308 = vmatprep.subr.mxu0 0.0
    %2309 = vmatpush2.msra.mxu0 0.0
    %2310 = vmatprep.subr.mxu0 0.0
    %2311 = vmatpush2.msra.mxu0 0.0
    %2312 = vmatprep.subr.mxu0 0.0
    %2313 = vmatpush2.msra.mxu0 0.0
    %2314 = vmatprep.subr.mxu0 0.0
    %2315 = vmatpush2.msra.mxu0 0.0
    %2316 = vmatprep.subr.mxu0 0.0
    %2317 = vmatpush2.msra.mxu0 0.0
    %2318 = vmatprep.subr.mxu0 0.0
    %2319 = vmatpush2.msra.mxu0 0.0
    %2320 = vmatprep.subr.mxu0 0.0
    %2321 = vmatpush2.msra.mxu0 0.0
    %2322 = vmatprep.subr.mxu0 0.0
    %2323 = vmatpush2.msra.mxu0 0.0
    %2324 = vmatprep.mubr.f32.mxu0 0.0
    %2325 = vmatmul.mubr.f32.gmra.mxu0 %v2037
    %v2326 = vpop.f32.mrf.mxu0
    %v2327 = vadd.f32 0.0, %v2326
    %v2328 = vpop.f32.mrf.mxu0
    %v2329 = vadd.f32 0.0, %v2328
    %2330 = vdwg.mxu0
    %2331 = vmatprep.subr.mxu0 0.0
    %2332 = vmatpush1.msra.mxu0 %v1981
    %2333 = vmatprep.subr.mxu0 0.0
    %2334 = vmatpush1.msra.mxu0 %v1980
    %2335 = vmatprep.subr.mxu0 0.0
    %2336 = vmatpush1.msra.mxu0 %v1979
    %2337 = vmatprep.subr.mxu0 0.0
    %2338 = vmatpush1.msra.mxu0 %v1978
    %2339 = vmatprep.subr.mxu0 0.0
    %2340 = vmatpush1.msra.mxu0 %v1977
    %2341 = vmatprep.subr.mxu0 0.0
    %2342 = vmatpush1.msra.mxu0 %v1976
    %2343 = vmatprep.subr.mxu0 0.0
    %2344 = vmatpush1.msra.mxu0 %v1975
    %2345 = vmatprep.subr.mxu0 0.0
    %2346 = vmatpush1.msra.mxu0 %v1974
    %2347 = vmatprep.subr.mxu0 0.0
    %2348 = vmatpush1.msra.mxu0 %v1973
    %2349 = vmatprep.subr.mxu0 0.0
    %2350 = vmatpush1.msra.mxu0 %v1972
    %2351 = vmatprep.subr.mxu0 0.0
    %2352 = vmatpush1.msra.mxu0 %v1971
    %2353 = vmatprep.subr.mxu0 0.0
    %2354 = vmatpush1.msra.mxu0 %v1970
    %2355 = vmatprep.subr.mxu0 0.0
    %2356 = vmatpush1.msra.mxu0 %v1969
    %2357 = vmatprep.subr.mxu0 0.0
    %2358 = vmatpush1.msra.mxu0 %v1968
    %2359 = vmatprep.subr.mxu0 0.0
    %2360 = vmatpush1.msra.mxu0 %v1967
    %2361 = vmatprep.subr.mxu0 0.0
    %2362 = vmatpush1.msra.mxu0 %v1966
    %2363 = vmatprep.subr.mxu0 0.0
    %2364 = vmatpush2.msra.mxu0 %v1997
    %2365 = vmatprep.subr.mxu0 0.0
    %2366 = vmatpush2.msra.mxu0 %v1996
    %2367 = vmatprep.subr.mxu0 0.0
    %2368 = vmatpush2.msra.mxu0 %v1995
    %2369 = vmatprep.subr.mxu0 0.0
    %2370 = vmatpush2.msra.mxu0 %v1994
    %2371 = vmatprep.subr.mxu0 0.0
    %2372 = vmatpush2.msra.mxu0 %v1993
    %2373 = vmatprep.subr.mxu0 0.0
    %2374 = vmatpush2.msra.mxu0 %v1992
    %2375 = vmatprep.subr.mxu0 0.0
    %2376 = vmatpush2.msra.mxu0 %v1991
    %2377 = vmatprep.subr.mxu0 0.0
    %2378 = vmatpush2.msra.mxu0 %v1990
    %2379 = vmatprep.subr.mxu0 0.0
    %2380 = vmatpush2.msra.mxu0 %v1989
    %2381 = vmatprep.subr.mxu0 0.0
    %2382 = vmatpush2.msra.mxu0 %v1988
    %2383 = vmatprep.subr.mxu0 0.0
    %2384 = vmatpush2.msra.mxu0 %v1987
    %2385 = vmatprep.subr.mxu0 0.0
    %2386 = vmatpush2.msra.mxu0 %v1986
    %2387 = vmatprep.subr.mxu0 0.0
    %2388 = vmatpush2.msra.mxu0 %v1985
    %2389 = vmatprep.subr.mxu0 0.0
    %2390 = vmatpush2.msra.mxu0 %v1984
    %2391 = vmatprep.subr.mxu0 0.0
    %2392 = vmatpush2.msra.mxu0 %v1983
    %2393 = vmatprep.subr.mxu0 0.0
    %2394 = vmatpush2.msra.mxu0 %v1982
    %2395 = vmatprep.mubr.f32.mxu0 %v2108
    %2396 = vmatmul.mubr.f32.gmra.mxu0 %v2106
    %v2397 = vpop.f32.mrf.mxu0
    %v2398 = vadd.f32 0.0, %v2397
    %v2399 = vpop.f32.mrf.mxu0
    %2400 = vdwg.mxu0
    %2401 = vmatprep.subr.mxu0 0.0
    %2402 = vmatpush1.msra.mxu0 %v2013
    %2403 = vmatprep.subr.mxu0 0.0
    %2404 = vmatpush1.msra.mxu0 %v2012
    %2405 = vmatprep.subr.mxu0 0.0
    %2406 = vmatpush1.msra.mxu0 %v2011
    %2407 = vmatprep.subr.mxu0 0.0
    %2408 = vmatpush1.msra.mxu0 %v2010
    %2409 = vmatprep.subr.mxu0 0.0
    %2410 = vmatpush1.msra.mxu0 %v2009
    %2411 = vmatprep.subr.mxu0 0.0
    %2412 = vmatpush1.msra.mxu0 %v2008
    %2413 = vmatprep.subr.mxu0 0.0
    %2414 = vmatpush1.msra.mxu0 %v2007
    %2415 = vmatprep.subr.mxu0 0.0
    %2416 = vmatpush1.msra.mxu0 %v2006
    %2417 = vmatprep.subr.mxu0 0.0
    %2418 = vmatpush1.msra.mxu0 %v2005
    %2419 = vmatprep.subr.mxu0 0.0
    %2420 = vmatpush1.msra.mxu0 %v2004
    %2421 = vmatprep.subr.mxu0 0.0
    %2422 = vmatpush1.msra.mxu0 %v2003
    %2423 = vmatprep.subr.mxu0 0.0
    %2424 = vmatpush1.msra.mxu0 %v2002
    %2425 = vmatprep.subr.mxu0 0.0
    %2426 = vmatpush1.msra.mxu0 %v2001
    %2427 = vmatprep.subr.mxu0 0.0
    %2428 = vmatpush1.msra.mxu0 %v2000
    %2429 = vmatprep.subr.mxu0 0.0
    %2430 = vmatpush1.msra.mxu0 %v1999
    %2431 = vmatprep.subr.mxu0 0.0
    %2432 = vmatpush1.msra.mxu0 %v1998
    %2433 = vmatprep.subr.mxu0 0.0
    %2434 = vmatpush2.msra.mxu0 %v2029
    %2435 = vmatprep.subr.mxu0 0.0
    %2436 = vmatpush2.msra.mxu0 %v2028
    %2437 = vmatprep.subr.mxu0 0.0
    %2438 = vmatpush2.msra.mxu0 %v2027
    %2439 = vmatprep.subr.mxu0 0.0
    %2440 = vmatpush2.msra.mxu0 %v2026
    %2441 = vmatprep.subr.mxu0 0.0
    %2442 = vmatpush2.msra.mxu0 %v2025
    %2443 = vmatprep.subr.mxu0 0.0
    %2444 = vmatpush2.msra.mxu0 %v2024
    %2445 = vmatprep.subr.mxu0 0.0
    %2446 = vmatpush2.msra.mxu0 %v2023
    %2447 = vmatprep.subr.mxu0 0.0
    %2448 = vmatpush2.msra.mxu0 %v2022
    %2449 = vmatprep.subr.mxu0 0.0
    %2450 = vmatpush2.msra.mxu0 %v2021
    %2451 = vmatprep.subr.mxu0 0.0
    %2452 = vmatpush2.msra.mxu0 %v2020
    %2453 = vmatprep.subr.mxu0 0.0
    %2454 = vmatpush2.msra.mxu0 %v2019
    %2455 = vmatprep.subr.mxu0 0.0
    %2456 = vmatpush2.msra.mxu0 %v2018
    %2457 = vmatprep.subr.mxu0 0.0
    %2458 = vmatpush2.msra.mxu0 %v2017
    %2459 = vmatprep.subr.mxu0 0.0
    %2460 = vmatpush2.msra.mxu0 %v2016
    %2461 = vmatprep.subr.mxu0 0.0
    %2462 = vmatpush2.msra.mxu0 %v2015
    %2463 = vmatprep.subr.mxu0 0.0
    %2464 = vmatpush2.msra.mxu0 %v2014
    %2465 = vmatprep.mubr.f32.mxu0 %v2179
    %2466 = vmatmul.mubr.f32.gmra.mxu0 %v2177
    %v2467 = vpop.f32.mrf.mxu0
    %v2468 = vadd.f32 %v2398, %v2467
    %v2469 = vpop.f32.mrf.mxu0
    %2470 = vdwg.mxu0
    %2471 = vmatprep.subr.mxu0 0.0
    %2472 = vmatpush1.msra.mxu0 %v1981
    %2473 = vmatprep.subr.mxu0 0.0
    %2474 = vmatpush1.msra.mxu0 %v1980
    %2475 = vmatprep.subr.mxu0 0.0
    %2476 = vmatpush1.msra.mxu0 %v1979
    %2477 = vmatprep.subr.mxu0 0.0
    %2478 = vmatpush1.msra.mxu0 %v1978
    %2479 = vmatprep.subr.mxu0 0.0
    %2480 = vmatpush1.msra.mxu0 %v1977
    %2481 = vmatprep.subr.mxu0 0.0
    %2482 = vmatpush1.msra.mxu0 %v1976
    %2483 = vmatprep.subr.mxu0 0.0
    %2484 = vmatpush1.msra.mxu0 %v1975
    %2485 = vmatprep.subr.mxu0 0.0
    %2486 = vmatpush1.msra.mxu0 %v1974
    %2487 = vmatprep.subr.mxu0 0.0
    %2488 = vmatpush1.msra.mxu0 %v1973
    %2489 = vmatprep.subr.mxu0 0.0
    %2490 = vmatpush1.msra.mxu0 %v1972
    %2491 = vmatprep.subr.mxu0 0.0
    %2492 = vmatpush1.msra.mxu0 %v1971
    %2493 = vmatprep.subr.mxu0 0.0
    %2494 = vmatpush1.msra.mxu0 %v1970
    %2495 = vmatprep.subr.mxu0 0.0
    %2496 = vmatpush1.msra.mxu0 %v1969
    %2497 = vmatprep.subr.mxu0 0.0
    %2498 = vmatpush1.msra.mxu0 %v1968
    %2499 = vmatprep.subr.mxu0 0.0
    %2500 = vmatpush1.msra.mxu0 %v1967
    %2501 = vmatprep.subr.mxu0 0.0
    %2502 = vmatpush1.msra.mxu0 %v1966
    %2503 = vmatprep.subr.mxu0 0.0
    %2504 = vmatpush2.msra.mxu0 %v1997
    %2505 = vmatprep.subr.mxu0 0.0
    %2506 = vmatpush2.msra.mxu0 %v1996
    %2507 = vmatprep.subr.mxu0 0.0
    %2508 = vmatpush2.msra.mxu0 %v1995
    %2509 = vmatprep.subr.mxu0 0.0
    %2510 = vmatpush2.msra.mxu0 %v1994
    %2511 = vmatprep.subr.mxu0 0.0
    %2512 = vmatpush2.msra.mxu0 %v1993
    %2513 = vmatprep.subr.mxu0 0.0
    %2514 = vmatpush2.msra.mxu0 %v1992
    %2515 = vmatprep.subr.mxu0 0.0
    %2516 = vmatpush2.msra.mxu0 %v1991
    %2517 = vmatprep.subr.mxu0 0.0
    %2518 = vmatpush2.msra.mxu0 %v1990
    %2519 = vmatprep.subr.mxu0 0.0
    %2520 = vmatpush2.msra.mxu0 %v1989
    %2521 = vmatprep.subr.mxu0 0.0
    %2522 = vmatpush2.msra.mxu0 %v1988
    %2523 = vmatprep.subr.mxu0 0.0
    %2524 = vmatpush2.msra.mxu0 %v1987
    %2525 = vmatprep.subr.mxu0 0.0
    %2526 = vmatpush2.msra.mxu0 %v1986
    %2527 = vmatprep.subr.mxu0 0.0
    %2528 = vmatpush2.msra.mxu0 %v1985
    %2529 = vmatprep.subr.mxu0 0.0
    %2530 = vmatpush2.msra.mxu0 %v1984
    %2531 = vmatprep.subr.mxu0 0.0
    %2532 = vmatpush2.msra.mxu0 %v1983
    %2533 = vmatprep.subr.mxu0 0.0
    %2534 = vmatpush2.msra.mxu0 %v1982
    %2535 = vmatprep.mubr.f32.mxu0 %v2258
    %2536 = vmatmul.mubr.f32.gmra.mxu0 %v2256
    %v2537 = vpop.f32.mrf.mxu0
    %v2538 = vadd.f32 0.0, %v2537
    %v2539 = vpop.f32.mrf.mxu0
    %2540 = vdwg.mxu0
    %2541 = vmatprep.subr.mxu0 0.0
    %2542 = vmatpush1.msra.mxu0 %v2013
    %2543 = vmatprep.subr.mxu0 0.0
    %2544 = vmatpush1.msra.mxu0 %v2012
    %2545 = vmatprep.subr.mxu0 0.0
    %2546 = vmatpush1.msra.mxu0 %v2011
    %2547 = vmatprep.subr.mxu0 0.0
    %2548 = vmatpush1.msra.mxu0 %v2010
    %2549 = vmatprep.subr.mxu0 0.0
    %2550 = vmatpush1.msra.mxu0 %v2009
    %2551 = vmatprep.subr.mxu0 0.0
    %2552 = vmatpush1.msra.mxu0 %v2008
    %2553 = vmatprep.subr.mxu0 0.0
    %2554 = vmatpush1.msra.mxu0 %v2007
    %2555 = vmatprep.subr.mxu0 0.0
    %2556 = vmatpush1.msra.mxu0 %v2006
    %2557 = vmatprep.subr.mxu0 0.0
    %2558 = vmatpush1.msra.mxu0 %v2005
    %2559 = vmatprep.subr.mxu0 0.0
    %2560 = vmatpush1.msra.mxu0 %v2004
    %2561 = vmatprep.subr.mxu0 0.0
    %2562 = vmatpush1.msra.mxu0 %v2003
    %2563 = vmatprep.subr.mxu0 0.0
    %2564 = vmatpush1.msra.mxu0 %v2002
    %2565 = vmatprep.subr.mxu0 0.0
    %2566 = vmatpush1.msra.mxu0 %v2001
    %2567 = vmatprep.subr.mxu0 0.0
    %2568 = vmatpush1.msra.mxu0 %v2000
    %2569 = vmatprep.subr.mxu0 0.0
    %2570 = vmatpush1.msra.mxu0 %v1999
    %2571 = vmatprep.subr.mxu0 0.0
    %2572 = vmatpush1.msra.mxu0 %v1998
    %2573 = vmatprep.subr.mxu0 0.0
    %2574 = vmatpush2.msra.mxu0 %v2029
    %2575 = vmatprep.subr.mxu0 0.0
    %2576 = vmatpush2.msra.mxu0 %v2028
    %2577 = vmatprep.subr.mxu0 0.0
    %2578 = vmatpush2.msra.mxu0 %v2027
    %2579 = vmatprep.subr.mxu0 0.0
    %2580 = vmatpush2.msra.mxu0 %v2026
    %2581 = vmatprep.subr.mxu0 0.0
    %2582 = vmatpush2.msra.mxu0 %v2025
    %2583 = vmatprep.subr.mxu0 0.0
    %2584 = vmatpush2.msra.mxu0 %v2024
    %2585 = vmatprep.subr.mxu0 0.0
    %2586 = vmatpush2.msra.mxu0 %v2023
    %2587 = vmatprep.subr.mxu0 0.0
    %2588 = vmatpush2.msra.mxu0 %v2022
    %2589 = vmatprep.subr.mxu0 0.0
    %2590 = vmatpush2.msra.mxu0 %v2021
    %2591 = vmatprep.subr.mxu0 0.0
    %2592 = vmatpush2.msra.mxu0 %v2020
    %2593 = vmatprep.subr.mxu0 0.0
    %2594 = vmatpush2.msra.mxu0 %v2019
    %2595 = vmatprep.subr.mxu0 0.0
    %2596 = vmatpush2.msra.mxu0 %v2018
    %2597 = vmatprep.subr.mxu0 0.0
    %2598 = vmatpush2.msra.mxu0 %v2017
    %2599 = vmatprep.subr.mxu0 0.0
    %2600 = vmatpush2.msra.mxu0 %v2016
    %2601 = vmatprep.subr.mxu0 0.0
    %2602 = vmatpush2.msra.mxu0 %v2015
    %2603 = vmatprep.subr.mxu0 0.0
    %2604 = vmatpush2.msra.mxu0 %v2014
    %2605 = vmatprep.mubr.f32.mxu0 %v2329
    %2606 = vmatmul.mubr.f32.gmra.mxu0 %v2327
    %v2607 = vpop.f32.mrf.mxu0
    %v2608 = vadd.f32 %v2538, %v2607
    %v2609 = vpop.f32.mrf.mxu0
    %2610 = vdwg.mxu0
    %v2611 = vmul.f32 %v2468, 0.001953125
    %v2612 = vmul.f32 %v2608, 0.001953125
    %v2613 = vmul.f32 %v2611, %v2611
    %v2614 = vsub.f32 %v2612, %v2613
    %v2615 = vadd.f32 %v2614, 1e-05
    %v2616 = vrsqrt.pop %v2615
    %vm2617 = vcmask 64512
    %v2619 = vsel %vm2617, %v2611, 0
    %2621 = vmatprep.subr.mxu0 0.0
    %2622 = vmatpush1.msra.mxu0 0.0
    %2623 = vmatprep.subr.mxu0 0.0
    %2624 = vmatpush1.msra.mxu0 0.0
    %2625 = vmatprep.subr.mxu0 0.0
    %2626 = vmatpush1.msra.mxu0 0.0
    %2627 = vmatprep.subr.mxu0 0.0
    %2628 = vmatpush1.msra.mxu0 0.0
    %2629 = vmatprep.subr.mxu0 0.0
    %2630 = vmatpush1.msra.mxu0 0.0
    %2631 = vmatprep.subr.mxu0 0.0
    %2632 = vmatpush1.msra.mxu0 0.0
    %2633 = vmatprep.subr.mxu0 0.0
    %2634 = vmatpush1.msra.mxu0 0.0
    %2635 = vmatprep.subr.mxu0 0.0
    %2636 = vmatpush1.msra.mxu0 0.0
    %2637 = vmatprep.subr.mxu0 0.0
    %2638 = vmatpush1.msra.mxu0 0.0
    %2639 = vmatprep.subr.mxu0 0.0
    %2640 = vmatpush1.msra.mxu0 0.0
    %2641 = vmatprep.subr.mxu0 0.0
    %2642 = vmatpush1.msra.mxu0 0.0
    %2643 = vmatprep.subr.mxu0 0.0
    %2644 = vmatpush1.msra.mxu0 0.0
    %2645 = vmatprep.subr.mxu0 0.0
    %2646 = vmatpush1.msra.mxu0 0.0
    %2647 = vmatprep.subr.mxu0 0.0
    %2648 = vmatpush1.msra.mxu0 0.0
    %2649 = vmatprep.subr.mxu0 0.0
    %2650 = vmatpush1.msra.mxu0 0.0
    %2651 = vmatprep.subr.mxu0 %v2031
    %2652 = vmatpush1.msra.mxu0 %v2030
    %2653 = vmatprep.subr.mxu0 0.0
    %2654 = vmatpush2.msra.mxu0 0.0
    %2655 = vmatprep.subr.mxu0 0.0
    %2656 = vmatpush2.msra.mxu0 0.0
    %2657 = vmatprep.subr.mxu0 0.0
    %2658 = vmatpush2.msra.mxu0 0.0
    %2659 = vmatprep.subr.mxu0 0.0
    %2660 = vmatpush2.msra.mxu0 0.0
    %2661 = vmatprep.subr.mxu0 0.0
    %2662 = vmatpush2.msra.mxu0 0.0
    %2663 = vmatprep.subr.mxu0 0.0
    %2664 = vmatpush2.msra.mxu0 0.0
    %2665 = vmatprep.subr.mxu0 0.0
    %2666 = vmatpush2.msra.mxu0 0.0
    %2667 = vmatprep.subr.mxu0 0.0
    %2668 = vmatpush2.msra.mxu0 0.0
    %2669 = vmatprep.subr.mxu0 0.0
    %2670 = vmatpush2.msra.mxu0 0.0
    %2671 = vmatprep.subr.mxu0 0.0
    %2672 = vmatpush2.msra.mxu0 0.0
    %2673 = vmatprep.subr.mxu0 0.0
    %2674 = vmatpush2.msra.mxu0 0.0
    %2675 = vmatprep.subr.mxu0 0.0
    %2676 = vmatpush2.msra.mxu0 0.0
    %2677 = vmatprep.subr.mxu0 0.0
    %2678 = vmatpush2.msra.mxu0 0.0
    %2679 = vmatprep.subr.mxu0 0.0
    %2680 = vmatpush2.msra.mxu0 0.0
    %2681 = vmatprep.subr.mxu0 0.0
    %2682 = vmatpush2.msra.mxu0 0.0
    %2683 = vmatprep.subr.mxu0 0.0
    %2684 = vmatpush2.msra.mxu0 0.0
    %2685 = vmatprep.mubr.f32.mxu0 0.0
    %2686 = vmatmul.mubr.f32.gmra.mxu0 %v2619
    %v2687 = vpop.f32.mrf.mxu0
    %v2688 = vadd.f32 0.0, %v2687
    %v2689 = vpop.f32.mrf.mxu0
    %v2690 = vadd.f32 0.0, %v2689
    %2691 = vdwg.mxu0
    %2692 = vmatprep.subr.mxu0 0.0
    %2693 = vmatpush1.msra.mxu0 0.0
    %2694 = vmatprep.subr.mxu0 0.0
    %2695 = vmatpush1.msra.mxu0 0.0
    %2696 = vmatprep.subr.mxu0 0.0
    %2697 = vmatpush1.msra.mxu0 0.0
    %2698 = vmatprep.subr.mxu0 0.0
    %2699 = vmatpush1.msra.mxu0 0.0
    %2700 = vmatprep.subr.mxu0 0.0
    %2701 = vmatpush1.msra.mxu0 0.0
    %2702 = vmatprep.subr.mxu0 0.0
    %2703 = vmatpush1.msra.mxu0 0.0
    %2704 = vmatprep.subr.mxu0 0.0
    %2705 = vmatpush1.msra.mxu0 0.0
    %2706 = vmatprep.subr.mxu0 0.0
    %2707 = vmatpush1.msra.mxu0 0.0
    %2708 = vmatprep.subr.mxu0 0.0
    %2709 = vmatpush1.msra.mxu0 0.0
    %2710 = vmatprep.subr.mxu0 0.0
    %2711 = vmatpush1.msra.mxu0 0.0
    %2712 = vmatprep.subr.mxu0 0.0
    %2713 = vmatpush1.msra.mxu0 0.0
    %2714 = vmatprep.subr.mxu0 0.0
    %2715 = vmatpush1.msra.mxu0 0.0
    %2716 = vmatprep.subr.mxu0 0.0
    %2717 = vmatpush1.msra.mxu0 0.0
    %2718 = vmatprep.subr.mxu0 0.0
    %2719 = vmatpush1.msra.mxu0 0.0
    %2720 = vmatprep.subr.mxu0 0.0
    %2721 = vmatpush1.msra.mxu0 0.0
    %2722 = vmatprep.subr.mxu0 %v2033
    %2723 = vmatpush1.msra.mxu0 %v2032
    %2724 = vmatprep.subr.mxu0 0.0
    %2725 = vmatpush2.msra.mxu0 0.0
    %2726 = vmatprep.subr.mxu0 0.0
    %2727 = vmatpush2.msra.mxu0 0.0
    %2728 = vmatprep.subr.mxu0 0.0
    %2729 = vmatpush2.msra.mxu0 0.0
    %2730 = vmatprep.subr.mxu0 0.0
    %2731 = vmatpush2.msra.mxu0 0.0
    %2732 = vmatprep.subr.mxu0 0.0
    %2733 = vmatpush2.msra.mxu0 0.0
    %2734 = vmatprep.subr.mxu0 0.0
    %2735 = vmatpush2.msra.mxu0 0.0
    %2736 = vmatprep.subr.mxu0 0.0
    %2737 = vmatpush2.msra.mxu0 0.0
    %2738 = vmatprep.subr.mxu0 0.0
    %2739 = vmatpush2.msra.mxu0 0.0
    %2740 = vmatprep.subr.mxu0 0.0
    %2741 = vmatpush2.msra.mxu0 0.0
    %2742 = vmatprep.subr.mxu0 0.0
    %2743 = vmatpush2.msra.mxu0 0.0
    %2744 = vmatprep.subr.mxu0 0.0
    %2745 = vmatpush2.msra.mxu0 0.0
    %2746 = vmatprep.subr.mxu0 0.0
    %2747 = vmatpush2.msra.mxu0 0.0
    %2748 = vmatprep.subr.mxu0 0.0
    %2749 = vmatpush2.msra.mxu0 0.0
    %2750 = vmatprep.subr.mxu0 0.0
    %2751 = vmatpush2.msra.mxu0 0.0
    %2752 = vmatprep.subr.mxu0 0.0
    %2753 = vmatpush2.msra.mxu0 0.0
    %2754 = vmatprep.subr.mxu0 0.0
    %2755 = vmatpush2.msra.mxu0 0.0
    %2756 = vmatprep.mubr.f32.mxu0 0.0
    %2757 = vmatmul.mubr.f32.gmra.mxu0 %v2619
    %v2758 = vpop.f32.mrf.mxu0
    %v2759 = vadd.f32 0.0, %v2758
    %v2760 = vpop.f32.mrf.mxu0
    %v2761 = vadd.f32 0.0, %v2760
    %2762 = vdwg.mxu0
    %vm2763 = vcmask 15360
    %v2765 = vsel %vm2763, %v221, 0
    %v2768 = vsel %vm2763, %v222, 0
    %vm2770 = vcmask 1041408
    %v2772 = vsel %vm2770, %v2688, 0
    %v2775 = vsel %vm2770, %v2690, 0
    %v2778 = vsel %vm2770, %v2759, 0
    %v2781 = vsel %vm2770, %v2761, 0
    %2783 = vmatprep.subr.mxu0 0.0
    %2784 = vmatpush1.msra.mxu0 0.0
    %2785 = vmatprep.subr.mxu0 0.0
    %2786 = vmatpush1.msra.mxu0 0.0
    %2787 = vmatprep.subr.mxu0 0.0
    %2788 = vmatpush1.msra.mxu0 0.0
    %2789 = vmatprep.subr.mxu0 0.0
    %2790 = vmatpush1.msra.mxu0 0.0
    %2791 = vmatprep.subr.mxu0 0.0
    %2792 = vmatpush1.msra.mxu0 0.0
    %2793 = vmatprep.subr.mxu0 0.0
    %2794 = vmatpush1.msra.mxu0 0.0
    %2795 = vmatprep.subr.mxu0 0.0
    %2796 = vmatpush1.msra.mxu0 0.0
    %2797 = vmatprep.subr.mxu0 0.0
    %2798 = vmatpush1.msra.mxu0 0.0
    %2799 = vmatprep.subr.mxu0 0.0
    %2800 = vmatpush1.msra.mxu0 0.0
    %2801 = vmatprep.subr.mxu0 0.0
    %2802 = vmatpush1.msra.mxu0 0.0
    %2803 = vmatprep.subr.mxu0 0.0
    %2804 = vmatpush1.msra.mxu0 0.0
    %2805 = vmatprep.subr.mxu0 0.0
    %2806 = vmatpush1.msra.mxu0 0.0
    %2807 = vmatprep.subr.mxu0 0.0
    %2808 = vmatpush1.msra.mxu0 0.0
    %2809 = vmatprep.subr.mxu0 0.0
    %2810 = vmatpush1.msra.mxu0 0.0
    %2811 = vmatprep.subr.mxu0 0.0
    %2812 = vmatpush1.msra.mxu0 0.0
    %2813 = vmatprep.subr.mxu0 %v2775
    %2814 = vmatpush1.msra.mxu0 %v2772
    %2815 = vmatprep.subr.mxu0 0.0
    %2816 = vmatpush2.msra.mxu0 0.0
    %2817 = vmatprep.subr.mxu0 0.0
    %2818 = vmatpush2.msra.mxu0 0.0
    %2819 = vmatprep.subr.mxu0 0.0
    %2820 = vmatpush2.msra.mxu0 0.0
    %2821 = vmatprep.subr.mxu0 0.0
    %2822 = vmatpush2.msra.mxu0 0.0
    %2823 = vmatprep.subr.mxu0 0.0
    %2824 = vmatpush2.msra.mxu0 0.0
    %2825 = vmatprep.subr.mxu0 0.0
    %2826 = vmatpush2.msra.mxu0 0.0
    %2827 = vmatprep.subr.mxu0 0.0
    %2828 = vmatpush2.msra.mxu0 0.0
    %2829 = vmatprep.subr.mxu0 0.0
    %2830 = vmatpush2.msra.mxu0 0.0
    %2831 = vmatprep.subr.mxu0 0.0
    %2832 = vmatpush2.msra.mxu0 0.0
    %2833 = vmatprep.subr.mxu0 0.0
    %2834 = vmatpush2.msra.mxu0 0.0
    %2835 = vmatprep.subr.mxu0 0.0
    %2836 = vmatpush2.msra.mxu0 0.0
    %2837 = vmatprep.subr.mxu0 0.0
    %2838 = vmatpush2.msra.mxu0 0.0
    %2839 = vmatprep.subr.mxu0 0.0
    %2840 = vmatpush2.msra.mxu0 0.0
    %2841 = vmatprep.subr.mxu0 0.0
    %2842 = vmatpush2.msra.mxu0 0.0
    %2843 = vmatprep.subr.mxu0 0.0
    %2844 = vmatpush2.msra.mxu0 0.0
    %2845 = vmatprep.subr.mxu0 0.0
    %2846 = vmatpush2.msra.mxu0 0.0
    %2847 = vmatprep.mubr.f32.mxu0 0.0
    %2848 = vmatmul.mubr.f32.gmra.mxu0 %v2765
    %v2849 = vpop.f32.mrf.mxu0
    %v2850 = vadd.f32 0.0, %v2849
    %v2851 = vpop.f32.mrf.mxu0
    %v2852 = vadd.f32 0.0, %v2851
    %2853 = vmatprep.mubr.f32.mxu0 0.0
    %2854 = vmatmul.mubr.f32.gmra.mxu0 %v2768
    %v2855 = vpop.f32.mrf.mxu0
    %v2856 = vadd.f32 0.0, %v2855
    %v2857 = vpop.f32.mrf.mxu0
    %v2858 = vadd.f32 0.0, %v2857
    %2859 = vdwg.mxu0
    %2860 = vmatprep.subr.mxu0 0.0
    %2861 = vmatpush1.msra.mxu0 0.0
    %2862 = vmatprep.subr.mxu0 0.0
    %2863 = vmatpush1.msra.mxu0 0.0
    %2864 = vmatprep.subr.mxu0 0.0
    %2865 = vmatpush1.msra.mxu0 0.0
    %2866 = vmatprep.subr.mxu0 0.0
    %2867 = vmatpush1.msra.mxu0 0.0
    %2868 = vmatprep.subr.mxu0 0.0
    %2869 = vmatpush1.msra.mxu0 0.0
    %2870 = vmatprep.subr.mxu0 0.0
    %2871 = vmatpush1.msra.mxu0 0.0
    %2872 = vmatprep.subr.mxu0 0.0
    %2873 = vmatpush1.msra.mxu0 0.0
    %2874 = vmatprep.subr.mxu0 0.0
    %2875 = vmatpush1.msra.mxu0 0.0
    %2876 = vmatprep.subr.mxu0 0.0
    %2877 = vmatpush1.msra.mxu0 0.0
    %2878 = vmatprep.subr.mxu0 0.0
    %2879 = vmatpush1.msra.mxu0 0.0
    %2880 = vmatprep.subr.mxu0 0.0
    %2881 = vmatpush1.msra.mxu0 0.0
    %2882 = vmatprep.subr.mxu0 0.0
    %2883 = vmatpush1.msra.mxu0 0.0
    %2884 = vmatprep.subr.mxu0 0.0
    %2885 = vmatpush1.msra.mxu0 0.0
    %2886 = vmatprep.subr.mxu0 0.0
    %2887 = vmatpush1.msra.mxu0 0.0
    %2888 = vmatprep.subr.mxu0 0.0
    %2889 = vmatpush1.msra.mxu0 0.0
    %2890 = vmatprep.subr.mxu0 %v2781
    %2891 = vmatpush1.msra.mxu0 %v2778
    %2892 = vmatprep.subr.mxu0 0.0
    %2893 = vmatpush2.msra.mxu0 0.0
    %2894 = vmatprep.subr.mxu0 0.0
    %2895 = vmatpush2.msra.mxu0 0.0
    %2896 = vmatprep.subr.mxu0 0.0
    %2897 = vmatpush2.msra.mxu0 0.0
    %2898 = vmatprep.subr.mxu0 0.0
    %2899 = vmatpush2.msra.mxu0 0.0
    %2900 = vmatprep.subr.mxu0 0.0
    %2901 = vmatpush2.msra.mxu0 0.0
    %2902 = vmatprep.subr.mxu0 0.0
    %2903 = vmatpush2.msra.mxu0 0.0
    %2904 = vmatprep.subr.mxu0 0.0
    %2905 = vmatpush2.msra.mxu0 0.0
    %2906 = vmatprep.subr.mxu0 0.0
    %2907 = vmatpush2.msra.mxu0 0.0
    %2908 = vmatprep.subr.mxu0 0.0
    %2909 = vmatpush2.msra.mxu0 0.0
    %2910 = vmatprep.subr.mxu0 0.0
    %2911 = vmatpush2.msra.mxu0 0.0
    %2912 = vmatprep.subr.mxu0 0.0
    %2913 = vmatpush2.msra.mxu0 0.0
    %2914 = vmatprep.subr.mxu0 0.0
    %2915 = vmatpush2.msra.mxu0 0.0
    %2916 = vmatprep.subr.mxu0 0.0
    %2917 = vmatpush2.msra.mxu0 0.0
    %2918 = vmatprep.subr.mxu0 0.0
    %2919 = vmatpush2.msra.mxu0 0.0
    %2920 = vmatprep.subr.mxu0 0.0
    %2921 = vmatpush2.msra.mxu0 0.0
    %2922 = vmatprep.subr.mxu0 0.0
    %2923 = vmatpush2.msra.mxu0 0.0
    %2924 = vmatprep.mubr.f32.mxu0 0.0
    %2925 = vmatmul.mubr.f32.gmra.mxu0 %v2765
    %v2926 = vpop.f32.mrf.mxu0
    %v2927 = vadd.f32 0.0, %v2926
    %v2928 = vpop.f32.mrf.mxu0
    %v2929 = vadd.f32 0.0, %v2928
    %2930 = vmatprep.mubr.f32.mxu0 0.0
    %2931 = vmatmul.mubr.f32.gmra.mxu0 %v2768
    %v2932 = vpop.f32.mrf.mxu0
    %v2933 = vadd.f32 0.0, %v2932
    %v2934 = vpop.f32.mrf.mxu0
    %v2935 = vadd.f32 0.0, %v2934
    %2936 = vdwg.mxu0
    %v2938 = vsel %vm2617, %v2616, 0
    %2940 = vmatprep.subr.mxu0 0.0
    %2941 = vmatpush1.msra.mxu0 0.0
    %2942 = vmatprep.subr.mxu0 0.0
    %2943 = vmatpush1.msra.mxu0 0.0
    %2944 = vmatprep.subr.mxu0 0.0
    %2945 = vmatpush1.msra.mxu0 0.0
    %2946 = vmatprep.subr.mxu0 0.0
    %2947 = vmatpush1.msra.mxu0 0.0
    %2948 = vmatprep.subr.mxu0 0.0
    %2949 = vmatpush1.msra.mxu0 0.0
    %2950 = vmatprep.subr.mxu0 0.0
    %2951 = vmatpush1.msra.mxu0 0.0
    %2952 = vmatprep.subr.mxu0 0.0
    %2953 = vmatpush1.msra.mxu0 0.0
    %2954 = vmatprep.subr.mxu0 0.0
    %2955 = vmatpush1.msra.mxu0 0.0
    %2956 = vmatprep.subr.mxu0 0.0
    %2957 = vmatpush1.msra.mxu0 0.0
    %2958 = vmatprep.subr.mxu0 0.0
    %2959 = vmatpush1.msra.mxu0 0.0
    %2960 = vmatprep.subr.mxu0 0.0
    %2961 = vmatpush1.msra.mxu0 0.0
    %2962 = vmatprep.subr.mxu0 0.0
    %2963 = vmatpush1.msra.mxu0 0.0
    %2964 = vmatprep.subr.mxu0 0.0
    %2965 = vmatpush1.msra.mxu0 0.0
    %2966 = vmatprep.subr.mxu0 0.0
    %2967 = vmatpush1.msra.mxu0 0.0
    %2968 = vmatprep.subr.mxu0 0.0
    %2969 = vmatpush1.msra.mxu0 0.0
    %2970 = vmatprep.subr.mxu0 %v2031
    %2971 = vmatpush1.msra.mxu0 %v2030
    %2972 = vmatprep.subr.mxu0 0.0
    %2973 = vmatpush2.msra.mxu0 0.0
    %2974 = vmatprep.subr.mxu0 0.0
    %2975 = vmatpush2.msra.mxu0 0.0
    %2976 = vmatprep.subr.mxu0 0.0
    %2977 = vmatpush2.msra.mxu0 0.0
    %2978 = vmatprep.subr.mxu0 0.0
    %2979 = vmatpush2.msra.mxu0 0.0
    %2980 = vmatprep.subr.mxu0 0.0
    %2981 = vmatpush2.msra.mxu0 0.0
    %2982 = vmatprep.subr.mxu0 0.0
    %2983 = vmatpush2.msra.mxu0 0.0
    %2984 = vmatprep.subr.mxu0 0.0
    %2985 = vmatpush2.msra.mxu0 0.0
    %2986 = vmatprep.subr.mxu0 0.0
    %2987 = vmatpush2.msra.mxu0 0.0
    %2988 = vmatprep.subr.mxu0 0.0
    %2989 = vmatpush2.msra.mxu0 0.0
    %2990 = vmatprep.subr.mxu0 0.0
    %2991 = vmatpush2.msra.mxu0 0.0
    %2992 = vmatprep.subr.mxu0 0.0
    %2993 = vmatpush2.msra.mxu0 0.0
    %2994 = vmatprep.subr.mxu0 0.0
    %2995 = vmatpush2.msra.mxu0 0.0
    %2996 = vmatprep.subr.mxu0 0.0
    %2997 = vmatpush2.msra.mxu0 0.0
    %2998 = vmatprep.subr.mxu0 0.0
    %2999 = vmatpush2.msra.mxu0 0.0
    %3000 = vmatprep.subr.mxu0 0.0
    %3001 = vmatpush2.msra.mxu0 0.0
    %3002 = vmatprep.subr.mxu0 0.0
    %3003 = vmatpush2.msra.mxu0 0.0
    %3004 = vmatprep.mubr.f32.mxu0 0.0
    %3005 = vmatmul.mubr.f32.gmra.mxu0 %v2938
    %v3006 = vpop.f32.mrf.mxu0
    %v3007 = vadd.f32 0.0, %v3006
    %v3008 = vpop.f32.mrf.mxu0
    %v3009 = vadd.f32 0.0, %v3008
    %3010 = vdwg.mxu0
    %3011 = vmatprep.subr.mxu0 0.0
    %3012 = vmatpush1.msra.mxu0 0.0
    %3013 = vmatprep.subr.mxu0 0.0
    %3014 = vmatpush1.msra.mxu0 0.0
    %3015 = vmatprep.subr.mxu0 0.0
    %3016 = vmatpush1.msra.mxu0 0.0
    %3017 = vmatprep.subr.mxu0 0.0
    %3018 = vmatpush1.msra.mxu0 0.0
    %3019 = vmatprep.subr.mxu0 0.0
    %3020 = vmatpush1.msra.mxu0 0.0
    %3021 = vmatprep.subr.mxu0 0.0
    %3022 = vmatpush1.msra.mxu0 0.0
    %3023 = vmatprep.subr.mxu0 0.0
    %3024 = vmatpush1.msra.mxu0 0.0
    %3025 = vmatprep.subr.mxu0 0.0
    %3026 = vmatpush1.msra.mxu0 0.0
    %3027 = vmatprep.subr.mxu0 0.0
    %3028 = vmatpush1.msra.mxu0 0.0
    %3029 = vmatprep.subr.mxu0 0.0
    %3030 = vmatpush1.msra.mxu0 0.0
    %3031 = vmatprep.subr.mxu0 0.0
    %3032 = vmatpush1.msra.mxu0 0.0
    %3033 = vmatprep.subr.mxu0 0.0
    %3034 = vmatpush1.msra.mxu0 0.0
    %3035 = vmatprep.subr.mxu0 0.0
    %3036 = vmatpush1.msra.mxu0 0.0
    %3037 = vmatprep.subr.mxu0 0.0
    %3038 = vmatpush1.msra.mxu0 0.0
    %3039 = vmatprep.subr.mxu0 0.0
    %3040 = vmatpush1.msra.mxu0 0.0
    %3041 = vmatprep.subr.mxu0 %v2033
    %3042 = vmatpush1.msra.mxu0 %v2032
    %3043 = vmatprep.subr.mxu0 0.0
    %3044 = vmatpush2.msra.mxu0 0.0
    %3045 = vmatprep.subr.mxu0 0.0
    %3046 = vmatpush2.msra.mxu0 0.0
    %3047 = vmatprep.subr.mxu0 0.0
    %3048 = vmatpush2.msra.mxu0 0.0
    %3049 = vmatprep.subr.mxu0 0.0
    %3050 = vmatpush2.msra.mxu0 0.0
    %3051 = vmatprep.subr.mxu0 0.0
    %3052 = vmatpush2.msra.mxu0 0.0
    %3053 = vmatprep.subr.mxu0 0.0
    %3054 = vmatpush2.msra.mxu0 0.0
    %3055 = vmatprep.subr.mxu0 0.0
    %3056 = vmatpush2.msra.mxu0 0.0
    %3057 = vmatprep.subr.mxu0 0.0
    %3058 = vmatpush2.msra.mxu0 0.0
    %3059 = vmatprep.subr.mxu0 0.0
    %3060 = vmatpush2.msra.mxu0 0.0
    %3061 = vmatprep.subr.mxu0 0.0
    %3062 = vmatpush2.msra.mxu0 0.0
    %3063 = vmatprep.subr.mxu0 0.0
    %3064 = vmatpush2.msra.mxu0 0.0
    %3065 = vmatprep.subr.mxu0 0.0
    %3066 = vmatpush2.msra.mxu0 0.0
    %3067 = vmatprep.subr.mxu0 0.0
    %3068 = vmatpush2.msra.mxu0 0.0
    %3069 = vmatprep.subr.mxu0 0.0
    %3070 = vmatpush2.msra.mxu0 0.0
    %3071 = vmatprep.subr.mxu0 0.0
    %3072 = vmatpush2.msra.mxu0 0.0
    %3073 = vmatprep.subr.mxu0 0.0
    %3074 = vmatpush2.msra.mxu0 0.0
    %3075 = vmatprep.mubr.f32.mxu0 0.0
    %3076 = vmatmul.mubr.f32.gmra.mxu0 %v2938
    %v3077 = vpop.f32.mrf.mxu0
    %v3078 = vadd.f32 0.0, %v3077
    %v3079 = vpop.f32.mrf.mxu0
    %v3080 = vadd.f32 0.0, %v3079
    %3081 = vdwg.mxu0
    %v3083 = vsel %vm2770, %v3007, 0
    %v3086 = vsel %vm2770, %v3009, 0
    %v3089 = vsel %vm2770, %v3078, 0
    %v3092 = vsel %vm2770, %v3080, 0
    %3094 = vmatprep.subr.mxu0 0.0
    %3095 = vmatpush1.msra.mxu0 0.0
    %3096 = vmatprep.subr.mxu0 0.0
    %3097 = vmatpush1.msra.mxu0 0.0
    %3098 = vmatprep.subr.mxu0 0.0
    %3099 = vmatpush1.msra.mxu0 0.0
    %3100 = vmatprep.subr.mxu0 0.0
    %3101 = vmatpush1.msra.mxu0 0.0
    %3102 = vmatprep.subr.mxu0 0.0
    %3103 = vmatpush1.msra.mxu0 0.0
    %3104 = vmatprep.subr.mxu0 0.0
    %3105 = vmatpush1.msra.mxu0 0.0
    %3106 = vmatprep.subr.mxu0 0.0
    %3107 = vmatpush1.msra.mxu0 0.0
    %3108 = vmatprep.subr.mxu0 0.0
    %3109 = vmatpush1.msra.mxu0 0.0
    %3110 = vmatprep.subr.mxu0 0.0
    %3111 = vmatpush1.msra.mxu0 0.0
    %3112 = vmatprep.subr.mxu0 0.0
    %3113 = vmatpush1.msra.mxu0 0.0
    %3114 = vmatprep.subr.mxu0 0.0
    %3115 = vmatpush1.msra.mxu0 0.0
    %3116 = vmatprep.subr.mxu0 0.0
    %3117 = vmatpush1.msra.mxu0 0.0
    %3118 = vmatprep.subr.mxu0 0.0
    %3119 = vmatpush1.msra.mxu0 0.0
    %3120 = vmatprep.subr.mxu0 0.0
    %3121 = vmatpush1.msra.mxu0 0.0
    %3122 = vmatprep.subr.mxu0 0.0
    %3123 = vmatpush1.msra.mxu0 0.0
    %3124 = vmatprep.subr.mxu0 %v3086
    %3125 = vmatpush1.msra.mxu0 %v3083
    %3126 = vmatprep.subr.mxu0 0.0
    %3127 = vmatpush2.msra.mxu0 0.0
    %3128 = vmatprep.subr.mxu0 0.0
    %3129 = vmatpush2.msra.mxu0 0.0
    %3130 = vmatprep.subr.mxu0 0.0
    %3131 = vmatpush2.msra.mxu0 0.0
    %3132 = vmatprep.subr.mxu0 0.0
    %3133 = vmatpush2.msra.mxu0 0.0
    %3134 = vmatprep.subr.mxu0 0.0
    %3135 = vmatpush2.msra.mxu0 0.0
    %3136 = vmatprep.subr.mxu0 0.0
    %3137 = vmatpush2.msra.mxu0 0.0
    %3138 = vmatprep.subr.mxu0 0.0
    %3139 = vmatpush2.msra.mxu0 0.0
    %3140 = vmatprep.subr.mxu0 0.0
    %3141 = vmatpush2.msra.mxu0 0.0
    %3142 = vmatprep.subr.mxu0 0.0
    %3143 = vmatpush2.msra.mxu0 0.0
    %3144 = vmatprep.subr.mxu0 0.0
    %3145 = vmatpush2.msra.mxu0 0.0
    %3146 = vmatprep.subr.mxu0 0.0
    %3147 = vmatpush2.msra.mxu0 0.0
    %3148 = vmatprep.subr.mxu0 0.0
    %3149 = vmatpush2.msra.mxu0 0.0
    %3150 = vmatprep.subr.mxu0 0.0
    %3151 = vmatpush2.msra.mxu0 0.0
    %3152 = vmatprep.subr.mxu0 0.0
    %3153 = vmatpush2.msra.mxu0 0.0
    %3154 = vmatprep.subr.mxu0 0.0
    %3155 = vmatpush2.msra.mxu0 0.0
    %3156 = vmatprep.subr.mxu0 0.0
    %3157 = vmatpush2.msra.mxu0 0.0
    %3158 = vmatprep.mubr.f32.mxu0 0.0
    %3159 = vmatmul.mubr.f32.gmra.mxu0 %v2765
    %v3160 = vpop.f32.mrf.mxu0
    %v3161 = vadd.f32 0.0, %v3160
    %v3162 = vpop.f32.mrf.mxu0
    %v3163 = vadd.f32 0.0, %v3162
    %3164 = vmatprep.mubr.f32.mxu0 0.0
    %3165 = vmatmul.mubr.f32.gmra.mxu0 %v2768
    %v3166 = vpop.f32.mrf.mxu0
    %v3167 = vadd.f32 0.0, %v3166
    %v3168 = vpop.f32.mrf.mxu0
    %v3169 = vadd.f32 0.0, %v3168
    %3170 = vdwg.mxu0
    %3171 = vmatprep.subr.mxu0 0.0
    %3172 = vmatpush1.msra.mxu0 0.0
    %3173 = vmatprep.subr.mxu0 0.0
    %3174 = vmatpush1.msra.mxu0 0.0
    %3175 = vmatprep.subr.mxu0 0.0
    %3176 = vmatpush1.msra.mxu0 0.0
    %3177 = vmatprep.subr.mxu0 0.0
    %3178 = vmatpush1.msra.mxu0 0.0
    %3179 = vmatprep.subr.mxu0 0.0
    %3180 = vmatpush1.msra.mxu0 0.0
    %3181 = vmatprep.subr.mxu0 0.0
    %3182 = vmatpush1.msra.mxu0 0.0
    %3183 = vmatprep.subr.mxu0 0.0
    %3184 = vmatpush1.msra.mxu0 0.0
    %3185 = vmatprep.subr.mxu0 0.0
    %3186 = vmatpush1.msra.mxu0 0.0
    %3187 = vmatprep.subr.mxu0 0.0
    %3188 = vmatpush1.msra.mxu0 0.0
    %3189 = vmatprep.subr.mxu0 0.0
    %3190 = vmatpush1.msra.mxu0 0.0
    %3191 = vmatprep.subr.mxu0 0.0
    %3192 = vmatpush1.msra.mxu0 0.0
    %3193 = vmatprep.subr.mxu0 0.0
    %3194 = vmatpush1.msra.mxu0 0.0
    %3195 = vmatprep.subr.mxu0 0.0
    %3196 = vmatpush1.msra.mxu0 0.0
    %3197 = vmatprep.subr.mxu0 0.0
    %3198 = vmatpush1.msra.mxu0 0.0
    %3199 = vmatprep.subr.mxu0 0.0
    %3200 = vmatpush1.msra.mxu0 0.0
    %3201 = vmatprep.subr.mxu0 %v3092
    %3202 = vmatpush1.msra.mxu0 %v3089
    %3203 = vmatprep.subr.mxu0 0.0
    %3204 = vmatpush2.msra.mxu0 0.0
    %3205 = vmatprep.subr.mxu0 0.0
    %3206 = vmatpush2.msra.mxu0 0.0
    %3207 = vmatprep.subr.mxu0 0.0
    %3208 = vmatpush2.msra.mxu0 0.0
    %3209 = vmatprep.subr.mxu0 0.0
    %3210 = vmatpush2.msra.mxu0 0.0
    %3211 = vmatprep.subr.mxu0 0.0
    %3212 = vmatpush2.msra.mxu0 0.0
    %3213 = vmatprep.subr.mxu0 0.0
    %3214 = vmatpush2.msra.mxu0 0.0
    %3215 = vmatprep.subr.mxu0 0.0
    %3216 = vmatpush2.msra.mxu0 0.0
    %3217 = vmatprep.subr.mxu0 0.0
    %3218 = vmatpush2.msra.mxu0 0.0
    %3219 = vmatprep.subr.mxu0 0.0
    %3220 = vmatpush2.msra.mxu0 0.0
    %3221 = vmatprep.subr.mxu0 0.0
    %3222 = vmatpush2.msra.mxu0 0.0
    %3223 = vmatprep.subr.mxu0 0.0
    %3224 = vmatpush2.msra.mxu0 0.0
    %3225 = vmatprep.subr.mxu0 0.0
    %3226 = vmatpush2.msra.mxu0 0.0
    %3227 = vmatprep.subr.mxu0 0.0
    %3228 = vmatpush2.msra.mxu0 0.0
    %3229 = vmatprep.subr.mxu0 0.0
    %3230 = vmatpush2.msra.mxu0 0.0
    %3231 = vmatprep.subr.mxu0 0.0
    %3232 = vmatpush2.msra.mxu0 0.0
    %3233 = vmatprep.subr.mxu0 0.0
    %3234 = vmatpush2.msra.mxu0 0.0
    %3235 = vmatprep.mubr.f32.mxu0 0.0
    %3236 = vmatmul.mubr.f32.gmra.mxu0 %v2765
    %v3237 = vpop.f32.mrf.mxu0
    %v3238 = vadd.f32 0.0, %v3237
    %v3239 = vpop.f32.mrf.mxu0
    %v3240 = vadd.f32 0.0, %v3239
    %3241 = vmatprep.mubr.f32.mxu0 0.0
    %3242 = vmatmul.mubr.f32.gmra.mxu0 %v2768
    %v3243 = vpop.f32.mrf.mxu0
    %v3244 = vadd.f32 0.0, %v3243
    %v3245 = vpop.f32.mrf.mxu0
    %v3246 = vadd.f32 0.0, %v3245
    %3247 = vdwg.mxu0
    %v3248 = vsub.f32 %v1958, %v2850
    %v3249 = vsub.f32 %v1959, %v2852
    %v3250 = vsub.f32 %v1960, %v2927
    %v3251 = vsub.f32 %v1961, %v2929
    %v3252 = vsub.f32 %v1962, %v2856
    %v3253 = vsub.f32 %v1963, %v2858
    %v3254 = vsub.f32 %v1964, %v2933
    %v3255 = vsub.f32 %v1965, %v2935
    %v3256 = vmul.f32 %v3248, %v3161
    %v3257 = vmul.f32 %v3249, %v3163
    %v3258 = vmul.f32 %v3250, %v3238
    %v3259 = vmul.f32 %v3251, %v3240
    %v3260 = vmul.f32 %v3252, %v3167
    %v3261 = vmul.f32 %v3253, %v3169
    %v3262 = vmul.f32 %v3254, %v3244
    %v3263 = vmul.f32 %v3255, %v3246
    %v3265 = vlaneseq
    %v3266 = vshrl.u32 %v3265, 7
    %v3267 = vsub.s32 0, %v3266
    %v3268 = vrot.slane %v2034, %v3267
    %v3269 = vlaneseq
    %v3270 = vshrl.u32 %v3269, 7
    %v3271 = vsub.s32 1, %v3270
    %v3272 = vrot.slane %v2034, %v3271
    %v3273 = vlaneseq
    %v3274 = vshrl.u32 %v3273, 7
    %v3275 = vsub.s32 2, %v3274
    %v3276 = vrot.slane %v2034, %v3275
    %v3277 = vlaneseq
    %v3278 = vshrl.u32 %v3277, 7
    %v3279 = vsub.s32 3, %v3278
    %v3280 = vrot.slane %v2034, %v3279
    %v3285 = vmul.f32 %v3256, %v3268
    %v3286 = vmul.f32 %v3257, %v3272
    %v3287 = vmul.f32 %v3258, %v3276
    %v3288 = vmul.f32 %v3259, %v3280
    %v3289 = vmul.f32 %v3260, %v3268
    %v3290 = vmul.f32 %v3261, %v3272
    %v3291 = vmul.f32 %v3262, %v3276
    %v3292 = vmul.f32 %v3263, %v3280
    %v3294 = vlaneseq
    %v3295 = vshrl.u32 %v3294, 7
    %v3296 = vsub.s32 0, %v3295
    %v3297 = vrot.slane %v2035, %v3296
    %v3298 = vlaneseq
    %v3299 = vshrl.u32 %v3298, 7
    %v3300 = vsub.s32 1, %v3299
    %v3301 = vrot.slane %v2035, %v3300
    %v3302 = vlaneseq
    %v3303 = vshrl.u32 %v3302, 7
    %v3304 = vsub.s32 2, %v3303
    %v3305 = vrot.slane %v2035, %v3304
    %v3306 = vlaneseq
    %v3307 = vshrl.u32 %v3306, 7
    %v3308 = vsub.s32 3, %v3307
    %v3309 = vrot.slane %v2035, %v3308
    %v3314 = vadd.f32 %v3285, %v3297
    %v3315 = vadd.f32 %v3286, %v3301
    %v3316 = vadd.f32 %v3287, %v3305
    %v3317 = vadd.f32 %v3288, %v3309
    %v3318 = vadd.f32 %v3289, %v3297
    %v3319 = vadd.f32 %v3290, %v3301
    %v3320 = vadd.f32 %v3291, %v3305
    %v3321 = vadd.f32 %v3292, %v3309
    %v3322 = vmul.f32 %v3314, 0.5
    %v3323 = vmul.f32 %v3315, 0.5
    %v3324 = vmul.f32 %v3316, 0.5
    %v3325 = vmul.f32 %v3317, 0.5
    %v3326 = vmul.f32 %v3318, 0.5
    %v3327 = vmul.f32 %v3319, 0.5
    %v3328 = vmul.f32 %v3320, 0.5
    %v3329 = vmul.f32 %v3321, 0.5
    %v3330 = vmul.f32 %v3314, %v3314
    %v3331 = vmul.f32 %v3315, %v3315
    %v3332 = vmul.f32 %v3316, %v3316
    %v3333 = vmul.f32 %v3317, %v3317
    %v3334 = vmul.f32 %v3318, %v3318
    %v3335 = vmul.f32 %v3319, %v3319
    %v3336 = vmul.f32 %v3320, %v3320
    %v3337 = vmul.f32 %v3321, %v3321
    %v3338 = vmul.f32 %v3330, %v3314
    %v3339 = vmul.f32 %v3331, %v3315
    %v3340 = vmul.f32 %v3332, %v3316
    %v3341 = vmul.f32 %v3333, %v3317
    %v3342 = vmul.f32 %v3334, %v3318
    %v3343 = vmul.f32 %v3335, %v3319
    %v3344 = vmul.f32 %v3336, %v3320
    %v3345 = vmul.f32 %v3337, %v3321
    %v3346 = vmul.f32 %v3338, 0.044715
    %v3347 = vmul.f32 %v3339, 0.044715
    %v3348 = vmul.f32 %v3340, 0.044715
    %v3349 = vmul.f32 %v3341, 0.044715
    %v3350 = vmul.f32 %v3342, 0.044715
    %v3351 = vmul.f32 %v3343, 0.044715
    %v3352 = vmul.f32 %v3344, 0.044715
    %v3353 = vmul.f32 %v3345, 0.044715
    %v3354 = vadd.f32 %v3314, %v3346
    %v3355 = vadd.f32 %v3315, %v3347
    %v3356 = vadd.f32 %v3316, %v3348
    %v3357 = vadd.f32 %v3317, %v3349
    %v3358 = vadd.f32 %v3318, %v3350
    %v3359 = vadd.f32 %v3319, %v3351
    %v3360 = vadd.f32 %v3320, %v3352
    %v3361 = vadd.f32 %v3321, %v3353
    %v3362 = vmul.f32 %v3354, 0.7978846
    %v3363 = vmul.f32 %v3355, 0.7978846
    %v3364 = vmul.f32 %v3356, 0.7978846
    %v3365 = vmul.f32 %v3357, 0.7978846
    %v3366 = vmul.f32 %v3358, 0.7978846
    %v3367 = vmul.f32 %v3359, 0.7978846
    %v3368 = vmul.f32 %v3360, 0.7978846
    %v3369 = vmul.f32 %v3361, 0.7978846
    %v3370 = vtanh.pop %v3362
    %v3371 = vtanh.pop %v3363
    %v3372 = vtanh.pop %v3364
    %v3373 = vtanh.pop %v3365
    %v3374 = vtanh.pop %v3366
    %v3375 = vtanh.pop %v3367
    %v3376 = vtanh.pop %v3368
    %v3377 = vtanh.pop %v3369
    %v3378 = vadd.f32 %v3370, 1.0
    %v3379 = vadd.f32 %v3371, 1.0
    %v3380 = vadd.f32 %v3372, 1.0
    %v3381 = vadd.f32 %v3373, 1.0
    %v3382 = vadd.f32 %v3374, 1.0
    %v3383 = vadd.f32 %v3375, 1.0
    %v3384 = vadd.f32 %v3376, 1.0
    %v3385 = vadd.f32 %v3377, 1.0
    %v3386 = vmul.f32 %v3322, %v3378
    %v3387 = vmul.f32 %v3323, %v3379
    %v3388 = vmul.f32 %v3324, %v3380
    %v3389 = vmul.f32 %v3325, %v3381
    %v3390 = vmul.f32 %v3326, %v3382
    %v3391 = vmul.f32 %v3327, %v3383
    %v3392 = vmul.f32 %v3328, %v3384
    %v3393 = vmul.f32 %v3329, %v3385
    %v3394 = vpack.c.bf16 %v3390, %v3386
    %v3395 = vpack.c.bf16 %v3391, %v3387
    %v3396 = vpack.c.bf16 %v3392, %v3388
    %v3397 = vpack.c.bf16 %v3393, %v3389
    %v3398 = vld [vmem:[#allocation2] sm:$0xff]
    %v3399 = vld [vmem:[#allocation2 + $0x8] sm:$0xff]
    %v3400 = vld [vmem:[#allocation2 + $0x10] sm:$0xff]
    %v3401 = vld [vmem:[#allocation2 + $0x18] sm:$0xff]
    %v3402 = vld [vmem:[#allocation2 + $0x20] sm:$0xff]
    %v3403 = vld [vmem:[#allocation2 + $0x28] sm:$0xff]
    %v3404 = vld [vmem:[#allocation2 + $0x30] sm:$0xff]
    %v3405 = vld [vmem:[#allocation2 + $0x38] sm:$0xff]
    %v3406 = vld [vmem:[#allocation2 + $0x40] sm:$0xff]
    %v3407 = vld [vmem:[#allocation2 + $0x48] sm:$0xff]
    %v3408 = vld [vmem:[#allocation2 + $0x50] sm:$0xff]
    %v3409 = vld [vmem:[#allocation2 + $0x58] sm:$0xff]
    %v3410 = vld [vmem:[#allocation2 + $0x60] sm:$0xff]
    %v3411 = vld [vmem:[#allocation2 + $0x68] sm:$0xff]
    %v3412 = vld [vmem:[#allocation2 + $0x70] sm:$0xff]
    %v3413 = vld [vmem:[#allocation2 + $0x78] sm:$0xff]
    %v3414 = vld [vmem:[#allocation2 + $0x80] sm:$0xff]
    %v3415 = vld [vmem:[#allocation2 + $0x88] sm:$0xff]
    %v3416 = vld [vmem:[#allocation2 + $0x90] sm:$0xff]
    %v3417 = vld [vmem:[#allocation2 + $0x98] sm:$0xff]
    %v3418 = vld [vmem:[#allocation2 + $0xa0] sm:$0xff]
    %v3419 = vld [vmem:[#allocation2 + $0xa8] sm:$0xff]
    %v3420 = vld [vmem:[#allocation2 + $0xb0] sm:$0xff]
    %v3421 = vld [vmem:[#allocation2 + $0xb8] sm:$0xff]
    %v3422 = vld [vmem:[#allocation2 + $0xc0] sm:$0xff]
    %v3423 = vld [vmem:[#allocation2 + $0xc8] sm:$0xff]
    %v3424 = vld [vmem:[#allocation2 + $0xd0] sm:$0xff]
    %v3425 = vld [vmem:[#allocation2 + $0xd8] sm:$0xff]
    %v3426 = vld [vmem:[#allocation2 + $0xe0] sm:$0xff]
    %v3427 = vld [vmem:[#allocation2 + $0xe8] sm:$0xff]
    %v3428 = vld [vmem:[#allocation2 + $0xf0] sm:$0xff]
    %v3429 = vld [vmem:[#allocation2 + $0xf8] sm:$0xff]
    %v3430 = vld [vmem:[#allocation2 + $0x100] sm:$0xff]
    %v3431 = vld [vmem:[#allocation2 + $0x108] sm:$0xff]
    %v3432 = vld [vmem:[#allocation2 + $0x110] sm:$0xff]
    %v3433 = vld [vmem:[#allocation2 + $0x118] sm:$0xff]
    %v3434 = vld [vmem:[#allocation2 + $0x120] sm:$0xff]
    %v3435 = vld [vmem:[#allocation2 + $0x128] sm:$0xff]
    %v3436 = vld [vmem:[#allocation2 + $0x130] sm:$0xff]
    %v3437 = vld [vmem:[#allocation2 + $0x138] sm:$0xff]
    %v3438 = vld [vmem:[#allocation2 + $0x140] sm:$0xff]
    %v3439 = vld [vmem:[#allocation2 + $0x148] sm:$0xff]
    %v3440 = vld [vmem:[#allocation2 + $0x150] sm:$0xff]
    %v3441 = vld [vmem:[#allocation2 + $0x158] sm:$0xff]
    %v3442 = vld [vmem:[#allocation2 + $0x160] sm:$0xff]
    %v3443 = vld [vmem:[#allocation2 + $0x168] sm:$0xff]
    %v3444 = vld [vmem:[#allocation2 + $0x170] sm:$0xff]
    %v3445 = vld [vmem:[#allocation2 + $0x178] sm:$0xff]
    %v3446 = vld [vmem:[#allocation2 + $0x180] sm:$0xff]
    %v3447 = vld [vmem:[#allocation2 + $0x188] sm:$0xff]
    %v3448 = vld [vmem:[#allocation2 + $0x190] sm:$0xff]
    %v3449 = vld [vmem:[#allocation2 + $0x198] sm:$0xff]
    %v3450 = vld [vmem:[#allocation2 + $0x1a0] sm:$0xff]
    %v3451 = vld [vmem:[#allocation2 + $0x1a8] sm:$0xff]
    %v3452 = vld [vmem:[#allocation2 + $0x1b0] sm:$0xff]
    %v3453 = vld [vmem:[#allocation2 + $0x1b8] sm:$0xff]
    %v3454 = vld [vmem:[#allocation2 + $0x1c0] sm:$0xff]
    %v3455 = vld [vmem:[#allocation2 + $0x1c8] sm:$0xff]
    %v3456 = vld [vmem:[#allocation2 + $0x1d0] sm:$0xff]
    %v3457 = vld [vmem:[#allocation2 + $0x1d8] sm:$0xff]
    %v3458 = vld [vmem:[#allocation2 + $0x1e0] sm:$0xff]
    %v3459 = vld [vmem:[#allocation2 + $0x1e8] sm:$0xff]
    %v3460 = vld [vmem:[#allocation2 + $0x1f0] sm:$0xff]
    %v3461 = vld [vmem:[#allocation2 + $0x1f8] sm:$0xff]
    %v3462 = vld [vmem:[#allocation2 + $0x200] sm:$0xff]
    %v3463 = vld [vmem:[#allocation2 + $0x208] sm:$0xff]
    %v3464 = vld [vmem:[#allocation2 + $0x210] sm:$0xff]
    %v3465 = vld [vmem:[#allocation2 + $0x218] sm:$0xff]
    %v3466 = vld [vmem:[#allocation2 + $0x220] sm:$0xff]
    %v3467 = vld [vmem:[#allocation2 + $0x228] sm:$0xff]
    %v3468 = vld [vmem:[#allocation2 + $0x230] sm:$0xff]
    %v3469 = vld [vmem:[#allocation2 + $0x238] sm:$0xff]
    %v3470 = vld [vmem:[#allocation2 + $0x240] sm:$0xff]
    %v3471 = vld [vmem:[#allocation2 + $0x248] sm:$0xff]
    %v3472 = vld [vmem:[#allocation2 + $0x250] sm:$0xff]
    %v3473 = vld [vmem:[#allocation2 + $0x258] sm:$0xff]
    %v3474 = vld [vmem:[#allocation2 + $0x260] sm:$0xff]
    %v3475 = vld [vmem:[#allocation2 + $0x268] sm:$0xff]
    %v3476 = vld [vmem:[#allocation2 + $0x270] sm:$0xff]
    %v3477 = vld [vmem:[#allocation2 + $0x278] sm:$0xff]
    %v3478 = vld [vmem:[#allocation2 + $0x280] sm:$0xff]
    %v3479 = vld [vmem:[#allocation2 + $0x288] sm:$0xff]
    %v3480 = vld [vmem:[#allocation2 + $0x290] sm:$0xff]
    %v3481 = vld [vmem:[#allocation2 + $0x298] sm:$0xff]
    %v3482 = vld [vmem:[#allocation2 + $0x2a0] sm:$0xff]
    %v3483 = vld [vmem:[#allocation2 + $0x2a8] sm:$0xff]
    %v3484 = vld [vmem:[#allocation2 + $0x2b0] sm:$0xff]
    %v3485 = vld [vmem:[#allocation2 + $0x2b8] sm:$0xff]
    %v3486 = vld [vmem:[#allocation2 + $0x2c0] sm:$0xff]
    %v3487 = vld [vmem:[#allocation2 + $0x2c8] sm:$0xff]
    %v3488 = vld [vmem:[#allocation2 + $0x2d0] sm:$0xff]
    %v3489 = vld [vmem:[#allocation2 + $0x2d8] sm:$0xff]
    %v3490 = vld [vmem:[#allocation2 + $0x2e0] sm:$0xff]
    %v3491 = vld [vmem:[#allocation2 + $0x2e8] sm:$0xff]
    %v3492 = vld [vmem:[#allocation2 + $0x2f0] sm:$0xff]
    %v3493 = vld [vmem:[#allocation2 + $0x2f8] sm:$0xff]
    %v3494 = vld [vmem:[#allocation2 + $0x300] sm:$0xff]
    %v3495 = vld [vmem:[#allocation2 + $0x308] sm:$0xff]
    %v3496 = vld [vmem:[#allocation2 + $0x310] sm:$0xff]
    %v3497 = vld [vmem:[#allocation2 + $0x318] sm:$0xff]
    %v3498 = vld [vmem:[#allocation2 + $0x320] sm:$0xff]
    %v3499 = vld [vmem:[#allocation2 + $0x328] sm:$0xff]
    %v3500 = vld [vmem:[#allocation2 + $0x330] sm:$0xff]
    %v3501 = vld [vmem:[#allocation2 + $0x338] sm:$0xff]
    %v3502 = vld [vmem:[#allocation2 + $0x340] sm:$0xff]
    %v3503 = vld [vmem:[#allocation2 + $0x348] sm:$0xff]
    %v3504 = vld [vmem:[#allocation2 + $0x350] sm:$0xff]
    %v3505 = vld [vmem:[#allocation2 + $0x358] sm:$0xff]
    %v3506 = vld [vmem:[#allocation2 + $0x360] sm:$0xff]
    %v3507 = vld [vmem:[#allocation2 + $0x368] sm:$0xff]
    %v3508 = vld [vmem:[#allocation2 + $0x370] sm:$0xff]
    %v3509 = vld [vmem:[#allocation2 + $0x378] sm:$0xff]
    %v3510 = vld [vmem:[#allocation2 + $0x380] sm:$0xff]
    %v3511 = vld [vmem:[#allocation2 + $0x388] sm:$0xff]
    %v3512 = vld [vmem:[#allocation2 + $0x390] sm:$0xff]
    %v3513 = vld [vmem:[#allocation2 + $0x398] sm:$0xff]
    %v3514 = vld [vmem:[#allocation2 + $0x3a0] sm:$0xff]
    %v3515 = vld [vmem:[#allocation2 + $0x3a8] sm:$0xff]
    %v3516 = vld [vmem:[#allocation2 + $0x3b0] sm:$0xff]
    %v3517 = vld [vmem:[#allocation2 + $0x3b8] sm:$0xff]
    %v3518 = vld [vmem:[#allocation2 + $0x3c0] sm:$0xff]
    %v3519 = vld [vmem:[#allocation2 + $0x3c8] sm:$0xff]
    %v3520 = vld [vmem:[#allocation2 + $0x3d0] sm:$0xff]
    %v3521 = vld [vmem:[#allocation2 + $0x3d8] sm:$0xff]
    %v3522 = vld [vmem:[#allocation2 + $0x3e0] sm:$0xff]
    %v3523 = vld [vmem:[#allocation2 + $0x3e8] sm:$0xff]
    %v3524 = vld [vmem:[#allocation2 + $0x3f0] sm:$0xff]
    %v3525 = vld [vmem:[#allocation2 + $0x3f8] sm:$0xff]
    %v3654 = vunpack.c.l.b16 %v3398
    %v3655 = vunpack.c.h.b16 %v3398
    %v3656 = vunpack.c.l.b16 %v3399
    %v3657 = vunpack.c.h.b16 %v3399
    %v3658 = vunpack.c.l.b16 %v3400
    %v3659 = vunpack.c.h.b16 %v3400
    %v3660 = vunpack.c.l.b16 %v3401
    %v3661 = vunpack.c.h.b16 %v3401
    %v3662 = vunpack.c.l.b16 %v3402
    %v3663 = vunpack.c.h.b16 %v3402
    %v3664 = vunpack.c.l.b16 %v3403
    %v3665 = vunpack.c.h.b16 %v3403
    %v3666 = vunpack.c.l.b16 %v3404
    %v3667 = vunpack.c.h.b16 %v3404
    %v3668 = vunpack.c.l.b16 %v3405
    %v3669 = vunpack.c.h.b16 %v3405
    %v3670 = vunpack.c.l.b16 %v3406
    %v3671 = vunpack.c.h.b16 %v3406
    %v3672 = vunpack.c.l.b16 %v3407
    %v3673 = vunpack.c.h.b16 %v3407
    %v3674 = vunpack.c.l.b16 %v3408
    %v3675 = vunpack.c.h.b16 %v3408
    %v3676 = vunpack.c.l.b16 %v3409
    %v3677 = vunpack.c.h.b16 %v3409
    %v3678 = vunpack.c.l.b16 %v3410
    %v3679 = vunpack.c.h.b16 %v3410
    %v3680 = vunpack.c.l.b16 %v3411
    %v3681 = vunpack.c.h.b16 %v3411
    %v3682 = vunpack.c.l.b16 %v3412
    %v3683 = vunpack.c.h.b16 %v3412
    %v3684 = vunpack.c.l.b16 %v3413
    %v3685 = vunpack.c.h.b16 %v3413
    %v3686 = vunpack.c.l.b16 %v3414
    %v3687 = vunpack.c.h.b16 %v3414
    %v3688 = vunpack.c.l.b16 %v3415
    %v3689 = vunpack.c.h.b16 %v3415
    %v3690 = vunpack.c.l.b16 %v3416
    %v3691 = vunpack.c.h.b16 %v3416
    %v3692 = vunpack.c.l.b16 %v3417
    %v3693 = vunpack.c.h.b16 %v3417
    %v3694 = vunpack.c.l.b16 %v3418
    %v3695 = vunpack.c.h.b16 %v3418
    %v3696 = vunpack.c.l.b16 %v3419
    %v3697 = vunpack.c.h.b16 %v3419
    %v3698 = vunpack.c.l.b16 %v3420
    %v3699 = vunpack.c.h.b16 %v3420
    %v3700 = vunpack.c.l.b16 %v3421
    %v3701 = vunpack.c.h.b16 %v3421
    %v3702 = vunpack.c.l.b16 %v3422
    %v3703 = vunpack.c.h.b16 %v3422
    %v3704 = vunpack.c.l.b16 %v3423
    %v3705 = vunpack.c.h.b16 %v3423
    %v3706 = vunpack.c.l.b16 %v3424
    %v3707 = vunpack.c.h.b16 %v3424
    %v3708 = vunpack.c.l.b16 %v3425
    %v3709 = vunpack.c.h.b16 %v3425
    %v3710 = vunpack.c.l.b16 %v3426
    %v3711 = vunpack.c.h.b16 %v3426
    %v3712 = vunpack.c.l.b16 %v3427
    %v3713 = vunpack.c.h.b16 %v3427
    %v3714 = vunpack.c.l.b16 %v3428
    %v3715 = vunpack.c.h.b16 %v3428
    %v3716 = vunpack.c.l.b16 %v3429
    %v3717 = vunpack.c.h.b16 %v3429
    %v3718 = vunpack.c.l.b16 %v3430
    %v3719 = vunpack.c.h.b16 %v3430
    %v3720 = vunpack.c.l.b16 %v3431
    %v3721 = vunpack.c.h.b16 %v3431
    %v3722 = vunpack.c.l.b16 %v3432
    %v3723 = vunpack.c.h.b16 %v3432
    %v3724 = vunpack.c.l.b16 %v3433
    %v3725 = vunpack.c.h.b16 %v3433
    %v3726 = vunpack.c.l.b16 %v3434
    %v3727 = vunpack.c.h.b16 %v3434
    %v3728 = vunpack.c.l.b16 %v3435
    %v3729 = vunpack.c.h.b16 %v3435
    %v3730 = vunpack.c.l.b16 %v3436
    %v3731 = vunpack.c.h.b16 %v3436
    %v3732 = vunpack.c.l.b16 %v3437
    %v3733 = vunpack.c.h.b16 %v3437
    %v3734 = vunpack.c.l.b16 %v3438
    %v3735 = vunpack.c.h.b16 %v3438
    %v3736 = vunpack.c.l.b16 %v3439
    %v3737 = vunpack.c.h.b16 %v3439
    %v3738 = vunpack.c.l.b16 %v3440
    %v3739 = vunpack.c.h.b16 %v3440
    %v3740 = vunpack.c.l.b16 %v3441
    %v3741 = vunpack.c.h.b16 %v3441
    %v3742 = vunpack.c.l.b16 %v3442
    %v3743 = vunpack.c.h.b16 %v3442
    %v3744 = vunpack.c.l.b16 %v3443
    %v3745 = vunpack.c.h.b16 %v3443
    %v3746 = vunpack.c.l.b16 %v3444
    %v3747 = vunpack.c.h.b16 %v3444
    %v3748 = vunpack.c.l.b16 %v3445
    %v3749 = vunpack.c.h.b16 %v3445
    %v3750 = vunpack.c.l.b16 %v3446
    %v3751 = vunpack.c.h.b16 %v3446
    %v3752 = vunpack.c.l.b16 %v3447
    %v3753 = vunpack.c.h.b16 %v3447
    %v3754 = vunpack.c.l.b16 %v3448
    %v3755 = vunpack.c.h.b16 %v3448
    %v3756 = vunpack.c.l.b16 %v3449
    %v3757 = vunpack.c.h.b16 %v3449
    %v3758 = vunpack.c.l.b16 %v3450
    %v3759 = vunpack.c.h.b16 %v3450
    %v3760 = vunpack.c.l.b16 %v3451
    %v3761 = vunpack.c.h.b16 %v3451
    %v3762 = vunpack.c.l.b16 %v3452
    %v3763 = vunpack.c.h.b16 %v3452
    %v3764 = vunpack.c.l.b16 %v3453
    %v3765 = vunpack.c.h.b16 %v3453
    %v3766 = vunpack.c.l.b16 %v3454
    %v3767 = vunpack.c.h.b16 %v3454
    %v3768 = vunpack.c.l.b16 %v3455
    %v3769 = vunpack.c.h.b16 %v3455
    %v3770 = vunpack.c.l.b16 %v3456
    %v3771 = vunpack.c.h.b16 %v3456
    %v3772 = vunpack.c.l.b16 %v3457
    %v3773 = vunpack.c.h.b16 %v3457
    %v3774 = vunpack.c.l.b16 %v3458
    %v3775 = vunpack.c.h.b16 %v3458
    %v3776 = vunpack.c.l.b16 %v3459
    %v3777 = vunpack.c.h.b16 %v3459
    %v3778 = vunpack.c.l.b16 %v3460
    %v3779 = vunpack.c.h.b16 %v3460
    %v3780 = vunpack.c.l.b16 %v3461
    %v3781 = vunpack.c.h.b16 %v3461
    %v3782 = vunpack.c.l.b16 %v3462
    %v3783 = vunpack.c.h.b16 %v3462
    %v3784 = vunpack.c.l.b16 %v3463
    %v3785 = vunpack.c.h.b16 %v3463
    %v3786 = vunpack.c.l.b16 %v3464
    %v3787 = vunpack.c.h.b16 %v3464
    %v3788 = vunpack.c.l.b16 %v3465
    %v3789 = vunpack.c.h.b16 %v3465
    %v3790 = vunpack.c.l.b16 %v3466
    %v3791 = vunpack.c.h.b16 %v3466
    %v3792 = vunpack.c.l.b16 %v3467
    %v3793 = vunpack.c.h.b16 %v3467
    %v3794 = vunpack.c.l.b16 %v3468
    %v3795 = vunpack.c.h.b16 %v3468
    %v3796 = vunpack.c.l.b16 %v3469
    %v3797 = vunpack.c.h.b16 %v3469
    %v3798 = vunpack.c.l.b16 %v3470
    %v3799 = vunpack.c.h.b16 %v3470
    %v3800 = vunpack.c.l.b16 %v3471
    %v3801 = vunpack.c.h.b16 %v3471
    %v3802 = vunpack.c.l.b16 %v3472
    %v3803 = vunpack.c.h.b16 %v3472
    %v3804 = vunpack.c.l.b16 %v3473
    %v3805 = vunpack.c.h.b16 %v3473
    %v3806 = vunpack.c.l.b16 %v3474
    %v3807 = vunpack.c.h.b16 %v3474
    %v3808 = vunpack.c.l.b16 %v3475
    %v3809 = vunpack.c.h.b16 %v3475
    %v3810 = vunpack.c.l.b16 %v3476
    %v3811 = vunpack.c.h.b16 %v3476
    %v3812 = vunpack.c.l.b16 %v3477
    %v3813 = vunpack.c.h.b16 %v3477
    %v3814 = vunpack.c.l.b16 %v3478
    %v3815 = vunpack.c.h.b16 %v3478
    %v3816 = vunpack.c.l.b16 %v3479
    %v3817 = vunpack.c.h.b16 %v3479
    %v3818 = vunpack.c.l.b16 %v3480
    %v3819 = vunpack.c.h.b16 %v3480
    %v3820 = vunpack.c.l.b16 %v3481
    %v3821 = vunpack.c.h.b16 %v3481
    %v3822 = vunpack.c.l.b16 %v3482
    %v3823 = vunpack.c.h.b16 %v3482
    %v3824 = vunpack.c.l.b16 %v3483
    %v3825 = vunpack.c.h.b16 %v3483
    %v3826 = vunpack.c.l.b16 %v3484
    %v3827 = vunpack.c.h.b16 %v3484
    %v3828 = vunpack.c.l.b16 %v3485
    %v3829 = vunpack.c.h.b16 %v3485
    %v3830 = vunpack.c.l.b16 %v3486
    %v3831 = vunpack.c.h.b16 %v3486
    %v3832 = vunpack.c.l.b16 %v3487
    %v3833 = vunpack.c.h.b16 %v3487
    %v3834 = vunpack.c.l.b16 %v3488
    %v3835 = vunpack.c.h.b16 %v3488
    %v3836 = vunpack.c.l.b16 %v3489
    %v3837 = vunpack.c.h.b16 %v3489
    %v3838 = vunpack.c.l.b16 %v3490
    %v3839 = vunpack.c.h.b16 %v3490
    %v3840 = vunpack.c.l.b16 %v3491
    %v3841 = vunpack.c.h.b16 %v3491
    %v3842 = vunpack.c.l.b16 %v3492
    %v3843 = vunpack.c.h.b16 %v3492
    %v3844 = vunpack.c.l.b16 %v3493
    %v3845 = vunpack.c.h.b16 %v3493
    %v3846 = vunpack.c.l.b16 %v3494
    %v3847 = vunpack.c.h.b16 %v3494
    %v3848 = vunpack.c.l.b16 %v3495
    %v3849 = vunpack.c.h.b16 %v3495
    %v3850 = vunpack.c.l.b16 %v3496
    %v3851 = vunpack.c.h.b16 %v3496
    %v3852 = vunpack.c.l.b16 %v3497
    %v3853 = vunpack.c.h.b16 %v3497
    %v3854 = vunpack.c.l.b16 %v3498
    %v3855 = vunpack.c.h.b16 %v3498
    %v3856 = vunpack.c.l.b16 %v3499
    %v3857 = vunpack.c.h.b16 %v3499
    %v3858 = vunpack.c.l.b16 %v3500
    %v3859 = vunpack.c.h.b16 %v3500
    %v3860 = vunpack.c.l.b16 %v3501
    %v3861 = vunpack.c.h.b16 %v3501
    %v3862 = vunpack.c.l.b16 %v3502
    %v3863 = vunpack.c.h.b16 %v3502
    %v3864 = vunpack.c.l.b16 %v3503
    %v3865 = vunpack.c.h.b16 %v3503
    %v3866 = vunpack.c.l.b16 %v3504
    %v3867 = vunpack.c.h.b16 %v3504
    %v3868 = vunpack.c.l.b16 %v3505
    %v3869 = vunpack.c.h.b16 %v3505
    %v3870 = vunpack.c.l.b16 %v3506
    %v3871 = vunpack.c.h.b16 %v3506
    %v3872 = vunpack.c.l.b16 %v3507
    %v3873 = vunpack.c.h.b16 %v3507
    %v3874 = vunpack.c.l.b16 %v3508
    %v3875 = vunpack.c.h.b16 %v3508
    %v3876 = vunpack.c.l.b16 %v3509
    %v3877 = vunpack.c.h.b16 %v3509
    %v3878 = vunpack.c.l.b16 %v3510
    %v3879 = vunpack.c.h.b16 %v3510
    %v3880 = vunpack.c.l.b16 %v3511
    %v3881 = vunpack.c.h.b16 %v3511
    %v3882 = vunpack.c.l.b16 %v3512
    %v3883 = vunpack.c.h.b16 %v3512
    %v3884 = vunpack.c.l.b16 %v3513
    %v3885 = vunpack.c.h.b16 %v3513
    %v3886 = vunpack.c.l.b16 %v3514
    %v3887 = vunpack.c.h.b16 %v3514
    %v3888 = vunpack.c.l.b16 %v3515
    %v3889 = vunpack.c.h.b16 %v3515
    %v3890 = vunpack.c.l.b16 %v3516
    %v3891 = vunpack.c.h.b16 %v3516
    %v3892 = vunpack.c.l.b16 %v3517
    %v3893 = vunpack.c.h.b16 %v3517
    %v3894 = vunpack.c.l.b16 %v3518
    %v3895 = vunpack.c.h.b16 %v3518
    %v3896 = vunpack.c.l.b16 %v3519
    %v3897 = vunpack.c.h.b16 %v3519
    %v3898 = vunpack.c.l.b16 %v3520
    %v3899 = vunpack.c.h.b16 %v3520
    %v3900 = vunpack.c.l.b16 %v3521
    %v3901 = vunpack.c.h.b16 %v3521
    %v3902 = vunpack.c.l.b16 %v3522
    %v3903 = vunpack.c.h.b16 %v3522
    %v3904 = vunpack.c.l.b16 %v3523
    %v3905 = vunpack.c.h.b16 %v3523
    %v3906 = vunpack.c.l.b16 %v3524
    %v3907 = vunpack.c.h.b16 %v3524
    %v3908 = vunpack.c.l.b16 %v3525
    %v3909 = vunpack.c.h.b16 %v3525
    %v3910 = vpack.c.b16 %v3658, %v3654
    %v3911 = vpack.c.b16 %v3659, %v3655
    %v3912 = vpack.c.b16 %v3660, %v3656
    %v3913 = vpack.c.b16 %v3661, %v3657
    %v3914 = vpack.c.b16 %v3666, %v3662
    %v3915 = vpack.c.b16 %v3667, %v3663
    %v3916 = vpack.c.b16 %v3668, %v3664
    %v3917 = vpack.c.b16 %v3669, %v3665
    %v3918 = vpack.c.b16 %v3674, %v3670
    %v3919 = vpack.c.b16 %v3675, %v3671
    %v3920 = vpack.c.b16 %v3676, %v3672
    %v3921 = vpack.c.b16 %v3677, %v3673
    %v3922 = vpack.c.b16 %v3682, %v3678
    %v3923 = vpack.c.b16 %v3683, %v3679
    %v3924 = vpack.c.b16 %v3684, %v3680
    %v3925 = vpack.c.b16 %v3685, %v3681
    %v3926 = vpack.c.b16 %v3690, %v3686
    %v3927 = vpack.c.b16 %v3691, %v3687
    %v3928 = vpack.c.b16 %v3692, %v3688
    %v3929 = vpack.c.b16 %v3693, %v3689
    %v3930 = vpack.c.b16 %v3698, %v3694
    %v3931 = vpack.c.b16 %v3699, %v3695
    %v3932 = vpack.c.b16 %v3700, %v3696
    %v3933 = vpack.c.b16 %v3701, %v3697
    %v3934 = vpack.c.b16 %v3706, %v3702
    %v3935 = vpack.c.b16 %v3707, %v3703
    %v3936 = vpack.c.b16 %v3708, %v3704
    %v3937 = vpack.c.b16 %v3709, %v3705
    %v3938 = vpack.c.b16 %v3714, %v3710
    %v3939 = vpack.c.b16 %v3715, %v3711
    %v3940 = vpack.c.b16 %v3716, %v3712
    %v3941 = vpack.c.b16 %v3717, %v3713
    %v3942 = vpack.c.b16 %v3722, %v3718
    %v3943 = vpack.c.b16 %v3723, %v3719
    %v3944 = vpack.c.b16 %v3724, %v3720
    %v3945 = vpack.c.b16 %v3725, %v3721
    %v3946 = vpack.c.b16 %v3730, %v3726
    %v3947 = vpack.c.b16 %v3731, %v3727
    %v3948 = vpack.c.b16 %v3732, %v3728
    %v3949 = vpack.c.b16 %v3733, %v3729
    %v3950 = vpack.c.b16 %v3738, %v3734
    %v3951 = vpack.c.b16 %v3739, %v3735
    %v3952 = vpack.c.b16 %v3740, %v3736
    %v3953 = vpack.c.b16 %v3741, %v3737
    %v3954 = vpack.c.b16 %v3746, %v3742
    %v3955 = vpack.c.b16 %v3747, %v3743
    %v3956 = vpack.c.b16 %v3748, %v3744
    %v3957 = vpack.c.b16 %v3749, %v3745
    %v3958 = vpack.c.b16 %v3754, %v3750
    %v3959 = vpack.c.b16 %v3755, %v3751
    %v3960 = vpack.c.b16 %v3756, %v3752
    %v3961 = vpack.c.b16 %v3757, %v3753
    %v3962 = vpack.c.b16 %v3762, %v3758
    %v3963 = vpack.c.b16 %v3763, %v3759
    %v3964 = vpack.c.b16 %v3764, %v3760
    %v3965 = vpack.c.b16 %v3765, %v3761
    %v3966 = vpack.c.b16 %v3770, %v3766
    %v3967 = vpack.c.b16 %v3771, %v3767
    %v3968 = vpack.c.b16 %v3772, %v3768
    %v3969 = vpack.c.b16 %v3773, %v3769
    %v3970 = vpack.c.b16 %v3778, %v3774
    %v3971 = vpack.c.b16 %v3779, %v3775
    %v3972 = vpack.c.b16 %v3780, %v3776
    %v3973 = vpack.c.b16 %v3781, %v3777
    %v3974 = vpack.c.b16 %v3786, %v3782
    %v3975 = vpack.c.b16 %v3787, %v3783
    %v3976 = vpack.c.b16 %v3788, %v3784
    %v3977 = vpack.c.b16 %v3789, %v3785
    %v3978 = vpack.c.b16 %v3794, %v3790
    %v3979 = vpack.c.b16 %v3795, %v3791
    %v3980 = vpack.c.b16 %v3796, %v3792
    %v3981 = vpack.c.b16 %v3797, %v3793
    %v3982 = vpack.c.b16 %v3802, %v3798
    %v3983 = vpack.c.b16 %v3803, %v3799
    %v3984 = vpack.c.b16 %v3804, %v3800
    %v3985 = vpack.c.b16 %v3805, %v3801
    %v3986 = vpack.c.b16 %v3810, %v3806
    %v3987 = vpack.c.b16 %v3811, %v3807
    %v3988 = vpack.c.b16 %v3812, %v3808
    %v3989 = vpack.c.b16 %v3813, %v3809
    %v3990 = vpack.c.b16 %v3818, %v3814
    %v3991 = vpack.c.b16 %v3819, %v3815
    %v3992 = vpack.c.b16 %v3820, %v3816
    %v3993 = vpack.c.b16 %v3821, %v3817
    %v3994 = vpack.c.b16 %v3826, %v3822
    %v3995 = vpack.c.b16 %v3827, %v3823
    %v3996 = vpack.c.b16 %v3828, %v3824
    %v3997 = vpack.c.b16 %v3829, %v3825
    %v3998 = vpack.c.b16 %v3834, %v3830
    %v3999 = vpack.c.b16 %v3835, %v3831
    %v4000 = vpack.c.b16 %v3836, %v3832
    %v4001 = vpack.c.b16 %v3837, %v3833
    %v4002 = vpack.c.b16 %v3842, %v3838
    %v4003 = vpack.c.b16 %v3843, %v3839
    %v4004 = vpack.c.b16 %v3844, %v3840
    %v4005 = vpack.c.b16 %v3845, %v3841
    %v4006 = vpack.c.b16 %v3850, %v3846
    %v4007 = vpack.c.b16 %v3851, %v3847
    %v4008 = vpack.c.b16 %v3852, %v3848
    %v4009 = vpack.c.b16 %v3853, %v3849
    %v4010 = vpack.c.b16 %v3858, %v3854
    %v4011 = vpack.c.b16 %v3859, %v3855
    %v4012 = vpack.c.b16 %v3860, %v3856
    %v4013 = vpack.c.b16 %v3861, %v3857
    %v4014 = vpack.c.b16 %v3866, %v3862
    %v4015 = vpack.c.b16 %v3867, %v3863
    %v4016 = vpack.c.b16 %v3868, %v3864
    %v4017 = vpack.c.b16 %v3869, %v3865
    %v4018 = vpack.c.b16 %v3874, %v3870
    %v4019 = vpack.c.b16 %v3875, %v3871
    %v4020 = vpack.c.b16 %v3876, %v3872
    %v4021 = vpack.c.b16 %v3877, %v3873
    %v4022 = vpack.c.b16 %v3882, %v3878
    %v4023 = vpack.c.b16 %v3883, %v3879
    %v4024 = vpack.c.b16 %v3884, %v3880
    %v4025 = vpack.c.b16 %v3885, %v3881
    %v4026 = vpack.c.b16 %v3890, %v3886
    %v4027 = vpack.c.b16 %v3891, %v3887
    %v4028 = vpack.c.b16 %v3892, %v3888
    %v4029 = vpack.c.b16 %v3893, %v3889
    %v4030 = vpack.c.b16 %v3898, %v3894
    %v4031 = vpack.c.b16 %v3899, %v3895
    %v4032 = vpack.c.b16 %v3900, %v3896
    %v4033 = vpack.c.b16 %v3901, %v3897
    %v4034 = vpack.c.b16 %v3906, %v3902
    %v4035 = vpack.c.b16 %v3907, %v3903
    %v4036 = vpack.c.b16 %v3908, %v3904
    %v4037 = vpack.c.b16 %v3909, %v3905
    %4166 = vmatprep.subr.bf16.mxu0 %v3939
    %4167 = vmatpush1.bf16.msra.mxu0 %v3938
    %4168 = vmatprep.subr.bf16.mxu0 %v3935
    %4169 = vmatpush1.bf16.msra.mxu0 %v3934
    %4170 = vmatprep.subr.bf16.mxu0 %v3931
    %4171 = vmatpush1.bf16.msra.mxu0 %v3930
    %4172 = vmatprep.subr.bf16.mxu0 %v3927
    %4173 = vmatpush1.bf16.msra.mxu0 %v3926
    %4174 = vmatprep.subr.bf16.mxu0 %v3923
    %4175 = vmatpush1.bf16.msra.mxu0 %v3922
    %4176 = vmatprep.subr.bf16.mxu0 %v3919
    %4177 = vmatpush1.bf16.msra.mxu0 %v3918
    %4178 = vmatprep.subr.bf16.mxu0 %v3915
    %4179 = vmatpush1.bf16.msra.mxu0 %v3914
    %4180 = vmatprep.subr.bf16.mxu0 %v3911
    %4181 = vmatpush1.bf16.msra.mxu0 %v3910
    %4182 = vmatprep.subr.bf16.mxu0 %v3971
    %4183 = vmatpush2.bf16.msra.mxu0 %v3970
    %4184 = vmatprep.subr.bf16.mxu0 %v3967
    %4185 = vmatpush2.bf16.msra.mxu0 %v3966
    %4186 = vmatprep.subr.bf16.mxu0 %v3963
    %4187 = vmatpush2.bf16.msra.mxu0 %v3962
    %4188 = vmatprep.subr.bf16.mxu0 %v3959
    %4189 = vmatpush2.bf16.msra.mxu0 %v3958
    %4190 = vmatprep.subr.bf16.mxu0 %v3955
    %4191 = vmatpush2.bf16.msra.mxu0 %v3954
    %4192 = vmatprep.subr.bf16.mxu0 %v3951
    %4193 = vmatpush2.bf16.msra.mxu0 %v3950
    %4194 = vmatprep.subr.bf16.mxu0 %v3947
    %4195 = vmatpush2.bf16.msra.mxu0 %v3946
    %4196 = vmatprep.subr.bf16.mxu0 %v3943
    %4197 = vmatpush2.bf16.msra.mxu0 %v3942
    %4198 = vmatprep.mubr.bf16.mxu0 %v3395
    %4199 = vmatmul.mubr.bf16.gmra.mxu0 %v3394
    %v4200 = vpop.f32.mrf.mxu0
    %v4201 = vadd.f32 0.0, %v4200
    %v4202 = vpop.f32.mrf.mxu0
    %v4203 = vadd.f32 0.0, %v4202
    %v4204 = vpop.f32.mrf.mxu0
    %v4205 = vadd.f32 0.0, %v4204
    %v4206 = vpop.f32.mrf.mxu0
    %v4207 = vadd.f32 0.0, %v4206
    %4208 = vdwg.mxu0
    %4209 = vmatprep.subr.bf16.mxu0 %v4003
    %4210 = vmatpush1.bf16.msra.mxu0 %v4002
    %4211 = vmatprep.subr.bf16.mxu0 %v3999
    %4212 = vmatpush1.bf16.msra.mxu0 %v3998
    %4213 = vmatprep.subr.bf16.mxu0 %v3995
    %4214 = vmatpush1.bf16.msra.mxu0 %v3994
    %4215 = vmatprep.subr.bf16.mxu0 %v3991
    %4216 = vmatpush1.bf16.msra.mxu0 %v3990
    %4217 = vmatprep.subr.bf16.mxu0 %v3987
    %4218 = vmatpush1.bf16.msra.mxu0 %v3986
    %4219 = vmatprep.subr.bf16.mxu0 %v3983
    %4220 = vmatpush1.bf16.msra.mxu0 %v3982
    %4221 = vmatprep.subr.bf16.mxu0 %v3979
    %4222 = vmatpush1.bf16.msra.mxu0 %v3978
    %4223 = vmatprep.subr.bf16.mxu0 %v3975
    %4224 = vmatpush1.bf16.msra.mxu0 %v3974
    %4225 = vmatprep.subr.bf16.mxu0 %v4035
    %4226 = vmatpush2.bf16.msra.mxu0 %v4034
    %4227 = vmatprep.subr.bf16.mxu0 %v4031
    %4228 = vmatpush2.bf16.msra.mxu0 %v4030
    %4229 = vmatprep.subr.bf16.mxu0 %v4027
    %4230 = vmatpush2.bf16.msra.mxu0 %v4026
    %4231 = vmatprep.subr.bf16.mxu0 %v4023
    %4232 = vmatpush2.bf16.msra.mxu0 %v4022
    %4233 = vmatprep.subr.bf16.mxu0 %v4019
    %4234 = vmatpush2.bf16.msra.mxu0 %v4018
    %4235 = vmatprep.subr.bf16.mxu0 %v4015
    %4236 = vmatpush2.bf16.msra.mxu0 %v4014
    %4237 = vmatprep.subr.bf16.mxu0 %v4011
    %4238 = vmatpush2.bf16.msra.mxu0 %v4010
    %4239 = vmatprep.subr.bf16.mxu0 %v4007
    %4240 = vmatpush2.bf16.msra.mxu0 %v4006
    %4241 = vmatprep.mubr.bf16.mxu0 %v3397
    %4242 = vmatmul.mubr.bf16.gmra.mxu0 %v3396
    %v4243 = vpop.f32.mrf.mxu0
    %v4244 = vadd.f32 %v4201, %v4243
    %v4245 = vpop.f32.mrf.mxu0
    %v4246 = vadd.f32 %v4203, %v4245
    %v4247 = vpop.f32.mrf.mxu0
    %v4248 = vadd.f32 %v4205, %v4247
    %v4249 = vpop.f32.mrf.mxu0
    %v4250 = vadd.f32 %v4207, %v4249
    %4251 = vdwg.mxu0
    %4252 = vmatprep.subr.bf16.mxu0 %v3941
    %4253 = vmatpush1.bf16.msra.mxu0 %v3940
    %4254 = vmatprep.subr.bf16.mxu0 %v3937
    %4255 = vmatpush1.bf16.msra.mxu0 %v3936
    %4256 = vmatprep.subr.bf16.mxu0 %v3933
    %4257 = vmatpush1.bf16.msra.mxu0 %v3932
    %4258 = vmatprep.subr.bf16.mxu0 %v3929
    %4259 = vmatpush1.bf16.msra.mxu0 %v3928
    %4260 = vmatprep.subr.bf16.mxu0 %v3925
    %4261 = vmatpush1.bf16.msra.mxu0 %v3924
    %4262 = vmatprep.subr.bf16.mxu0 %v3921
    %4263 = vmatpush1.bf16.msra.mxu0 %v3920
    %4264 = vmatprep.subr.bf16.mxu0 %v3917
    %4265 = vmatpush1.bf16.msra.mxu0 %v3916
    %4266 = vmatprep.subr.bf16.mxu0 %v3913
    %4267 = vmatpush1.bf16.msra.mxu0 %v3912
    %4268 = vmatprep.subr.bf16.mxu0 %v3973
    %4269 = vmatpush2.bf16.msra.mxu0 %v3972
    %4270 = vmatprep.subr.bf16.mxu0 %v3969
    %4271 = vmatpush2.bf16.msra.mxu0 %v3968
    %4272 = vmatprep.subr.bf16.mxu0 %v3965
    %4273 = vmatpush2.bf16.msra.mxu0 %v3964
    %4274 = vmatprep.subr.bf16.mxu0 %v3961
    %4275 = vmatpush2.bf16.msra.mxu0 %v3960
    %4276 = vmatprep.subr.bf16.mxu0 %v3957
    %4277 = vmatpush2.bf16.msra.mxu0 %v3956
    %4278 = vmatprep.subr.bf16.mxu0 %v3953
    %4279 = vmatpush2.bf16.msra.mxu0 %v3952
    %4280 = vmatprep.subr.bf16.mxu0 %v3949
    %4281 = vmatpush2.bf16.msra.mxu0 %v3948
    %4282 = vmatprep.subr.bf16.mxu0 %v3945
    %4283 = vmatpush2.bf16.msra.mxu0 %v3944
    %4284 = vmatprep.mubr.bf16.mxu0 %v3395
    %4285 = vmatmul.mubr.bf16.gmra.mxu0 %v3394
    %v4286 = vpop.f32.mrf.mxu0
    %v4287 = vadd.f32 0.0, %v4286
    %v4288 = vpop.f32.mrf.mxu0
    %v4289 = vadd.f32 0.0, %v4288
    %v4290 = vpop.f32.mrf.mxu0
    %v4291 = vadd.f32 0.0, %v4290
    %v4292 = vpop.f32.mrf.mxu0
    %v4293 = vadd.f32 0.0, %v4292
    %4294 = vdwg.mxu0
    %4295 = vmatprep.subr.bf16.mxu0 %v4005
    %4296 = vmatpush1.bf16.msra.mxu0 %v4004
    %4297 = vmatprep.subr.bf16.mxu0 %v4001
    %4298 = vmatpush1.bf16.msra.mxu0 %v4000
    %4299 = vmatprep.subr.bf16.mxu0 %v3997
    %4300 = vmatpush1.bf16.msra.mxu0 %v3996
    %4301 = vmatprep.subr.bf16.mxu0 %v3993
    %4302 = vmatpush1.bf16.msra.mxu0 %v3992
    %4303 = vmatprep.subr.bf16.mxu0 %v3989
    %4304 = vmatpush1.bf16.msra.mxu0 %v3988
    %4305 = vmatprep.subr.bf16.mxu0 %v3985
    %4306 = vmatpush1.bf16.msra.mxu0 %v3984
    %4307 = vmatprep.subr.bf16.mxu0 %v3981
    %4308 = vmatpush1.bf16.msra.mxu0 %v3980
    %4309 = vmatprep.subr.bf16.mxu0 %v3977
    %4310 = vmatpush1.bf16.msra.mxu0 %v3976
    %4311 = vmatprep.subr.bf16.mxu0 %v4037
    %4312 = vmatpush2.bf16.msra.mxu0 %v4036
    %4313 = vmatprep.subr.bf16.mxu0 %v4033
    %4314 = vmatpush2.bf16.msra.mxu0 %v4032
    %4315 = vmatprep.subr.bf16.mxu0 %v4029
    %4316 = vmatpush2.bf16.msra.mxu0 %v4028
    %4317 = vmatprep.subr.bf16.mxu0 %v4025
    %4318 = vmatpush2.bf16.msra.mxu0 %v4024
    %4319 = vmatprep.subr.bf16.mxu0 %v4021
    %4320 = vmatpush2.bf16.msra.mxu0 %v4020
    %4321 = vmatprep.subr.bf16.mxu0 %v4017
    %4322 = vmatpush2.bf16.msra.mxu0 %v4016
    %4323 = vmatprep.subr.bf16.mxu0 %v4013
    %4324 = vmatpush2.bf16.msra.mxu0 %v4012
    %4325 = vmatprep.subr.bf16.mxu0 %v4009
    %4326 = vmatpush2.bf16.msra.mxu0 %v4008
    %4327 = vmatprep.mubr.bf16.mxu0 %v3397
    %4328 = vmatmul.mubr.bf16.gmra.mxu0 %v3396
    %v4329 = vpop.f32.mrf.mxu0
    %v4330 = vadd.f32 %v4287, %v4329
    %v4331 = vpop.f32.mrf.mxu0
    %v4332 = vadd.f32 %v4289, %v4331
    %v4333 = vpop.f32.mrf.mxu0
    %v4334 = vadd.f32 %v4291, %v4333
    %v4335 = vpop.f32.mrf.mxu0
    %v4336 = vadd.f32 %v4293, %v4335
    %4337 = vdwg.mxu0
    %s4338 = scalar_lea.vmem [#allocation2], 1024
    %v4339 = vld [vmem:[%s4338] sm:$0xff]
    %v4340 = vld [vmem:[%s4338 + $0x8] sm:$0xff]
    %v4341 = vld [vmem:[%s4338 + $0x10] sm:$0xff]
    %v4342 = vld [vmem:[%s4338 + $0x18] sm:$0xff]
    %v4343 = vld [vmem:[%s4338 + $0x20] sm:$0xff]
    %v4344 = vld [vmem:[%s4338 + $0x28] sm:$0xff]
    %v4345 = vld [vmem:[%s4338 + $0x30] sm:$0xff]
    %v4346 = vld [vmem:[%s4338 + $0x38] sm:$0xff]
    %v4347 = vld [vmem:[%s4338 + $0x40] sm:$0xff]
    %v4348 = vld [vmem:[%s4338 + $0x48] sm:$0xff]
    %v4349 = vld [vmem:[%s4338 + $0x50] sm:$0xff]
    %v4350 = vld [vmem:[%s4338 + $0x58] sm:$0xff]
    %v4351 = vld [vmem:[%s4338 + $0x60] sm:$0xff]
    %v4352 = vld [vmem:[%s4338 + $0x68] sm:$0xff]
    %v4353 = vld [vmem:[%s4338 + $0x70] sm:$0xff]
    %v4354 = vld [vmem:[%s4338 + $0x78] sm:$0xff]
    %v4355 = vld [vmem:[%s4338 + $0x80] sm:$0xff]
    %v4356 = vld [vmem:[%s4338 + $0x88] sm:$0xff]
    %v4357 = vld [vmem:[%s4338 + $0x90] sm:$0xff]
    %v4358 = vld [vmem:[%s4338 + $0x98] sm:$0xff]
    %v4359 = vld [vmem:[%s4338 + $0xa0] sm:$0xff]
    %v4360 = vld [vmem:[%s4338 + $0xa8] sm:$0xff]
    %v4361 = vld [vmem:[%s4338 + $0xb0] sm:$0xff]
    %v4362 = vld [vmem:[%s4338 + $0xb8] sm:$0xff]
    %v4363 = vld [vmem:[%s4338 + $0xc0] sm:$0xff]
    %v4364 = vld [vmem:[%s4338 + $0xc8] sm:$0xff]
    %v4365 = vld [vmem:[%s4338 + $0xd0] sm:$0xff]
    %v4366 = vld [vmem:[%s4338 + $0xd8] sm:$0xff]
    %v4367 = vld [vmem:[%s4338 + $0xe0] sm:$0xff]
    %v4368 = vld [vmem:[%s4338 + $0xe8] sm:$0xff]
    %v4369 = vld [vmem:[%s4338 + $0xf0] sm:$0xff]
    %v4370 = vld [vmem:[%s4338 + $0xf8] sm:$0xff]
    %v4371 = vld [vmem:[%s4338 + $0x100] sm:$0xff]
    %v4372 = vld [vmem:[%s4338 + $0x108] sm:$0xff]
    %v4373 = vld [vmem:[%s4338 + $0x110] sm:$0xff]
    %v4374 = vld [vmem:[%s4338 + $0x118] sm:$0xff]
    %v4375 = vld [vmem:[%s4338 + $0x120] sm:$0xff]
    %v4376 = vld [vmem:[%s4338 + $0x128] sm:$0xff]
    %v4377 = vld [vmem:[%s4338 + $0x130] sm:$0xff]
    %v4378 = vld [vmem:[%s4338 + $0x138] sm:$0xff]
    %v4379 = vld [vmem:[%s4338 + $0x140] sm:$0xff]
    %v4380 = vld [vmem:[%s4338 + $0x148] sm:$0xff]
    %v4381 = vld [vmem:[%s4338 + $0x150] sm:$0xff]
    %v4382 = vld [vmem:[%s4338 + $0x158] sm:$0xff]
    %v4383 = vld [vmem:[%s4338 + $0x160] sm:$0xff]
    %v4384 = vld [vmem:[%s4338 + $0x168] sm:$0xff]
    %v4385 = vld [vmem:[%s4338 + $0x170] sm:$0xff]
    %v4386 = vld [vmem:[%s4338 + $0x178] sm:$0xff]
    %v4387 = vld [vmem:[%s4338 + $0x180] sm:$0xff]
    %v4388 = vld [vmem:[%s4338 + $0x188] sm:$0xff]
    %v4389 = vld [vmem:[%s4338 + $0x190] sm:$0xff]
    %v4390 = vld [vmem:[%s4338 + $0x198] sm:$0xff]
    %v4391 = vld [vmem:[%s4338 + $0x1a0] sm:$0xff]
    %v4392 = vld [vmem:[%s4338 + $0x1a8] sm:$0xff]
    %v4393 = vld [vmem:[%s4338 + $0x1b0] sm:$0xff]
    %v4394 = vld [vmem:[%s4338 + $0x1b8] sm:$0xff]
    %v4395 = vld [vmem:[%s4338 + $0x1c0] sm:$0xff]
    %v4396 = vld [vmem:[%s4338 + $0x1c8] sm:$0xff]
    %v4397 = vld [vmem:[%s4338 + $0x1d0] sm:$0xff]
    %v4398 = vld [vmem:[%s4338 + $0x1d8] sm:$0xff]
    %v4399 = vld [vmem:[%s4338 + $0x1e0] sm:$0xff]
    %v4400 = vld [vmem:[%s4338 + $0x1e8] sm:$0xff]
    %v4401 = vld [vmem:[%s4338 + $0x1f0] sm:$0xff]
    %v4402 = vld [vmem:[%s4338 + $0x1f8] sm:$0xff]
    %v4403 = vld [vmem:[%s4338 + $0x200] sm:$0xff]
    %v4404 = vld [vmem:[%s4338 + $0x208] sm:$0xff]
    %v4405 = vld [vmem:[%s4338 + $0x210] sm:$0xff]
    %v4406 = vld [vmem:[%s4338 + $0x218] sm:$0xff]
    %v4407 = vld [vmem:[%s4338 + $0x220] sm:$0xff]
    %v4408 = vld [vmem:[%s4338 + $0x228] sm:$0xff]
    %v4409 = vld [vmem:[%s4338 + $0x230] sm:$0xff]
    %v4410 = vld [vmem:[%s4338 + $0x238] sm:$0xff]
    %v4411 = vld [vmem:[%s4338 + $0x240] sm:$0xff]
    %v4412 = vld [vmem:[%s4338 + $0x248] sm:$0xff]
    %v4413 = vld [vmem:[%s4338 + $0x250] sm:$0xff]
    %v4414 = vld [vmem:[%s4338 + $0x258] sm:$0xff]
    %v4415 = vld [vmem:[%s4338 + $0x260] sm:$0xff]
    %v4416 = vld [vmem:[%s4338 + $0x268] sm:$0xff]
    %v4417 = vld [vmem:[%s4338 + $0x270] sm:$0xff]
    %v4418 = vld [vmem:[%s4338 + $0x278] sm:$0xff]
    %v4419 = vld [vmem:[%s4338 + $0x280] sm:$0xff]
    %v4420 = vld [vmem:[%s4338 + $0x288] sm:$0xff]
    %v4421 = vld [vmem:[%s4338 + $0x290] sm:$0xff]
    %v4422 = vld [vmem:[%s4338 + $0x298] sm:$0xff]
    %v4423 = vld [vmem:[%s4338 + $0x2a0] sm:$0xff]
    %v4424 = vld [vmem:[%s4338 + $0x2a8] sm:$0xff]
    %v4425 = vld [vmem:[%s4338 + $0x2b0] sm:$0xff]
    %v4426 = vld [vmem:[%s4338 + $0x2b8] sm:$0xff]
    %v4427 = vld [vmem:[%s4338 + $0x2c0] sm:$0xff]
    %v4428 = vld [vmem:[%s4338 + $0x2c8] sm:$0xff]
    %v4429 = vld [vmem:[%s4338 + $0x2d0] sm:$0xff]
    %v4430 = vld [vmem:[%s4338 + $0x2d8] sm:$0xff]
    %v4431 = vld [vmem:[%s4338 + $0x2e0] sm:$0xff]
    %v4432 = vld [vmem:[%s4338 + $0x2e8] sm:$0xff]
    %v4433 = vld [vmem:[%s4338 + $0x2f0] sm:$0xff]
    %v4434 = vld [vmem:[%s4338 + $0x2f8] sm:$0xff]
    %v4435 = vld [vmem:[%s4338 + $0x300] sm:$0xff]
    %v4436 = vld [vmem:[%s4338 + $0x308] sm:$0xff]
    %v4437 = vld [vmem:[%s4338 + $0x310] sm:$0xff]
    %v4438 = vld [vmem:[%s4338 + $0x318] sm:$0xff]
    %v4439 = vld [vmem:[%s4338 + $0x320] sm:$0xff]
    %v4440 = vld [vmem:[%s4338 + $0x328] sm:$0xff]
    %v4441 = vld [vmem:[%s4338 + $0x330] sm:$0xff]
    %v4442 = vld [vmem:[%s4338 + $0x338] sm:$0xff]
    %v4443 = vld [vmem:[%s4338 + $0x340] sm:$0xff]
    %v4444 = vld [vmem:[%s4338 + $0x348] sm:$0xff]
    %v4445 = vld [vmem:[%s4338 + $0x350] sm:$0xff]
    %v4446 = vld [vmem:[%s4338 + $0x358] sm:$0xff]
    %v4447 = vld [vmem:[%s4338 + $0x360] sm:$0xff]
    %v4448 = vld [vmem:[%s4338 + $0x368] sm:$0xff]
    %v4449 = vld [vmem:[%s4338 + $0x370] sm:$0xff]
    %v4450 = vld [vmem:[%s4338 + $0x378] sm:$0xff]
    %v4451 = vld [vmem:[%s4338 + $0x380] sm:$0xff]
    %v4452 = vld [vmem:[%s4338 + $0x388] sm:$0xff]
    %v4453 = vld [vmem:[%s4338 + $0x390] sm:$0xff]
    %v4454 = vld [vmem:[%s4338 + $0x398] sm:$0xff]
    %v4455 = vld [vmem:[%s4338 + $0x3a0] sm:$0xff]
    %v4456 = vld [vmem:[%s4338 + $0x3a8] sm:$0xff]
    %v4457 = vld [vmem:[%s4338 + $0x3b0] sm:$0xff]
    %v4458 = vld [vmem:[%s4338 + $0x3b8] sm:$0xff]
    %v4459 = vld [vmem:[%s4338 + $0x3c0] sm:$0xff]
    %v4460 = vld [vmem:[%s4338 + $0x3c8] sm:$0xff]
    %v4461 = vld [vmem:[%s4338 + $0x3d0] sm:$0xff]
    %v4462 = vld [vmem:[%s4338 + $0x3d8] sm:$0xff]
    %v4463 = vld [vmem:[%s4338 + $0x3e0] sm:$0xff]
    %v4464 = vld [vmem:[%s4338 + $0x3e8] sm:$0xff]
    %v4465 = vld [vmem:[%s4338 + $0x3f0] sm:$0xff]
    %v4466 = vld [vmem:[%s4338 + $0x3f8] sm:$0xff]
    %v4595 = vunpack.c.l.b16 %v4339
    %v4596 = vunpack.c.h.b16 %v4339
    %v4597 = vunpack.c.l.b16 %v4340
    %v4598 = vunpack.c.h.b16 %v4340
    %v4599 = vunpack.c.l.b16 %v4341
    %v4600 = vunpack.c.h.b16 %v4341
    %v4601 = vunpack.c.l.b16 %v4342
    %v4602 = vunpack.c.h.b16 %v4342
    %v4603 = vunpack.c.l.b16 %v4343
    %v4604 = vunpack.c.h.b16 %v4343
    %v4605 = vunpack.c.l.b16 %v4344
    %v4606 = vunpack.c.h.b16 %v4344
    %v4607 = vunpack.c.l.b16 %v4345
    %v4608 = vunpack.c.h.b16 %v4345
    %v4609 = vunpack.c.l.b16 %v4346
    %v4610 = vunpack.c.h.b16 %v4346
    %v4611 = vunpack.c.l.b16 %v4347
    %v4612 = vunpack.c.h.b16 %v4347
    %v4613 = vunpack.c.l.b16 %v4348
    %v4614 = vunpack.c.h.b16 %v4348
    %v4615 = vunpack.c.l.b16 %v4349
    %v4616 = vunpack.c.h.b16 %v4349
    %v4617 = vunpack.c.l.b16 %v4350
    %v4618 = vunpack.c.h.b16 %v4350
    %v4619 = vunpack.c.l.b16 %v4351
    %v4620 = vunpack.c.h.b16 %v4351
    %v4621 = vunpack.c.l.b16 %v4352
    %v4622 = vunpack.c.h.b16 %v4352
    %v4623 = vunpack.c.l.b16 %v4353
    %v4624 = vunpack.c.h.b16 %v4353
    %v4625 = vunpack.c.l.b16 %v4354
    %v4626 = vunpack.c.h.b16 %v4354
    %v4627 = vunpack.c.l.b16 %v4355
    %v4628 = vunpack.c.h.b16 %v4355
    %v4629 = vunpack.c.l.b16 %v4356
    %v4630 = vunpack.c.h.b16 %v4356
    %v4631 = vunpack.c.l.b16 %v4357
    %v4632 = vunpack.c.h.b16 %v4357
    %v4633 = vunpack.c.l.b16 %v4358
    %v4634 = vunpack.c.h.b16 %v4358
    %v4635 = vunpack.c.l.b16 %v4359
    %v4636 = vunpack.c.h.b16 %v4359
    %v4637 = vunpack.c.l.b16 %v4360
    %v4638 = vunpack.c.h.b16 %v4360
    %v4639 = vunpack.c.l.b16 %v4361
    %v4640 = vunpack.c.h.b16 %v4361
    %v4641 = vunpack.c.l.b16 %v4362
    %v4642 = vunpack.c.h.b16 %v4362
    %v4643 = vunpack.c.l.b16 %v4363
    %v4644 = vunpack.c.h.b16 %v4363
    %v4645 = vunpack.c.l.b16 %v4364
    %v4646 = vunpack.c.h.b16 %v4364
    %v4647 = vunpack.c.l.b16 %v4365
    %v4648 = vunpack.c.h.b16 %v4365
    %v4649 = vunpack.c.l.b16 %v4366
    %v4650 = vunpack.c.h.b16 %v4366
    %v4651 = vunpack.c.l.b16 %v4367
    %v4652 = vunpack.c.h.b16 %v4367
    %v4653 = vunpack.c.l.b16 %v4368
    %v4654 = vunpack.c.h.b16 %v4368
    %v4655 = vunpack.c.l.b16 %v4369
    %v4656 = vunpack.c.h.b16 %v4369
    %v4657 = vunpack.c.l.b16 %v4370
    %v4658 = vunpack.c.h.b16 %v4370
    %v4659 = vunpack.c.l.b16 %v4371
    %v4660 = vunpack.c.h.b16 %v4371
    %v4661 = vunpack.c.l.b16 %v4372
    %v4662 = vunpack.c.h.b16 %v4372
    %v4663 = vunpack.c.l.b16 %v4373
    %v4664 = vunpack.c.h.b16 %v4373
    %v4665 = vunpack.c.l.b16 %v4374
    %v4666 = vunpack.c.h.b16 %v4374
    %v4667 = vunpack.c.l.b16 %v4375
    %v4668 = vunpack.c.h.b16 %v4375
    %v4669 = vunpack.c.l.b16 %v4376
    %v4670 = vunpack.c.h.b16 %v4376
    %v4671 = vunpack.c.l.b16 %v4377
    %v4672 = vunpack.c.h.b16 %v4377
    %v4673 = vunpack.c.l.b16 %v4378
    %v4674 = vunpack.c.h.b16 %v4378
    %v4675 = vunpack.c.l.b16 %v4379
    %v4676 = vunpack.c.h.b16 %v4379
    %v4677 = vunpack.c.l.b16 %v4380
    %v4678 = vunpack.c.h.b16 %v4380
    %v4679 = vunpack.c.l.b16 %v4381
    %v4680 = vunpack.c.h.b16 %v4381
    %v4681 = vunpack.c.l.b16 %v4382
    %v4682 = vunpack.c.h.b16 %v4382
    %v4683 = vunpack.c.l.b16 %v4383
    %v4684 = vunpack.c.h.b16 %v4383
    %v4685 = vunpack.c.l.b16 %v4384
    %v4686 = vunpack.c.h.b16 %v4384
    %v4687 = vunpack.c.l.b16 %v4385
    %v4688 = vunpack.c.h.b16 %v4385
    %v4689 = vunpack.c.l.b16 %v4386
    %v4690 = vunpack.c.h.b16 %v4386
    %v4691 = vunpack.c.l.b16 %v4387
    %v4692 = vunpack.c.h.b16 %v4387
    %v4693 = vunpack.c.l.b16 %v4388
    %v4694 = vunpack.c.h.b16 %v4388
    %v4695 = vunpack.c.l.b16 %v4389
    %v4696 = vunpack.c.h.b16 %v4389
    %v4697 = vunpack.c.l.b16 %v4390
    %v4698 = vunpack.c.h.b16 %v4390
    %v4699 = vunpack.c.l.b16 %v4391
    %v4700 = vunpack.c.h.b16 %v4391
    %v4701 = vunpack.c.l.b16 %v4392
    %v4702 = vunpack.c.h.b16 %v4392
    %v4703 = vunpack.c.l.b16 %v4393
    %v4704 = vunpack.c.h.b16 %v4393
    %v4705 = vunpack.c.l.b16 %v4394
    %v4706 = vunpack.c.h.b16 %v4394
    %v4707 = vunpack.c.l.b16 %v4395
    %v4708 = vunpack.c.h.b16 %v4395
    %v4709 = vunpack.c.l.b16 %v4396
    %v4710 = vunpack.c.h.b16 %v4396
    %v4711 = vunpack.c.l.b16 %v4397
    %v4712 = vunpack.c.h.b16 %v4397
    %v4713 = vunpack.c.l.b16 %v4398
    %v4714 = vunpack.c.h.b16 %v4398
    %v4715 = vunpack.c.l.b16 %v4399
    %v4716 = vunpack.c.h.b16 %v4399
    %v4717 = vunpack.c.l.b16 %v4400
    %v4718 = vunpack.c.h.b16 %v4400
    %v4719 = vunpack.c.l.b16 %v4401
    %v4720 = vunpack.c.h.b16 %v4401
    %v4721 = vunpack.c.l.b16 %v4402
    %v4722 = vunpack.c.h.b16 %v4402
    %v4723 = vunpack.c.l.b16 %v4403
    %v4724 = vunpack.c.h.b16 %v4403
    %v4725 = vunpack.c.l.b16 %v4404
    %v4726 = vunpack.c.h.b16 %v4404
    %v4727 = vunpack.c.l.b16 %v4405
    %v4728 = vunpack.c.h.b16 %v4405
    %v4729 = vunpack.c.l.b16 %v4406
    %v4730 = vunpack.c.h.b16 %v4406
    %v4731 = vunpack.c.l.b16 %v4407
    %v4732 = vunpack.c.h.b16 %v4407
    %v4733 = vunpack.c.l.b16 %v4408
    %v4734 = vunpack.c.h.b16 %v4408
    %v4735 = vunpack.c.l.b16 %v4409
    %v4736 = vunpack.c.h.b16 %v4409
    %v4737 = vunpack.c.l.b16 %v4410
    %v4738 = vunpack.c.h.b16 %v4410
    %v4739 = vunpack.c.l.b16 %v4411
    %v4740 = vunpack.c.h.b16 %v4411
    %v4741 = vunpack.c.l.b16 %v4412
    %v4742 = vunpack.c.h.b16 %v4412
    %v4743 = vunpack.c.l.b16 %v4413
    %v4744 = vunpack.c.h.b16 %v4413
    %v4745 = vunpack.c.l.b16 %v4414
    %v4746 = vunpack.c.h.b16 %v4414
    %v4747 = vunpack.c.l.b16 %v4415
    %v4748 = vunpack.c.h.b16 %v4415
    %v4749 = vunpack.c.l.b16 %v4416
    %v4750 = vunpack.c.h.b16 %v4416
    %v4751 = vunpack.c.l.b16 %v4417
    %v4752 = vunpack.c.h.b16 %v4417
    %v4753 = vunpack.c.l.b16 %v4418
    %v4754 = vunpack.c.h.b16 %v4418
    %v4755 = vunpack.c.l.b16 %v4419
    %v4756 = vunpack.c.h.b16 %v4419
    %v4757 = vunpack.c.l.b16 %v4420
    %v4758 = vunpack.c.h.b16 %v4420
    %v4759 = vunpack.c.l.b16 %v4421
    %v4760 = vunpack.c.h.b16 %v4421
    %v4761 = vunpack.c.l.b16 %v4422
    %v4762 = vunpack.c.h.b16 %v4422
    %v4763 = vunpack.c.l.b16 %v4423
    %v4764 = vunpack.c.h.b16 %v4423
    %v4765 = vunpack.c.l.b16 %v4424
    %v4766 = vunpack.c.h.b16 %v4424
    %v4767 = vunpack.c.l.b16 %v4425
    %v4768 = vunpack.c.h.b16 %v4425
    %v4769 = vunpack.c.l.b16 %v4426
    %v4770 = vunpack.c.h.b16 %v4426
    %v4771 = vunpack.c.l.b16 %v4427
    %v4772 = vunpack.c.h.b16 %v4427
    %v4773 = vunpack.c.l.b16 %v4428
    %v4774 = vunpack.c.h.b16 %v4428
    %v4775 = vunpack.c.l.b16 %v4429
    %v4776 = vunpack.c.h.b16 %v4429
    %v4777 = vunpack.c.l.b16 %v4430
    %v4778 = vunpack.c.h.b16 %v4430
    %v4779 = vunpack.c.l.b16 %v4431
    %v4780 = vunpack.c.h.b16 %v4431
    %v4781 = vunpack.c.l.b16 %v4432
    %v4782 = vunpack.c.h.b16 %v4432
    %v4783 = vunpack.c.l.b16 %v4433
    %v4784 = vunpack.c.h.b16 %v4433
    %v4785 = vunpack.c.l.b16 %v4434
    %v4786 = vunpack.c.h.b16 %v4434
    %v4787 = vunpack.c.l.b16 %v4435
    %v4788 = vunpack.c.h.b16 %v4435
    %v4789 = vunpack.c.l.b16 %v4436
    %v4790 = vunpack.c.h.b16 %v4436
    %v4791 = vunpack.c.l.b16 %v4437
    %v4792 = vunpack.c.h.b16 %v4437
    %v4793 = vunpack.c.l.b16 %v4438
    %v4794 = vunpack.c.h.b16 %v4438
    %v4795 = vunpack.c.l.b16 %v4439
    %v4796 = vunpack.c.h.b16 %v4439
    %v4797 = vunpack.c.l.b16 %v4440
    %v4798 = vunpack.c.h.b16 %v4440
    %v4799 = vunpack.c.l.b16 %v4441
    %v4800 = vunpack.c.h.b16 %v4441
    %v4801 = vunpack.c.l.b16 %v4442
    %v4802 = vunpack.c.h.b16 %v4442
    %v4803 = vunpack.c.l.b16 %v4443
    %v4804 = vunpack.c.h.b16 %v4443
    %v4805 = vunpack.c.l.b16 %v4444
    %v4806 = vunpack.c.h.b16 %v4444
    %v4807 = vunpack.c.l.b16 %v4445
    %v4808 = vunpack.c.h.b16 %v4445
    %v4809 = vunpack.c.l.b16 %v4446
    %v4810 = vunpack.c.h.b16 %v4446
    %v4811 = vunpack.c.l.b16 %v4447
    %v4812 = vunpack.c.h.b16 %v4447
    %v4813 = vunpack.c.l.b16 %v4448
    %v4814 = vunpack.c.h.b16 %v4448
    %v4815 = vunpack.c.l.b16 %v4449
    %v4816 = vunpack.c.h.b16 %v4449
    %v4817 = vunpack.c.l.b16 %v4450
    %v4818 = vunpack.c.h.b16 %v4450
    %v4819 = vunpack.c.l.b16 %v4451
    %v4820 = vunpack.c.h.b16 %v4451
    %v4821 = vunpack.c.l.b16 %v4452
    %v4822 = vunpack.c.h.b16 %v4452
    %v4823 = vunpack.c.l.b16 %v4453
    %v4824 = vunpack.c.h.b16 %v4453
    %v4825 = vunpack.c.l.b16 %v4454
    %v4826 = vunpack.c.h.b16 %v4454
    %v4827 = vunpack.c.l.b16 %v4455
    %v4828 = vunpack.c.h.b16 %v4455
    %v4829 = vunpack.c.l.b16 %v4456
    %v4830 = vunpack.c.h.b16 %v4456
    %v4831 = vunpack.c.l.b16 %v4457
    %v4832 = vunpack.c.h.b16 %v4457
    %v4833 = vunpack.c.l.b16 %v4458
    %v4834 = vunpack.c.h.b16 %v4458
    %v4835 = vunpack.c.l.b16 %v4459
    %v4836 = vunpack.c.h.b16 %v4459
    %v4837 = vunpack.c.l.b16 %v4460
    %v4838 = vunpack.c.h.b16 %v4460
    %v4839 = vunpack.c.l.b16 %v4461
    %v4840 = vunpack.c.h.b16 %v4461
    %v4841 = vunpack.c.l.b16 %v4462
    %v4842 = vunpack.c.h.b16 %v4462
    %v4843 = vunpack.c.l.b16 %v4463
    %v4844 = vunpack.c.h.b16 %v4463
    %v4845 = vunpack.c.l.b16 %v4464
    %v4846 = vunpack.c.h.b16 %v4464
    %v4847 = vunpack.c.l.b16 %v4465
    %v4848 = vunpack.c.h.b16 %v4465
    %v4849 = vunpack.c.l.b16 %v4466
    %v4850 = vunpack.c.h.b16 %v4466
    %v4851 = vpack.c.b16 %v4599, %v4595
    %v4852 = vpack.c.b16 %v4600, %v4596
    %v4853 = vpack.c.b16 %v4601, %v4597
    %v4854 = vpack.c.b16 %v4602, %v4598
    %v4855 = vpack.c.b16 %v4607, %v4603
    %v4856 = vpack.c.b16 %v4608, %v4604
    %v4857 = vpack.c.b16 %v4609, %v4605
    %v4858 = vpack.c.b16 %v4610, %v4606
    %v4859 = vpack.c.b16 %v4615, %v4611
    %v4860 = vpack.c.b16 %v4616, %v4612
    %v4861 = vpack.c.b16 %v4617, %v4613
    %v4862 = vpack.c.b16 %v4618, %v4614
    %v4863 = vpack.c.b16 %v4623, %v4619
    %v4864 = vpack.c.b16 %v4624, %v4620
    %v4865 = vpack.c.b16 %v4625, %v4621
    %v4866 = vpack.c.b16 %v4626, %v4622
    %v4867 = vpack.c.b16 %v4631, %v4627
    %v4868 = vpack.c.b16 %v4632, %v4628
    %v4869 = vpack.c.b16 %v4633, %v4629
    %v4870 = vpack.c.b16 %v4634, %v4630
    %v4871 = vpack.c.b16 %v4639, %v4635
    %v4872 = vpack.c.b16 %v4640, %v4636
    %v4873 = vpack.c.b16 %v4641, %v4637
    %v4874 = vpack.c.b16 %v4642, %v4638
    %v4875 = vpack.c.b16 %v4647, %v4643
    %v4876 = vpack.c.b16 %v4648, %v4644
    %v4877 = vpack.c.b16 %v4649, %v4645
    %v4878 = vpack.c.b16 %v4650, %v4646
    %v4879 = vpack.c.b16 %v4655, %v4651
    %v4880 = vpack.c.b16 %v4656, %v4652
    %v4881 = vpack.c.b16 %v4657, %v4653
    %v4882 = vpack.c.b16 %v4658, %v4654
    %v4883 = vpack.c.b16 %v4663, %v4659
    %v4884 = vpack.c.b16 %v4664, %v4660
    %v4885 = vpack.c.b16 %v4665, %v4661
    %v4886 = vpack.c.b16 %v4666, %v4662
    %v4887 = vpack.c.b16 %v4671, %v4667
    %v4888 = vpack.c.b16 %v4672, %v4668
    %v4889 = vpack.c.b16 %v4673, %v4669
    %v4890 = vpack.c.b16 %v4674, %v4670
    %v4891 = vpack.c.b16 %v4679, %v4675
    %v4892 = vpack.c.b16 %v4680, %v4676
    %v4893 = vpack.c.b16 %v4681, %v4677
    %v4894 = vpack.c.b16 %v4682, %v4678
    %v4895 = vpack.c.b16 %v4687, %v4683
    %v4896 = vpack.c.b16 %v4688, %v4684
    %v4897 = vpack.c.b16 %v4689, %v4685
    %v4898 = vpack.c.b16 %v4690, %v4686
    %v4899 = vpack.c.b16 %v4695, %v4691
    %v4900 = vpack.c.b16 %v4696, %v4692
    %v4901 = vpack.c.b16 %v4697, %v4693
    %v4902 = vpack.c.b16 %v4698, %v4694
    %v4903 = vpack.c.b16 %v4703, %v4699
    %v4904 = vpack.c.b16 %v4704, %v4700
    %v4905 = vpack.c.b16 %v4705, %v4701
    %v4906 = vpack.c.b16 %v4706, %v4702
    %v4907 = vpack.c.b16 %v4711, %v4707
    %v4908 = vpack.c.b16 %v4712, %v4708
    %v4909 = vpack.c.b16 %v4713, %v4709
    %v4910 = vpack.c.b16 %v4714, %v4710
    %v4911 = vpack.c.b16 %v4719, %v4715
    %v4912 = vpack.c.b16 %v4720, %v4716
    %v4913 = vpack.c.b16 %v4721, %v4717
    %v4914 = vpack.c.b16 %v4722, %v4718
    %v4915 = vpack.c.b16 %v4727, %v4723
    %v4916 = vpack.c.b16 %v4728, %v4724
    %v4917 = vpack.c.b16 %v4729, %v4725
    %v4918 = vpack.c.b16 %v4730, %v4726
    %v4919 = vpack.c.b16 %v4735, %v4731
    %v4920 = vpack.c.b16 %v4736, %v4732
    %v4921 = vpack.c.b16 %v4737, %v4733
    %v4922 = vpack.c.b16 %v4738, %v4734
    %v4923 = vpack.c.b16 %v4743, %v4739
    %v4924 = vpack.c.b16 %v4744, %v4740
    %v4925 = vpack.c.b16 %v4745, %v4741
    %v4926 = vpack.c.b16 %v4746, %v4742
    %v4927 = vpack.c.b16 %v4751, %v4747
    %v4928 = vpack.c.b16 %v4752, %v4748
    %v4929 = vpack.c.b16 %v4753, %v4749
    %v4930 = vpack.c.b16 %v4754, %v4750
    %v4931 = vpack.c.b16 %v4759, %v4755
    %v4932 = vpack.c.b16 %v4760, %v4756
    %v4933 = vpack.c.b16 %v4761, %v4757
    %v4934 = vpack.c.b16 %v4762, %v4758
    %v4935 = vpack.c.b16 %v4767, %v4763
    %v4936 = vpack.c.b16 %v4768, %v4764
    %v4937 = vpack.c.b16 %v4769, %v4765
    %v4938 = vpack.c.b16 %v4770, %v4766
    %v4939 = vpack.c.b16 %v4775, %v4771
    %v4940 = vpack.c.b16 %v4776, %v4772
    %v4941 = vpack.c.b16 %v4777, %v4773
    %v4942 = vpack.c.b16 %v4778, %v4774
    %v4943 = vpack.c.b16 %v4783, %v4779
    %v4944 = vpack.c.b16 %v4784, %v4780
    %v4945 = vpack.c.b16 %v4785, %v4781
    %v4946 = vpack.c.b16 %v4786, %v4782
    %v4947 = vpack.c.b16 %v4791, %v4787
    %v4948 = vpack.c.b16 %v4792, %v4788
    %v4949 = vpack.c.b16 %v4793, %v4789
    %v4950 = vpack.c.b16 %v4794, %v4790
    %v4951 = vpack.c.b16 %v4799, %v4795
    %v4952 = vpack.c.b16 %v4800, %v4796
    %v4953 = vpack.c.b16 %v4801, %v4797
    %v4954 = vpack.c.b16 %v4802, %v4798
    %v4955 = vpack.c.b16 %v4807, %v4803
    %v4956 = vpack.c.b16 %v4808, %v4804
    %v4957 = vpack.c.b16 %v4809, %v4805
    %v4958 = vpack.c.b16 %v4810, %v4806
    %v4959 = vpack.c.b16 %v4815, %v4811
    %v4960 = vpack.c.b16 %v4816, %v4812
    %v4961 = vpack.c.b16 %v4817, %v4813
    %v4962 = vpack.c.b16 %v4818, %v4814
    %v4963 = vpack.c.b16 %v4823, %v4819
    %v4964 = vpack.c.b16 %v4824, %v4820
    %v4965 = vpack.c.b16 %v4825, %v4821
    %v4966 = vpack.c.b16 %v4826, %v4822
    %v4967 = vpack.c.b16 %v4831, %v4827
    %v4968 = vpack.c.b16 %v4832, %v4828
    %v4969 = vpack.c.b16 %v4833, %v4829
    %v4970 = vpack.c.b16 %v4834, %v4830
    %v4971 = vpack.c.b16 %v4839, %v4835
    %v4972 = vpack.c.b16 %v4840, %v4836
    %v4973 = vpack.c.b16 %v4841, %v4837
    %v4974 = vpack.c.b16 %v4842, %v4838
    %v4975 = vpack.c.b16 %v4847, %v4843
    %v4976 = vpack.c.b16 %v4848, %v4844
    %v4977 = vpack.c.b16 %v4849, %v4845
    %v4978 = vpack.c.b16 %v4850, %v4846
    %5107 = vmatprep.subr.bf16.mxu0 %v4880
    %5108 = vmatpush1.bf16.msra.mxu0 %v4879
    %5109 = vmatprep.subr.bf16.mxu0 %v4876
    %5110 = vmatpush1.bf16.msra.mxu0 %v4875
    %5111 = vmatprep.subr.bf16.mxu0 %v4872
    %5112 = vmatpush1.bf16.msra.mxu0 %v4871
    %5113 = vmatprep.subr.bf16.mxu0 %v4868
    %5114 = vmatpush1.bf16.msra.mxu0 %v4867
    %5115 = vmatprep.subr.bf16.mxu0 %v4864
    %5116 = vmatpush1.bf16.msra.mxu0 %v4863
    %5117 = vmatprep.subr.bf16.mxu0 %v4860
    %5118 = vmatpush1.bf16.msra.mxu0 %v4859
    %5119 = vmatprep.subr.bf16.mxu0 %v4856
    %5120 = vmatpush1.bf16.msra.mxu0 %v4855
    %5121 = vmatprep.subr.bf16.mxu0 %v4852
    %5122 = vmatpush1.bf16.msra.mxu0 %v4851
    %5123 = vmatprep.subr.bf16.mxu0 %v4912
    %5124 = vmatpush2.bf16.msra.mxu0 %v4911
    %5125 = vmatprep.subr.bf16.mxu0 %v4908
    %5126 = vmatpush2.bf16.msra.mxu0 %v4907
    %5127 = vmatprep.subr.bf16.mxu0 %v4904
    %5128 = vmatpush2.bf16.msra.mxu0 %v4903
    %5129 = vmatprep.subr.bf16.mxu0 %v4900
    %5130 = vmatpush2.bf16.msra.mxu0 %v4899
    %5131 = vmatprep.subr.bf16.mxu0 %v4896
    %5132 = vmatpush2.bf16.msra.mxu0 %v4895
    %5133 = vmatprep.subr.bf16.mxu0 %v4892
    %5134 = vmatpush2.bf16.msra.mxu0 %v4891
    %5135 = vmatprep.subr.bf16.mxu0 %v4888
    %5136 = vmatpush2.bf16.msra.mxu0 %v4887
    %5137 = vmatprep.subr.bf16.mxu0 %v4884
    %5138 = vmatpush2.bf16.msra.mxu0 %v4883
    %5139 = vmatprep.mubr.bf16.mxu0 %v3395
    %5140 = vmatmul.mubr.bf16.gmra.mxu0 %v3394
    %v5141 = vpop.f32.mrf.mxu0
    %v5142 = vadd.f32 0.0, %v5141
    %v5143 = vpop.f32.mrf.mxu0
    %v5144 = vadd.f32 0.0, %v5143
    %v5145 = vpop.f32.mrf.mxu0
    %v5146 = vadd.f32 0.0, %v5145
    %v5147 = vpop.f32.mrf.mxu0
    %v5148 = vadd.f32 0.0, %v5147
    %5149 = vdwg.mxu0
    %5150 = vmatprep.subr.bf16.mxu0 %v4944
    %5151 = vmatpush1.bf16.msra.mxu0 %v4943
    %5152 = vmatprep.subr.bf16.mxu0 %v4940
    %5153 = vmatpush1.bf16.msra.mxu0 %v4939
    %5154 = vmatprep.subr.bf16.mxu0 %v4936
    %5155 = vmatpush1.bf16.msra.mxu0 %v4935
    %5156 = vmatprep.subr.bf16.mxu0 %v4932
    %5157 = vmatpush1.bf16.msra.mxu0 %v4931
    %5158 = vmatprep.subr.bf16.mxu0 %v4928
    %5159 = vmatpush1.bf16.msra.mxu0 %v4927
    %5160 = vmatprep.subr.bf16.mxu0 %v4924
    %5161 = vmatpush1.bf16.msra.mxu0 %v4923
    %5162 = vmatprep.subr.bf16.mxu0 %v4920
    %5163 = vmatpush1.bf16.msra.mxu0 %v4919
    %5164 = vmatprep.subr.bf16.mxu0 %v4916
    %5165 = vmatpush1.bf16.msra.mxu0 %v4915
    %5166 = vmatprep.subr.bf16.mxu0 %v4976
    %5167 = vmatpush2.bf16.msra.mxu0 %v4975
    %5168 = vmatprep.subr.bf16.mxu0 %v4972
    %5169 = vmatpush2.bf16.msra.mxu0 %v4971
    %5170 = vmatprep.subr.bf16.mxu0 %v4968
    %5171 = vmatpush2.bf16.msra.mxu0 %v4967
    %5172 = vmatprep.subr.bf16.mxu0 %v4964
    %5173 = vmatpush2.bf16.msra.mxu0 %v4963
    %5174 = vmatprep.subr.bf16.mxu0 %v4960
    %5175 = vmatpush2.bf16.msra.mxu0 %v4959
    %5176 = vmatprep.subr.bf16.mxu0 %v4956
    %5177 = vmatpush2.bf16.msra.mxu0 %v4955
    %5178 = vmatprep.subr.bf16.mxu0 %v4952
    %5179 = vmatpush2.bf16.msra.mxu0 %v4951
    %5180 = vmatprep.subr.bf16.mxu0 %v4948
    %5181 = vmatpush2.bf16.msra.mxu0 %v4947
    %5182 = vmatprep.mubr.bf16.mxu0 %v3397
    %5183 = vmatmul.mubr.bf16.gmra.mxu0 %v3396
    %v5184 = vpop.f32.mrf.mxu0
    %v5185 = vadd.f32 %v5142, %v5184
    %v5186 = vpop.f32.mrf.mxu0
    %v5187 = vadd.f32 %v5144, %v5186
    %v5188 = vpop.f32.mrf.mxu0
    %v5189 = vadd.f32 %v5146, %v5188
    %v5190 = vpop.f32.mrf.mxu0
    %v5191 = vadd.f32 %v5148, %v5190
    %5192 = vdwg.mxu0
    %5193 = vmatprep.subr.bf16.mxu0 %v4882
    %5194 = vmatpush1.bf16.msra.mxu0 %v4881
    %5195 = vmatprep.subr.bf16.mxu0 %v4878
    %5196 = vmatpush1.bf16.msra.mxu0 %v4877
    %5197 = vmatprep.subr.bf16.mxu0 %v4874
    %5198 = vmatpush1.bf16.msra.mxu0 %v4873
    %5199 = vmatprep.subr.bf16.mxu0 %v4870
    %5200 = vmatpush1.bf16.msra.mxu0 %v4869
    %5201 = vmatprep.subr.bf16.mxu0 %v4866
    %5202 = vmatpush1.bf16.msra.mxu0 %v4865
    %5203 = vmatprep.subr.bf16.mxu0 %v4862
    %5204 = vmatpush1.bf16.msra.mxu0 %v4861
    %5205 = vmatprep.subr.bf16.mxu0 %v4858
    %5206 = vmatpush1.bf16.msra.mxu0 %v4857
    %5207 = vmatprep.subr.bf16.mxu0 %v4854
    %5208 = vmatpush1.bf16.msra.mxu0 %v4853
    %5209 = vmatprep.subr.bf16.mxu0 %v4914
    %5210 = vmatpush2.bf16.msra.mxu0 %v4913
    %5211 = vmatprep.subr.bf16.mxu0 %v4910
    %5212 = vmatpush2.bf16.msra.mxu0 %v4909
    %5213 = vmatprep.subr.bf16.mxu0 %v4906
    %5214 = vmatpush2.bf16.msra.mxu0 %v4905
    %5215 = vmatprep.subr.bf16.mxu0 %v4902
    %5216 = vmatpush2.bf16.msra.mxu0 %v4901
    %5217 = vmatprep.subr.bf16.mxu0 %v4898
    %5218 = vmatpush2.bf16.msra.mxu0 %v4897
    %5219 = vmatprep.subr.bf16.mxu0 %v4894
    %5220 = vmatpush2.bf16.msra.mxu0 %v4893
    %5221 = vmatprep.subr.bf16.mxu0 %v4890
    %5222 = vmatpush2.bf16.msra.mxu0 %v4889
    %5223 = vmatprep.subr.bf16.mxu0 %v4886
    %5224 = vmatpush2.bf16.msra.mxu0 %v4885
    %5225 = vmatprep.mubr.bf16.mxu0 %v3395
    %5226 = vmatmul.mubr.bf16.gmra.mxu0 %v3394
    %v5227 = vpop.f32.mrf.mxu0
    %v5228 = vadd.f32 0.0, %v5227
    %v5229 = vpop.f32.mrf.mxu0
    %v5230 = vadd.f32 0.0, %v5229
    %v5231 = vpop.f32.mrf.mxu0
    %v5232 = vadd.f32 0.0, %v5231
    %v5233 = vpop.f32.mrf.mxu0
    %v5234 = vadd.f32 0.0, %v5233
    %5235 = vdwg.mxu0
    %5236 = vmatprep.subr.bf16.mxu0 %v4946
    %5237 = vmatpush1.bf16.msra.mxu0 %v4945
    %5238 = vmatprep.subr.bf16.mxu0 %v4942
    %5239 = vmatpush1.bf16.msra.mxu0 %v4941
    %5240 = vmatprep.subr.bf16.mxu0 %v4938
    %5241 = vmatpush1.bf16.msra.mxu0 %v4937
    %5242 = vmatprep.subr.bf16.mxu0 %v4934
    %5243 = vmatpush1.bf16.msra.mxu0 %v4933
    %5244 = vmatprep.subr.bf16.mxu0 %v4930
    %5245 = vmatpush1.bf16.msra.mxu0 %v4929
    %5246 = vmatprep.subr.bf16.mxu0 %v4926
    %5247 = vmatpush1.bf16.msra.mxu0 %v4925
    %5248 = vmatprep.subr.bf16.mxu0 %v4922
    %5249 = vmatpush1.bf16.msra.mxu0 %v4921
    %5250 = vmatprep.subr.bf16.mxu0 %v4918
    %5251 = vmatpush1.bf16.msra.mxu0 %v4917
    %5252 = vmatprep.subr.bf16.mxu0 %v4978
    %5253 = vmatpush2.bf16.msra.mxu0 %v4977
    %5254 = vmatprep.subr.bf16.mxu0 %v4974
    %5255 = vmatpush2.bf16.msra.mxu0 %v4973
    %5256 = vmatprep.subr.bf16.mxu0 %v4970
    %5257 = vmatpush2.bf16.msra.mxu0 %v4969
    %5258 = vmatprep.subr.bf16.mxu0 %v4966
    %5259 = vmatpush2.bf16.msra.mxu0 %v4965
    %5260 = vmatprep.subr.bf16.mxu0 %v4962
    %5261 = vmatpush2.bf16.msra.mxu0 %v4961
    %5262 = vmatprep.subr.bf16.mxu0 %v4958
    %5263 = vmatpush2.bf16.msra.mxu0 %v4957
    %5264 = vmatprep.subr.bf16.mxu0 %v4954
    %5265 = vmatpush2.bf16.msra.mxu0 %v4953
    %5266 = vmatprep.subr.bf16.mxu0 %v4950
    %5267 = vmatpush2.bf16.msra.mxu0 %v4949
    %5268 = vmatprep.mubr.bf16.mxu0 %v3397
    %5269 = vmatmul.mubr.bf16.gmra.mxu0 %v3396
    %v5270 = vpop.f32.mrf.mxu0
    %v5271 = vadd.f32 %v5228, %v5270
    %v5272 = vpop.f32.mrf.mxu0
    %v5273 = vadd.f32 %v5230, %v5272
    %v5274 = vpop.f32.mrf.mxu0
    %v5275 = vadd.f32 %v5232, %v5274
    %v5276 = vpop.f32.mrf.mxu0
    %v5277 = vadd.f32 %v5234, %v5276
    %5278 = vdwg.mxu0
    %s5279 = scalar_lea.vmem [#allocation2], 2048
    %v5280 = vld [vmem:[%s5279] sm:$0xff]
    %v5281 = vld [vmem:[%s5279 + $0x8] sm:$0xff]
    %v5282 = vld [vmem:[%s5279 + $0x10] sm:$0xff]
    %v5283 = vld [vmem:[%s5279 + $0x18] sm:$0xff]
    %v5284 = vld [vmem:[%s5279 + $0x20] sm:$0xff]
    %v5285 = vld [vmem:[%s5279 + $0x28] sm:$0xff]
    %v5286 = vld [vmem:[%s5279 + $0x30] sm:$0xff]
    %v5287 = vld [vmem:[%s5279 + $0x38] sm:$0xff]
    %v5288 = vld [vmem:[%s5279 + $0x40] sm:$0xff]
    %v5289 = vld [vmem:[%s5279 + $0x48] sm:$0xff]
    %v5290 = vld [vmem:[%s5279 + $0x50] sm:$0xff]
    %v5291 = vld [vmem:[%s5279 + $0x58] sm:$0xff]
    %v5292 = vld [vmem:[%s5279 + $0x60] sm:$0xff]
    %v5293 = vld [vmem:[%s5279 + $0x68] sm:$0xff]
    %v5294 = vld [vmem:[%s5279 + $0x70] sm:$0xff]
    %v5295 = vld [vmem:[%s5279 + $0x78] sm:$0xff]
    %v5296 = vld [vmem:[%s5279 + $0x80] sm:$0xff]
    %v5297 = vld [vmem:[%s5279 + $0x88] sm:$0xff]
    %v5298 = vld [vmem:[%s5279 + $0x90] sm:$0xff]
    %v5299 = vld [vmem:[%s5279 + $0x98] sm:$0xff]
    %v5300 = vld [vmem:[%s5279 + $0xa0] sm:$0xff]
    %v5301 = vld [vmem:[%s5279 + $0xa8] sm:$0xff]
    %v5302 = vld [vmem:[%s5279 + $0xb0] sm:$0xff]
    %v5303 = vld [vmem:[%s5279 + $0xb8] sm:$0xff]
    %v5304 = vld [vmem:[%s5279 + $0xc0] sm:$0xff]
    %v5305 = vld [vmem:[%s5279 + $0xc8] sm:$0xff]
    %v5306 = vld [vmem:[%s5279 + $0xd0] sm:$0xff]
    %v5307 = vld [vmem:[%s5279 + $0xd8] sm:$0xff]
    %v5308 = vld [vmem:[%s5279 + $0xe0] sm:$0xff]
    %v5309 = vld [vmem:[%s5279 + $0xe8] sm:$0xff]
    %v5310 = vld [vmem:[%s5279 + $0xf0] sm:$0xff]
    %v5311 = vld [vmem:[%s5279 + $0xf8] sm:$0xff]
    %v5312 = vld [vmem:[%s5279 + $0x100] sm:$0xff]
    %v5313 = vld [vmem:[%s5279 + $0x108] sm:$0xff]
    %v5314 = vld [vmem:[%s5279 + $0x110] sm:$0xff]
    %v5315 = vld [vmem:[%s5279 + $0x118] sm:$0xff]
    %v5316 = vld [vmem:[%s5279 + $0x120] sm:$0xff]
    %v5317 = vld [vmem:[%s5279 + $0x128] sm:$0xff]
    %v5318 = vld [vmem:[%s5279 + $0x130] sm:$0xff]
    %v5319 = vld [vmem:[%s5279 + $0x138] sm:$0xff]
    %v5320 = vld [vmem:[%s5279 + $0x140] sm:$0xff]
    %v5321 = vld [vmem:[%s5279 + $0x148] sm:$0xff]
    %v5322 = vld [vmem:[%s5279 + $0x150] sm:$0xff]
    %v5323 = vld [vmem:[%s5279 + $0x158] sm:$0xff]
    %v5324 = vld [vmem:[%s5279 + $0x160] sm:$0xff]
    %v5325 = vld [vmem:[%s5279 + $0x168] sm:$0xff]
    %v5326 = vld [vmem:[%s5279 + $0x170] sm:$0xff]
    %v5327 = vld [vmem:[%s5279 + $0x178] sm:$0xff]
    %v5328 = vld [vmem:[%s5279 + $0x180] sm:$0xff]
    %v5329 = vld [vmem:[%s5279 + $0x188] sm:$0xff]
    %v5330 = vld [vmem:[%s5279 + $0x190] sm:$0xff]
    %v5331 = vld [vmem:[%s5279 + $0x198] sm:$0xff]
    %v5332 = vld [vmem:[%s5279 + $0x1a0] sm:$0xff]
    %v5333 = vld [vmem:[%s5279 + $0x1a8] sm:$0xff]
    %v5334 = vld [vmem:[%s5279 + $0x1b0] sm:$0xff]
    %v5335 = vld [vmem:[%s5279 + $0x1b8] sm:$0xff]
    %v5336 = vld [vmem:[%s5279 + $0x1c0] sm:$0xff]
    %v5337 = vld [vmem:[%s5279 + $0x1c8] sm:$0xff]
    %v5338 = vld [vmem:[%s5279 + $0x1d0] sm:$0xff]
    %v5339 = vld [vmem:[%s5279 + $0x1d8] sm:$0xff]
    %v5340 = vld [vmem:[%s5279 + $0x1e0] sm:$0xff]
    %v5341 = vld [vmem:[%s5279 + $0x1e8] sm:$0xff]
    %v5342 = vld [vmem:[%s5279 + $0x1f0] sm:$0xff]
    %v5343 = vld [vmem:[%s5279 + $0x1f8] sm:$0xff]
    %v5344 = vld [vmem:[%s5279 + $0x200] sm:$0xff]
    %v5345 = vld [vmem:[%s5279 + $0x208] sm:$0xff]
    %v5346 = vld [vmem:[%s5279 + $0x210] sm:$0xff]
    %v5347 = vld [vmem:[%s5279 + $0x218] sm:$0xff]
    %v5348 = vld [vmem:[%s5279 + $0x220] sm:$0xff]
    %v5349 = vld [vmem:[%s5279 + $0x228] sm:$0xff]
    %v5350 = vld [vmem:[%s5279 + $0x230] sm:$0xff]
    %v5351 = vld [vmem:[%s5279 + $0x238] sm:$0xff]
    %v5352 = vld [vmem:[%s5279 + $0x240] sm:$0xff]
    %v5353 = vld [vmem:[%s5279 + $0x248] sm:$0xff]
    %v5354 = vld [vmem:[%s5279 + $0x250] sm:$0xff]
    %v5355 = vld [vmem:[%s5279 + $0x258] sm:$0xff]
    %v5356 = vld [vmem:[%s5279 + $0x260] sm:$0xff]
    %v5357 = vld [vmem:[%s5279 + $0x268] sm:$0xff]
    %v5358 = vld [vmem:[%s5279 + $0x270] sm:$0xff]
    %v5359 = vld [vmem:[%s5279 + $0x278] sm:$0xff]
    %v5360 = vld [vmem:[%s5279 + $0x280] sm:$0xff]
    %v5361 = vld [vmem:[%s5279 + $0x288] sm:$0xff]
    %v5362 = vld [vmem:[%s5279 + $0x290] sm:$0xff]
    %v5363 = vld [vmem:[%s5279 + $0x298] sm:$0xff]
    %v5364 = vld [vmem:[%s5279 + $0x2a0] sm:$0xff]
    %v5365 = vld [vmem:[%s5279 + $0x2a8] sm:$0xff]
    %v5366 = vld [vmem:[%s5279 + $0x2b0] sm:$0xff]
    %v5367 = vld [vmem:[%s5279 + $0x2b8] sm:$0xff]
    %v5368 = vld [vmem:[%s5279 + $0x2c0] sm:$0xff]
    %v5369 = vld [vmem:[%s5279 + $0x2c8] sm:$0xff]
    %v5370 = vld [vmem:[%s5279 + $0x2d0] sm:$0xff]
    %v5371 = vld [vmem:[%s5279 + $0x2d8] sm:$0xff]
    %v5372 = vld [vmem:[%s5279 + $0x2e0] sm:$0xff]
    %v5373 = vld [vmem:[%s5279 + $0x2e8] sm:$0xff]
    %v5374 = vld [vmem:[%s5279 + $0x2f0] sm:$0xff]
    %v5375 = vld [vmem:[%s5279 + $0x2f8] sm:$0xff]
    %v5376 = vld [vmem:[%s5279 + $0x300] sm:$0xff]
    %v5377 = vld [vmem:[%s5279 + $0x308] sm:$0xff]
    %v5378 = vld [vmem:[%s5279 + $0x310] sm:$0xff]
    %v5379 = vld [vmem:[%s5279 + $0x318] sm:$0xff]
    %v5380 = vld [vmem:[%s5279 + $0x320] sm:$0xff]
    %v5381 = vld [vmem:[%s5279 + $0x328] sm:$0xff]
    %v5382 = vld [vmem:[%s5279 + $0x330] sm:$0xff]
    %v5383 = vld [vmem:[%s5279 + $0x338] sm:$0xff]
    %v5384 = vld [vmem:[%s5279 + $0x340] sm:$0xff]
    %v5385 = vld [vmem:[%s5279 + $0x348] sm:$0xff]
    %v5386 = vld [vmem:[%s5279 + $0x350] sm:$0xff]
    %v5387 = vld [vmem:[%s5279 + $0x358] sm:$0xff]
    %v5388 = vld [vmem:[%s5279 + $0x360] sm:$0xff]
    %v5389 = vld [vmem:[%s5279 + $0x368] sm:$0xff]
    %v5390 = vld [vmem:[%s5279 + $0x370] sm:$0xff]
    %v5391 = vld [vmem:[%s5279 + $0x378] sm:$0xff]
    %v5392 = vld [vmem:[%s5279 + $0x380] sm:$0xff]
    %v5393 = vld [vmem:[%s5279 + $0x388] sm:$0xff]
    %v5394 = vld [vmem:[%s5279 + $0x390] sm:$0xff]
    %v5395 = vld [vmem:[%s5279 + $0x398] sm:$0xff]
    %v5396 = vld [vmem:[%s5279 + $0x3a0] sm:$0xff]
    %v5397 = vld [vmem:[%s5279 + $0x3a8] sm:$0xff]
    %v5398 = vld [vmem:[%s5279 + $0x3b0] sm:$0xff]
    %v5399 = vld [vmem:[%s5279 + $0x3b8] sm:$0xff]
    %v5400 = vld [vmem:[%s5279 + $0x3c0] sm:$0xff]
    %v5401 = vld [vmem:[%s5279 + $0x3c8] sm:$0xff]
    %v5402 = vld [vmem:[%s5279 + $0x3d0] sm:$0xff]
    %v5403 = vld [vmem:[%s5279 + $0x3d8] sm:$0xff]
    %v5404 = vld [vmem:[%s5279 + $0x3e0] sm:$0xff]
    %v5405 = vld [vmem:[%s5279 + $0x3e8] sm:$0xff]
    %v5406 = vld [vmem:[%s5279 + $0x3f0] sm:$0xff]
    %v5407 = vld [vmem:[%s5279 + $0x3f8] sm:$0xff]
    %v5536 = vunpack.c.l.b16 %v5280
    %v5537 = vunpack.c.h.b16 %v5280
    %v5538 = vunpack.c.l.b16 %v5281
    %v5539 = vunpack.c.h.b16 %v5281
    %v5540 = vunpack.c.l.b16 %v5282
    %v5541 = vunpack.c.h.b16 %v5282
    %v5542 = vunpack.c.l.b16 %v5283
    %v5543 = vunpack.c.h.b16 %v5283
    %v5544 = vunpack.c.l.b16 %v5284
    %v5545 = vunpack.c.h.b16 %v5284
    %v5546 = vunpack.c.l.b16 %v5285
    %v5547 = vunpack.c.h.b16 %v5285
    %v5548 = vunpack.c.l.b16 %v5286
    %v5549 = vunpack.c.h.b16 %v5286
    %v5550 = vunpack.c.l.b16 %v5287
    %v5551 = vunpack.c.h.b16 %v5287
    %v5552 = vunpack.c.l.b16 %v5288
    %v5553 = vunpack.c.h.b16 %v5288
    %v5554 = vunpack.c.l.b16 %v5289
    %v5555 = vunpack.c.h.b16 %v5289
    %v5556 = vunpack.c.l.b16 %v5290
    %v5557 = vunpack.c.h.b16 %v5290
    %v5558 = vunpack.c.l.b16 %v5291
    %v5559 = vunpack.c.h.b16 %v5291
    %v5560 = vunpack.c.l.b16 %v5292
    %v5561 = vunpack.c.h.b16 %v5292
    %v5562 = vunpack.c.l.b16 %v5293
    %v5563 = vunpack.c.h.b16 %v5293
    %v5564 = vunpack.c.l.b16 %v5294
    %v5565 = vunpack.c.h.b16 %v5294
    %v5566 = vunpack.c.l.b16 %v5295
    %v5567 = vunpack.c.h.b16 %v5295
    %v5568 = vunpack.c.l.b16 %v5296
    %v5569 = vunpack.c.h.b16 %v5296
    %v5570 = vunpack.c.l.b16 %v5297
    %v5571 = vunpack.c.h.b16 %v5297
    %v5572 = vunpack.c.l.b16 %v5298
    %v5573 = vunpack.c.h.b16 %v5298
    %v5574 = vunpack.c.l.b16 %v5299
    %v5575 = vunpack.c.h.b16 %v5299
    %v5576 = vunpack.c.l.b16 %v5300
    %v5577 = vunpack.c.h.b16 %v5300
    %v5578 = vunpack.c.l.b16 %v5301
    %v5579 = vunpack.c.h.b16 %v5301
    %v5580 = vunpack.c.l.b16 %v5302
    %v5581 = vunpack.c.h.b16 %v5302
    %v5582 = vunpack.c.l.b16 %v5303
    %v5583 = vunpack.c.h.b16 %v5303
    %v5584 = vunpack.c.l.b16 %v5304
    %v5585 = vunpack.c.h.b16 %v5304
    %v5586 = vunpack.c.l.b16 %v5305
    %v5587 = vunpack.c.h.b16 %v5305
    %v5588 = vunpack.c.l.b16 %v5306
    %v5589 = vunpack.c.h.b16 %v5306
    %v5590 = vunpack.c.l.b16 %v5307
    %v5591 = vunpack.c.h.b16 %v5307
    %v5592 = vunpack.c.l.b16 %v5308
    %v5593 = vunpack.c.h.b16 %v5308
    %v5594 = vunpack.c.l.b16 %v5309
    %v5595 = vunpack.c.h.b16 %v5309
    %v5596 = vunpack.c.l.b16 %v5310
    %v5597 = vunpack.c.h.b16 %v5310
    %v5598 = vunpack.c.l.b16 %v5311
    %v5599 = vunpack.c.h.b16 %v5311
    %v5600 = vunpack.c.l.b16 %v5312
    %v5601 = vunpack.c.h.b16 %v5312
    %v5602 = vunpack.c.l.b16 %v5313
    %v5603 = vunpack.c.h.b16 %v5313
    %v5604 = vunpack.c.l.b16 %v5314
    %v5605 = vunpack.c.h.b16 %v5314
    %v5606 = vunpack.c.l.b16 %v5315
    %v5607 = vunpack.c.h.b16 %v5315
    %v5608 = vunpack.c.l.b16 %v5316
    %v5609 = vunpack.c.h.b16 %v5316
    %v5610 = vunpack.c.l.b16 %v5317
    %v5611 = vunpack.c.h.b16 %v5317
    %v5612 = vunpack.c.l.b16 %v5318
    %v5613 = vunpack.c.h.b16 %v5318
    %v5614 = vunpack.c.l.b16 %v5319
    %v5615 = vunpack.c.h.b16 %v5319
    %v5616 = vunpack.c.l.b16 %v5320
    %v5617 = vunpack.c.h.b16 %v5320
    %v5618 = vunpack.c.l.b16 %v5321
    %v5619 = vunpack.c.h.b16 %v5321
    %v5620 = vunpack.c.l.b16 %v5322
    %v5621 = vunpack.c.h.b16 %v5322
    %v5622 = vunpack.c.l.b16 %v5323
    %v5623 = vunpack.c.h.b16 %v5323
    %v5624 = vunpack.c.l.b16 %v5324
    %v5625 = vunpack.c.h.b16 %v5324
    %v5626 = vunpack.c.l.b16 %v5325
    %v5627 = vunpack.c.h.b16 %v5325
    %v5628 = vunpack.c.l.b16 %v5326
    %v5629 = vunpack.c.h.b16 %v5326
    %v5630 = vunpack.c.l.b16 %v5327
    %v5631 = vunpack.c.h.b16 %v5327
    %v5632 = vunpack.c.l.b16 %v5328
    %v5633 = vunpack.c.h.b16 %v5328
    %v5634 = vunpack.c.l.b16 %v5329
    %v5635 = vunpack.c.h.b16 %v5329
    %v5636 = vunpack.c.l.b16 %v5330
    %v5637 = vunpack.c.h.b16 %v5330
    %v5638 = vunpack.c.l.b16 %v5331
    %v5639 = vunpack.c.h.b16 %v5331
    %v5640 = vunpack.c.l.b16 %v5332
    %v5641 = vunpack.c.h.b16 %v5332
    %v5642 = vunpack.c.l.b16 %v5333
    %v5643 = vunpack.c.h.b16 %v5333
    %v5644 = vunpack.c.l.b16 %v5334
    %v5645 = vunpack.c.h.b16 %v5334
    %v5646 = vunpack.c.l.b16 %v5335
    %v5647 = vunpack.c.h.b16 %v5335
    %v5648 = vunpack.c.l.b16 %v5336
    %v5649 = vunpack.c.h.b16 %v5336
    %v5650 = vunpack.c.l.b16 %v5337
    %v5651 = vunpack.c.h.b16 %v5337
    %v5652 = vunpack.c.l.b16 %v5338
    %v5653 = vunpack.c.h.b16 %v5338
    %v5654 = vunpack.c.l.b16 %v5339
    %v5655 = vunpack.c.h.b16 %v5339
    %v5656 = vunpack.c.l.b16 %v5340
    %v5657 = vunpack.c.h.b16 %v5340
    %v5658 = vunpack.c.l.b16 %v5341
    %v5659 = vunpack.c.h.b16 %v5341
    %v5660 = vunpack.c.l.b16 %v5342
    %v5661 = vunpack.c.h.b16 %v5342
    %v5662 = vunpack.c.l.b16 %v5343
    %v5663 = vunpack.c.h.b16 %v5343
    %v5664 = vunpack.c.l.b16 %v5344
    %v5665 = vunpack.c.h.b16 %v5344
    %v5666 = vunpack.c.l.b16 %v5345
    %v5667 = vunpack.c.h.b16 %v5345
    %v5668 = vunpack.c.l.b16 %v5346
    %v5669 = vunpack.c.h.b16 %v5346
    %v5670 = vunpack.c.l.b16 %v5347
    %v5671 = vunpack.c.h.b16 %v5347
    %v5672 = vunpack.c.l.b16 %v5348
    %v5673 = vunpack.c.h.b16 %v5348
    %v5674 = vunpack.c.l.b16 %v5349
    %v5675 = vunpack.c.h.b16 %v5349
    %v5676 = vunpack.c.l.b16 %v5350
    %v5677 = vunpack.c.h.b16 %v5350
    %v5678 = vunpack.c.l.b16 %v5351
    %v5679 = vunpack.c.h.b16 %v5351
    %v5680 = vunpack.c.l.b16 %v5352
    %v5681 = vunpack.c.h.b16 %v5352
    %v5682 = vunpack.c.l.b16 %v5353
    %v5683 = vunpack.c.h.b16 %v5353
    %v5684 = vunpack.c.l.b16 %v5354
    %v5685 = vunpack.c.h.b16 %v5354
    %v5686 = vunpack.c.l.b16 %v5355
    %v5687 = vunpack.c.h.b16 %v5355
    %v5688 = vunpack.c.l.b16 %v5356
    %v5689 = vunpack.c.h.b16 %v5356
    %v5690 = vunpack.c.l.b16 %v5357
    %v5691 = vunpack.c.h.b16 %v5357
    %v5692 = vunpack.c.l.b16 %v5358
    %v5693 = vunpack.c.h.b16 %v5358
    %v5694 = vunpack.c.l.b16 %v5359
    %v5695 = vunpack.c.h.b16 %v5359
    %v5696 = vunpack.c.l.b16 %v5360
    %v5697 = vunpack.c.h.b16 %v5360
    %v5698 = vunpack.c.l.b16 %v5361
    %v5699 = vunpack.c.h.b16 %v5361
    %v5700 = vunpack.c.l.b16 %v5362
    %v5701 = vunpack.c.h.b16 %v5362
    %v5702 = vunpack.c.l.b16 %v5363
    %v5703 = vunpack.c.h.b16 %v5363
    %v5704 = vunpack.c.l.b16 %v5364
    %v5705 = vunpack.c.h.b16 %v5364
    %v5706 = vunpack.c.l.b16 %v5365
    %v5707 = vunpack.c.h.b16 %v5365
    %v5708 = vunpack.c.l.b16 %v5366
    %v5709 = vunpack.c.h.b16 %v5366
    %v5710 = vunpack.c.l.b16 %v5367
    %v5711 = vunpack.c.h.b16 %v5367
    %v5712 = vunpack.c.l.b16 %v5368
    %v5713 = vunpack.c.h.b16 %v5368
    %v5714 = vunpack.c.l.b16 %v5369
    %v5715 = vunpack.c.h.b16 %v5369
    %v5716 = vunpack.c.l.b16 %v5370
    %v5717 = vunpack.c.h.b16 %v5370
    %v5718 = vunpack.c.l.b16 %v5371
    %v5719 = vunpack.c.h.b16 %v5371
    %v5720 = vunpack.c.l.b16 %v5372
    %v5721 = vunpack.c.h.b16 %v5372
    %v5722 = vunpack.c.l.b16 %v5373
    %v5723 = vunpack.c.h.b16 %v5373
    %v5724 = vunpack.c.l.b16 %v5374
    %v5725 = vunpack.c.h.b16 %v5374
    %v5726 = vunpack.c.l.b16 %v5375
    %v5727 = vunpack.c.h.b16 %v5375
    %v5728 = vunpack.c.l.b16 %v5376
    %v5729 = vunpack.c.h.b16 %v5376
    %v5730 = vunpack.c.l.b16 %v5377
    %v5731 = vunpack.c.h.b16 %v5377
    %v5732 = vunpack.c.l.b16 %v5378
    %v5733 = vunpack.c.h.b16 %v5378
    %v5734 = vunpack.c.l.b16 %v5379
    %v5735 = vunpack.c.h.b16 %v5379
    %v5736 = vunpack.c.l.b16 %v5380
    %v5737 = vunpack.c.h.b16 %v5380
    %v5738 = vunpack.c.l.b16 %v5381
    %v5739 = vunpack.c.h.b16 %v5381
    %v5740 = vunpack.c.l.b16 %v5382
    %v5741 = vunpack.c.h.b16 %v5382
    %v5742 = vunpack.c.l.b16 %v5383
    %v5743 = vunpack.c.h.b16 %v5383
    %v5744 = vunpack.c.l.b16 %v5384
    %v5745 = vunpack.c.h.b16 %v5384
    %v5746 = vunpack.c.l.b16 %v5385
    %v5747 = vunpack.c.h.b16 %v5385
    %v5748 = vunpack.c.l.b16 %v5386
    %v5749 = vunpack.c.h.b16 %v5386
    %v5750 = vunpack.c.l.b16 %v5387
    %v5751 = vunpack.c.h.b16 %v5387
    %v5752 = vunpack.c.l.b16 %v5388
    %v5753 = vunpack.c.h.b16 %v5388
    %v5754 = vunpack.c.l.b16 %v5389
    %v5755 = vunpack.c.h.b16 %v5389
    %v5756 = vunpack.c.l.b16 %v5390
    %v5757 = vunpack.c.h.b16 %v5390
    %v5758 = vunpack.c.l.b16 %v5391
    %v5759 = vunpack.c.h.b16 %v5391
    %v5760 = vunpack.c.l.b16 %v5392
    %v5761 = vunpack.c.h.b16 %v5392
    %v5762 = vunpack.c.l.b16 %v5393
    %v5763 = vunpack.c.h.b16 %v5393
    %v5764 = vunpack.c.l.b16 %v5394
    %v5765 = vunpack.c.h.b16 %v5394
    %v5766 = vunpack.c.l.b16 %v5395
    %v5767 = vunpack.c.h.b16 %v5395
    %v5768 = vunpack.c.l.b16 %v5396
    %v5769 = vunpack.c.h.b16 %v5396
    %v5770 = vunpack.c.l.b16 %v5397
    %v5771 = vunpack.c.h.b16 %v5397
    %v5772 = vunpack.c.l.b16 %v5398
    %v5773 = vunpack.c.h.b16 %v5398
    %v5774 = vunpack.c.l.b16 %v5399
    %v5775 = vunpack.c.h.b16 %v5399
    %v5776 = vunpack.c.l.b16 %v5400
    %v5777 = vunpack.c.h.b16 %v5400
    %v5778 = vunpack.c.l.b16 %v5401
    %v5779 = vunpack.c.h.b16 %v5401
    %v5780 = vunpack.c.l.b16 %v5402
    %v5781 = vunpack.c.h.b16 %v5402
    %v5782 = vunpack.c.l.b16 %v5403
    %v5783 = vunpack.c.h.b16 %v5403
    %v5784 = vunpack.c.l.b16 %v5404
    %v5785 = vunpack.c.h.b16 %v5404
    %v5786 = vunpack.c.l.b16 %v5405
    %v5787 = vunpack.c.h.b16 %v5405
    %v5788 = vunpack.c.l.b16 %v5406
    %v5789 = vunpack.c.h.b16 %v5406
    %v5790 = vunpack.c.l.b16 %v5407
    %v5791 = vunpack.c.h.b16 %v5407
    %v5792 = vpack.c.b16 %v5540, %v5536
    %v5793 = vpack.c.b16 %v5541, %v5537
    %v5794 = vpack.c.b16 %v5542, %v5538
    %v5795 = vpack.c.b16 %v5543, %v5539
    %v5796 = vpack.c.b16 %v5548, %v5544
    %v5797 = vpack.c.b16 %v5549, %v5545
    %v5798 = vpack.c.b16 %v5550, %v5546
    %v5799 = vpack.c.b16 %v5551, %v5547
    %v5800 = vpack.c.b16 %v5556, %v5552
    %v5801 = vpack.c.b16 %v5557, %v5553
    %v5802 = vpack.c.b16 %v5558, %v5554
    %v5803 = vpack.c.b16 %v5559, %v5555
    %v5804 = vpack.c.b16 %v5564, %v5560
    %v5805 = vpack.c.b16 %v5565, %v5561
    %v5806 = vpack.c.b16 %v5566, %v5562
    %v5807 = vpack.c.b16 %v5567, %v5563
    %v5808 = vpack.c.b16 %v5572, %v5568
    %v5809 = vpack.c.b16 %v5573, %v5569
    %v5810 = vpack.c.b16 %v5574, %v5570
    %v5811 = vpack.c.b16 %v5575, %v5571
    %v5812 = vpack.c.b16 %v5580, %v5576
    %v5813 = vpack.c.b16 %v5581, %v5577
    %v5814 = vpack.c.b16 %v5582, %v5578
    %v5815 = vpack.c.b16 %v5583, %v5579
    %v5816 = vpack.c.b16 %v5588, %v5584
    %v5817 = vpack.c.b16 %v5589, %v5585
    %v5818 = vpack.c.b16 %v5590, %v5586
    %v5819 = vpack.c.b16 %v5591, %v5587
    %v5820 = vpack.c.b16 %v5596, %v5592
    %v5821 = vpack.c.b16 %v5597, %v5593
    %v5822 = vpack.c.b16 %v5598, %v5594
    %v5823 = vpack.c.b16 %v5599, %v5595
    %v5824 = vpack.c.b16 %v5604, %v5600
    %v5825 = vpack.c.b16 %v5605, %v5601
    %v5826 = vpack.c.b16 %v5606, %v5602
    %v5827 = vpack.c.b16 %v5607, %v5603
    %v5828 = vpack.c.b16 %v5612, %v5608
    %v5829 = vpack.c.b16 %v5613, %v5609
    %v5830 = vpack.c.b16 %v5614, %v5610
    %v5831 = vpack.c.b16 %v5615, %v5611
    %v5832 = vpack.c.b16 %v5620, %v5616
    %v5833 = vpack.c.b16 %v5621, %v5617
    %v5834 = vpack.c.b16 %v5622, %v5618
    %v5835 = vpack.c.b16 %v5623, %v5619
    %v5836 = vpack.c.b16 %v5628, %v5624
    %v5837 = vpack.c.b16 %v5629, %v5625
    %v5838 = vpack.c.b16 %v5630, %v5626
    %v5839 = vpack.c.b16 %v5631, %v5627
    %v5840 = vpack.c.b16 %v5636, %v5632
    %v5841 = vpack.c.b16 %v5637, %v5633
    %v5842 = vpack.c.b16 %v5638, %v5634
    %v5843 = vpack.c.b16 %v5639, %v5635
    %v5844 = vpack.c.b16 %v5644, %v5640
    %v5845 = vpack.c.b16 %v5645, %v5641
    %v5846 = vpack.c.b16 %v5646, %v5642
    %v5847 = vpack.c.b16 %v5647, %v5643
    %v5848 = vpack.c.b16 %v5652, %v5648
    %v5849 = vpack.c.b16 %v5653, %v5649
    %v5850 = vpack.c.b16 %v5654, %v5650
    %v5851 = vpack.c.b16 %v5655, %v5651
    %v5852 = vpack.c.b16 %v5660, %v5656
    %v5853 = vpack.c.b16 %v5661, %v5657
    %v5854 = vpack.c.b16 %v5662, %v5658
    %v5855 = vpack.c.b16 %v5663, %v5659
    %v5856 = vpack.c.b16 %v5668, %v5664
    %v5857 = vpack.c.b16 %v5669, %v5665
    %v5858 = vpack.c.b16 %v5670, %v5666
    %v5859 = vpack.c.b16 %v5671, %v5667
    %v5860 = vpack.c.b16 %v5676, %v5672
    %v5861 = vpack.c.b16 %v5677, %v5673
    %v5862 = vpack.c.b16 %v5678, %v5674
    %v5863 = vpack.c.b16 %v5679, %v5675
    %v5864 = vpack.c.b16 %v5684, %v5680
    %v5865 = vpack.c.b16 %v5685, %v5681
    %v5866 = vpack.c.b16 %v5686, %v5682
    %v5867 = vpack.c.b16 %v5687, %v5683
    %v5868 = vpack.c.b16 %v5692, %v5688
    %v5869 = vpack.c.b16 %v5693, %v5689
    %v5870 = vpack.c.b16 %v5694, %v5690
    %v5871 = vpack.c.b16 %v5695, %v5691
    %v5872 = vpack.c.b16 %v5700, %v5696
    %v5873 = vpack.c.b16 %v5701, %v5697
    %v5874 = vpack.c.b16 %v5702, %v5698
    %v5875 = vpack.c.b16 %v5703, %v5699
    %v5876 = vpack.c.b16 %v5708, %v5704
    %v5877 = vpack.c.b16 %v5709, %v5705
    %v5878 = vpack.c.b16 %v5710, %v5706
    %v5879 = vpack.c.b16 %v5711, %v5707
    %v5880 = vpack.c.b16 %v5716, %v5712
    %v5881 = vpack.c.b16 %v5717, %v5713
    %v5882 = vpack.c.b16 %v5718, %v5714
    %v5883 = vpack.c.b16 %v5719, %v5715
    %v5884 = vpack.c.b16 %v5724, %v5720
    %v5885 = vpack.c.b16 %v5725, %v5721
    %v5886 = vpack.c.b16 %v5726, %v5722
    %v5887 = vpack.c.b16 %v5727, %v5723
    %v5888 = vpack.c.b16 %v5732, %v5728
    %v5889 = vpack.c.b16 %v5733, %v5729
    %v5890 = vpack.c.b16 %v5734, %v5730
    %v5891 = vpack.c.b16 %v5735, %v5731
    %v5892 = vpack.c.b16 %v5740, %v5736
    %v5893 = vpack.c.b16 %v5741, %v5737
    %v5894 = vpack.c.b16 %v5742, %v5738
    %v5895 = vpack.c.b16 %v5743, %v5739
    %v5896 = vpack.c.b16 %v5748, %v5744
    %v5897 = vpack.c.b16 %v5749, %v5745
    %v5898 = vpack.c.b16 %v5750, %v5746
    %v5899 = vpack.c.b16 %v5751, %v5747
    %v5900 = vpack.c.b16 %v5756, %v5752
    %v5901 = vpack.c.b16 %v5757, %v5753
    %v5902 = vpack.c.b16 %v5758, %v5754
    %v5903 = vpack.c.b16 %v5759, %v5755
    %v5904 = vpack.c.b16 %v5764, %v5760
    %v5905 = vpack.c.b16 %v5765, %v5761
    %v5906 = vpack.c.b16 %v5766, %v5762
    %v5907 = vpack.c.b16 %v5767, %v5763
    %v5908 = vpack.c.b16 %v5772, %v5768
    %v5909 = vpack.c.b16 %v5773, %v5769
    %v5910 = vpack.c.b16 %v5774, %v5770
    %v5911 = vpack.c.b16 %v5775, %v5771
    %v5912 = vpack.c.b16 %v5780, %v5776
    %v5913 = vpack.c.b16 %v5781, %v5777
    %v5914 = vpack.c.b16 %v5782, %v5778
    %v5915 = vpack.c.b16 %v5783, %v5779
    %v5916 = vpack.c.b16 %v5788, %v5784
    %v5917 = vpack.c.b16 %v5789, %v5785
    %v5918 = vpack.c.b16 %v5790, %v5786
    %v5919 = vpack.c.b16 %v5791, %v5787
    %6048 = vmatprep.subr.bf16.mxu0 %v5821
    %6049 = vmatpush1.bf16.msra.mxu0 %v5820
    %6050 = vmatprep.subr.bf16.mxu0 %v5817
    %6051 = vmatpush1.bf16.msra.mxu0 %v5816
    %6052 = vmatprep.subr.bf16.mxu0 %v5813
    %6053 = vmatpush1.bf16.msra.mxu0 %v5812
    %6054 = vmatprep.subr.bf16.mxu0 %v5809
    %6055 = vmatpush1.bf16.msra.mxu0 %v5808
    %6056 = vmatprep.subr.bf16.mxu0 %v5805
    %6057 = vmatpush1.bf16.msra.mxu0 %v5804
    %6058 = vmatprep.subr.bf16.mxu0 %v5801
    %6059 = vmatpush1.bf16.msra.mxu0 %v5800
    %6060 = vmatprep.subr.bf16.mxu0 %v5797
    %6061 = vmatpush1.bf16.msra.mxu0 %v5796
    %6062 = vmatprep.subr.bf16.mxu0 %v5793
    %6063 = vmatpush1.bf16.msra.mxu0 %v5792
    %6064 = vmatprep.subr.bf16.mxu0 %v5853
    %6065 = vmatpush2.bf16.msra.mxu0 %v5852
    %6066 = vmatprep.subr.bf16.mxu0 %v5849
    %6067 = vmatpush2.bf16.msra.mxu0 %v5848
    %6068 = vmatprep.subr.bf16.mxu0 %v5845
    %6069 = vmatpush2.bf16.msra.mxu0 %v5844
    %6070 = vmatprep.subr.bf16.mxu0 %v5841
    %6071 = vmatpush2.bf16.msra.mxu0 %v5840
    %6072 = vmatprep.subr.bf16.mxu0 %v5837
    %6073 = vmatpush2.bf16.msra.mxu0 %v5836
    %6074 = vmatprep.subr.bf16.mxu0 %v5833
    %6075 = vmatpush2.bf16.msra.mxu0 %v5832
    %6076 = vmatprep.subr.bf16.mxu0 %v5829
    %6077 = vmatpush2.bf16.msra.mxu0 %v5828
    %6078 = vmatprep.subr.bf16.mxu0 %v5825
    %6079 = vmatpush2.bf16.msra.mxu0 %v5824
    %6080 = vmatprep.mubr.bf16.mxu0 %v3395
    %6081 = vmatmul.mubr.bf16.gmra.mxu0 %v3394
    %v6082 = vpop.f32.mrf.mxu0
    %v6083 = vadd.f32 0.0, %v6082
    %v6084 = vpop.f32.mrf.mxu0
    %v6085 = vadd.f32 0.0, %v6084
    %v6086 = vpop.f32.mrf.mxu0
    %v6087 = vadd.f32 0.0, %v6086
    %v6088 = vpop.f32.mrf.mxu0
    %v6089 = vadd.f32 0.0, %v6088
    %6090 = vdwg.mxu0
    %6091 = vmatprep.subr.bf16.mxu0 %v5885
    %6092 = vmatpush1.bf16.msra.mxu0 %v5884
    %6093 = vmatprep.subr.bf16.mxu0 %v5881
    %6094 = vmatpush1.bf16.msra.mxu0 %v5880
    %6095 = vmatprep.subr.bf16.mxu0 %v5877
    %6096 = vmatpush1.bf16.msra.mxu0 %v5876
    %6097 = vmatprep.subr.bf16.mxu0 %v5873
    %6098 = vmatpush1.bf16.msra.mxu0 %v5872
    %6099 = vmatprep.subr.bf16.mxu0 %v5869
    %6100 = vmatpush1.bf16.msra.mxu0 %v5868
    %6101 = vmatprep.subr.bf16.mxu0 %v5865
    %6102 = vmatpush1.bf16.msra.mxu0 %v5864
    %6103 = vmatprep.subr.bf16.mxu0 %v5861
    %6104 = vmatpush1.bf16.msra.mxu0 %v5860
    %6105 = vmatprep.subr.bf16.mxu0 %v5857
    %6106 = vmatpush1.bf16.msra.mxu0 %v5856
    %6107 = vmatprep.subr.bf16.mxu0 %v5917
    %6108 = vmatpush2.bf16.msra.mxu0 %v5916
    %6109 = vmatprep.subr.bf16.mxu0 %v5913
    %6110 = vmatpush2.bf16.msra.mxu0 %v5912
    %6111 = vmatprep.subr.bf16.mxu0 %v5909
    %6112 = vmatpush2.bf16.msra.mxu0 %v5908
    %6113 = vmatprep.subr.bf16.mxu0 %v5905
    %6114 = vmatpush2.bf16.msra.mxu0 %v5904
    %6115 = vmatprep.subr.bf16.mxu0 %v5901
    %6116 = vmatpush2.bf16.msra.mxu0 %v5900
    %6117 = vmatprep.subr.bf16.mxu0 %v5897
    %6118 = vmatpush2.bf16.msra.mxu0 %v5896
    %6119 = vmatprep.subr.bf16.mxu0 %v5893
    %6120 = vmatpush2.bf16.msra.mxu0 %v5892
    %6121 = vmatprep.subr.bf16.mxu0 %v5889
    %6122 = vmatpush2.bf16.msra.mxu0 %v5888
    %6123 = vmatprep.mubr.bf16.mxu0 %v3397
    %6124 = vmatmul.mubr.bf16.gmra.mxu0 %v3396
    %v6125 = vpop.f32.mrf.mxu0
    %v6126 = vadd.f32 %v6083, %v6125
    %v6127 = vpop.f32.mrf.mxu0
    %v6128 = vadd.f32 %v6085, %v6127
    %v6129 = vpop.f32.mrf.mxu0
    %v6130 = vadd.f32 %v6087, %v6129
    %v6131 = vpop.f32.mrf.mxu0
    %v6132 = vadd.f32 %v6089, %v6131
    %6133 = vdwg.mxu0
    %6134 = vmatprep.subr.bf16.mxu0 %v5823
    %6135 = vmatpush1.bf16.msra.mxu0 %v5822
    %6136 = vmatprep.subr.bf16.mxu0 %v5819
    %6137 = vmatpush1.bf16.msra.mxu0 %v5818
    %6138 = vmatprep.subr.bf16.mxu0 %v5815
    %6139 = vmatpush1.bf16.msra.mxu0 %v5814
    %6140 = vmatprep.subr.bf16.mxu0 %v5811
    %6141 = vmatpush1.bf16.msra.mxu0 %v5810
    %6142 = vmatprep.subr.bf16.mxu0 %v5807
    %6143 = vmatpush1.bf16.msra.mxu0 %v5806
    %6144 = vmatprep.subr.bf16.mxu0 %v5803
    %6145 = vmatpush1.bf16.msra.mxu0 %v5802
    %6146 = vmatprep.subr.bf16.mxu0 %v5799
    %6147 = vmatpush1.bf16.msra.mxu0 %v5798
    %6148 = vmatprep.subr.bf16.mxu0 %v5795
    %6149 = vmatpush1.bf16.msra.mxu0 %v5794
    %6150 = vmatprep.subr.bf16.mxu0 %v5855
    %6151 = vmatpush2.bf16.msra.mxu0 %v5854
    %6152 = vmatprep.subr.bf16.mxu0 %v5851
    %6153 = vmatpush2.bf16.msra.mxu0 %v5850
    %6154 = vmatprep.subr.bf16.mxu0 %v5847
    %6155 = vmatpush2.bf16.msra.mxu0 %v5846
    %6156 = vmatprep.subr.bf16.mxu0 %v5843
    %6157 = vmatpush2.bf16.msra.mxu0 %v5842
    %6158 = vmatprep.subr.bf16.mxu0 %v5839
    %6159 = vmatpush2.bf16.msra.mxu0 %v5838
    %6160 = vmatprep.subr.bf16.mxu0 %v5835
    %6161 = vmatpush2.bf16.msra.mxu0 %v5834
    %6162 = vmatprep.subr.bf16.mxu0 %v5831
    %6163 = vmatpush2.bf16.msra.mxu0 %v5830
    %6164 = vmatprep.subr.bf16.mxu0 %v5827
    %6165 = vmatpush2.bf16.msra.mxu0 %v5826
    %6166 = vmatprep.mubr.bf16.mxu0 %v3395
    %6167 = vmatmul.mubr.bf16.gmra.mxu0 %v3394
    %v6168 = vpop.f32.mrf.mxu0
    %v6169 = vadd.f32 0.0, %v6168
    %v6170 = vpop.f32.mrf.mxu0
    %v6171 = vadd.f32 0.0, %v6170
    %v6172 = vpop.f32.mrf.mxu0
    %v6173 = vadd.f32 0.0, %v6172
    %v6174 = vpop.f32.mrf.mxu0
    %v6175 = vadd.f32 0.0, %v6174
    %6176 = vdwg.mxu0
    %6177 = vmatprep.subr.bf16.mxu0 %v5887
    %6178 = vmatpush1.bf16.msra.mxu0 %v5886
    %6179 = vmatprep.subr.bf16.mxu0 %v5883
    %6180 = vmatpush1.bf16.msra.mxu0 %v5882
    %6181 = vmatprep.subr.bf16.mxu0 %v5879
    %6182 = vmatpush1.bf16.msra.mxu0 %v5878
    %6183 = vmatprep.subr.bf16.mxu0 %v5875
    %6184 = vmatpush1.bf16.msra.mxu0 %v5874
    %6185 = vmatprep.subr.bf16.mxu0 %v5871
    %6186 = vmatpush1.bf16.msra.mxu0 %v5870
    %6187 = vmatprep.subr.bf16.mxu0 %v5867
    %6188 = vmatpush1.bf16.msra.mxu0 %v5866
    %6189 = vmatprep.subr.bf16.mxu0 %v5863
    %6190 = vmatpush1.bf16.msra.mxu0 %v5862
    %6191 = vmatprep.subr.bf16.mxu0 %v5859
    %6192 = vmatpush1.bf16.msra.mxu0 %v5858
    %6193 = vmatprep.subr.bf16.mxu0 %v5919
    %6194 = vmatpush2.bf16.msra.mxu0 %v5918
    %6195 = vmatprep.subr.bf16.mxu0 %v5915
    %6196 = vmatpush2.bf16.msra.mxu0 %v5914
    %6197 = vmatprep.subr.bf16.mxu0 %v5911
    %6198 = vmatpush2.bf16.msra.mxu0 %v5910
    %6199 = vmatprep.subr.bf16.mxu0 %v5907
    %6200 = vmatpush2.bf16.msra.mxu0 %v5906
    %6201 = vmatprep.subr.bf16.mxu0 %v5903
    %6202 = vmatpush2.bf16.msra.mxu0 %v5902
    %6203 = vmatprep.subr.bf16.mxu0 %v5899
    %6204 = vmatpush2.bf16.msra.mxu0 %v5898
    %6205 = vmatprep.subr.bf16.mxu0 %v5895
    %6206 = vmatpush2.bf16.msra.mxu0 %v5894
    %6207 = vmatprep.subr.bf16.mxu0 %v5891
    %6208 = vmatpush2.bf16.msra.mxu0 %v5890
    %6209 = vmatprep.mubr.bf16.mxu0 %v3397
    %6210 = vmatmul.mubr.bf16.gmra.mxu0 %v3396
    %v6211 = vpop.f32.mrf.mxu0
    %v6212 = vadd.f32 %v6169, %v6211
    %v6213 = vpop.f32.mrf.mxu0
    %v6214 = vadd.f32 %v6171, %v6213
    %v6215 = vpop.f32.mrf.mxu0
    %v6216 = vadd.f32 %v6173, %v6215
    %v6217 = vpop.f32.mrf.mxu0
    %v6218 = vadd.f32 %v6175, %v6217
    %6219 = vdwg.mxu0
    %6220 = vmatprep.subr.mxu0 0.0
    %6221 = vmatpush1.msra.mxu0 0.0
    %6222 = vmatprep.subr.mxu0 0.0
    %6223 = vmatpush1.msra.mxu0 0.0
    %6224 = vmatprep.subr.mxu0 0.0
    %6225 = vmatpush1.msra.mxu0 0.0
    %6226 = vmatprep.subr.mxu0 0.0
    %6227 = vmatpush1.msra.mxu0 0.0
    %6228 = vmatprep.subr.mxu0 0.0
    %6229 = vmatpush1.msra.mxu0 0.0
    %6230 = vmatprep.subr.mxu0 0.0
    %6231 = vmatpush1.msra.mxu0 0.0
    %6232 = vmatprep.subr.mxu0 0.0
    %6233 = vmatpush1.msra.mxu0 0.0
    %6234 = vmatprep.subr.mxu0 0.0
    %6235 = vmatpush1.msra.mxu0 0.0
    %6236 = vmatprep.subr.mxu0 0.0
    %6237 = vmatpush1.msra.mxu0 0.0
    %6238 = vmatprep.subr.mxu0 0.0
    %6239 = vmatpush1.msra.mxu0 0.0
    %6240 = vmatprep.subr.mxu0 0.0
    %6241 = vmatpush1.msra.mxu0 0.0
    %6242 = vmatprep.subr.mxu0 0.0
    %6243 = vmatpush1.msra.mxu0 0.0
    %6244 = vmatprep.subr.mxu0 0.0
    %6245 = vmatpush1.msra.mxu0 0.0
    %6246 = vmatprep.subr.mxu0 0.0
    %6247 = vmatpush1.msra.mxu0 0.0
    %6248 = vmatprep.subr.mxu0 %v4250
    %6249 = vmatpush1.msra.mxu0 %v4248
    %6250 = vmatprep.subr.mxu0 %v4246
    %6251 = vmatpush1.msra.mxu0 %v4244
    %6252 = vmatprep.subr.mxu0 0.0
    %6253 = vmatpush2.msra.mxu0 0.0
    %6254 = vmatprep.subr.mxu0 0.0
    %6255 = vmatpush2.msra.mxu0 0.0
    %6256 = vmatprep.subr.mxu0 0.0
    %6257 = vmatpush2.msra.mxu0 0.0
    %6258 = vmatprep.subr.mxu0 0.0
    %6259 = vmatpush2.msra.mxu0 0.0
    %6260 = vmatprep.subr.mxu0 0.0
    %6261 = vmatpush2.msra.mxu0 0.0
    %6262 = vmatprep.subr.mxu0 0.0
    %6263 = vmatpush2.msra.mxu0 0.0
    %6264 = vmatprep.subr.mxu0 0.0
    %6265 = vmatpush2.msra.mxu0 0.0
    %6266 = vmatprep.subr.mxu0 0.0
    %6267 = vmatpush2.msra.mxu0 0.0
    %6268 = vmatprep.subr.mxu0 0.0
    %6269 = vmatpush2.msra.mxu0 0.0
    %6270 = vmatprep.subr.mxu0 0.0
    %6271 = vmatpush2.msra.mxu0 0.0
    %6272 = vmatprep.subr.mxu0 0.0
    %6273 = vmatpush2.msra.mxu0 0.0
    %6274 = vmatprep.subr.mxu0 0.0
    %6275 = vmatpush2.msra.mxu0 0.0
    %6276 = vmatprep.subr.mxu0 0.0
    %6277 = vmatpush2.msra.mxu0 0.0
    %6278 = vmatprep.subr.mxu0 0.0
    %6279 = vmatpush2.msra.mxu0 0.0
    %6280 = vmatprep.subr.mxu0 0.0
    %6281 = vmatpush2.msra.mxu0 0.0
    %6282 = vmatprep.subr.mxu0 0.0
    %6283 = vmatpush2.msra.mxu0 0.0
    %6284 = vmatprep.mubr.f32.mxu0 0.0
    %6285 = vmatmul.mubr.f32.gmra.mxu0 %v1639
    %v6286 = vpop.f32.mrf.mxu0
    %v6287 = vadd.f32 %v5185, %v6286
    %v6288 = vpop.f32.mrf.mxu0
    %v6289 = vadd.f32 %v5187, %v6288
    %6290 = vmatprep.mubr.f32.mxu0 0.0
    %6291 = vmatmul.mubr.f32.gmra.mxu0 %v1642
    %v6292 = vpop.f32.mrf.mxu0
    %v6293 = vadd.f32 %v5189, %v6292
    %v6294 = vpop.f32.mrf.mxu0
    %v6295 = vadd.f32 %v5191, %v6294
    %6296 = vdwg.mxu0
    %6297 = vmatprep.subr.mxu0 0.0
    %6298 = vmatpush1.msra.mxu0 0.0
    %6299 = vmatprep.subr.mxu0 0.0
    %6300 = vmatpush1.msra.mxu0 0.0
    %6301 = vmatprep.subr.mxu0 0.0
    %6302 = vmatpush1.msra.mxu0 0.0
    %6303 = vmatprep.subr.mxu0 0.0
    %6304 = vmatpush1.msra.mxu0 0.0
    %6305 = vmatprep.subr.mxu0 0.0
    %6306 = vmatpush1.msra.mxu0 0.0
    %6307 = vmatprep.subr.mxu0 0.0
    %6308 = vmatpush1.msra.mxu0 0.0
    %6309 = vmatprep.subr.mxu0 0.0
    %6310 = vmatpush1.msra.mxu0 0.0
    %6311 = vmatprep.subr.mxu0 0.0
    %6312 = vmatpush1.msra.mxu0 0.0
    %6313 = vmatprep.subr.mxu0 0.0
    %6314 = vmatpush1.msra.mxu0 0.0
    %6315 = vmatprep.subr.mxu0 0.0
    %6316 = vmatpush1.msra.mxu0 0.0
    %6317 = vmatprep.subr.mxu0 0.0
    %6318 = vmatpush1.msra.mxu0 0.0
    %6319 = vmatprep.subr.mxu0 0.0
    %6320 = vmatpush1.msra.mxu0 0.0
    %6321 = vmatprep.subr.mxu0 0.0
    %6322 = vmatpush1.msra.mxu0 0.0
    %6323 = vmatprep.subr.mxu0 0.0
    %6324 = vmatpush1.msra.mxu0 0.0
    %6325 = vmatprep.subr.mxu0 %v4336
    %6326 = vmatpush1.msra.mxu0 %v4334
    %6327 = vmatprep.subr.mxu0 %v4332
    %6328 = vmatpush1.msra.mxu0 %v4330
    %6329 = vmatprep.subr.mxu0 0.0
    %6330 = vmatpush2.msra.mxu0 0.0
    %6331 = vmatprep.subr.mxu0 0.0
    %6332 = vmatpush2.msra.mxu0 0.0
    %6333 = vmatprep.subr.mxu0 0.0
    %6334 = vmatpush2.msra.mxu0 0.0
    %6335 = vmatprep.subr.mxu0 0.0
    %6336 = vmatpush2.msra.mxu0 0.0
    %6337 = vmatprep.subr.mxu0 0.0
    %6338 = vmatpush2.msra.mxu0 0.0
    %6339 = vmatprep.subr.mxu0 0.0
    %6340 = vmatpush2.msra.mxu0 0.0
    %6341 = vmatprep.subr.mxu0 0.0
    %6342 = vmatpush2.msra.mxu0 0.0
    %6343 = vmatprep.subr.mxu0 0.0
    %6344 = vmatpush2.msra.mxu0 0.0
    %6345 = vmatprep.subr.mxu0 0.0
    %6346 = vmatpush2.msra.mxu0 0.0
    %6347 = vmatprep.subr.mxu0 0.0
    %6348 = vmatpush2.msra.mxu0 0.0
    %6349 = vmatprep.subr.mxu0 0.0
    %6350 = vmatpush2.msra.mxu0 0.0
    %6351 = vmatprep.subr.mxu0 0.0
    %6352 = vmatpush2.msra.mxu0 0.0
    %6353 = vmatprep.subr.mxu0 0.0
    %6354 = vmatpush2.msra.mxu0 0.0
    %6355 = vmatprep.subr.mxu0 0.0
    %6356 = vmatpush2.msra.mxu0 0.0
    %6357 = vmatprep.subr.mxu0 0.0
    %6358 = vmatpush2.msra.mxu0 0.0
    %6359 = vmatprep.subr.mxu0 0.0
    %6360 = vmatpush2.msra.mxu0 0.0
    %6361 = vmatprep.mubr.f32.mxu0 0.0
    %6362 = vmatmul.mubr.f32.gmra.mxu0 %v1639
    %v6363 = vpop.f32.mrf.mxu0
    %v6364 = vadd.f32 %v5271, %v6363
    %v6365 = vpop.f32.mrf.mxu0
    %v6366 = vadd.f32 %v5273, %v6365
    %6367 = vmatprep.mubr.f32.mxu0 0.0
    %6368 = vmatmul.mubr.f32.gmra.mxu0 %v1642
    %v6369 = vpop.f32.mrf.mxu0
    %v6370 = vadd.f32 %v5275, %v6369
    %v6371 = vpop.f32.mrf.mxu0
    %v6372 = vadd.f32 %v5277, %v6371
    %6373 = vdwg.mxu0
    %6374 = vmatprep.subr.mxu0 0.0
    %6375 = vmatpush1.msra.mxu0 0.0
    %6376 = vmatprep.subr.mxu0 0.0
    %6377 = vmatpush1.msra.mxu0 0.0
    %6378 = vmatprep.subr.mxu0 0.0
    %6379 = vmatpush1.msra.mxu0 0.0
    %6380 = vmatprep.subr.mxu0 0.0
    %6381 = vmatpush1.msra.mxu0 0.0
    %6382 = vmatprep.subr.mxu0 0.0
    %6383 = vmatpush1.msra.mxu0 0.0
    %6384 = vmatprep.subr.mxu0 0.0
    %6385 = vmatpush1.msra.mxu0 0.0
    %6386 = vmatprep.subr.mxu0 0.0
    %6387 = vmatpush1.msra.mxu0 0.0
    %6388 = vmatprep.subr.mxu0 0.0
    %6389 = vmatpush1.msra.mxu0 0.0
    %6390 = vmatprep.subr.mxu0 0.0
    %6391 = vmatpush1.msra.mxu0 0.0
    %6392 = vmatprep.subr.mxu0 0.0
    %6393 = vmatpush1.msra.mxu0 0.0
    %6394 = vmatprep.subr.mxu0 0.0
    %6395 = vmatpush1.msra.mxu0 0.0
    %6396 = vmatprep.subr.mxu0 0.0
    %6397 = vmatpush1.msra.mxu0 0.0
    %6398 = vmatprep.subr.mxu0 0.0
    %6399 = vmatpush1.msra.mxu0 0.0
    %6400 = vmatprep.subr.mxu0 0.0
    %6401 = vmatpush1.msra.mxu0 0.0
    %6402 = vmatprep.subr.mxu0 %v6132
    %6403 = vmatpush1.msra.mxu0 %v6130
    %6404 = vmatprep.subr.mxu0 %v6128
    %6405 = vmatpush1.msra.mxu0 %v6126
    %6406 = vmatprep.subr.mxu0 0.0
    %6407 = vmatpush2.msra.mxu0 0.0
    %6408 = vmatprep.subr.mxu0 0.0
    %6409 = vmatpush2.msra.mxu0 0.0
    %6410 = vmatprep.subr.mxu0 0.0
    %6411 = vmatpush2.msra.mxu0 0.0
    %6412 = vmatprep.subr.mxu0 0.0
    %6413 = vmatpush2.msra.mxu0 0.0
    %6414 = vmatprep.subr.mxu0 0.0
    %6415 = vmatpush2.msra.mxu0 0.0
    %6416 = vmatprep.subr.mxu0 0.0
    %6417 = vmatpush2.msra.mxu0 0.0
    %6418 = vmatprep.subr.mxu0 0.0
    %6419 = vmatpush2.msra.mxu0 0.0
    %6420 = vmatprep.subr.mxu0 0.0
    %6421 = vmatpush2.msra.mxu0 0.0
    %6422 = vmatprep.subr.mxu0 0.0
    %6423 = vmatpush2.msra.mxu0 0.0
    %6424 = vmatprep.subr.mxu0 0.0
    %6425 = vmatpush2.msra.mxu0 0.0
    %6426 = vmatprep.subr.mxu0 0.0
    %6427 = vmatpush2.msra.mxu0 0.0
    %6428 = vmatprep.subr.mxu0 0.0
    %6429 = vmatpush2.msra.mxu0 0.0
    %6430 = vmatprep.subr.mxu0 0.0
    %6431 = vmatpush2.msra.mxu0 0.0
    %6432 = vmatprep.subr.mxu0 0.0
    %6433 = vmatpush2.msra.mxu0 0.0
    %6434 = vmatprep.subr.mxu0 0.0
    %6435 = vmatpush2.msra.mxu0 0.0
    %6436 = vmatprep.subr.mxu0 0.0
    %6437 = vmatpush2.msra.mxu0 0.0
    %6438 = vmatprep.mubr.f32.mxu0 0.0
    %6439 = vmatmul.mubr.f32.gmra.mxu0 %v1799
    %v6440 = vpop.f32.mrf.mxu0
    %v6441 = vadd.f32 0.0, %v6440
    %v6442 = vpop.f32.mrf.mxu0
    %v6443 = vadd.f32 0.0, %v6442
    %6444 = vmatprep.mubr.f32.mxu0 0.0
    %6445 = vmatmul.mubr.f32.gmra.mxu0 %v1802
    %v6446 = vpop.f32.mrf.mxu0
    %v6447 = vadd.f32 0.0, %v6446
    %v6448 = vpop.f32.mrf.mxu0
    %v6449 = vadd.f32 0.0, %v6448
    %6450 = vdwg.mxu0
    %6451 = vmatprep.subr.mxu0 0.0
    %6452 = vmatpush1.msra.mxu0 0.0
    %6453 = vmatprep.subr.mxu0 0.0
    %6454 = vmatpush1.msra.mxu0 0.0
    %6455 = vmatprep.subr.mxu0 0.0
    %6456 = vmatpush1.msra.mxu0 0.0
    %6457 = vmatprep.subr.mxu0 0.0
    %6458 = vmatpush1.msra.mxu0 0.0
    %6459 = vmatprep.subr.mxu0 0.0
    %6460 = vmatpush1.msra.mxu0 0.0
    %6461 = vmatprep.subr.mxu0 0.0
    %6462 = vmatpush1.msra.mxu0 0.0
    %6463 = vmatprep.subr.mxu0 0.0
    %6464 = vmatpush1.msra.mxu0 0.0
    %6465 = vmatprep.subr.mxu0 0.0
    %6466 = vmatpush1.msra.mxu0 0.0
    %6467 = vmatprep.subr.mxu0 0.0
    %6468 = vmatpush1.msra.mxu0 0.0
    %6469 = vmatprep.subr.mxu0 0.0
    %6470 = vmatpush1.msra.mxu0 0.0
    %6471 = vmatprep.subr.mxu0 0.0
    %6472 = vmatpush1.msra.mxu0 0.0
    %6473 = vmatprep.subr.mxu0 0.0
    %6474 = vmatpush1.msra.mxu0 0.0
    %6475 = vmatprep.subr.mxu0 0.0
    %6476 = vmatpush1.msra.mxu0 0.0
    %6477 = vmatprep.subr.mxu0 0.0
    %6478 = vmatpush1.msra.mxu0 0.0
    %6479 = vmatprep.subr.mxu0 %v6218
    %6480 = vmatpush1.msra.mxu0 %v6216
    %6481 = vmatprep.subr.mxu0 %v6214
    %6482 = vmatpush1.msra.mxu0 %v6212
    %6483 = vmatprep.subr.mxu0 0.0
    %6484 = vmatpush2.msra.mxu0 0.0
    %6485 = vmatprep.subr.mxu0 0.0
    %6486 = vmatpush2.msra.mxu0 0.0
    %6487 = vmatprep.subr.mxu0 0.0
    %6488 = vmatpush2.msra.mxu0 0.0
    %6489 = vmatprep.subr.mxu0 0.0
    %6490 = vmatpush2.msra.mxu0 0.0
    %6491 = vmatprep.subr.mxu0 0.0
    %6492 = vmatpush2.msra.mxu0 0.0
    %6493 = vmatprep.subr.mxu0 0.0
    %6494 = vmatpush2.msra.mxu0 0.0
    %6495 = vmatprep.subr.mxu0 0.0
    %6496 = vmatpush2.msra.mxu0 0.0
    %6497 = vmatprep.subr.mxu0 0.0
    %6498 = vmatpush2.msra.mxu0 0.0
    %6499 = vmatprep.subr.mxu0 0.0
    %6500 = vmatpush2.msra.mxu0 0.0
    %6501 = vmatprep.subr.mxu0 0.0
    %6502 = vmatpush2.msra.mxu0 0.0
    %6503 = vmatprep.subr.mxu0 0.0
    %6504 = vmatpush2.msra.mxu0 0.0
    %6505 = vmatprep.subr.mxu0 0.0
    %6506 = vmatpush2.msra.mxu0 0.0
    %6507 = vmatprep.subr.mxu0 0.0
    %6508 = vmatpush2.msra.mxu0 0.0
    %6509 = vmatprep.subr.mxu0 0.0
    %6510 = vmatpush2.msra.mxu0 0.0
    %6511 = vmatprep.subr.mxu0 0.0
    %6512 = vmatpush2.msra.mxu0 0.0
    %6513 = vmatprep.subr.mxu0 0.0
    %6514 = vmatpush2.msra.mxu0 0.0
    %6515 = vmatprep.mubr.f32.mxu0 0.0
    %6516 = vmatmul.mubr.f32.gmra.mxu0 %v1799
    %v6517 = vpop.f32.mrf.mxu0
    %v6518 = vadd.f32 0.0, %v6517
    %v6519 = vpop.f32.mrf.mxu0
    %v6520 = vadd.f32 0.0, %v6519
    %6521 = vmatprep.mubr.f32.mxu0 0.0
    %6522 = vmatmul.mubr.f32.gmra.mxu0 %v1802
    %v6523 = vpop.f32.mrf.mxu0
    %v6524 = vadd.f32 0.0, %v6523
    %v6525 = vpop.f32.mrf.mxu0
    %v6526 = vadd.f32 0.0, %v6525
    %6527 = vdwg.mxu0
    %v6528 = vadd.f32 %v6287, %v6441
    %v6529 = vadd.f32 %v6289, %v6443
    %v6530 = vadd.f32 %v6364, %v6518
    %v6531 = vadd.f32 %v6366, %v6520
    %v6532 = vadd.f32 %v6293, %v6447
    %v6533 = vadd.f32 %v6295, %v6449
    %v6534 = vadd.f32 %v6370, %v6524
    %v6535 = vadd.f32 %v6372, %v6526
    %v6536 = vld [vmem:[#allocation13] sm:$0xff]
    %v6537 = vld [vmem:[#allocation13 + $0x8] sm:$0xff]
    %v6538 = vld [vmem:[#allocation13 + $0x10] sm:$0xff]
    %v6539 = vld [vmem:[#allocation13 + $0x18] sm:$0xff]
    %v6540 = vld [vmem:[#allocation13 + $0x20] sm:$0xff]
    %v6541 = vld [vmem:[#allocation13 + $0x28] sm:$0xff]
    %v6542 = vld [vmem:[#allocation13 + $0x30] sm:$0xff]
    %v6543 = vld [vmem:[#allocation13 + $0x38] sm:$0xff]
    %v6544 = vld [vmem:[#allocation13 + $0x40] sm:$0xff]
    %v6545 = vld [vmem:[#allocation13 + $0x48] sm:$0xff]
    %v6546 = vld [vmem:[#allocation13 + $0x50] sm:$0xff]
    %v6547 = vld [vmem:[#allocation13 + $0x58] sm:$0xff]
    %v6548 = vld [vmem:[#allocation13 + $0x60] sm:$0xff]
    %v6549 = vld [vmem:[#allocation13 + $0x68] sm:$0xff]
    %v6550 = vld [vmem:[#allocation13 + $0x70] sm:$0xff]
    %v6551 = vld [vmem:[#allocation13 + $0x78] sm:$0xff]
    %v6552 = vld [vmem:[#allocation13 + $0x80] sm:$0xff]
    %v6553 = vld [vmem:[#allocation13 + $0x88] sm:$0xff]
    %v6554 = vld [vmem:[#allocation13 + $0x90] sm:$0xff]
    %v6555 = vld [vmem:[#allocation13 + $0x98] sm:$0xff]
    %v6556 = vld [vmem:[#allocation13 + $0xa0] sm:$0xff]
    %v6557 = vld [vmem:[#allocation13 + $0xa8] sm:$0xff]
    %v6558 = vld [vmem:[#allocation13 + $0xb0] sm:$0xff]
    %v6559 = vld [vmem:[#allocation13 + $0xb8] sm:$0xff]
    %v6560 = vld [vmem:[#allocation13 + $0xc0] sm:$0xff]
    %v6561 = vld [vmem:[#allocation13 + $0xc8] sm:$0xff]
    %v6562 = vld [vmem:[#allocation13 + $0xd0] sm:$0xff]
    %v6563 = vld [vmem:[#allocation13 + $0xd8] sm:$0xff]
    %v6564 = vld [vmem:[#allocation13 + $0xe0] sm:$0xff]
    %v6565 = vld [vmem:[#allocation13 + $0xe8] sm:$0xff]
    %v6566 = vld [vmem:[#allocation13 + $0xf0] sm:$0xff]
    %v6567 = vld [vmem:[#allocation13 + $0xf8] sm:$0xff]
    %v6568 = vld [vmem:[#allocation13 + $0x100] sm:$0xff]
    %v6569 = vld [vmem:[#allocation13 + $0x108] sm:$0xff]
    %v6570 = vld [vmem:[#allocation13 + $0x110] sm:$0xff]
    %v6571 = vld [vmem:[#allocation13 + $0x118] sm:$0xff]
    %v6572 = vld [vmem:[#allocation13 + $0x120] sm:$0xff]
    %v6573 = vld [vmem:[#allocation13 + $0x128] sm:$0xff]
    %v6574 = vld [vmem:[#allocation13 + $0x130] sm:$0xff]
    %v6575 = vld [vmem:[#allocation13 + $0x138] sm:$0xff]
    %v6576 = vld [vmem:[#allocation13 + $0x140] sm:$0xff]
    %v6577 = vld [vmem:[#allocation13 + $0x148] sm:$0xff]
    %v6578 = vld [vmem:[#allocation13 + $0x150] sm:$0xff]
    %v6579 = vld [vmem:[#allocation13 + $0x158] sm:$0xff]
    %v6580 = vld [vmem:[#allocation13 + $0x160] sm:$0xff]
    %v6581 = vld [vmem:[#allocation13 + $0x168] sm:$0xff]
    %v6582 = vld [vmem:[#allocation13 + $0x170] sm:$0xff]
    %v6583 = vld [vmem:[#allocation13 + $0x178] sm:$0xff]
    %v6584 = vld [vmem:[#allocation13 + $0x180] sm:$0xff]
    %v6585 = vld [vmem:[#allocation13 + $0x188] sm:$0xff]
    %v6586 = vld [vmem:[#allocation13 + $0x190] sm:$0xff]
    %v6587 = vld [vmem:[#allocation13 + $0x198] sm:$0xff]
    %v6588 = vld [vmem:[#allocation13 + $0x1a0] sm:$0xff]
    %v6589 = vld [vmem:[#allocation13 + $0x1a8] sm:$0xff]
    %v6590 = vld [vmem:[#allocation13 + $0x1b0] sm:$0xff]
    %v6591 = vld [vmem:[#allocation13 + $0x1b8] sm:$0xff]
    %v6592 = vld [vmem:[#allocation13 + $0x1c0] sm:$0xff]
    %v6593 = vld [vmem:[#allocation13 + $0x1c8] sm:$0xff]
    %v6594 = vld [vmem:[#allocation13 + $0x1d0] sm:$0xff]
    %v6595 = vld [vmem:[#allocation13 + $0x1d8] sm:$0xff]
    %v6596 = vld [vmem:[#allocation13 + $0x1e0] sm:$0xff]
    %v6597 = vld [vmem:[#allocation13 + $0x1e8] sm:$0xff]
    %v6598 = vld [vmem:[#allocation13 + $0x1f0] sm:$0xff]
    %v6599 = vld [vmem:[#allocation13 + $0x1f8] sm:$0xff]
    %v6600 = vld [vmem:[#allocation15] sm:$0xff]
    %v6601 = vld [vmem:[#allocation15 + $0x8] sm:$0xff]
    %v6602 = vld [vmem:[#allocation15 + $0x10] sm:$0xff]
    %v6603 = vld [vmem:[#allocation15 + $0x18] sm:$0xff]
    %v6604 = vld [vmem:[#allocation19] sm:$0xf]
    %v6605 = vld [vmem:[#allocation21] sm:$0xf]
    %6606 = vmatprep.subr.mxu0 0.0
    %6607 = vmatpush1.msra.mxu0 0.0
    %6608 = vmatprep.subr.mxu0 0.0
    %6609 = vmatpush1.msra.mxu0 0.0
    %6610 = vmatprep.subr.mxu0 0.0
    %6611 = vmatpush1.msra.mxu0 0.0
    %6612 = vmatprep.subr.mxu0 0.0
    %6613 = vmatpush1.msra.mxu0 0.0
    %6614 = vmatprep.subr.mxu0 0.0
    %6615 = vmatpush1.msra.mxu0 0.0
    %6616 = vmatprep.subr.mxu0 0.0
    %6617 = vmatpush1.msra.mxu0 0.0
    %6618 = vmatprep.subr.mxu0 0.0
    %6619 = vmatpush1.msra.mxu0 0.0
    %6620 = vmatprep.subr.mxu0 0.0
    %6621 = vmatpush1.msra.mxu0 0.0
    %6622 = vmatprep.subr.mxu0 0.0
    %6623 = vmatpush1.msra.mxu0 0.0
    %6624 = vmatprep.subr.mxu0 0.0
    %6625 = vmatpush1.msra.mxu0 0.0
    %6626 = vmatprep.subr.mxu0 0.0
    %6627 = vmatpush1.msra.mxu0 0.0
    %6628 = vmatprep.subr.mxu0 0.0
    %6629 = vmatpush1.msra.mxu0 0.0
    %6630 = vmatprep.subr.mxu0 0.0
    %6631 = vmatpush1.msra.mxu0 0.0
    %6632 = vmatprep.subr.mxu0 0.0
    %6633 = vmatpush1.msra.mxu0 0.0
    %6634 = vmatprep.subr.mxu0 %v6533
    %6635 = vmatpush1.msra.mxu0 %v6532
    %6636 = vmatprep.subr.mxu0 %v6529
    %6637 = vmatpush1.msra.mxu0 %v6528
    %6638 = vmatprep.subr.mxu0 0.0
    %6639 = vmatpush2.msra.mxu0 0.0
    %6640 = vmatprep.subr.mxu0 0.0
    %6641 = vmatpush2.msra.mxu0 0.0
    %6642 = vmatprep.subr.mxu0 0.0
    %6643 = vmatpush2.msra.mxu0 0.0
    %6644 = vmatprep.subr.mxu0 0.0
    %6645 = vmatpush2.msra.mxu0 0.0
    %6646 = vmatprep.subr.mxu0 0.0
    %6647 = vmatpush2.msra.mxu0 0.0
    %6648 = vmatprep.subr.mxu0 0.0
    %6649 = vmatpush2.msra.mxu0 0.0
    %6650 = vmatprep.subr.mxu0 0.0
    %6651 = vmatpush2.msra.mxu0 0.0
    %6652 = vmatprep.subr.mxu0 0.0
    %6653 = vmatpush2.msra.mxu0 0.0
    %6654 = vmatprep.subr.mxu0 0.0
    %6655 = vmatpush2.msra.mxu0 0.0
    %6656 = vmatprep.subr.mxu0 0.0
    %6657 = vmatpush2.msra.mxu0 0.0
    %6658 = vmatprep.subr.mxu0 0.0
    %6659 = vmatpush2.msra.mxu0 0.0
    %6660 = vmatprep.subr.mxu0 0.0
    %6661 = vmatpush2.msra.mxu0 0.0
    %6662 = vmatprep.subr.mxu0 0.0
    %6663 = vmatpush2.msra.mxu0 0.0
    %6664 = vmatprep.subr.mxu0 0.0
    %6665 = vmatpush2.msra.mxu0 0.0
    %6666 = vmatprep.subr.mxu0 0.0
    %6667 = vmatpush2.msra.mxu0 0.0
    %6668 = vmatprep.subr.mxu0 0.0
    %6669 = vmatpush2.msra.mxu0 0.0
    %6670 = vmatprep.mubr.f32.mxu0 0.0
    %6671 = vmatmul.mubr.f32.gmra.mxu0 %v2037
    %v6672 = vpop.f32.mrf.mxu0
    %v6673 = vadd.f32 0.0, %v6672
    %v6674 = vpop.f32.mrf.mxu0
    %v6675 = vadd.f32 0.0, %v6674
    %6676 = vdwg.mxu0
    %6677 = vmatprep.subr.mxu0 0.0
    %6678 = vmatpush1.msra.mxu0 0.0
    %6679 = vmatprep.subr.mxu0 0.0
    %6680 = vmatpush1.msra.mxu0 0.0
    %6681 = vmatprep.subr.mxu0 0.0
    %6682 = vmatpush1.msra.mxu0 0.0
    %6683 = vmatprep.subr.mxu0 0.0
    %6684 = vmatpush1.msra.mxu0 0.0
    %6685 = vmatprep.subr.mxu0 0.0
    %6686 = vmatpush1.msra.mxu0 0.0
    %6687 = vmatprep.subr.mxu0 0.0
    %6688 = vmatpush1.msra.mxu0 0.0
    %6689 = vmatprep.subr.mxu0 0.0
    %6690 = vmatpush1.msra.mxu0 0.0
    %6691 = vmatprep.subr.mxu0 0.0
    %6692 = vmatpush1.msra.mxu0 0.0
    %6693 = vmatprep.subr.mxu0 0.0
    %6694 = vmatpush1.msra.mxu0 0.0
    %6695 = vmatprep.subr.mxu0 0.0
    %6696 = vmatpush1.msra.mxu0 0.0
    %6697 = vmatprep.subr.mxu0 0.0
    %6698 = vmatpush1.msra.mxu0 0.0
    %6699 = vmatprep.subr.mxu0 0.0
    %6700 = vmatpush1.msra.mxu0 0.0
    %6701 = vmatprep.subr.mxu0 0.0
    %6702 = vmatpush1.msra.mxu0 0.0
    %6703 = vmatprep.subr.mxu0 0.0
    %6704 = vmatpush1.msra.mxu0 0.0
    %6705 = vmatprep.subr.mxu0 %v6535
    %6706 = vmatpush1.msra.mxu0 %v6534
    %6707 = vmatprep.subr.mxu0 %v6531
    %6708 = vmatpush1.msra.mxu0 %v6530
    %6709 = vmatprep.subr.mxu0 0.0
    %6710 = vmatpush2.msra.mxu0 0.0
    %6711 = vmatprep.subr.mxu0 0.0
    %6712 = vmatpush2.msra.mxu0 0.0
    %6713 = vmatprep.subr.mxu0 0.0
    %6714 = vmatpush2.msra.mxu0 0.0
    %6715 = vmatprep.subr.mxu0 0.0
    %6716 = vmatpush2.msra.mxu0 0.0
    %6717 = vmatprep.subr.mxu0 0.0
    %6718 = vmatpush2.msra.mxu0 0.0
    %6719 = vmatprep.subr.mxu0 0.0
    %6720 = vmatpush2.msra.mxu0 0.0
    %6721 = vmatprep.subr.mxu0 0.0
    %6722 = vmatpush2.msra.mxu0 0.0
    %6723 = vmatprep.subr.mxu0 0.0
    %6724 = vmatpush2.msra.mxu0 0.0
    %6725 = vmatprep.subr.mxu0 0.0
    %6726 = vmatpush2.msra.mxu0 0.0
    %6727 = vmatprep.subr.mxu0 0.0
    %6728 = vmatpush2.msra.mxu0 0.0
    %6729 = vmatprep.subr.mxu0 0.0
    %6730 = vmatpush2.msra.mxu0 0.0
    %6731 = vmatprep.subr.mxu0 0.0
    %6732 = vmatpush2.msra.mxu0 0.0
    %6733 = vmatprep.subr.mxu0 0.0
    %6734 = vmatpush2.msra.mxu0 0.0
    %6735 = vmatprep.subr.mxu0 0.0
    %6736 = vmatpush2.msra.mxu0 0.0
    %6737 = vmatprep.subr.mxu0 0.0
    %6738 = vmatpush2.msra.mxu0 0.0
    %6739 = vmatprep.subr.mxu0 0.0
    %6740 = vmatpush2.msra.mxu0 0.0
    %6741 = vmatprep.mubr.f32.mxu0 0.0
    %6742 = vmatmul.mubr.f32.gmra.mxu0 %v2037
    %v6743 = vpop.f32.mrf.mxu0
    %v6744 = vadd.f32 0.0, %v6743
    %v6745 = vpop.f32.mrf.mxu0
    %v6746 = vadd.f32 0.0, %v6745
    %6747 = vdwg.mxu0
    %v6748 = vmul.f32 %v6528, %v6528
    %v6749 = vmul.f32 %v6529, %v6529
    %v6750 = vmul.f32 %v6530, %v6530
    %v6751 = vmul.f32 %v6531, %v6531
    %v6752 = vmul.f32 %v6532, %v6532
    %v6753 = vmul.f32 %v6533, %v6533
    %v6754 = vmul.f32 %v6534, %v6534
    %v6755 = vmul.f32 %v6535, %v6535
    %6756 = vmatprep.subr.mxu0 0.0
    %6757 = vmatpush1.msra.mxu0 0.0
    %6758 = vmatprep.subr.mxu0 0.0
    %6759 = vmatpush1.msra.mxu0 0.0
    %6760 = vmatprep.subr.mxu0 0.0
    %6761 = vmatpush1.msra.mxu0 0.0
    %6762 = vmatprep.subr.mxu0 0.0
    %6763 = vmatpush1.msra.mxu0 0.0
    %6764 = vmatprep.subr.mxu0 0.0
    %6765 = vmatpush1.msra.mxu0 0.0
    %6766 = vmatprep.subr.mxu0 0.0
    %6767 = vmatpush1.msra.mxu0 0.0
    %6768 = vmatprep.subr.mxu0 0.0
    %6769 = vmatpush1.msra.mxu0 0.0
    %6770 = vmatprep.subr.mxu0 0.0
    %6771 = vmatpush1.msra.mxu0 0.0
    %6772 = vmatprep.subr.mxu0 0.0
    %6773 = vmatpush1.msra.mxu0 0.0
    %6774 = vmatprep.subr.mxu0 0.0
    %6775 = vmatpush1.msra.mxu0 0.0
    %6776 = vmatprep.subr.mxu0 0.0
    %6777 = vmatpush1.msra.mxu0 0.0
    %6778 = vmatprep.subr.mxu0 0.0
    %6779 = vmatpush1.msra.mxu0 0.0
    %6780 = vmatprep.subr.mxu0 0.0
    %6781 = vmatpush1.msra.mxu0 0.0
    %6782 = vmatprep.subr.mxu0 0.0
    %6783 = vmatpush1.msra.mxu0 0.0
    %6784 = vmatprep.subr.mxu0 %v6753
    %6785 = vmatpush1.msra.mxu0 %v6752
    %6786 = vmatprep.subr.mxu0 %v6749
    %6787 = vmatpush1.msra.mxu0 %v6748
    %6788 = vmatprep.subr.mxu0 0.0
    %6789 = vmatpush2.msra.mxu0 0.0
    %6790 = vmatprep.subr.mxu0 0.0
    %6791 = vmatpush2.msra.mxu0 0.0
    %6792 = vmatprep.subr.mxu0 0.0
    %6793 = vmatpush2.msra.mxu0 0.0
    %6794 = vmatprep.subr.mxu0 0.0
    %6795 = vmatpush2.msra.mxu0 0.0
    %6796 = vmatprep.subr.mxu0 0.0
    %6797 = vmatpush2.msra.mxu0 0.0
    %6798 = vmatprep.subr.mxu0 0.0
    %6799 = vmatpush2.msra.mxu0 0.0
    %6800 = vmatprep.subr.mxu0 0.0
    %6801 = vmatpush2.msra.mxu0 0.0
    %6802 = vmatprep.subr.mxu0 0.0
    %6803 = vmatpush2.msra.mxu0 0.0
    %6804 = vmatprep.subr.mxu0 0.0
    %6805 = vmatpush2.msra.mxu0 0.0
    %6806 = vmatprep.subr.mxu0 0.0
    %6807 = vmatpush2.msra.mxu0 0.0
    %6808 = vmatprep.subr.mxu0 0.0
    %6809 = vmatpush2.msra.mxu0 0.0
    %6810 = vmatprep.subr.mxu0 0.0
    %6811 = vmatpush2.msra.mxu0 0.0
    %6812 = vmatprep.subr.mxu0 0.0
    %6813 = vmatpush2.msra.mxu0 0.0
    %6814 = vmatprep.subr.mxu0 0.0
    %6815 = vmatpush2.msra.mxu0 0.0
    %6816 = vmatprep.subr.mxu0 0.0
    %6817 = vmatpush2.msra.mxu0 0.0
    %6818 = vmatprep.subr.mxu0 0.0
    %6819 = vmatpush2.msra.mxu0 0.0
    %6820 = vmatprep.mubr.f32.mxu0 0.0
    %6821 = vmatmul.mubr.f32.gmra.mxu0 %v2037
    %v6822 = vpop.f32.mrf.mxu0
    %v6823 = vadd.f32 0.0, %v6822
    %v6824 = vpop.f32.mrf.mxu0
    %v6825 = vadd.f32 0.0, %v6824
    %6826 = vdwg.mxu0
    %6827 = vmatprep.subr.mxu0 0.0
    %6828 = vmatpush1.msra.mxu0 0.0
    %6829 = vmatprep.subr.mxu0 0.0
    %6830 = vmatpush1.msra.mxu0 0.0
    %6831 = vmatprep.subr.mxu0 0.0
    %6832 = vmatpush1.msra.mxu0 0.0
    %6833 = vmatprep.subr.mxu0 0.0
    %6834 = vmatpush1.msra.mxu0 0.0
    %6835 = vmatprep.subr.mxu0 0.0
    %6836 = vmatpush1.msra.mxu0 0.0
    %6837 = vmatprep.subr.mxu0 0.0
    %6838 = vmatpush1.msra.mxu0 0.0
    %6839 = vmatprep.subr.mxu0 0.0
    %6840 = vmatpush1.msra.mxu0 0.0
    %6841 = vmatprep.subr.mxu0 0.0
    %6842 = vmatpush1.msra.mxu0 0.0
    %6843 = vmatprep.subr.mxu0 0.0
    %6844 = vmatpush1.msra.mxu0 0.0
    %6845 = vmatprep.subr.mxu0 0.0
    %6846 = vmatpush1.msra.mxu0 0.0
    %6847 = vmatprep.subr.mxu0 0.0
    %6848 = vmatpush1.msra.mxu0 0.0
    %6849 = vmatprep.subr.mxu0 0.0
    %6850 = vmatpush1.msra.mxu0 0.0
    %6851 = vmatprep.subr.mxu0 0.0
    %6852 = vmatpush1.msra.mxu0 0.0
    %6853 = vmatprep.subr.mxu0 0.0
    %6854 = vmatpush1.msra.mxu0 0.0
    %6855 = vmatprep.subr.mxu0 %v6755
    %6856 = vmatpush1.msra.mxu0 %v6754
    %6857 = vmatprep.subr.mxu0 %v6751
    %6858 = vmatpush1.msra.mxu0 %v6750
    %6859 = vmatprep.subr.mxu0 0.0
    %6860 = vmatpush2.msra.mxu0 0.0
    %6861 = vmatprep.subr.mxu0 0.0
    %6862 = vmatpush2.msra.mxu0 0.0
    %6863 = vmatprep.subr.mxu0 0.0
    %6864 = vmatpush2.msra.mxu0 0.0
    %6865 = vmatprep.subr.mxu0 0.0
    %6866 = vmatpush2.msra.mxu0 0.0
    %6867 = vmatprep.subr.mxu0 0.0
    %6868 = vmatpush2.msra.mxu0 0.0
    %6869 = vmatprep.subr.mxu0 0.0
    %6870 = vmatpush2.msra.mxu0 0.0
    %6871 = vmatprep.subr.mxu0 0.0
    %6872 = vmatpush2.msra.mxu0 0.0
    %6873 = vmatprep.subr.mxu0 0.0
    %6874 = vmatpush2.msra.mxu0 0.0
    %6875 = vmatprep.subr.mxu0 0.0
    %6876 = vmatpush2.msra.mxu0 0.0
    %6877 = vmatprep.subr.mxu0 0.0
    %6878 = vmatpush2.msra.mxu0 0.0
    %6879 = vmatprep.subr.mxu0 0.0
    %6880 = vmatpush2.msra.mxu0 0.0
    %6881 = vmatprep.subr.mxu0 0.0
    %6882 = vmatpush2.msra.mxu0 0.0
    %6883 = vmatprep.subr.mxu0 0.0
    %6884 = vmatpush2.msra.mxu0 0.0
    %6885 = vmatprep.subr.mxu0 0.0
    %6886 = vmatpush2.msra.mxu0 0.0
    %6887 = vmatprep.subr.mxu0 0.0
    %6888 = vmatpush2.msra.mxu0 0.0
    %6889 = vmatprep.subr.mxu0 0.0
    %6890 = vmatpush2.msra.mxu0 0.0
    %6891 = vmatprep.mubr.f32.mxu0 0.0
    %6892 = vmatmul.mubr.f32.gmra.mxu0 %v2037
    %v6893 = vpop.f32.mrf.mxu0
    %v6894 = vadd.f32 0.0, %v6893
    %v6895 = vpop.f32.mrf.mxu0
    %v6896 = vadd.f32 0.0, %v6895
    %6897 = vdwg.mxu0
    %6898 = vmatprep.subr.mxu0 0.0
    %6899 = vmatpush1.msra.mxu0 %v6551
    %6900 = vmatprep.subr.mxu0 0.0
    %6901 = vmatpush1.msra.mxu0 %v6550
    %6902 = vmatprep.subr.mxu0 0.0
    %6903 = vmatpush1.msra.mxu0 %v6549
    %6904 = vmatprep.subr.mxu0 0.0
    %6905 = vmatpush1.msra.mxu0 %v6548
    %6906 = vmatprep.subr.mxu0 0.0
    %6907 = vmatpush1.msra.mxu0 %v6547
    %6908 = vmatprep.subr.mxu0 0.0
    %6909 = vmatpush1.msra.mxu0 %v6546
    %6910 = vmatprep.subr.mxu0 0.0
    %6911 = vmatpush1.msra.mxu0 %v6545
    %6912 = vmatprep.subr.mxu0 0.0
    %6913 = vmatpush1.msra.mxu0 %v6544
    %6914 = vmatprep.subr.mxu0 0.0
    %6915 = vmatpush1.msra.mxu0 %v6543
    %6916 = vmatprep.subr.mxu0 0.0
    %6917 = vmatpush1.msra.mxu0 %v6542
    %6918 = vmatprep.subr.mxu0 0.0
    %6919 = vmatpush1.msra.mxu0 %v6541
    %6920 = vmatprep.subr.mxu0 0.0
    %6921 = vmatpush1.msra.mxu0 %v6540
    %6922 = vmatprep.subr.mxu0 0.0
    %6923 = vmatpush1.msra.mxu0 %v6539
    %6924 = vmatprep.subr.mxu0 0.0
    %6925 = vmatpush1.msra.mxu0 %v6538
    %6926 = vmatprep.subr.mxu0 0.0
    %6927 = vmatpush1.msra.mxu0 %v6537
    %6928 = vmatprep.subr.mxu0 0.0
    %6929 = vmatpush1.msra.mxu0 %v6536
    %6930 = vmatprep.subr.mxu0 0.0
    %6931 = vmatpush2.msra.mxu0 %v6567
    %6932 = vmatprep.subr.mxu0 0.0
    %6933 = vmatpush2.msra.mxu0 %v6566
    %6934 = vmatprep.subr.mxu0 0.0
    %6935 = vmatpush2.msra.mxu0 %v6565
    %6936 = vmatprep.subr.mxu0 0.0
    %6937 = vmatpush2.msra.mxu0 %v6564
    %6938 = vmatprep.subr.mxu0 0.0
    %6939 = vmatpush2.msra.mxu0 %v6563
    %6940 = vmatprep.subr.mxu0 0.0
    %6941 = vmatpush2.msra.mxu0 %v6562
    %6942 = vmatprep.subr.mxu0 0.0
    %6943 = vmatpush2.msra.mxu0 %v6561
    %6944 = vmatprep.subr.mxu0 0.0
    %6945 = vmatpush2.msra.mxu0 %v6560
    %6946 = vmatprep.subr.mxu0 0.0
    %6947 = vmatpush2.msra.mxu0 %v6559
    %6948 = vmatprep.subr.mxu0 0.0
    %6949 = vmatpush2.msra.mxu0 %v6558
    %6950 = vmatprep.subr.mxu0 0.0
    %6951 = vmatpush2.msra.mxu0 %v6557
    %6952 = vmatprep.subr.mxu0 0.0
    %6953 = vmatpush2.msra.mxu0 %v6556
    %6954 = vmatprep.subr.mxu0 0.0
    %6955 = vmatpush2.msra.mxu0 %v6555
    %6956 = vmatprep.subr.mxu0 0.0
    %6957 = vmatpush2.msra.mxu0 %v6554
    %6958 = vmatprep.subr.mxu0 0.0
    %6959 = vmatpush2.msra.mxu0 %v6553
    %6960 = vmatprep.subr.mxu0 0.0
    %6961 = vmatpush2.msra.mxu0 %v6552
    %6962 = vmatprep.mubr.f32.mxu0 %v6675
    %6963 = vmatmul.mubr.f32.gmra.mxu0 %v6673
    %v6964 = vpop.f32.mrf.mxu0
    %v6965 = vadd.f32 0.0, %v6964
    %v6966 = vpop.f32.mrf.mxu0
    %6967 = vdwg.mxu0
    %6968 = vmatprep.subr.mxu0 0.0
    %6969 = vmatpush1.msra.mxu0 %v6583
    %6970 = vmatprep.subr.mxu0 0.0
    %6971 = vmatpush1.msra.mxu0 %v6582
    %6972 = vmatprep.subr.mxu0 0.0
    %6973 = vmatpush1.msra.mxu0 %v6581
    %6974 = vmatprep.subr.mxu0 0.0
    %6975 = vmatpush1.msra.mxu0 %v6580
    %6976 = vmatprep.subr.mxu0 0.0
    %6977 = vmatpush1.msra.mxu0 %v6579
    %6978 = vmatprep.subr.mxu0 0.0
    %6979 = vmatpush1.msra.mxu0 %v6578
    %6980 = vmatprep.subr.mxu0 0.0
    %6981 = vmatpush1.msra.mxu0 %v6577
    %6982 = vmatprep.subr.mxu0 0.0
    %6983 = vmatpush1.msra.mxu0 %v6576
    %6984 = vmatprep.subr.mxu0 0.0
    %6985 = vmatpush1.msra.mxu0 %v6575
    %6986 = vmatprep.subr.mxu0 0.0
    %6987 = vmatpush1.msra.mxu0 %v6574
    %6988 = vmatprep.subr.mxu0 0.0
    %6989 = vmatpush1.msra.mxu0 %v6573
    %6990 = vmatprep.subr.mxu0 0.0
    %6991 = vmatpush1.msra.mxu0 %v6572
    %6992 = vmatprep.subr.mxu0 0.0
    %6993 = vmatpush1.msra.mxu0 %v6571
    %6994 = vmatprep.subr.mxu0 0.0
    %6995 = vmatpush1.msra.mxu0 %v6570
    %6996 = vmatprep.subr.mxu0 0.0
    %6997 = vmatpush1.msra.mxu0 %v6569
    %6998 = vmatprep.subr.mxu0 0.0
    %6999 = vmatpush1.msra.mxu0 %v6568
    %7000 = vmatprep.subr.mxu0 0.0
    %7001 = vmatpush2.msra.mxu0 %v6599
    %7002 = vmatprep.subr.mxu0 0.0
    %7003 = vmatpush2.msra.mxu0 %v6598
    %7004 = vmatprep.subr.mxu0 0.0
    %7005 = vmatpush2.msra.mxu0 %v6597
    %7006 = vmatprep.subr.mxu0 0.0
    %7007 = vmatpush2.msra.mxu0 %v6596
    %7008 = vmatprep.subr.mxu0 0.0
    %7009 = vmatpush2.msra.mxu0 %v6595
    %7010 = vmatprep.subr.mxu0 0.0
    %7011 = vmatpush2.msra.mxu0 %v6594
    %7012 = vmatprep.subr.mxu0 0.0
    %7013 = vmatpush2.msra.mxu0 %v6593
    %7014 = vmatprep.subr.mxu0 0.0
    %7015 = vmatpush2.msra.mxu0 %v6592
    %7016 = vmatprep.subr.mxu0 0.0
    %7017 = vmatpush2.msra.mxu0 %v6591
    %7018 = vmatprep.subr.mxu0 0.0
    %7019 = vmatpush2.msra.mxu0 %v6590
    %7020 = vmatprep.subr.mxu0 0.0
    %7021 = vmatpush2.msra.mxu0 %v6589
    %7022 = vmatprep.subr.mxu0 0.0
    %7023 = vmatpush2.msra.mxu0 %v6588
    %7024 = vmatprep.subr.mxu0 0.0
    %7025 = vmatpush2.msra.mxu0 %v6587
    %7026 = vmatprep.subr.mxu0 0.0
    %7027 = vmatpush2.msra.mxu0 %v6586
    %7028 = vmatprep.subr.mxu0 0.0
    %7029 = vmatpush2.msra.mxu0 %v6585
    %7030 = vmatprep.subr.mxu0 0.0
    %7031 = vmatpush2.msra.mxu0 %v6584
    %7032 = vmatprep.mubr.f32.mxu0 %v6746
    %7033 = vmatmul.mubr.f32.gmra.mxu0 %v6744
    %v7034 = vpop.f32.mrf.mxu0
    %v7035 = vadd.f32 %v6965, %v7034
    %v7036 = vpop.f32.mrf.mxu0
    %7037 = vdwg.mxu0
    %7038 = vmatprep.subr.mxu0 0.0
    %7039 = vmatpush1.msra.mxu0 %v6551
    %7040 = vmatprep.subr.mxu0 0.0
    %7041 = vmatpush1.msra.mxu0 %v6550
    %7042 = vmatprep.subr.mxu0 0.0
    %7043 = vmatpush1.msra.mxu0 %v6549
    %7044 = vmatprep.subr.mxu0 0.0
    %7045 = vmatpush1.msra.mxu0 %v6548
    %7046 = vmatprep.subr.mxu0 0.0
    %7047 = vmatpush1.msra.mxu0 %v6547
    %7048 = vmatprep.subr.mxu0 0.0
    %7049 = vmatpush1.msra.mxu0 %v6546
    %7050 = vmatprep.subr.mxu0 0.0
    %7051 = vmatpush1.msra.mxu0 %v6545
    %7052 = vmatprep.subr.mxu0 0.0
    %7053 = vmatpush1.msra.mxu0 %v6544
    %7054 = vmatprep.subr.mxu0 0.0
    %7055 = vmatpush1.msra.mxu0 %v6543
    %7056 = vmatprep.subr.mxu0 0.0
    %7057 = vmatpush1.msra.mxu0 %v6542
    %7058 = vmatprep.subr.mxu0 0.0
    %7059 = vmatpush1.msra.mxu0 %v6541
    %7060 = vmatprep.subr.mxu0 0.0
    %7061 = vmatpush1.msra.mxu0 %v6540
    %7062 = vmatprep.subr.mxu0 0.0
    %7063 = vmatpush1.msra.mxu0 %v6539
    %7064 = vmatprep.subr.mxu0 0.0
    %7065 = vmatpush1.msra.mxu0 %v6538
    %7066 = vmatprep.subr.mxu0 0.0
    %7067 = vmatpush1.msra.mxu0 %v6537
    %7068 = vmatprep.subr.mxu0 0.0
    %7069 = vmatpush1.msra.mxu0 %v6536
    %7070 = vmatprep.subr.mxu0 0.0
    %7071 = vmatpush2.msra.mxu0 %v6567
    %7072 = vmatprep.subr.mxu0 0.0
    %7073 = vmatpush2.msra.mxu0 %v6566
    %7074 = vmatprep.subr.mxu0 0.0
    %7075 = vmatpush2.msra.mxu0 %v6565
    %7076 = vmatprep.subr.mxu0 0.0
    %7077 = vmatpush2.msra.mxu0 %v6564
    %7078 = vmatprep.subr.mxu0 0.0
    %7079 = vmatpush2.msra.mxu0 %v6563
    %7080 = vmatprep.subr.mxu0 0.0
    %7081 = vmatpush2.msra.mxu0 %v6562
    %7082 = vmatprep.subr.mxu0 0.0
    %7083 = vmatpush2.msra.mxu0 %v6561
    %7084 = vmatprep.subr.mxu0 0.0
    %7085 = vmatpush2.msra.mxu0 %v6560
    %7086 = vmatprep.subr.mxu0 0.0
    %7087 = vmatpush2.msra.mxu0 %v6559
    %7088 = vmatprep.subr.mxu0 0.0
    %7089 = vmatpush2.msra.mxu0 %v6558
    %7090 = vmatprep.subr.mxu0 0.0
    %7091 = vmatpush2.msra.mxu0 %v6557
    %7092 = vmatprep.subr.mxu0 0.0
    %7093 = vmatpush2.msra.mxu0 %v6556
    %7094 = vmatprep.subr.mxu0 0.0
    %7095 = vmatpush2.msra.mxu0 %v6555
    %7096 = vmatprep.subr.mxu0 0.0
    %7097 = vmatpush2.msra.mxu0 %v6554
    %7098 = vmatprep.subr.mxu0 0.0
    %7099 = vmatpush2.msra.mxu0 %v6553
    %7100 = vmatprep.subr.mxu0 0.0
    %7101 = vmatpush2.msra.mxu0 %v6552
    %7102 = vmatprep.mubr.f32.mxu0 %v6825
    %7103 = vmatmul.mubr.f32.gmra.mxu0 %v6823
    %v7104 = vpop.f32.mrf.mxu0
    %v7105 = vadd.f32 0.0, %v7104
    %v7106 = vpop.f32.mrf.mxu0
    %7107 = vdwg.mxu0
    %7108 = vmatprep.subr.mxu0 0.0
    %7109 = vmatpush1.msra.mxu0 %v6583
    %7110 = vmatprep.subr.mxu0 0.0
    %7111 = vmatpush1.msra.mxu0 %v6582
    %7112 = vmatprep.subr.mxu0 0.0
    %7113 = vmatpush1.msra.mxu0 %v6581
    %7114 = vmatprep.subr.mxu0 0.0
    %7115 = vmatpush1.msra.mxu0 %v6580
    %7116 = vmatprep.subr.mxu0 0.0
    %7117 = vmatpush1.msra.mxu0 %v6579
    %7118 = vmatprep.subr.mxu0 0.0
    %7119 = vmatpush1.msra.mxu0 %v6578
    %7120 = vmatprep.subr.mxu0 0.0
    %7121 = vmatpush1.msra.mxu0 %v6577
    %7122 = vmatprep.subr.mxu0 0.0
    %7123 = vmatpush1.msra.mxu0 %v6576
    %7124 = vmatprep.subr.mxu0 0.0
    %7125 = vmatpush1.msra.mxu0 %v6575
    %7126 = vmatprep.subr.mxu0 0.0
    %7127 = vmatpush1.msra.mxu0 %v6574
    %7128 = vmatprep.subr.mxu0 0.0
    %7129 = vmatpush1.msra.mxu0 %v6573
    %7130 = vmatprep.subr.mxu0 0.0
    %7131 = vmatpush1.msra.mxu0 %v6572
    %7132 = vmatprep.subr.mxu0 0.0
    %7133 = vmatpush1.msra.mxu0 %v6571
    %7134 = vmatprep.subr.mxu0 0.0
    %7135 = vmatpush1.msra.mxu0 %v6570
    %7136 = vmatprep.subr.mxu0 0.0
    %7137 = vmatpush1.msra.mxu0 %v6569
    %7138 = vmatprep.subr.mxu0 0.0
    %7139 = vmatpush1.msra.mxu0 %v6568
    %7140 = vmatprep.subr.mxu0 0.0
    %7141 = vmatpush2.msra.mxu0 %v6599
    %7142 = vmatprep.subr.mxu0 0.0
    %7143 = vmatpush2.msra.mxu0 %v6598
    %7144 = vmatprep.subr.mxu0 0.0
    %7145 = vmatpush2.msra.mxu0 %v6597
    %7146 = vmatprep.subr.mxu0 0.0
    %7147 = vmatpush2.msra.mxu0 %v6596
    %7148 = vmatprep.subr.mxu0 0.0
    %7149 = vmatpush2.msra.mxu0 %v6595
    %7150 = vmatprep.subr.mxu0 0.0
    %7151 = vmatpush2.msra.mxu0 %v6594
    %7152 = vmatprep.subr.mxu0 0.0
    %7153 = vmatpush2.msra.mxu0 %v6593
    %7154 = vmatprep.subr.mxu0 0.0
    %7155 = vmatpush2.msra.mxu0 %v6592
    %7156 = vmatprep.subr.mxu0 0.0
    %7157 = vmatpush2.msra.mxu0 %v6591
    %7158 = vmatprep.subr.mxu0 0.0
    %7159 = vmatpush2.msra.mxu0 %v6590
    %7160 = vmatprep.subr.mxu0 0.0
    %7161 = vmatpush2.msra.mxu0 %v6589
    %7162 = vmatprep.subr.mxu0 0.0
    %7163 = vmatpush2.msra.mxu0 %v6588
    %7164 = vmatprep.subr.mxu0 0.0
    %7165 = vmatpush2.msra.mxu0 %v6587
    %7166 = vmatprep.subr.mxu0 0.0
    %7167 = vmatpush2.msra.mxu0 %v6586
    %7168 = vmatprep.subr.mxu0 0.0
    %7169 = vmatpush2.msra.mxu0 %v6585
    %7170 = vmatprep.subr.mxu0 0.0
    %7171 = vmatpush2.msra.mxu0 %v6584
    %7172 = vmatprep.mubr.f32.mxu0 %v6896
    %7173 = vmatmul.mubr.f32.gmra.mxu0 %v6894
    %v7174 = vpop.f32.mrf.mxu0
    %v7175 = vadd.f32 %v7105, %v7174
    %v7176 = vpop.f32.mrf.mxu0
    %7177 = vdwg.mxu0
    %v7178 = vmul.f32 %v7035, 0.001953125
    %v7179 = vmul.f32 %v7175, 0.001953125
    %v7180 = vmul.f32 %v7178, %v7178
    %v7181 = vsub.f32 %v7179, %v7180
    %v7182 = vadd.f32 %v7181, 1e-05
    %v7183 = vrsqrt.pop %v7182
    %v7185 = vsel %vm2617, %v7178, 0
    %7187 = vmatprep.subr.mxu0 0.0
    %7188 = vmatpush1.msra.mxu0 0.0
    %7189 = vmatprep.subr.mxu0 0.0
    %7190 = vmatpush1.msra.mxu0 0.0
    %7191 = vmatprep.subr.mxu0 0.0
    %7192 = vmatpush1.msra.mxu0 0.0
    %7193 = vmatprep.subr.mxu0 0.0
    %7194 = vmatpush1.msra.mxu0 0.0
    %7195 = vmatprep.subr.mxu0 0.0
    %7196 = vmatpush1.msra.mxu0 0.0
    %7197 = vmatprep.subr.mxu0 0.0
    %7198 = vmatpush1.msra.mxu0 0.0
    %7199 = vmatprep.subr.mxu0 0.0
    %7200 = vmatpush1.msra.mxu0 0.0
    %7201 = vmatprep.subr.mxu0 0.0
    %7202 = vmatpush1.msra.mxu0 0.0
    %7203 = vmatprep.subr.mxu0 0.0
    %7204 = vmatpush1.msra.mxu0 0.0
    %7205 = vmatprep.subr.mxu0 0.0
    %7206 = vmatpush1.msra.mxu0 0.0
    %7207 = vmatprep.subr.mxu0 0.0
    %7208 = vmatpush1.msra.mxu0 0.0
    %7209 = vmatprep.subr.mxu0 0.0
    %7210 = vmatpush1.msra.mxu0 0.0
    %7211 = vmatprep.subr.mxu0 0.0
    %7212 = vmatpush1.msra.mxu0 0.0
    %7213 = vmatprep.subr.mxu0 0.0
    %7214 = vmatpush1.msra.mxu0 0.0
    %7215 = vmatprep.subr.mxu0 0.0
    %7216 = vmatpush1.msra.mxu0 0.0
    %7217 = vmatprep.subr.mxu0 %v6601
    %7218 = vmatpush1.msra.mxu0 %v6600
    %7219 = vmatprep.subr.mxu0 0.0
    %7220 = vmatpush2.msra.mxu0 0.0
    %7221 = vmatprep.subr.mxu0 0.0
    %7222 = vmatpush2.msra.mxu0 0.0
    %7223 = vmatprep.subr.mxu0 0.0
    %7224 = vmatpush2.msra.mxu0 0.0
    %7225 = vmatprep.subr.mxu0 0.0
    %7226 = vmatpush2.msra.mxu0 0.0
    %7227 = vmatprep.subr.mxu0 0.0
    %7228 = vmatpush2.msra.mxu0 0.0
    %7229 = vmatprep.subr.mxu0 0.0
    %7230 = vmatpush2.msra.mxu0 0.0
    %7231 = vmatprep.subr.mxu0 0.0
    %7232 = vmatpush2.msra.mxu0 0.0
    %7233 = vmatprep.subr.mxu0 0.0
    %7234 = vmatpush2.msra.mxu0 0.0
    %7235 = vmatprep.subr.mxu0 0.0
    %7236 = vmatpush2.msra.mxu0 0.0
    %7237 = vmatprep.subr.mxu0 0.0
    %7238 = vmatpush2.msra.mxu0 0.0
    %7239 = vmatprep.subr.mxu0 0.0
    %7240 = vmatpush2.msra.mxu0 0.0
    %7241 = vmatprep.subr.mxu0 0.0
    %7242 = vmatpush2.msra.mxu0 0.0
    %7243 = vmatprep.subr.mxu0 0.0
    %7244 = vmatpush2.msra.mxu0 0.0
    %7245 = vmatprep.subr.mxu0 0.0
    %7246 = vmatpush2.msra.mxu0 0.0
    %7247 = vmatprep.subr.mxu0 0.0
    %7248 = vmatpush2.msra.mxu0 0.0
    %7249 = vmatprep.subr.mxu0 0.0
    %7250 = vmatpush2.msra.mxu0 0.0
    %7251 = vmatprep.mubr.f32.mxu0 0.0
    %7252 = vmatmul.mubr.f32.gmra.mxu0 %v7185
    %v7253 = vpop.f32.mrf.mxu0
    %v7254 = vadd.f32 0.0, %v7253
    %v7255 = vpop.f32.mrf.mxu0
    %v7256 = vadd.f32 0.0, %v7255
    %7257 = vdwg.mxu0
    %7258 = vmatprep.subr.mxu0 0.0
    %7259 = vmatpush1.msra.mxu0 0.0
    %7260 = vmatprep.subr.mxu0 0.0
    %7261 = vmatpush1.msra.mxu0 0.0
    %7262 = vmatprep.subr.mxu0 0.0
    %7263 = vmatpush1.msra.mxu0 0.0
    %7264 = vmatprep.subr.mxu0 0.0
    %7265 = vmatpush1.msra.mxu0 0.0
    %7266 = vmatprep.subr.mxu0 0.0
    %7267 = vmatpush1.msra.mxu0 0.0
    %7268 = vmatprep.subr.mxu0 0.0
    %7269 = vmatpush1.msra.mxu0 0.0
    %7270 = vmatprep.subr.mxu0 0.0
    %7271 = vmatpush1.msra.mxu0 0.0
    %7272 = vmatprep.subr.mxu0 0.0
    %7273 = vmatpush1.msra.mxu0 0.0
    %7274 = vmatprep.subr.mxu0 0.0
    %7275 = vmatpush1.msra.mxu0 0.0
    %7276 = vmatprep.subr.mxu0 0.0
    %7277 = vmatpush1.msra.mxu0 0.0
    %7278 = vmatprep.subr.mxu0 0.0
    %7279 = vmatpush1.msra.mxu0 0.0
    %7280 = vmatprep.subr.mxu0 0.0
    %7281 = vmatpush1.msra.mxu0 0.0
    %7282 = vmatprep.subr.mxu0 0.0
    %7283 = vmatpush1.msra.mxu0 0.0
    %7284 = vmatprep.subr.mxu0 0.0
    %7285 = vmatpush1.msra.mxu0 0.0
    %7286 = vmatprep.subr.mxu0 0.0
    %7287 = vmatpush1.msra.mxu0 0.0
    %7288 = vmatprep.subr.mxu0 %v6603
    %7289 = vmatpush1.msra.mxu0 %v6602
    %7290 = vmatprep.subr.mxu0 0.0
    %7291 = vmatpush2.msra.mxu0 0.0
    %7292 = vmatprep.subr.mxu0 0.0
    %7293 = vmatpush2.msra.mxu0 0.0
    %7294 = vmatprep.subr.mxu0 0.0
    %7295 = vmatpush2.msra.mxu0 0.0
    %7296 = vmatprep.subr.mxu0 0.0
    %7297 = vmatpush2.msra.mxu0 0.0
    %7298 = vmatprep.subr.mxu0 0.0
    %7299 = vmatpush2.msra.mxu0 0.0
    %7300 = vmatprep.subr.mxu0 0.0
    %7301 = vmatpush2.msra.mxu0 0.0
    %7302 = vmatprep.subr.mxu0 0.0
    %7303 = vmatpush2.msra.mxu0 0.0
    %7304 = vmatprep.subr.mxu0 0.0
    %7305 = vmatpush2.msra.mxu0 0.0
    %7306 = vmatprep.subr.mxu0 0.0
    %7307 = vmatpush2.msra.mxu0 0.0
    %7308 = vmatprep.subr.mxu0 0.0
    %7309 = vmatpush2.msra.mxu0 0.0
    %7310 = vmatprep.subr.mxu0 0.0
    %7311 = vmatpush2.msra.mxu0 0.0
    %7312 = vmatprep.subr.mxu0 0.0
    %7313 = vmatpush2.msra.mxu0 0.0
    %7314 = vmatprep.subr.mxu0 0.0
    %7315 = vmatpush2.msra.mxu0 0.0
    %7316 = vmatprep.subr.mxu0 0.0
    %7317 = vmatpush2.msra.mxu0 0.0
    %7318 = vmatprep.subr.mxu0 0.0
    %7319 = vmatpush2.msra.mxu0 0.0
    %7320 = vmatprep.subr.mxu0 0.0
    %7321 = vmatpush2.msra.mxu0 0.0
    %7322 = vmatprep.mubr.f32.mxu0 0.0
    %7323 = vmatmul.mubr.f32.gmra.mxu0 %v7185
    %v7324 = vpop.f32.mrf.mxu0
    %v7325 = vadd.f32 0.0, %v7324
    %v7326 = vpop.f32.mrf.mxu0
    %v7327 = vadd.f32 0.0, %v7326
    %7328 = vdwg.mxu0
    %v7330 = vsel %vm2770, %v7254, 0
    %v7333 = vsel %vm2770, %v7256, 0
    %v7336 = vsel %vm2770, %v7325, 0
    %v7339 = vsel %vm2770, %v7327, 0
    %7341 = vmatprep.subr.mxu0 0.0
    %7342 = vmatpush1.msra.mxu0 0.0
    %7343 = vmatprep.subr.mxu0 0.0
    %7344 = vmatpush1.msra.mxu0 0.0
    %7345 = vmatprep.subr.mxu0 0.0
    %7346 = vmatpush1.msra.mxu0 0.0
    %7347 = vmatprep.subr.mxu0 0.0
    %7348 = vmatpush1.msra.mxu0 0.0
    %7349 = vmatprep.subr.mxu0 0.0
    %7350 = vmatpush1.msra.mxu0 0.0
    %7351 = vmatprep.subr.mxu0 0.0
    %7352 = vmatpush1.msra.mxu0 0.0
    %7353 = vmatprep.subr.mxu0 0.0
    %7354 = vmatpush1.msra.mxu0 0.0
    %7355 = vmatprep.subr.mxu0 0.0
    %7356 = vmatpush1.msra.mxu0 0.0
    %7357 = vmatprep.subr.mxu0 0.0
    %7358 = vmatpush1.msra.mxu0 0.0
    %7359 = vmatprep.subr.mxu0 0.0
    %7360 = vmatpush1.msra.mxu0 0.0
    %7361 = vmatprep.subr.mxu0 0.0
    %7362 = vmatpush1.msra.mxu0 0.0
    %7363 = vmatprep.subr.mxu0 0.0
    %7364 = vmatpush1.msra.mxu0 0.0
    %7365 = vmatprep.subr.mxu0 0.0
    %7366 = vmatpush1.msra.mxu0 0.0
    %7367 = vmatprep.subr.mxu0 0.0
    %7368 = vmatpush1.msra.mxu0 0.0
    %7369 = vmatprep.subr.mxu0 0.0
    %7370 = vmatpush1.msra.mxu0 0.0
    %7371 = vmatprep.subr.mxu0 %v7333
    %7372 = vmatpush1.msra.mxu0 %v7330
    %7373 = vmatprep.subr.mxu0 0.0
    %7374 = vmatpush2.msra.mxu0 0.0
    %7375 = vmatprep.subr.mxu0 0.0
    %7376 = vmatpush2.msra.mxu0 0.0
    %7377 = vmatprep.subr.mxu0 0.0
    %7378 = vmatpush2.msra.mxu0 0.0
    %7379 = vmatprep.subr.mxu0 0.0
    %7380 = vmatpush2.msra.mxu0 0.0
    %7381 = vmatprep.subr.mxu0 0.0
    %7382 = vmatpush2.msra.mxu0 0.0
    %7383 = vmatprep.subr.mxu0 0.0
    %7384 = vmatpush2.msra.mxu0 0.0
    %7385 = vmatprep.subr.mxu0 0.0
    %7386 = vmatpush2.msra.mxu0 0.0
    %7387 = vmatprep.subr.mxu0 0.0
    %7388 = vmatpush2.msra.mxu0 0.0
    %7389 = vmatprep.subr.mxu0 0.0
    %7390 = vmatpush2.msra.mxu0 0.0
    %7391 = vmatprep.subr.mxu0 0.0
    %7392 = vmatpush2.msra.mxu0 0.0
    %7393 = vmatprep.subr.mxu0 0.0
    %7394 = vmatpush2.msra.mxu0 0.0
    %7395 = vmatprep.subr.mxu0 0.0
    %7396 = vmatpush2.msra.mxu0 0.0
    %7397 = vmatprep.subr.mxu0 0.0
    %7398 = vmatpush2.msra.mxu0 0.0
    %7399 = vmatprep.subr.mxu0 0.0
    %7400 = vmatpush2.msra.mxu0 0.0
    %7401 = vmatprep.subr.mxu0 0.0
    %7402 = vmatpush2.msra.mxu0 0.0
    %7403 = vmatprep.subr.mxu0 0.0
    %7404 = vmatpush2.msra.mxu0 0.0
    %7405 = vmatprep.mubr.f32.mxu0 0.0
    %7406 = vmatmul.mubr.f32.gmra.mxu0 %v2765
    %v7407 = vpop.f32.mrf.mxu0
    %v7408 = vadd.f32 0.0, %v7407
    %v7409 = vpop.f32.mrf.mxu0
    %v7410 = vadd.f32 0.0, %v7409
    %7411 = vmatprep.mubr.f32.mxu0 0.0
    %7412 = vmatmul.mubr.f32.gmra.mxu0 %v2768
    %v7413 = vpop.f32.mrf.mxu0
    %v7414 = vadd.f32 0.0, %v7413
    %v7415 = vpop.f32.mrf.mxu0
    %v7416 = vadd.f32 0.0, %v7415
    %7417 = vdwg.mxu0
    %7418 = vmatprep.subr.mxu0 0.0
    %7419 = vmatpush1.msra.mxu0 0.0
    %7420 = vmatprep.subr.mxu0 0.0
    %7421 = vmatpush1.msra.mxu0 0.0
    %7422 = vmatprep.subr.mxu0 0.0
    %7423 = vmatpush1.msra.mxu0 0.0
    %7424 = vmatprep.subr.mxu0 0.0
    %7425 = vmatpush1.msra.mxu0 0.0
    %7426 = vmatprep.subr.mxu0 0.0
    %7427 = vmatpush1.msra.mxu0 0.0
    %7428 = vmatprep.subr.mxu0 0.0
    %7429 = vmatpush1.msra.mxu0 0.0
    %7430 = vmatprep.subr.mxu0 0.0
    %7431 = vmatpush1.msra.mxu0 0.0
    %7432 = vmatprep.subr.mxu0 0.0
    %7433 = vmatpush1.msra.mxu0 0.0
    %7434 = vmatprep.subr.mxu0 0.0
    %7435 = vmatpush1.msra.mxu0 0.0
    %7436 = vmatprep.subr.mxu0 0.0
    %7437 = vmatpush1.msra.mxu0 0.0
    %7438 = vmatprep.subr.mxu0 0.0
    %7439 = vmatpush1.msra.mxu0 0.0
    %7440 = vmatprep.subr.mxu0 0.0
    %7441 = vmatpush1.msra.mxu0 0.0
    %7442 = vmatprep.subr.mxu0 0.0
    %7443 = vmatpush1.msra.mxu0 0.0
    %7444 = vmatprep.subr.mxu0 0.0
    %7445 = vmatpush1.msra.mxu0 0.0
    %7446 = vmatprep.subr.mxu0 0.0
    %7447 = vmatpush1.msra.mxu0 0.0
    %7448 = vmatprep.subr.mxu0 %v7339
    %7449 = vmatpush1.msra.mxu0 %v7336
    %7450 = vmatprep.subr.mxu0 0.0
    %7451 = vmatpush2.msra.mxu0 0.0
    %7452 = vmatprep.subr.mxu0 0.0
    %7453 = vmatpush2.msra.mxu0 0.0
    %7454 = vmatprep.subr.mxu0 0.0
    %7455 = vmatpush2.msra.mxu0 0.0
    %7456 = vmatprep.subr.mxu0 0.0
    %7457 = vmatpush2.msra.mxu0 0.0
    %7458 = vmatprep.subr.mxu0 0.0
    %7459 = vmatpush2.msra.mxu0 0.0
    %7460 = vmatprep.subr.mxu0 0.0
    %7461 = vmatpush2.msra.mxu0 0.0
    %7462 = vmatprep.subr.mxu0 0.0
    %7463 = vmatpush2.msra.mxu0 0.0
    %7464 = vmatprep.subr.mxu0 0.0
    %7465 = vmatpush2.msra.mxu0 0.0
    %7466 = vmatprep.subr.mxu0 0.0
    %7467 = vmatpush2.msra.mxu0 0.0
    %7468 = vmatprep.subr.mxu0 0.0
    %7469 = vmatpush2.msra.mxu0 0.0
    %7470 = vmatprep.subr.mxu0 0.0
    %7471 = vmatpush2.msra.mxu0 0.0
    %7472 = vmatprep.subr.mxu0 0.0
    %7473 = vmatpush2.msra.mxu0 0.0
    %7474 = vmatprep.subr.mxu0 0.0
    %7475 = vmatpush2.msra.mxu0 0.0
    %7476 = vmatprep.subr.mxu0 0.0
    %7477 = vmatpush2.msra.mxu0 0.0
    %7478 = vmatprep.subr.mxu0 0.0
    %7479 = vmatpush2.msra.mxu0 0.0
    %7480 = vmatprep.subr.mxu0 0.0
    %7481 = vmatpush2.msra.mxu0 0.0
    %7482 = vmatprep.mubr.f32.mxu0 0.0
    %7483 = vmatmul.mubr.f32.gmra.mxu0 %v2765
    %v7484 = vpop.f32.mrf.mxu0
    %v7485 = vadd.f32 0.0, %v7484
    %v7486 = vpop.f32.mrf.mxu0
    %v7487 = vadd.f32 0.0, %v7486
    %7488 = vmatprep.mubr.f32.mxu0 0.0
    %7489 = vmatmul.mubr.f32.gmra.mxu0 %v2768
    %v7490 = vpop.f32.mrf.mxu0
    %v7491 = vadd.f32 0.0, %v7490
    %v7492 = vpop.f32.mrf.mxu0
    %v7493 = vadd.f32 0.0, %v7492
    %7494 = vdwg.mxu0
    %v7496 = vsel %vm2617, %v7183, 0
    %7498 = vmatprep.subr.mxu0 0.0
    %7499 = vmatpush1.msra.mxu0 0.0
    %7500 = vmatprep.subr.mxu0 0.0
    %7501 = vmatpush1.msra.mxu0 0.0
    %7502 = vmatprep.subr.mxu0 0.0
    %7503 = vmatpush1.msra.mxu0 0.0
    %7504 = vmatprep.subr.mxu0 0.0
    %7505 = vmatpush1.msra.mxu0 0.0
    %7506 = vmatprep.subr.mxu0 0.0
    %7507 = vmatpush1.msra.mxu0 0.0
    %7508 = vmatprep.subr.mxu0 0.0
    %7509 = vmatpush1.msra.mxu0 0.0
    %7510 = vmatprep.subr.mxu0 0.0
    %7511 = vmatpush1.msra.mxu0 0.0
    %7512 = vmatprep.subr.mxu0 0.0
    %7513 = vmatpush1.msra.mxu0 0.0
    %7514 = vmatprep.subr.mxu0 0.0
    %7515 = vmatpush1.msra.mxu0 0.0
    %7516 = vmatprep.subr.mxu0 0.0
    %7517 = vmatpush1.msra.mxu0 0.0
    %7518 = vmatprep.subr.mxu0 0.0
    %7519 = vmatpush1.msra.mxu0 0.0
    %7520 = vmatprep.subr.mxu0 0.0
    %7521 = vmatpush1.msra.mxu0 0.0
    %7522 = vmatprep.subr.mxu0 0.0
    %7523 = vmatpush1.msra.mxu0 0.0
    %7524 = vmatprep.subr.mxu0 0.0
    %7525 = vmatpush1.msra.mxu0 0.0
    %7526 = vmatprep.subr.mxu0 0.0
    %7527 = vmatpush1.msra.mxu0 0.0
    %7528 = vmatprep.subr.mxu0 %v6601
    %7529 = vmatpush1.msra.mxu0 %v6600
    %7530 = vmatprep.subr.mxu0 0.0
    %7531 = vmatpush2.msra.mxu0 0.0
    %7532 = vmatprep.subr.mxu0 0.0
    %7533 = vmatpush2.msra.mxu0 0.0
    %7534 = vmatprep.subr.mxu0 0.0
    %7535 = vmatpush2.msra.mxu0 0.0
    %7536 = vmatprep.subr.mxu0 0.0
    %7537 = vmatpush2.msra.mxu0 0.0
    %7538 = vmatprep.subr.mxu0 0.0
    %7539 = vmatpush2.msra.mxu0 0.0
    %7540 = vmatprep.subr.mxu0 0.0
    %7541 = vmatpush2.msra.mxu0 0.0
    %7542 = vmatprep.subr.mxu0 0.0
    %7543 = vmatpush2.msra.mxu0 0.0
    %7544 = vmatprep.subr.mxu0 0.0
    %7545 = vmatpush2.msra.mxu0 0.0
    %7546 = vmatprep.subr.mxu0 0.0
    %7547 = vmatpush2.msra.mxu0 0.0
    %7548 = vmatprep.subr.mxu0 0.0
    %7549 = vmatpush2.msra.mxu0 0.0
    %7550 = vmatprep.subr.mxu0 0.0
    %7551 = vmatpush2.msra.mxu0 0.0
    %7552 = vmatprep.subr.mxu0 0.0
    %7553 = vmatpush2.msra.mxu0 0.0
    %7554 = vmatprep.subr.mxu0 0.0
    %7555 = vmatpush2.msra.mxu0 0.0
    %7556 = vmatprep.subr.mxu0 0.0
    %7557 = vmatpush2.msra.mxu0 0.0
    %7558 = vmatprep.subr.mxu0 0.0
    %7559 = vmatpush2.msra.mxu0 0.0
    %7560 = vmatprep.subr.mxu0 0.0
    %7561 = vmatpush2.msra.mxu0 0.0
    %7562 = vmatprep.mubr.f32.mxu0 0.0
    %7563 = vmatmul.mubr.f32.gmra.mxu0 %v7496
    %v7564 = vpop.f32.mrf.mxu0
    %v7565 = vadd.f32 0.0, %v7564
    %v7566 = vpop.f32.mrf.mxu0
    %v7567 = vadd.f32 0.0, %v7566
    %7568 = vdwg.mxu0
    %7569 = vmatprep.subr.mxu0 0.0
    %7570 = vmatpush1.msra.mxu0 0.0
    %7571 = vmatprep.subr.mxu0 0.0
    %7572 = vmatpush1.msra.mxu0 0.0
    %7573 = vmatprep.subr.mxu0 0.0
    %7574 = vmatpush1.msra.mxu0 0.0
    %7575 = vmatprep.subr.mxu0 0.0
    %7576 = vmatpush1.msra.mxu0 0.0
    %7577 = vmatprep.subr.mxu0 0.0
    %7578 = vmatpush1.msra.mxu0 0.0
    %7579 = vmatprep.subr.mxu0 0.0
    %7580 = vmatpush1.msra.mxu0 0.0
    %7581 = vmatprep.subr.mxu0 0.0
    %7582 = vmatpush1.msra.mxu0 0.0
    %7583 = vmatprep.subr.mxu0 0.0
    %7584 = vmatpush1.msra.mxu0 0.0
    %7585 = vmatprep.subr.mxu0 0.0
    %7586 = vmatpush1.msra.mxu0 0.0
    %7587 = vmatprep.subr.mxu0 0.0
    %7588 = vmatpush1.msra.mxu0 0.0
    %7589 = vmatprep.subr.mxu0 0.0
    %7590 = vmatpush1.msra.mxu0 0.0
    %7591 = vmatprep.subr.mxu0 0.0
    %7592 = vmatpush1.msra.mxu0 0.0
    %7593 = vmatprep.subr.mxu0 0.0
    %7594 = vmatpush1.msra.mxu0 0.0
    %7595 = vmatprep.subr.mxu0 0.0
    %7596 = vmatpush1.msra.mxu0 0.0
    %7597 = vmatprep.subr.mxu0 0.0
    %7598 = vmatpush1.msra.mxu0 0.0
    %7599 = vmatprep.subr.mxu0 %v6603
    %7600 = vmatpush1.msra.mxu0 %v6602
    %7601 = vmatprep.subr.mxu0 0.0
    %7602 = vmatpush2.msra.mxu0 0.0
    %7603 = vmatprep.subr.mxu0 0.0
    %7604 = vmatpush2.msra.mxu0 0.0
    %7605 = vmatprep.subr.mxu0 0.0
    %7606 = vmatpush2.msra.mxu0 0.0
    %7607 = vmatprep.subr.mxu0 0.0
    %7608 = vmatpush2.msra.mxu0 0.0
    %7609 = vmatprep.subr.mxu0 0.0
    %7610 = vmatpush2.msra.mxu0 0.0
    %7611 = vmatprep.subr.mxu0 0.0
    %7612 = vmatpush2.msra.mxu0 0.0
    %7613 = vmatprep.subr.mxu0 0.0
    %7614 = vmatpush2.msra.mxu0 0.0
    %7615 = vmatprep.subr.mxu0 0.0
    %7616 = vmatpush2.msra.mxu0 0.0
    %7617 = vmatprep.subr.mxu0 0.0
    %7618 = vmatpush2.msra.mxu0 0.0
    %7619 = vmatprep.subr.mxu0 0.0
    %7620 = vmatpush2.msra.mxu0 0.0
    %7621 = vmatprep.subr.mxu0 0.0
    %7622 = vmatpush2.msra.mxu0 0.0
    %7623 = vmatprep.subr.mxu0 0.0
    %7624 = vmatpush2.msra.mxu0 0.0
    %7625 = vmatprep.subr.mxu0 0.0
    %7626 = vmatpush2.msra.mxu0 0.0
    %7627 = vmatprep.subr.mxu0 0.0
    %7628 = vmatpush2.msra.mxu0 0.0
    %7629 = vmatprep.subr.mxu0 0.0
    %7630 = vmatpush2.msra.mxu0 0.0
    %7631 = vmatprep.subr.mxu0 0.0
    %7632 = vmatpush2.msra.mxu0 0.0
    %7633 = vmatprep.mubr.f32.mxu0 0.0
    %7634 = vmatmul.mubr.f32.gmra.mxu0 %v7496
    %v7635 = vpop.f32.mrf.mxu0
    %v7636 = vadd.f32 0.0, %v7635
    %v7637 = vpop.f32.mrf.mxu0
    %v7638 = vadd.f32 0.0, %v7637
    %7639 = vdwg.mxu0
    %v7641 = vsel %vm2770, %v7565, 0
    %v7644 = vsel %vm2770, %v7567, 0
    %v7647 = vsel %vm2770, %v7636, 0
    %v7650 = vsel %vm2770, %v7638, 0
    %7652 = vmatprep.subr.mxu0 0.0
    %7653 = vmatpush1.msra.mxu0 0.0
    %7654 = vmatprep.subr.mxu0 0.0
    %7655 = vmatpush1.msra.mxu0 0.0
    %7656 = vmatprep.subr.mxu0 0.0
    %7657 = vmatpush1.msra.mxu0 0.0
    %7658 = vmatprep.subr.mxu0 0.0
    %7659 = vmatpush1.msra.mxu0 0.0
    %7660 = vmatprep.subr.mxu0 0.0
    %7661 = vmatpush1.msra.mxu0 0.0
    %7662 = vmatprep.subr.mxu0 0.0
    %7663 = vmatpush1.msra.mxu0 0.0
    %7664 = vmatprep.subr.mxu0 0.0
    %7665 = vmatpush1.msra.mxu0 0.0
    %7666 = vmatprep.subr.mxu0 0.0
    %7667 = vmatpush1.msra.mxu0 0.0
    %7668 = vmatprep.subr.mxu0 0.0
    %7669 = vmatpush1.msra.mxu0 0.0
    %7670 = vmatprep.subr.mxu0 0.0
    %7671 = vmatpush1.msra.mxu0 0.0
    %7672 = vmatprep.subr.mxu0 0.0
    %7673 = vmatpush1.msra.mxu0 0.0
    %7674 = vmatprep.subr.mxu0 0.0
    %7675 = vmatpush1.msra.mxu0 0.0
    %7676 = vmatprep.subr.mxu0 0.0
    %7677 = vmatpush1.msra.mxu0 0.0
    %7678 = vmatprep.subr.mxu0 0.0
    %7679 = vmatpush1.msra.mxu0 0.0
    %7680 = vmatprep.subr.mxu0 0.0
    %7681 = vmatpush1.msra.mxu0 0.0
    %7682 = vmatprep.subr.mxu0 %v7644
    %7683 = vmatpush1.msra.mxu0 %v7641
    %7684 = vmatprep.subr.mxu0 0.0
    %7685 = vmatpush2.msra.mxu0 0.0
    %7686 = vmatprep.subr.mxu0 0.0
    %7687 = vmatpush2.msra.mxu0 0.0
    %7688 = vmatprep.subr.mxu0 0.0
    %7689 = vmatpush2.msra.mxu0 0.0
    %7690 = vmatprep.subr.mxu0 0.0
    %7691 = vmatpush2.msra.mxu0 0.0
    %7692 = vmatprep.subr.mxu0 0.0
    %7693 = vmatpush2.msra.mxu0 0.0
    %7694 = vmatprep.subr.mxu0 0.0
    %7695 = vmatpush2.msra.mxu0 0.0
    %7696 = vmatprep.subr.mxu0 0.0
    %7697 = vmatpush2.msra.mxu0 0.0
    %7698 = vmatprep.subr.mxu0 0.0
    %7699 = vmatpush2.msra.mxu0 0.0
    %7700 = vmatprep.subr.mxu0 0.0
    %7701 = vmatpush2.msra.mxu0 0.0
    %7702 = vmatprep.subr.mxu0 0.0
    %7703 = vmatpush2.msra.mxu0 0.0
    %7704 = vmatprep.subr.mxu0 0.0
    %7705 = vmatpush2.msra.mxu0 0.0
    %7706 = vmatprep.subr.mxu0 0.0
    %7707 = vmatpush2.msra.mxu0 0.0
    %7708 = vmatprep.subr.mxu0 0.0
    %7709 = vmatpush2.msra.mxu0 0.0
    %7710 = vmatprep.subr.mxu0 0.0
    %7711 = vmatpush2.msra.mxu0 0.0
    %7712 = vmatprep.subr.mxu0 0.0
    %7713 = vmatpush2.msra.mxu0 0.0
    %7714 = vmatprep.subr.mxu0 0.0
    %7715 = vmatpush2.msra.mxu0 0.0
    %7716 = vmatprep.mubr.f32.mxu0 0.0
    %7717 = vmatmul.mubr.f32.gmra.mxu0 %v2765
    %v7718 = vpop.f32.mrf.mxu0
    %v7719 = vadd.f32 0.0, %v7718
    %v7720 = vpop.f32.mrf.mxu0
    %v7721 = vadd.f32 0.0, %v7720
    %7722 = vmatprep.mubr.f32.mxu0 0.0
    %7723 = vmatmul.mubr.f32.gmra.mxu0 %v2768
    %v7724 = vpop.f32.mrf.mxu0
    %v7725 = vadd.f32 0.0, %v7724
    %v7726 = vpop.f32.mrf.mxu0
    %v7727 = vadd.f32 0.0, %v7726
    %7728 = vdwg.mxu0
    %7729 = vmatprep.subr.mxu0 0.0
    %7730 = vmatpush1.msra.mxu0 0.0
    %7731 = vmatprep.subr.mxu0 0.0
    %7732 = vmatpush1.msra.mxu0 0.0
    %7733 = vmatprep.subr.mxu0 0.0
    %7734 = vmatpush1.msra.mxu0 0.0
    %7735 = vmatprep.subr.mxu0 0.0
    %7736 = vmatpush1.msra.mxu0 0.0
    %7737 = vmatprep.subr.mxu0 0.0
    %7738 = vmatpush1.msra.mxu0 0.0
    %7739 = vmatprep.subr.mxu0 0.0
    %7740 = vmatpush1.msra.mxu0 0.0
    %7741 = vmatprep.subr.mxu0 0.0
    %7742 = vmatpush1.msra.mxu0 0.0
    %7743 = vmatprep.subr.mxu0 0.0
    %7744 = vmatpush1.msra.mxu0 0.0
    %7745 = vmatprep.subr.mxu0 0.0
    %7746 = vmatpush1.msra.mxu0 0.0
    %7747 = vmatprep.subr.mxu0 0.0
    %7748 = vmatpush1.msra.mxu0 0.0
    %7749 = vmatprep.subr.mxu0 0.0
    %7750 = vmatpush1.msra.mxu0 0.0
    %7751 = vmatprep.subr.mxu0 0.0
    %7752 = vmatpush1.msra.mxu0 0.0
    %7753 = vmatprep.subr.mxu0 0.0
    %7754 = vmatpush1.msra.mxu0 0.0
    %7755 = vmatprep.subr.mxu0 0.0
    %7756 = vmatpush1.msra.mxu0 0.0
    %7757 = vmatprep.subr.mxu0 0.0
    %7758 = vmatpush1.msra.mxu0 0.0
    %7759 = vmatprep.subr.mxu0 %v7650
    %7760 = vmatpush1.msra.mxu0 %v7647
    %7761 = vmatprep.subr.mxu0 0.0
    %7762 = vmatpush2.msra.mxu0 0.0
    %7763 = vmatprep.subr.mxu0 0.0
    %7764 = vmatpush2.msra.mxu0 0.0
    %7765 = vmatprep.subr.mxu0 0.0
    %7766 = vmatpush2.msra.mxu0 0.0
    %7767 = vmatprep.subr.mxu0 0.0
    %7768 = vmatpush2.msra.mxu0 0.0
    %7769 = vmatprep.subr.mxu0 0.0
    %7770 = vmatpush2.msra.mxu0 0.0
    %7771 = vmatprep.subr.mxu0 0.0
    %7772 = vmatpush2.msra.mxu0 0.0
    %7773 = vmatprep.subr.mxu0 0.0
    %7774 = vmatpush2.msra.mxu0 0.0
    %7775 = vmatprep.subr.mxu0 0.0
    %7776 = vmatpush2.msra.mxu0 0.0
    %7777 = vmatprep.subr.mxu0 0.0
    %7778 = vmatpush2.msra.mxu0 0.0
    %7779 = vmatprep.subr.mxu0 0.0
    %7780 = vmatpush2.msra.mxu0 0.0
    %7781 = vmatprep.subr.mxu0 0.0
    %7782 = vmatpush2.msra.mxu0 0.0
    %7783 = vmatprep.subr.mxu0 0.0
    %7784 = vmatpush2.msra.mxu0 0.0
    %7785 = vmatprep.subr.mxu0 0.0
    %7786 = vmatpush2.msra.mxu0 0.0
    %7787 = vmatprep.subr.mxu0 0.0
    %7788 = vmatpush2.msra.mxu0 0.0
    %7789 = vmatprep.subr.mxu0 0.0
    %7790 = vmatpush2.msra.mxu0 0.0
    %7791 = vmatprep.subr.mxu0 0.0
    %7792 = vmatpush2.msra.mxu0 0.0
    %7793 = vmatprep.mubr.f32.mxu0 0.0
    %7794 = vmatmul.mubr.f32.gmra.mxu0 %v2765
    %v7795 = vpop.f32.mrf.mxu0
    %v7796 = vadd.f32 0.0, %v7795
    %v7797 = vpop.f32.mrf.mxu0
    %v7798 = vadd.f32 0.0, %v7797
    %7799 = vmatprep.mubr.f32.mxu0 0.0
    %7800 = vmatmul.mubr.f32.gmra.mxu0 %v2768
    %v7801 = vpop.f32.mrf.mxu0
    %v7802 = vadd.f32 0.0, %v7801
    %v7803 = vpop.f32.mrf.mxu0
    %v7804 = vadd.f32 0.0, %v7803
    %7805 = vdwg.mxu0
    %v7806 = vsub.f32 %v6528, %v7408
    %v7807 = vsub.f32 %v6529, %v7410
    %v7808 = vsub.f32 %v6530, %v7485
    %v7809 = vsub.f32 %v6531, %v7487
    %v7810 = vsub.f32 %v6532, %v7414
    %v7811 = vsub.f32 %v6533, %v7416
    %v7812 = vsub.f32 %v6534, %v7491
    %v7813 = vsub.f32 %v6535, %v7493
    %v7814 = vmul.f32 %v7806, %v7719
    %v7815 = vmul.f32 %v7807, %v7721
    %v7816 = vmul.f32 %v7808, %v7796
    %v7817 = vmul.f32 %v7809, %v7798
    %v7818 = vmul.f32 %v7810, %v7725
    %v7819 = vmul.f32 %v7811, %v7727
    %v7820 = vmul.f32 %v7812, %v7802
    %v7821 = vmul.f32 %v7813, %v7804
    %v7823 = vlaneseq
    %v7824 = vshrl.u32 %v7823, 7
    %v7825 = vsub.s32 0, %v7824
    %v7826 = vrot.slane %v6604, %v7825
    %v7827 = vlaneseq
    %v7828 = vshrl.u32 %v7827, 7
    %v7829 = vsub.s32 1, %v7828
    %v7830 = vrot.slane %v6604, %v7829
    %v7831 = vlaneseq
    %v7832 = vshrl.u32 %v7831, 7
    %v7833 = vsub.s32 2, %v7832
    %v7834 = vrot.slane %v6604, %v7833
    %v7835 = vlaneseq
    %v7836 = vshrl.u32 %v7835, 7
    %v7837 = vsub.s32 3, %v7836
    %v7838 = vrot.slane %v6604, %v7837
    %v7843 = vmul.f32 %v7814, %v7826
    %v7844 = vmul.f32 %v7815, %v7830
    %v7845 = vmul.f32 %v7816, %v7834
    %v7846 = vmul.f32 %v7817, %v7838
    %v7847 = vmul.f32 %v7818, %v7826
    %v7848 = vmul.f32 %v7819, %v7830
    %v7849 = vmul.f32 %v7820, %v7834
    %v7850 = vmul.f32 %v7821, %v7838
    %v7852 = vlaneseq
    %v7853 = vshrl.u32 %v7852, 7
    %v7854 = vsub.s32 0, %v7853
    %v7855 = vrot.slane %v6605, %v7854
    %v7856 = vlaneseq
    %v7857 = vshrl.u32 %v7856, 7
    %v7858 = vsub.s32 1, %v7857
    %v7859 = vrot.slane %v6605, %v7858
    %v7860 = vlaneseq
    %v7861 = vshrl.u32 %v7860, 7
    %v7862 = vsub.s32 2, %v7861
    %v7863 = vrot.slane %v6605, %v7862
    %v7864 = vlaneseq
    %v7865 = vshrl.u32 %v7864, 7
    %v7866 = vsub.s32 3, %v7865
    %v7867 = vrot.slane %v6605, %v7866
    %v7872 = vadd.f32 %v7843, %v7855
    %v7873 = vadd.f32 %v7844, %v7859
    %v7874 = vadd.f32 %v7845, %v7863
    %v7875 = vadd.f32 %v7846, %v7867
    %v7876 = vadd.f32 %v7847, %v7855
    %v7877 = vadd.f32 %v7848, %v7859
    %v7878 = vadd.f32 %v7849, %v7863
    %v7879 = vadd.f32 %v7850, %v7867
    %7880 = vst [vmem:[%s15] sm:$0xff] %v7872
    %7881 = vst [vmem:[%s15 + $0x8] sm:$0xff] %v7873
    %7882 = vst [vmem:[%s15 + $0x10] sm:$0xff] %v7874
    %7883 = vst [vmem:[%s15 + $0x18] sm:$0xff] %v7875
    %7884 = vst [vmem:[%s15 + $0x20] sm:$0xff] %v7876
    %7885 = vst [vmem:[%s15 + $0x28] sm:$0xff] %v7877
    %7886 = vst [vmem:[%s15 + $0x30] sm:$0xff] %v7878
    %7887 = vst [vmem:[%s15 + $0x38] sm:$0xff] %v7879
    // Predicated region
    $region114: #{apply.1} parent=1 // pred_check
      _
    $region115: #{apply.1} parent=1 // pred_check_branch
      %7889 = sbr.rel (0) target = $region117
    $region116: #{apply.1} parent=1 // pred_region
      _
    $region117: #{apply.1} parent=1 // pred_fallthru
      _
    // Predicated region
    $region118: #{apply.1} parent=1 // pred_check
      _
    $region119: #{apply.1} parent=1 // pred_check_branch
      %7891 = sbr.rel (0) target = $region121
    $region120: #{apply.1} parent=1 // pred_region
      _
    $region121: #{apply.1} parent=1 // pred_fallthru
      _
    %7892 = vsyncpa [#allocation3], 1
    %7893 = vsyncpa [#allocation5], 1
    %7894 = vsyncpa [#allocation8], 1
    %7895 = vsyncpa [#allocation11], 1
    %7896 = vsyncpa [#allocation14], 1
    %7897 = vsyncpa [#allocation17], 1
    %7898 = vsyncpa [#allocation20], 1

</llo_original>
